<compile_context>
chip_gen: v6e
topology: v6e:2x2x1
jax: 0.10.0
libtpu: 0.0.40
codegen_flags: <defaults>
</compile_context>

<pallas_src>
import functools

import jax
import jax.numpy as jnp
from jax.experimental import pallas as pl
from jax.experimental.pallas import tpu as pltpu

LANE = 128
EPS = 1e-5


def _round_up(x, m):
    return ((x + m - 1) // m) * m


# ---------------------------------------------------------------------------
# Pass 1: 3x3 conv (zero padding=1) + per-image BN statistics
# ---------------------------------------------------------------------------
def conv_stats_kernel(x_ref, w_ref, z_ref, stats_ref, *scratch, H, W, Wp, halo_out):
    """One image per grid step.

    x_ref:     (1, H+2, Wp, Cin)  bf16, spatially halo'd (zero ring / zero W-pad)
    w_ref:     (9, K, Cp)         bf16 3x3 weights, tap index t = dy*3 + dx
    z_ref:     (1, H+2, Wp, Cp)   f32 pre-BN conv output, halo'd layout   (halo_out)
               (1, H,   Wp, Cp)   f32 pre-BN conv output, valid cols [0,W) (last layer)
    stats_ref: (1, 2, Cp)         per-image [sum; sum of squares] per channel
    scratch:   optional (H+2, Wp, K) bf16 staging buffer (only when Cin < K):
               zero-extends the tiny real Cin to the padded contraction dim.
    """
    Cin = x_ref.shape[-1]
    Cp = z_ref.shape[-1]
    K = w_ref.shape[1]
    M = H * Wp
    lo = 1 if halo_out else 0          # column offset of the valid output window

    if scratch:                        # layer 0: zero-extend Cin -> K in VMEM once
        xk_ref, = scratch
        xk_ref[...] = jnp.zeros(xk_ref.shape, xk_ref.dtype)
        xk_ref[:, :, 0:Cin] = x_ref[0]

        def row_slice(dy):
            return xk_ref[dy:dy + H, :, :]
    else:

        def row_slice(dy):
            return x_ref[0, dy:dy + H, :, :]

    # 9 taps as 9 MXU matmuls; dy via cheap leading-dim slices, dx via one XLU
    # roll of each dx-group's f32 partial sum.  Accumulation stays in local
    # values (no scratch-ref round trips).
    acc = None
    for dx in range(3):
        part = None
        for dy in range(3):
            xr = row_slice(dy).reshape(M, K)                 # bf16, free reshape
            t = jnp.dot(xr, w_ref[3 * dy + dx],
                        preferred_element_type=jnp.float32)  # (M, Cp) f32
            part = t if part is None else part + t
        shift = (lo - dx) % M
        rolled = part if shift == 0 else pltpu.roll(part, shift=shift, axis=0)
        acc = rolled if acc is None else acc + rolled

    # Mask the garbage columns (roll wrap / W padding) and emit statistics.
    z3 = acc.reshape(H, Wp, Cp)
    col = jax.lax.broadcasted_iota(jnp.int32, (H, Wp, Cp), 1)
    z3 = jnp.where((col >= lo) & (col < lo + W), z3, 0.0)
    stats_ref[0, 0:1, :] = jnp.sum(z3, axis=(0, 1), keepdims=True).reshape(1, Cp)
    stats_ref[0, 1:2, :] = jnp.sum(z3 * z3, axis=(0, 1), keepdims=True).reshape(1, Cp)

    if halo_out:
        zero_row = jnp.zeros((1, Wp, Cp), z_ref.dtype)
        z_ref[0, 0:1, :, :] = zero_row
        z_ref[0, 1:H + 1, :, :] = z3.astype(z_ref.dtype)
        z_ref[0, H + 1:H + 2, :, :] = zero_row
    else:
        z_ref[0] = z3.astype(z_ref.dtype)


# ---------------------------------------------------------------------------
# Pass 2 (non-last layer): BN affine + ReLU, written in the halo'd layout
# ---------------------------------------------------------------------------
def bn_relu_halo_kernel(z_ref, ss_ref, y_ref, *, H, W):
    """y = relu(z*scale + shift) on the interior; halo ring / W-pad forced to 0.

    z_ref: (1, H+2, Wp, C) f32;  ss_ref: (2, C) [scale; shift];  y_ref: bf16 same shape.
    relu(0*scale + shift) != 0, so the ring is masked positionally, not padded.
    """
    Hh, Wp, C = z_ref.shape[1], z_ref.shape[2], z_ref.shape[3]
    z = z_ref[0]
    y = jnp.maximum(z * ss_ref[0:1, :] + ss_ref[1:2, :], 0.0)
    row = jax.lax.broadcasted_iota(jnp.int32, (Hh, Wp, C), 0)
    col = jax.lax.broadcasted_iota(jnp.int32, (Hh, Wp, C), 1)
    interior = (row >= 1) & (row <= H) & (col >= 1) & (col <= W)
    y_ref[0] = jnp.where(interior, y, 0.0).astype(y_ref.dtype)


# ---------------------------------------------------------------------------
# Pass 2 (last layer): BN affine + ReLU + fused 2x2/stride-2 max pool
# ---------------------------------------------------------------------------
def bn_relu_pool_kernel(z_ref, ss_ref, y_ref, *, Hp, Wpairs, C):
    """W-pairs were folded into the lane dim by an XLA reshape, so:

    z_ref:  (1, 2*Hp, Wpairs, 2*C)  channel c of the odd column lives at lane C+c
    ss_ref: (2, 2*C)                [scale; shift] duplicated across the two halves
    y_ref:  (1, Hp, Wpairs, C)      valid at [:, :, :W//2, :Cout]
    """
    z = z_ref[0]
    y = jnp.maximum(z * ss_ref[0:1, :] + ss_ref[1:2, :], 0.0)   # (2Hp, Wpairs, 2C)
    y = y.reshape(Hp, 2, Wpairs, 2 * C)                          # split leading dim only
    y = jnp.maximum(y[:, 0], y[:, 1])                            # pool over H
    y = jnp.maximum(y[:, :, :C], y[:, :, C:])                    # pool over W (lane-aligned)
    y_ref[0] = y.astype(y_ref.dtype)


# ---------------------------------------------------------------------------
# Per-layer wrapper: Conv3x3(pad=1) + training-mode BN + ReLU [+ fused maxpool]
# ---------------------------------------------------------------------------
def conv_bn_relu_layer(x_halo, w, gamma, beta, *, H, W, Wp, last):
    """x_halo: (N, H+2, Wp, Cin_eff) bf16 with zero ring.  w: (3,3,Cin,Cout) f32.

    Returns the next layer's halo'd bf16 activation, or (last=True) the pooled
    (N, H//2, Wp//2, Cp) f32 output, valid at [:, :, :W//2, :Cout]."""
    N, _, _, Cin_eff = x_halo.shape
    Cin, Cout = w.shape[2], w.shape[3]
    Cp = _round_up(Cout, LANE)
    K = Cin_eff if Cin_eff >= LANE else LANE      # in-kernel contraction dim

    # Parameters: zero-pad channels (mathematically inert), weights to bf16.
    w9 = jnp.pad(w, ((0, 0), (0, 0), (0, K - Cin), (0, Cp - Cout)))
    w9 = w9.reshape(9, K, Cp).astype(jnp.bfloat16)
    gamma_p = jnp.pad(gamma, (0, Cp - Cout))
    beta_p = jnp.pad(beta, (0, Cp - Cout))

    halo_out = not last
    z_rows = H + 2 if halo_out else H
    z_shape = (N, z_rows, Wp, Cp)

    flops = 2 * N * H * W * 9 * Cin * Cout        # real channels, not padded
    bytes_accessed = int(x_halo.size * 2 + w9.size * 2
                         + N * z_rows * Wp * Cp * 4 + N * 2 * Cp * 4)

    scratch_shapes = ([pltpu.VMEM((H + 2, Wp, K), jnp.bfloat16)]
                      if Cin_eff < LANE else [])

    # ---- pass 1: conv (9 in-kernel taps) + per-image channel sum / sumsq ----
    z, stats = pl.pallas_call(
        functools.partial(conv_stats_kernel, H=H, W=W, Wp=Wp, halo_out=halo_out),
        out_shape=(jax.ShapeDtypeStruct(z_shape, jnp.float32),
                   jax.ShapeDtypeStruct((N, 2, Cp), jnp.float32)),
        grid=(N,),
        in_specs=[
            pl.BlockSpec((1, H + 2, Wp, Cin_eff), lambda n: (n, 0, 0, 0)),
            pl.BlockSpec((9, K, Cp), lambda n: (0, 0, 0)),       # resident
        ],
        out_specs=(
            pl.BlockSpec((1, z_rows, Wp, Cp), lambda n: (n, 0, 0, 0)),
            pl.BlockSpec((1, 2, Cp), lambda n: (n, 0, 0)),
        ),
        scratch_shapes=scratch_shapes,
        compiler_params=pltpu.CompilerParams(
            dimension_semantics=("parallel",),
            vmem_limit_bytes=64 * 1024 * 1024),
        cost_estimate=pl.CostEstimate(flops=flops, transcendentals=0,
                                      bytes_accessed=bytes_accessed),
    )(x_halo, w9)

    # ---- tiny O(Cout) reduction + affine folding (XLA, negligible) ----------
    cnt = N * H * W
    tot = jnp.sum(stats, axis=0)                        # (2, Cp)
    mean = tot[0] / cnt
    var = jnp.maximum(tot[1] / cnt - mean * mean, 0.0)  # biased var (torch train BN)
    scale = gamma_p * jax.lax.rsqrt(var + EPS)
    shift = beta_p - mean * scale
    # (Conv bias omitted in-kernel: exactly cancelled by the train-mode BN mean.)

    if halo_out:
        # ---- pass 2: normalize + ReLU, written halo'd for the next layer ----
        ss = jnp.stack([scale, shift], axis=0)          # (2, Cp)
        return pl.pallas_call(
            functools.partial(bn_relu_halo_kernel, H=H, W=W),
            out_shape=jax.ShapeDtypeStruct((N, H + 2, Wp, Cp), jnp.bfloat16),
            grid=(N,),
            in_specs=[
                pl.BlockSpec((1, H + 2, Wp, Cp), lambda n: (n, 0, 0, 0)),
                pl.BlockSpec((2, Cp), lambda n: (0, 0)),          # resident
            ],
            out_specs=pl.BlockSpec((1, H + 2, Wp, Cp), lambda n: (n, 0, 0, 0)),
            compiler_params=pltpu.CompilerParams(
                dimension_semantics=("parallel",)),
        )(z, ss)

    # ---- pass 2 + fused 2x2/stride-2 max pool (last conv layer) -------------
    assert H % 2 == 0 and W % 2 == 0
    Hp, Wpairs = H // 2, Wp // 2
    z_folded = z.reshape(N, H, Wpairs, 2 * Cp)          # contiguous W-pair -> lane fold
    ss2 = jnp.stack([jnp.concatenate([scale, scale]),
                     jnp.concatenate([shift, shift])], axis=0)    # (2, 2*Cp)
    return pl.pallas_call(
        functools.partial(bn_relu_pool_kernel, Hp=Hp, Wpairs=Wpairs, C=Cp),
        out_shape=jax.ShapeDtypeStruct((N, Hp, Wpairs, Cp), jnp.float32),
        grid=(N,),
        in_specs=[
            pl.BlockSpec((1, H, Wpairs, 2 * Cp), lambda n: (n, 0, 0, 0)),
            pl.BlockSpec((2, 2 * Cp), lambda n: (0, 0)),          # resident
        ],
        out_specs=pl.BlockSpec((1, Hp, Wpairs, Cp), lambda n: (n, 0, 0, 0)),
        compiler_params=pltpu.CompilerParams(dimension_semantics=("parallel",)),
    )(z_folded, ss2)


# ---------------------------------------------------------------------------
# Full VGGBlock forward
# ---------------------------------------------------------------------------
@jax.jit
def vgg_block_forward(x_nchw, params):
    """params: list of (w(3,3,Cin,Cout), b(Cout), gamma(Cout), beta(Cout))."""
    x = jnp.transpose(x_nchw, (0, 2, 3, 1))             # NCHW -> NHWC
    N, H, W, Cin = x.shape
    Cout = params[-1][0].shape[-1]
    # Halo'd width padded to a multiple of 16 so in-kernel (H,Wp,C)<->(H*Wp,C)
    # reshapes are layout-preserving for both bf16 and f32.
    Wp = _round_up(W + 2, 16)

    # Layer-0 activation: spatial halo (zero ring + zero W-pad), bf16, REAL Cin
    # (full-dim last block dim, so the tiny input is never 128-lane padded in HBM).
    x = jnp.pad(x, ((0, 0), (1, 1), (1, Wp - W - 1), (0, 0))).astype(jnp.bfloat16)

    n_layers = len(params)
    for li, (w, b, gamma, beta) in enumerate(params):
        # b unused: exactly cancelled by training-mode BN mean subtraction.
        x = conv_bn_relu_layer(x, w, gamma, beta, H=H, W=W, Wp=Wp,
                               last=(li == n_layers - 1))

    x = x[:, :, :W // 2, :Cout]                          # drop W-pair / channel padding
    return jnp.transpose(x, (0, 3, 1, 2))                # NHWC -> NCHW


# ---------------------------------------------------------------------------
# Pure-JAX reference (bias-including, matches nn.Sequential semantics)
# ---------------------------------------------------------------------------
def vgg_block_reference(x_nchw, params):
    x = jnp.transpose(x_nchw, (0, 2, 3, 1))
    for (w, b, gamma, beta) in params:
        z = jax.lax.conv_general_dilated(
            x, w, window_strides=(1, 1), padding=((1, 1), (1, 1)),
            dimension_numbers=("NHWC", "HWIO", "NHWC"),
            precision=jax.lax.Precision.HIGHEST) + b
        mean = jnp.mean(z, axis=(0, 1, 2))
        var = jnp.mean((z - mean) ** 2, axis=(0, 1, 2))
        x = jnp.maximum(gamma * (z - mean) * jax.lax.rsqrt(var + EPS) + beta, 0.0)
    N, H, W, C = x.shape
    x = x.reshape(N, H // 2, 2, W // 2, 2, C).max(axis=(2, 4))
    return jnp.transpose(x, (0, 3, 1, 2))


def init_vgg_block_params(key, in_channels, out_channels, num_conv_layers):
    """Deterministic synthetic parameters (shapes match nn.Conv2d / nn.BatchNorm2d)."""
    params = []
    cin = in_channels
    for _ in range(num_conv_layers):
        key, kw, kb, kg, kbe = jax.random.split(key, 5)
        w = 0.1 * jax.random.normal(kw, (3, 3, cin, out_channels), jnp.float32)
        b = 0.1 * jax.random.normal(kb, (out_channels,), jnp.float32)
        gamma = 1.0 + 0.1 * jax.random.normal(kg, (out_channels,), jnp.float32)
        beta = 0.1 * jax.random.normal(kbe, (out_channels,), jnp.float32)
        params.append((w, b, gamma, beta))
        cin = out_channels
    return params


if __name__ == "__main__":
    key = jax.random.PRNGKey(0)
    k_x, k_p = jax.random.split(key)

    N, Cin, H, W = 2, 4, 16, 16
    Cout, num_conv_layers = 8, 2

    x = jax.random.normal(k_x, (N, Cin, H, W), jnp.float32)
    params = init_vgg_block_params(k_p, Cin, Cout, num_conv_layers)

    out = jax.block_until_ready(vgg_block_forward(x, params))
    assert out.shape == (N, Cout, H // 2, W // 2), out.shape
    assert bool(jnp.all(jnp.isfinite(out)))

    ref = jax.block_until_ready(vgg_block_reference(x, params))
    max_err = float(jnp.max(jnp.abs(out - ref)))
    assert max_err < 5e-2, f"max abs err vs reference: {max_err}"

    print("KERNEL_OK")
</pallas_src>

<mosaic_0001>
module attributes {stable_mosaic.version = 11 : i64} {
  func.func @conv_stats_kernel(%arg0: i32, %arg1: memref<1x18x32x4xbf16, #tpu.memory_space<vmem>>, %arg2: memref<9x128x128xbf16, #tpu.memory_space<vmem>>, %arg3: memref<1x18x32x128xf32, #tpu.memory_space<vmem>>, %arg4: memref<1x2x128xf32, #tpu.memory_space<vmem>>, %arg5: memref<18x32x128xbf16, #tpu.memory_space<vmem>>) attributes {dimension_semantics = [#tpu.dimension_semantics<parallel>], iteration_bounds = array<i64: 2>, scalar_prefetch = 0 : i64, scratch_operands = 1 : i64, tpu.core_type = #tpu.core_type<tc>, window_params = [{transform_indices = @transform_0, window_bounds = array<i64: 1, 18, 32, 4>}, {pipeline_mode = #tpu.pipeline_mode<synchronous>, transform_indices = @transform_1, window_bounds = array<i64: 9, 128, 128>}, {transform_indices = @transform_2, window_bounds = array<i64: 1, 18, 32, 128>}, {transform_indices = @transform_3, window_bounds = array<i64: 1, 2, 128>}]} {
    %cst = arith.constant 0.000000e+00 : bf16
    %0 = vector.broadcast %cst : bf16 to vector<18x32x128xbf16>
    %c0 = arith.constant 0 : index
    %c0_0 = arith.constant 0 : index
    %c0_1 = arith.constant 0 : index
    %1 = vector.load %arg5[%c0, %c0_0, %c0_1] : memref<18x32x128xbf16, #tpu.memory_space<vmem>>, vector<18x32x128xbf16>
    tpu.vector_store %arg5[%c0, %c0_0, %c0_1], %0 {strides = array<i32>} : memref<18x32x128xbf16, #tpu.memory_space<vmem>>, vector<18x32x128xbf16>,
    %c0_2 = arith.constant 0 : index
    %c0_3 = arith.constant 0 : index
    %c0_4 = arith.constant 0 : index
    %c0_5 = arith.constant 0 : index
    %2 = vector.load %arg1[%c0_2, %c0_3, %c0_4, %c0_5] : memref<1x18x32x4xbf16, #tpu.memory_space<vmem>>, vector<1x18x32x4xbf16>
    %3 = vector.shape_cast %2 : vector<1x18x32x4xbf16> to vector<18x32x4xbf16>
    %c0_6 = arith.constant 0 : index
    %c0_7 = arith.constant 0 : index
    %c0_8 = arith.constant 0 : index
    %4 = vector.load %arg5[%c0_6, %c0_7, %c0_8] : memref<18x32x128xbf16, #tpu.memory_space<vmem>>, vector<18x32x4xbf16>
    tpu.vector_store %arg5[%c0_6, %c0_7, %c0_8], %3 {strides = array<i32>} : memref<18x32x128xbf16, #tpu.memory_space<vmem>>, vector<18x32x4xbf16>,
    %c0_9 = arith.constant 0 : index
    %c0_10 = arith.constant 0 : index
    %c0_11 = arith.constant 0 : index
    %5 = vector.load %arg5[%c0_9, %c0_10, %c0_11] : memref<18x32x128xbf16, #tpu.memory_space<vmem>>, vector<16x32x128xbf16>
    %6 = vector.shape_cast %5 : vector<16x32x128xbf16> to vector<512x128xbf16>
    %c0_12 = arith.constant 0 : index
    %c0_13 = arith.constant 0 : index
    %c0_14 = arith.constant 0 : index
    %7 = vector.load %arg2[%c0_12, %c0_13, %c0_14] : memref<9x128x128xbf16, #tpu.memory_space<vmem>>, vector<1x128x128xbf16>
    %8 = vector.shape_cast %7 : vector<1x128x128xbf16> to vector<128x128xbf16>
    %cst_15 = arith.constant dense<0.000000e+00> : vector<512x128xf32>
    %9 = tpu.matmul %6, %8, %cst_15 {dimension_numbers = #tpu.dot_dimension_numbers<[1], [0], [0], [1], [0, 0, 1, 1], [], []>} : vector<512x128xbf16>, vector<128x128xbf16>, vector<512x128xf32> -> vector<512x128xf32>
    %c1 = arith.constant 1 : index
    %c0_16 = arith.constant 0 : index
    %c0_17 = arith.constant 0 : index
    %10 = vector.load %arg5[%c1, %c0_16, %c0_17] : memref<18x32x128xbf16, #tpu.memory_space<vmem>>, vector<16x32x128xbf16>
    %11 = vector.shape_cast %10 : vector<16x32x128xbf16> to vector<512x128xbf16>
    %c3 = arith.constant 3 : index
    %c0_18 = arith.constant 0 : index
    %c0_19 = arith.constant 0 : index
    %12 = vector.load %arg2[%c3, %c0_18, %c0_19] : memref<9x128x128xbf16, #tpu.memory_space<vmem>>, vector<1x128x128xbf16>
    %13 = vector.shape_cast %12 : vector<1x128x128xbf16> to vector<128x128xbf16>
    %cst_20 = arith.constant dense<0.000000e+00> : vector<512x128xf32>
    %14 = tpu.matmul %11, %13, %cst_20 {dimension_numbers = #tpu.dot_dimension_numbers<[1], [0], [0], [1], [0, 0, 1, 1], [], []>} : vector<512x128xbf16>, vector<128x128xbf16>, vector<512x128xf32> -> vector<512x128xf32>
    %15 = arith.addf %9, %14 : vector<512x128xf32>
    %c2 = arith.constant 2 : index
    %c0_21 = arith.constant 0 : index
    %c0_22 = arith.constant 0 : index
    %16 = vector.load %arg5[%c2, %c0_21, %c0_22] : memref<18x32x128xbf16, #tpu.memory_space<vmem>>, vector<16x32x128xbf16>
    %17 = vector.shape_cast %16 : vector<16x32x128xbf16> to vector<512x128xbf16>
    %c6 = arith.constant 6 : index
    %c0_23 = arith.constant 0 : index
    %c0_24 = arith.constant 0 : index
    %18 = vector.load %arg2[%c6, %c0_23, %c0_24] : memref<9x128x128xbf16, #tpu.memory_space<vmem>>, vector<1x128x128xbf16>
    %19 = vector.shape_cast %18 : vector<1x128x128xbf16> to vector<128x128xbf16>
    %cst_25 = arith.constant dense<0.000000e+00> : vector<512x128xf32>
    %20 = tpu.matmul %17, %19, %cst_25 {dimension_numbers = #tpu.dot_dimension_numbers<[1], [0], [0], [1], [0, 0, 1, 1], [], []>} : vector<512x128xbf16>, vector<128x128xbf16>, vector<512x128xf32> -> vector<512x128xf32>
    %21 = arith.addf %15, %20 : vector<512x128xf32>
    %c1_i32 = arith.constant 1 : i32
    %22 = tpu.dynamic_rotate %21 by %c1_i32 dim 0 : vector<512x128xf32>, i32 -> vector<512x128xf32>
    %c0_26 = arith.constant 0 : index
    %c0_27 = arith.constant 0 : index
    %c0_28 = arith.constant 0 : index
    %23 = vector.load %arg5[%c0_26, %c0_27, %c0_28] : memref<18x32x128xbf16, #tpu.memory_space<vmem>>, vector<16x32x128xbf16>
    %24 = vector.shape_cast %23 : vector<16x32x128xbf16> to vector<512x128xbf16>
    %c1_29 = arith.constant 1 : index
    %c0_30 = arith.constant 0 : index
    %c0_31 = arith.constant 0 : index
    %25 = vector.load %arg2[%c1_29, %c0_30, %c0_31] : memref<9x128x128xbf16, #tpu.memory_space<vmem>>, vector<1x128x128xbf16>
    %26 = vector.shape_cast %25 : vector<1x128x128xbf16> to vector<128x128xbf16>
    %cst_32 = arith.constant dense<0.000000e+00> : vector<512x128xf32>
    %27 = tpu.matmul %24, %26, %cst_32 {dimension_numbers = #tpu.dot_dimension_numbers<[1], [0], [0], [1], [0, 0, 1, 1], [], []>} : vector<512x128xbf16>, vector<128x128xbf16>, vector<512x128xf32> -> vector<512x128xf32>
    %c1_33 = arith.constant 1 : index
    %c0_34 = arith.constant 0 : index
    %c0_35 = arith.constant 0 : index
    %28 = vector.load %arg5[%c1_33, %c0_34, %c0_35] : memref<18x32x128xbf16, #tpu.memory_space<vmem>>, vector<16x32x128xbf16>
    %29 = vector.shape_cast %28 : vector<16x32x128xbf16> to vector<512x128xbf16>
    %c4 = arith.constant 4 : index
    %c0_36 = arith.constant 0 : index
    %c0_37 = arith.constant 0 : index
    %30 = vector.load %arg2[%c4, %c0_36, %c0_37] : memref<9x128x128xbf16, #tpu.memory_space<vmem>>, vector<1x128x128xbf16>
    %31 = vector.shape_cast %30 : vector<1x128x128xbf16> to vector<128x128xbf16>
    %cst_38 = arith.constant dense<0.000000e+00> : vector<512x128xf32>
    %32 = tpu.matmul %29, %31, %cst_38 {dimension_numbers = #tpu.dot_dimension_numbers<[1], [0], [0], [1], [0, 0, 1, 1], [], []>} : vector<512x128xbf16>, vector<128x128xbf16>, vector<512x128xf32> -> vector<512x128xf32>
    %33 = arith.addf %27, %32 : vector<512x128xf32>
    %c2_39 = arith.constant 2 : index
    %c0_40 = arith.constant 0 : index
    %c0_41 = arith.constant 0 : index
    %34 = vector.load %arg5[%c2_39, %c0_40, %c0_41] : memref<18x32x128xbf16, #tpu.memory_space<vmem>>, vector<16x32x128xbf16>
    %35 = vector.shape_cast %34 : vector<16x32x128xbf16> to vector<512x128xbf16>
    %c7 = arith.constant 7 : index
    %c0_42 = arith.constant 0 : index
    %c0_43 = arith.constant 0 : index
    %36 = vector.load %arg2[%c7, %c0_42, %c0_43] : memref<9x128x128xbf16, #tpu.memory_space<vmem>>, vector<1x128x128xbf16>
    %37 = vector.shape_cast %36 : vector<1x128x128xbf16> to vector<128x128xbf16>
    %cst_44 = arith.constant dense<0.000000e+00> : vector<512x128xf32>
    %38 = tpu.matmul %35, %37, %cst_44 {dimension_numbers = #tpu.dot_dimension_numbers<[1], [0], [0], [1], [0, 0, 1, 1], [], []>} : vector<512x128xbf16>, vector<128x128xbf16>, vector<512x128xf32> -> vector<512x128xf32>
    %39 = arith.addf %33, %38 : vector<512x128xf32>
    %40 = arith.addf %22, %39 : vector<512x128xf32>
    %c0_45 = arith.constant 0 : index
    %c0_46 = arith.constant 0 : index
    %c0_47 = arith.constant 0 : index
    %41 = vector.load %arg5[%c0_45, %c0_46, %c0_47] : memref<18x32x128xbf16, #tpu.memory_space<vmem>>, vector<16x32x128xbf16>
    %42 = vector.shape_cast %41 : vector<16x32x128xbf16> to vector<512x128xbf16>
    %c2_48 = arith.constant 2 : index
    %c0_49 = arith.constant 0 : index
    %c0_50 = arith.constant 0 : index
    %43 = vector.load %arg2[%c2_48, %c0_49, %c0_50] : memref<9x128x128xbf16, #tpu.memory_space<vmem>>, vector<1x128x128xbf16>
    %44 = vector.shape_cast %43 : vector<1x128x128xbf16> to vector<128x128xbf16>
    %cst_51 = arith.constant dense<0.000000e+00> : vector<512x128xf32>
    %45 = tpu.matmul %42, %44, %cst_51 {dimension_numbers = #tpu.dot_dimension_numbers<[1], [0], [0], [1], [0, 0, 1, 1], [], []>} : vector<512x128xbf16>, vector<128x128xbf16>, vector<512x128xf32> -> vector<512x128xf32>
    %c1_52 = arith.constant 1 : index
    %c0_53 = arith.constant 0 : index
    %c0_54 = arith.constant 0 : index
    %46 = vector.load %arg5[%c1_52, %c0_53, %c0_54] : memref<18x32x128xbf16, #tpu.memory_space<vmem>>, vector<16x32x128xbf16>
    %47 = vector.shape_cast %46 : vector<16x32x128xbf16> to vector<512x128xbf16>
    %c5 = arith.constant 5 : index
    %c0_55 = arith.constant 0 : index
    %c0_56 = arith.constant 0 : index
    %48 = vector.load %arg2[%c5, %c0_55, %c0_56] : memref<9x128x128xbf16, #tpu.memory_space<vmem>>, vector<1x128x128xbf16>
    %49 = vector.shape_cast %48 : vector<1x128x128xbf16> to vector<128x128xbf16>
    %cst_57 = arith.constant dense<0.000000e+00> : vector<512x128xf32>
    %50 = tpu.matmul %47, %49, %cst_57 {dimension_numbers = #tpu.dot_dimension_numbers<[1], [0], [0], [1], [0, 0, 1, 1], [], []>} : vector<512x128xbf16>, vector<128x128xbf16>, vector<512x128xf32> -> vector<512x128xf32>
    %51 = arith.addf %45, %50 : vector<512x128xf32>
    %c2_58 = arith.constant 2 : index
    %c0_59 = arith.constant 0 : index
    %c0_60 = arith.constant 0 : index
    %52 = vector.load %arg5[%c2_58, %c0_59, %c0_60] : memref<18x32x128xbf16, #tpu.memory_space<vmem>>, vector<16x32x128xbf16>
    %53 = vector.shape_cast %52 : vector<16x32x128xbf16> to vector<512x128xbf16>
    %c8 = arith.constant 8 : index
    %c0_61 = arith.constant 0 : index
    %c0_62 = arith.constant 0 : index
    %54 = vector.load %arg2[%c8, %c0_61, %c0_62] : memref<9x128x128xbf16, #tpu.memory_space<vmem>>, vector<1x128x128xbf16>
    %55 = vector.shape_cast %54 : vector<1x128x128xbf16> to vector<128x128xbf16>
    %cst_63 = arith.constant dense<0.000000e+00> : vector<512x128xf32>
    %56 = tpu.matmul %53, %55, %cst_63 {dimension_numbers = #tpu.dot_dimension_numbers<[1], [0], [0], [1], [0, 0, 1, 1], [], []>} : vector<512x128xbf16>, vector<128x128xbf16>, vector<512x128xf32> -> vector<512x128xf32>
    %57 = arith.addf %51, %56 : vector<512x128xf32>
    %c511_i32 = arith.constant 511 : i32
    %58 = tpu.dynamic_rotate %57 by %c511_i32 dim 0 : vector<512x128xf32>, i32 -> vector<512x128xf32>
    %59 = arith.addf %40, %58 : vector<512x128xf32>
    %60 = vector.shape_cast %59 : vector<512x128xf32> to vector<16x32x128xf32>
    %61 = tpu.iota {dimensions = array<i32: 1>} : vector<16x32x128xi32>
    %c1_i32_64 = arith.constant 1 : i32
    %62 = vector.broadcast %c1_i32_64 : i32 to vector<16x32x128xi32>
    %63 = arith.cmpi sge, %61, %62 : vector<16x32x128xi32>
    %c17_i32 = arith.constant 17 : i32
    %64 = vector.broadcast %c17_i32 : i32 to vector<16x32x128xi32>
    %65 = arith.cmpi slt, %61, %64 : vector<16x32x128xi32>
    %66 = arith.andi %63, %65 : vector<16x32x128xi1>
    %cst_65 = arith.constant 0.000000e+00 : f32
    %67 = vector.broadcast %cst_65 : f32 to vector<16x32x128xf32>
    %68 = arith.select %66, %60, %67 : vector<16x32x128xi1>, vector<16x32x128xf32>
    %cst_66 = arith.constant dense<0.000000e+00> : vector<128xf32>
    %69 = vector.multi_reduction <add>, %68, %cst_66 [0, 1] : vector<16x32x128xf32> to vector<128xf32>
    %70 = vector.shape_cast %69 : vector<128xf32> to vector<1x1x128xf32>
    %71 = vector.shape_cast %70 : vector<1x1x128xf32> to vector<1x128xf32>
    %c0_67 = arith.constant 0 : index
    %c0_68 = arith.constant 0 : index
    %c0_69 = arith.constant 0 : index
    %72 = vector.load %arg4[%c0_67, %c0_68, %c0_69] : memref<1x2x128xf32, #tpu.memory_space<vmem>>, vector<1x1x128xf32>
    %73 = vector.shape_cast %72 : vector<1x1x128xf32> to vector<1x128xf32>
    %74 = vector.shape_cast %71 : vector<1x128xf32> to vector<1x1x128xf32>
    tpu.vector_store %arg4[%c0_67, %c0_68, %c0_69], %74 {strides = array<i32>} : memref<1x2x128xf32, #tpu.memory_space<vmem>>, vector<1x1x128xf32>,
    %75 = arith.mulf %68, %68 : vector<16x32x128xf32>
    %cst_70 = arith.constant dense<0.000000e+00> : vector<128xf32>
    %76 = vector.multi_reduction <add>, %75, %cst_70 [0, 1] : vector<16x32x128xf32> to vector<128xf32>
    %77 = vector.shape_cast %76 : vector<128xf32> to vector<1x1x128xf32>
    %78 = vector.shape_cast %77 : vector<1x1x128xf32> to vector<1x128xf32>
    %c0_71 = arith.constant 0 : index
    %c1_72 = arith.constant 1 : index
    %c0_73 = arith.constant 0 : index
    %79 = vector.load %arg4[%c0_71, %c1_72, %c0_73] : memref<1x2x128xf32, #tpu.memory_space<vmem>>, vector<1x1x128xf32>
    %80 = vector.shape_cast %79 : vector<1x1x128xf32> to vector<1x128xf32>
    %81 = vector.shape_cast %78 : vector<1x128xf32> to vector<1x1x128xf32>
    tpu.vector_store %arg4[%c0_71, %c1_72, %c0_73], %81 {strides = array<i32>} : memref<1x2x128xf32, #tpu.memory_space<vmem>>, vector<1x1x128xf32>,
    %cst_74 = arith.constant 0.000000e+00 : f32
    %82 = vector.broadcast %cst_74 : f32 to vector<1x32x128xf32>
    %c0_75 = arith.constant 0 : index
    %c0_76 = arith.constant 0 : index
    %c0_77 = arith.constant 0 : index
    %c0_78 = arith.constant 0 : index
    %83 = vector.load %arg3[%c0_75, %c0_76, %c0_77, %c0_78] : memref<1x18x32x128xf32, #tpu.memory_space<vmem>>, vector<1x1x32x128xf32>
    %84 = vector.shape_cast %83 : vector<1x1x32x128xf32> to vector<1x32x128xf32>
    %85 = vector.shape_cast %82 : vector<1x32x128xf32> to vector<1x1x32x128xf32>
    tpu.vector_store %arg3[%c0_75, %c0_76, %c0_77, %c0_78], %85 {strides = array<i32>} : memref<1x18x32x128xf32, #tpu.memory_space<vmem>>, vector<1x1x32x128xf32>,
    %c0_79 = arith.constant 0 : index
    %c1_80 = arith.constant 1 : index
    %c0_81 = arith.constant 0 : index
    %c0_82 = arith.constant 0 : index
    %86 = vector.load %arg3[%c0_79, %c1_80, %c0_81, %c0_82] : memref<1x18x32x128xf32, #tpu.memory_space<vmem>>, vector<1x16x32x128xf32>
    %87 = vector.shape_cast %86 : vector<1x16x32x128xf32> to vector<16x32x128xf32>
    %88 = vector.shape_cast %68 : vector<16x32x128xf32> to vector<1x16x32x128xf32>
    tpu.vector_store %arg3[%c0_79, %c1_80, %c0_81, %c0_82], %88 {strides = array<i32>} : memref<1x18x32x128xf32, #tpu.memory_space<vmem>>, vector<1x16x32x128xf32>,
    %c0_83 = arith.constant 0 : index
    %c17 = arith.constant 17 : index
    %c0_84 = arith.constant 0 : index
    %c0_85 = arith.constant 0 : index
    %89 = vector.load %arg3[%c0_83, %c17, %c0_84, %c0_85] : memref<1x18x32x128xf32, #tpu.memory_space<vmem>>, vector<1x1x32x128xf32>
    %90 = vector.shape_cast %89 : vector<1x1x32x128xf32> to vector<1x32x128xf32>
    %91 = vector.shape_cast %82 : vector<1x32x128xf32> to vector<1x1x32x128xf32>
    tpu.vector_store %arg3[%c0_83, %c17, %c0_84, %c0_85], %91 {strides = array<i32>} : memref<1x18x32x128xf32, #tpu.memory_space<vmem>>, vector<1x1x32x128xf32>,
    return
  }
  func.func @transform_0(%arg0: i32) -> (i32, i32, i32, i32) {
    %c0_i32 = arith.constant 0 : i32
    %c0_i32_0 = arith.constant 0 : i32
    %c0_i32_1 = arith.constant 0 : i32
    %c0_i32_2 = arith.constant 0 : i32
    return %arg0, %c0_i32, %c0_i32_0, %c0_i32_1 : i32, i32, i32, i32
  }
  func.func @transform_1(%arg0: i32) -> (i32, i32, i32) {
    %c0_i32 = arith.constant 0 : i32
    %c0_i32_0 = arith.constant 0 : i32
    %c0_i32_1 = arith.constant 0 : i32
    %c0_i32_2 = arith.constant 0 : i32
    return %c0_i32, %c0_i32_0, %c0_i32_1 : i32, i32, i32
  }
  func.func @transform_2(%arg0: i32) -> (i32, i32, i32, i32) {
    %c0_i32 = arith.constant 0 : i32
    %c0_i32_0 = arith.constant 0 : i32
    %c0_i32_1 = arith.constant 0 : i32
    %c0_i32_2 = arith.constant 0 : i32
    return %arg0, %c0_i32, %c0_i32_0, %c0_i32_1 : i32, i32, i32, i32
  }
  func.func @transform_3(%arg0: i32) -> (i32, i32, i32) {
    %c0_i32 = arith.constant 0 : i32
    %c0_i32_0 = arith.constant 0 : i32
    %c0_i32_1 = arith.constant 0 : i32
    return %arg0, %c0_i32, %c0_i32_0 : i32, i32, i32
  }
}

module attributes {stable_mosaic.version = 11 : i64} {
  func.func @bn_relu_halo_kernel(%arg0: i32, %arg1: memref<1x18x32x128xf32, #tpu.memory_space<vmem>>, %arg2: memref<2x128xf32, #tpu.memory_space<vmem>>, %arg3: memref<1x18x32x128xbf16, #tpu.memory_space<vmem>>) attributes {dimension_semantics = [#tpu.dimension_semantics<parallel>], iteration_bounds = array<i64: 2>, scalar_prefetch = 0 : i64, scratch_operands = 0 : i64, tpu.core_type = #tpu.core_type<tc>, window_params = [{transform_indices = @transform_0, window_bounds = array<i64: 1, 18, 32, 128>}, {pipeline_mode = #tpu.pipeline_mode<synchronous>, transform_indices = @transform_1, window_bounds = array<i64: 2, 128>}, {transform_indices = @transform_2, window_bounds = array<i64: 1, 18, 32, 128>}]} {
    %c0 = arith.constant 0 : index
    %c0_0 = arith.constant 0 : index
    %c0_1 = arith.constant 0 : index
    %c0_2 = arith.constant 0 : index
    %0 = vector.load %arg1[%c0, %c0_0, %c0_1, %c0_2] : memref<1x18x32x128xf32, #tpu.memory_space<vmem>>, vector<1x18x32x128xf32>
    %1 = vector.shape_cast %0 : vector<1x18x32x128xf32> to vector<18x32x128xf32>
    %c0_3 = arith.constant 0 : index
    %c0_4 = arith.constant 0 : index
    %2 = vector.load %arg2[%c0_3, %c0_4] : memref<2x128xf32, #tpu.memory_space<vmem>>, vector<1x128xf32>
    %3 = vector.shape_cast %2 : vector<1x128xf32> to vector<1x1x128xf32>
    %4 = vector.broadcast %3 : vector<1x1x128xf32> to vector<18x32x128xf32>
    %5 = arith.mulf %1, %4 : vector<18x32x128xf32>
    %c1 = arith.constant 1 : index
    %c0_5 = arith.constant 0 : index
    %6 = vector.load %arg2[%c1, %c0_5] : memref<2x128xf32, #tpu.memory_space<vmem>>, vector<1x128xf32>
    %7 = vector.shape_cast %6 : vector<1x128xf32> to vector<1x1x128xf32>
    %8 = vector.broadcast %7 : vector<1x1x128xf32> to vector<18x32x128xf32>
    %9 = arith.addf %5, %8 : vector<18x32x128xf32>
    %cst = arith.constant 0.000000e+00 : f32
    %10 = vector.broadcast %cst : f32 to vector<18x32x128xf32>
    %11 = arith.maximumf %9, %10 : vector<18x32x128xf32>
    %12 = tpu.iota {dimensions = array<i32: 0>} : vector<18x32x128xi32>
    %13 = tpu.iota {dimensions = array<i32: 1>} : vector<18x32x128xi32>
    %c1_i32 = arith.constant 1 : i32
    %14 = vector.broadcast %c1_i32 : i32 to vector<18x32x128xi32>
    %15 = arith.cmpi sge, %12, %14 : vector<18x32x128xi32>
    %c16_i32 = arith.constant 16 : i32
    %16 = vector.broadcast %c16_i32 : i32 to vector<18x32x128xi32>
    %17 = arith.cmpi sle, %12, %16 : vector<18x32x128xi32>
    %18 = arith.andi %15, %17 : vector<18x32x128xi1>
    %c1_i32_6 = arith.constant 1 : i32
    %19 = vector.broadcast %c1_i32_6 : i32 to vector<18x32x128xi32>
    %20 = arith.cmpi sge, %13, %19 : vector<18x32x128xi32>
    %21 = arith.andi %18, %20 : vector<18x32x128xi1>
    %c16_i32_7 = arith.constant 16 : i32
    %22 = vector.broadcast %c16_i32_7 : i32 to vector<18x32x128xi32>
    %23 = arith.cmpi sle, %13, %22 : vector<18x32x128xi32>
    %24 = arith.andi %21, %23 : vector<18x32x128xi1>
    %cst_8 = arith.constant 0.000000e+00 : f32
    %25 = vector.broadcast %cst_8 : f32 to vector<18x32x128xf32>
    %26 = arith.select %24, %11, %25 : vector<18x32x128xi1>, vector<18x32x128xf32>
    %27 = arith.truncf %26 : vector<18x32x128xf32> to vector<18x32x128xbf16>
    %c0_9 = arith.constant 0 : index
    %c0_10 = arith.constant 0 : index
    %c0_11 = arith.constant 0 : index
    %c0_12 = arith.constant 0 : index
    %28 = vector.load %arg3[%c0_9, %c0_10, %c0_11, %c0_12] : memref<1x18x32x128xbf16, #tpu.memory_space<vmem>>, vector<1x18x32x128xbf16>
    %29 = vector.shape_cast %28 : vector<1x18x32x128xbf16> to vector<18x32x128xbf16>
    %30 = vector.shape_cast %27 : vector<18x32x128xbf16> to vector<1x18x32x128xbf16>
    tpu.vector_store %arg3[%c0_9, %c0_10, %c0_11, %c0_12], %30 {strides = array<i32>} : memref<1x18x32x128xbf16, #tpu.memory_space<vmem>>, vector<1x18x32x128xbf16>,
    return
  }
  func.func @transform_0(%arg0: i32) -> (i32, i32, i32, i32) {
    %c0_i32 = arith.constant 0 : i32
    %c0_i32_0 = arith.constant 0 : i32
    %c0_i32_1 = arith.constant 0 : i32
    %c0_i32_2 = arith.constant 0 : i32
    return %arg0, %c0_i32, %c0_i32_0, %c0_i32_1 : i32, i32, i32, i32
  }
  func.func @transform_1(%arg0: i32) -> (i32, i32) {
    %c0_i32 = arith.constant 0 : i32
    %c0_i32_0 = arith.constant 0 : i32
    %c0_i32_1 = arith.constant 0 : i32
    return %c0_i32, %c0_i32_0 : i32, i32
  }
  func.func @transform_2(%arg0: i32) -> (i32, i32, i32, i32) {
    %c0_i32 = arith.constant 0 : i32
    %c0_i32_0 = arith.constant 0 : i32
    %c0_i32_1 = arith.constant 0 : i32
    %c0_i32_2 = arith.constant 0 : i32
    return %arg0, %c0_i32, %c0_i32_0, %c0_i32_1 : i32, i32, i32, i32
  }
}

module attributes {stable_mosaic.version = 11 : i64} {
  func.func @conv_stats_kernel(%arg0: i32, %arg1: memref<1x18x32x128xbf16, #tpu.memory_space<vmem>>, %arg2: memref<9x128x128xbf16, #tpu.memory_space<vmem>>, %arg3: memref<1x16x32x128xf32, #tpu.memory_space<vmem>>, %arg4: memref<1x2x128xf32, #tpu.memory_space<vmem>>) attributes {dimension_semantics = [#tpu.dimension_semantics<parallel>], iteration_bounds = array<i64: 2>, scalar_prefetch = 0 : i64, scratch_operands = 0 : i64, tpu.core_type = #tpu.core_type<tc>, window_params = [{transform_indices = @transform_0, window_bounds = array<i64: 1, 18, 32, 128>}, {pipeline_mode = #tpu.pipeline_mode<synchronous>, transform_indices = @transform_1, window_bounds = array<i64: 9, 128, 128>}, {transform_indices = @transform_2, window_bounds = array<i64: 1, 16, 32, 128>}, {transform_indices = @transform_3, window_bounds = array<i64: 1, 2, 128>}]} {
    %c0 = arith.constant 0 : index
    %c0_0 = arith.constant 0 : index
    %c0_1 = arith.constant 0 : index
    %c0_2 = arith.constant 0 : index
    %0 = vector.load %arg1[%c0, %c0_0, %c0_1, %c0_2] : memref<1x18x32x128xbf16, #tpu.memory_space<vmem>>, vector<1x16x32x128xbf16>
    %1 = vector.shape_cast %0 : vector<1x16x32x128xbf16> to vector<16x32x128xbf16>
    %2 = vector.shape_cast %1 : vector<16x32x128xbf16> to vector<512x128xbf16>
    %c0_3 = arith.constant 0 : index
    %c0_4 = arith.constant 0 : index
    %c0_5 = arith.constant 0 : index
    %3 = vector.load %arg2[%c0_3, %c0_4, %c0_5] : memref<9x128x128xbf16, #tpu.memory_space<vmem>>, vector<1x128x128xbf16>
    %4 = vector.shape_cast %3 : vector<1x128x128xbf16> to vector<128x128xbf16>
    %cst = arith.constant dense<0.000000e+00> : vector<512x128xf32>
    %5 = tpu.matmul %2, %4, %cst {dimension_numbers = #tpu.dot_dimension_numbers<[1], [0], [0], [1], [0, 0, 1, 1], [], []>} : vector<512x128xbf16>, vector<128x128xbf16>, vector<512x128xf32> -> vector<512x128xf32>
    %c0_6 = arith.constant 0 : index
    %c1 = arith.constant 1 : index
    %c0_7 = arith.constant 0 : index
    %c0_8 = arith.constant 0 : index
    %6 = vector.load %arg1[%c0_6, %c1, %c0_7, %c0_8] : memref<1x18x32x128xbf16, #tpu.memory_space<vmem>>, vector<1x16x32x128xbf16>
    %7 = vector.shape_cast %6 : vector<1x16x32x128xbf16> to vector<16x32x128xbf16>
    %8 = vector.shape_cast %7 : vector<16x32x128xbf16> to vector<512x128xbf16>
    %c3 = arith.constant 3 : index
    %c0_9 = arith.constant 0 : index
    %c0_10 = arith.constant 0 : index
    %9 = vector.load %arg2[%c3, %c0_9, %c0_10] : memref<9x128x128xbf16, #tpu.memory_space<vmem>>, vector<1x128x128xbf16>
    %10 = vector.shape_cast %9 : vector<1x128x128xbf16> to vector<128x128xbf16>
    %cst_11 = arith.constant dense<0.000000e+00> : vector<512x128xf32>
    %11 = tpu.matmul %8, %10, %cst_11 {dimension_numbers = #tpu.dot_dimension_numbers<[1], [0], [0], [1], [0, 0, 1, 1], [], []>} : vector<512x128xbf16>, vector<128x128xbf16>, vector<512x128xf32> -> vector<512x128xf32>
    %12 = arith.addf %5, %11 : vector<512x128xf32>
    %c0_12 = arith.constant 0 : index
    %c2 = arith.constant 2 : index
    %c0_13 = arith.constant 0 : index
    %c0_14 = arith.constant 0 : index
    %13 = vector.load %arg1[%c0_12, %c2, %c0_13, %c0_14] : memref<1x18x32x128xbf16, #tpu.memory_space<vmem>>, vector<1x16x32x128xbf16>
    %14 = vector.shape_cast %13 : vector<1x16x32x128xbf16> to vector<16x32x128xbf16>
    %15 = vector.shape_cast %14 : vector<16x32x128xbf16> to vector<512x128xbf16>
    %c6 = arith.constant 6 : index
    %c0_15 = arith.constant 0 : index
    %c0_16 = arith.constant 0 : index
    %16 = vector.load %arg2[%c6, %c0_15, %c0_16] : memref<9x128x128xbf16, #tpu.memory_space<vmem>>, vector<1x128x128xbf16>
    %17 = vector.shape_cast %16 : vector<1x128x128xbf16> to vector<128x128xbf16>
    %cst_17 = arith.constant dense<0.000000e+00> : vector<512x128xf32>
    %18 = tpu.matmul %15, %17, %cst_17 {dimension_numbers = #tpu.dot_dimension_numbers<[1], [0], [0], [1], [0, 0, 1, 1], [], []>} : vector<512x128xbf16>, vector<128x128xbf16>, vector<512x128xf32> -> vector<512x128xf32>
    %19 = arith.addf %12, %18 : vector<512x128xf32>
    %c0_18 = arith.constant 0 : index
    %c0_19 = arith.constant 0 : index
    %c0_20 = arith.constant 0 : index
    %c0_21 = arith.constant 0 : index
    %20 = vector.load %arg1[%c0_18, %c0_19, %c0_20, %c0_21] : memref<1x18x32x128xbf16, #tpu.memory_space<vmem>>, vector<1x16x32x128xbf16>
    %21 = vector.shape_cast %20 : vector<1x16x32x128xbf16> to vector<16x32x128xbf16>
    %22 = vector.shape_cast %21 : vector<16x32x128xbf16> to vector<512x128xbf16>
    %c1_22 = arith.constant 1 : index
    %c0_23 = arith.constant 0 : index
    %c0_24 = arith.constant 0 : index
    %23 = vector.load %arg2[%c1_22, %c0_23, %c0_24] : memref<9x128x128xbf16, #tpu.memory_space<vmem>>, vector<1x128x128xbf16>
    %24 = vector.shape_cast %23 : vector<1x128x128xbf16> to vector<128x128xbf16>
    %cst_25 = arith.constant dense<0.000000e+00> : vector<512x128xf32>
    %25 = tpu.matmul %22, %24, %cst_25 {dimension_numbers = #tpu.dot_dimension_numbers<[1], [0], [0], [1], [0, 0, 1, 1], [], []>} : vector<512x128xbf16>, vector<128x128xbf16>, vector<512x128xf32> -> vector<512x128xf32>
    %c0_26 = arith.constant 0 : index
    %c1_27 = arith.constant 1 : index
    %c0_28 = arith.constant 0 : index
    %c0_29 = arith.constant 0 : index
    %26 = vector.load %arg1[%c0_26, %c1_27, %c0_28, %c0_29] : memref<1x18x32x128xbf16, #tpu.memory_space<vmem>>, vector<1x16x32x128xbf16>
    %27 = vector.shape_cast %26 : vector<1x16x32x128xbf16> to vector<16x32x128xbf16>
    %28 = vector.shape_cast %27 : vector<16x32x128xbf16> to vector<512x128xbf16>
    %c4 = arith.constant 4 : index
    %c0_30 = arith.constant 0 : index
    %c0_31 = arith.constant 0 : index
    %29 = vector.load %arg2[%c4, %c0_30, %c0_31] : memref<9x128x128xbf16, #tpu.memory_space<vmem>>, vector<1x128x128xbf16>
    %30 = vector.shape_cast %29 : vector<1x128x128xbf16> to vector<128x128xbf16>
    %cst_32 = arith.constant dense<0.000000e+00> : vector<512x128xf32>
    %31 = tpu.matmul %28, %30, %cst_32 {dimension_numbers = #tpu.dot_dimension_numbers<[1], [0], [0], [1], [0, 0, 1, 1], [], []>} : vector<512x128xbf16>, vector<128x128xbf16>, vector<512x128xf32> -> vector<512x128xf32>
    %32 = arith.addf %25, %31 : vector<512x128xf32>
    %c0_33 = arith.constant 0 : index
    %c2_34 = arith.constant 2 : index
    %c0_35 = arith.constant 0 : index
    %c0_36 = arith.constant 0 : index
    %33 = vector.load %arg1[%c0_33, %c2_34, %c0_35, %c0_36] : memref<1x18x32x128xbf16, #tpu.memory_space<vmem>>, vector<1x16x32x128xbf16>
    %34 = vector.shape_cast %33 : vector<1x16x32x128xbf16> to vector<16x32x128xbf16>
    %35 = vector.shape_cast %34 : vector<16x32x128xbf16> to vector<512x128xbf16>
    %c7 = arith.constant 7 : index
    %c0_37 = arith.constant 0 : index
    %c0_38 = arith.constant 0 : index
    %36 = vector.load %arg2[%c7, %c0_37, %c0_38] : memref<9x128x128xbf16, #tpu.memory_space<vmem>>, vector<1x128x128xbf16>
    %37 = vector.shape_cast %36 : vector<1x128x128xbf16> to vector<128x128xbf16>
    %cst_39 = arith.constant dense<0.000000e+00> : vector<512x128xf32>
    %38 = tpu.matmul %35, %37, %cst_39 {dimension_numbers = #tpu.dot_dimension_numbers<[1], [0], [0], [1], [0, 0, 1, 1], [], []>} : vector<512x128xbf16>, vector<128x128xbf16>, vector<512x128xf32> -> vector<512x128xf32>
    %39 = arith.addf %32, %38 : vector<512x128xf32>
    %c511_i32 = arith.constant 511 : i32
    %40 = tpu.dynamic_rotate %39 by %c511_i32 dim 0 : vector<512x128xf32>, i32 -> vector<512x128xf32>
    %41 = arith.addf %19, %40 : vector<512x128xf32>
    %c0_40 = arith.constant 0 : index
    %c0_41 = arith.constant 0 : index
    %c0_42 = arith.constant 0 : index
    %c0_43 = arith.constant 0 : index
    %42 = vector.load %arg1[%c0_40, %c0_41, %c0_42, %c0_43] : memref<1x18x32x128xbf16, #tpu.memory_space<vmem>>, vector<1x16x32x128xbf16>
    %43 = vector.shape_cast %42 : vector<1x16x32x128xbf16> to vector<16x32x128xbf16>
    %44 = vector.shape_cast %43 : vector<16x32x128xbf16> to vector<512x128xbf16>
    %c2_44 = arith.constant 2 : index
    %c0_45 = arith.constant 0 : index
    %c0_46 = arith.constant 0 : index
    %45 = vector.load %arg2[%c2_44, %c0_45, %c0_46] : memref<9x128x128xbf16, #tpu.memory_space<vmem>>, vector<1x128x128xbf16>
    %46 = vector.shape_cast %45 : vector<1x128x128xbf16> to vector<128x128xbf16>
    %cst_47 = arith.constant dense<0.000000e+00> : vector<512x128xf32>
    %47 = tpu.matmul %44, %46, %cst_47 {dimension_numbers = #tpu.dot_dimension_numbers<[1], [0], [0], [1], [0, 0, 1, 1], [], []>} : vector<512x128xbf16>, vector<128x128xbf16>, vector<512x128xf32> -> vector<512x128xf32>
    %c0_48 = arith.constant 0 : index
    %c1_49 = arith.constant 1 : index
    %c0_50 = arith.constant 0 : index
    %c0_51 = arith.constant 0 : index
    %48 = vector.load %arg1[%c0_48, %c1_49, %c0_50, %c0_51] : memref<1x18x32x128xbf16, #tpu.memory_space<vmem>>, vector<1x16x32x128xbf16>
    %49 = vector.shape_cast %48 : vector<1x16x32x128xbf16> to vector<16x32x128xbf16>
    %50 = vector.shape_cast %49 : vector<16x32x128xbf16> to vector<512x128xbf16>
    %c5 = arith.constant 5 : index
    %c0_52 = arith.constant 0 : index
    %c0_53 = arith.constant 0 : index
    %51 = vector.load %arg2[%c5, %c0_52, %c0_53] : memref<9x128x128xbf16, #tpu.memory_space<vmem>>, vector<1x128x128xbf16>
    %52 = vector.shape_cast %51 : vector<1x128x128xbf16> to vector<128x128xbf16>
    %cst_54 = arith.constant dense<0.000000e+00> : vector<512x128xf32>
    %53 = tpu.matmul %50, %52, %cst_54 {dimension_numbers = #tpu.dot_dimension_numbers<[1], [0], [0], [1], [0, 0, 1, 1], [], []>} : vector<512x128xbf16>, vector<128x128xbf16>, vector<512x128xf32> -> vector<512x128xf32>
    %54 = arith.addf %47, %53 : vector<512x128xf32>
    %c0_55 = arith.constant 0 : index
    %c2_56 = arith.constant 2 : index
    %c0_57 = arith.constant 0 : index
    %c0_58 = arith.constant 0 : index
    %55 = vector.load %arg1[%c0_55, %c2_56, %c0_57, %c0_58] : memref<1x18x32x128xbf16, #tpu.memory_space<vmem>>, vector<1x16x32x128xbf16>
    %56 = vector.shape_cast %55 : vector<1x16x32x128xbf16> to vector<16x32x128xbf16>
    %57 = vector.shape_cast %56 : vector<16x32x128xbf16> to vector<512x128xbf16>
    %c8 = arith.constant 8 : index
    %c0_59 = arith.constant 0 : index
    %c0_60 = arith.constant 0 : index
    %58 = vector.load %arg2[%c8, %c0_59, %c0_60] : memref<9x128x128xbf16, #tpu.memory_space<vmem>>, vector<1x128x128xbf16>
    %59 = vector.shape_cast %58 : vector<1x128x128xbf16> to vector<128x128xbf16>
    %cst_61 = arith.constant dense<0.000000e+00> : vector<512x128xf32>
    %60 = tpu.matmul %57, %59, %cst_61 {dimension_numbers = #tpu.dot_dimension_numbers<[1], [0], [0], [1], [0, 0, 1, 1], [], []>} : vector<512x128xbf16>, vector<128x128xbf16>, vector<512x128xf32> -> vector<512x128xf32>
    %61 = arith.addf %54, %60 : vector<512x128xf32>
    %c510_i32 = arith.constant 510 : i32
    %62 = tpu.dynamic_rotate %61 by %c510_i32 dim 0 : vector<512x128xf32>, i32 -> vector<512x128xf32>
    %63 = arith.addf %41, %62 : vector<512x128xf32>
    %64 = vector.shape_cast %63 : vector<512x128xf32> to vector<16x32x128xf32>
    %65 = tpu.iota {dimensions = array<i32: 1>} : vector<16x32x128xi32>
    %c0_i32 = arith.constant 0 : i32
    %66 = vector.broadcast %c0_i32 : i32 to vector<16x32x128xi32>
    %67 = arith.cmpi sge, %65, %66 : vector<16x32x128xi32>
    %c16_i32 = arith.constant 16 : i32
    %68 = vector.broadcast %c16_i32 : i32 to vector<16x32x128xi32>
    %69 = arith.cmpi slt, %65, %68 : vector<16x32x128xi32>
    %70 = arith.andi %67, %69 : vector<16x32x128xi1>
    %cst_62 = arith.constant 0.000000e+00 : f32
    %71 = vector.broadcast %cst_62 : f32 to vector<16x32x128xf32>
    %72 = arith.select %70, %64, %71 : vector<16x32x128xi1>, vector<16x32x128xf32>
    %cst_63 = arith.constant dense<0.000000e+00> : vector<128xf32>
    %73 = vector.multi_reduction <add>, %72, %cst_63 [0, 1] : vector<16x32x128xf32> to vector<128xf32>
    %74 = vector.shape_cast %73 : vector<128xf32> to vector<1x1x128xf32>
    %75 = vector.shape_cast %74 : vector<1x1x128xf32> to vector<1x128xf32>
    %c0_64 = arith.constant 0 : index
    %c0_65 = arith.constant 0 : index
    %c0_66 = arith.constant 0 : index
    %76 = vector.load %arg4[%c0_64, %c0_65, %c0_66] : memref<1x2x128xf32, #tpu.memory_space<vmem>>, vector<1x1x128xf32>
    %77 = vector.shape_cast %76 : vector<1x1x128xf32> to vector<1x128xf32>
    %78 = vector.shape_cast %75 : vector<1x128xf32> to vector<1x1x128xf32>
    tpu.vector_store %arg4[%c0_64, %c0_65, %c0_66], %78 {strides = array<i32>} : memref<1x2x128xf32, #tpu.memory_space<vmem>>, vector<1x1x128xf32>,
    %79 = arith.mulf %72, %72 : vector<16x32x128xf32>
    %cst_67 = arith.constant dense<0.000000e+00> : vector<128xf32>
    %80 = vector.multi_reduction <add>, %79, %cst_67 [0, 1] : vector<16x32x128xf32> to vector<128xf32>
    %81 = vector.shape_cast %80 : vector<128xf32> to vector<1x1x128xf32>
    %82 = vector.shape_cast %81 : vector<1x1x128xf32> to vector<1x128xf32>
    %c0_68 = arith.constant 0 : index
    %c1_69 = arith.constant 1 : index
    %c0_70 = arith.constant 0 : index
    %83 = vector.load %arg4[%c0_68, %c1_69, %c0_70] : memref<1x2x128xf32, #tpu.memory_space<vmem>>, vector<1x1x128xf32>
    %84 = vector.shape_cast %83 : vector<1x1x128xf32> to vector<1x128xf32>
    %85 = vector.shape_cast %82 : vector<1x128xf32> to vector<1x1x128xf32>
    tpu.vector_store %arg4[%c0_68, %c1_69, %c0_70], %85 {strides = array<i32>} : memref<1x2x128xf32, #tpu.memory_space<vmem>>, vector<1x1x128xf32>,
    %c0_71 = arith.constant 0 : index
    %c0_72 = arith.constant 0 : index
    %c0_73 = arith.constant 0 : index
    %c0_74 = arith.constant 0 : index
    %86 = vector.load %arg3[%c0_71, %c0_72, %c0_73, %c0_74] : memref<1x16x32x128xf32, #tpu.memory_space<vmem>>, vector<1x16x32x128xf32>
    %87 = vector.shape_cast %86 : vector<1x16x32x128xf32> to vector<16x32x128xf32>
    %88 = vector.shape_cast %72 : vector<16x32x128xf32> to vector<1x16x32x128xf32>
    tpu.vector_store %arg3[%c0_71, %c0_72, %c0_73, %c0_74], %88 {strides = array<i32>} : memref<1x16x32x128xf32, #tpu.memory_space<vmem>>, vector<1x16x32x128xf32>,
    return
  }
  func.func @transform_0(%arg0: i32) -> (i32, i32, i32, i32) {
    %c0_i32 = arith.constant 0 : i32
    %c0_i32_0 = arith.constant 0 : i32
    %c0_i32_1 = arith.constant 0 : i32
    %c0_i32_2 = arith.constant 0 : i32
    return %arg0, %c0_i32, %c0_i32_0, %c0_i32_1 : i32, i32, i32, i32
  }
  func.func @transform_1(%arg0: i32) -> (i32, i32, i32) {
    %c0_i32 = arith.constant 0 : i32
    %c0_i32_0 = arith.constant 0 : i32
    %c0_i32_1 = arith.constant 0 : i32
    %c0_i32_2 = arith.constant 0 : i32
    return %c0_i32, %c0_i32_0, %c0_i32_1 : i32, i32, i32
  }
  func.func @transform_2(%arg0: i32) -> (i32, i32, i32, i32) {
    %c0_i32 = arith.constant 0 : i32
    %c0_i32_0 = arith.constant 0 : i32
    %c0_i32_1 = arith.constant 0 : i32
    %c0_i32_2 = arith.constant 0 : i32
    return %arg0, %c0_i32, %c0_i32_0, %c0_i32_1 : i32, i32, i32, i32
  }
  func.func @transform_3(%arg0: i32) -> (i32, i32, i32) {
    %c0_i32 = arith.constant 0 : i32
    %c0_i32_0 = arith.constant 0 : i32
    %c0_i32_1 = arith.constant 0 : i32
    return %arg0, %c0_i32, %c0_i32_0 : i32, i32, i32
  }
}

module attributes {stable_mosaic.version = 11 : i64} {
  func.func @bn_relu_pool_kernel(%arg0: i32, %arg1: memref<1x16x16x256xf32, #tpu.memory_space<vmem>>, %arg2: memref<2x256xf32, #tpu.memory_space<vmem>>, %arg3: memref<1x8x16x128xf32, #tpu.memory_space<vmem>>) attributes {dimension_semantics = [#tpu.dimension_semantics<parallel>], iteration_bounds = array<i64: 2>, scalar_prefetch = 0 : i64, scratch_operands = 0 : i64, tpu.core_type = #tpu.core_type<tc>, window_params = [{transform_indices = @transform_0, window_bounds = array<i64: 1, 16, 16, 256>}, {pipeline_mode = #tpu.pipeline_mode<synchronous>, transform_indices = @transform_1, window_bounds = array<i64: 2, 256>}, {transform_indices = @transform_2, window_bounds = array<i64: 1, 8, 16, 128>}]} {
    %c0 = arith.constant 0 : index
    %c0_0 = arith.constant 0 : index
    %c0_1 = arith.constant 0 : index
    %c0_2 = arith.constant 0 : index
    %0 = vector.load %arg1[%c0, %c0_0, %c0_1, %c0_2] : memref<1x16x16x256xf32, #tpu.memory_space<vmem>>, vector<1x16x16x256xf32>
    %1 = vector.shape_cast %0 : vector<1x16x16x256xf32> to vector<16x16x256xf32>
    %c0_3 = arith.constant 0 : index
    %c0_4 = arith.constant 0 : index
    %2 = vector.load %arg2[%c0_3, %c0_4] : memref<2x256xf32, #tpu.memory_space<vmem>>, vector<1x256xf32>
    %3 = vector.shape_cast %2 : vector<1x256xf32> to vector<1x1x256xf32>
    %4 = vector.broadcast %3 : vector<1x1x256xf32> to vector<16x16x256xf32>
    %5 = arith.mulf %1, %4 : vector<16x16x256xf32>
    %c1 = arith.constant 1 : index
    %c0_5 = arith.constant 0 : index
    %6 = vector.load %arg2[%c1, %c0_5] : memref<2x256xf32, #tpu.memory_space<vmem>>, vector<1x256xf32>
    %7 = vector.shape_cast %6 : vector<1x256xf32> to vector<1x1x256xf32>
    %8 = vector.broadcast %7 : vector<1x1x256xf32> to vector<16x16x256xf32>
    %9 = arith.addf %5, %8 : vector<16x16x256xf32>
    %cst = arith.constant 0.000000e+00 : f32
    %10 = vector.broadcast %cst : f32 to vector<16x16x256xf32>
    %11 = arith.maximumf %9, %10 : vector<16x16x256xf32>
    %12 = vector.shape_cast %11 : vector<16x16x256xf32> to vector<8x2x16x256xf32>
    %13 = vector.extract_strided_slice %12 {offsets = [0, 0, 0, 0], sizes = [8, 1, 16, 256], strides = [1, 1, 1, 1]} : vector<8x2x16x256xf32> to vector<8x1x16x256xf32>
    %14 = vector.shape_cast %13 : vector<8x1x16x256xf32> to vector<8x16x256xf32>
    %15 = vector.extract_strided_slice %12 {offsets = [0, 1, 0, 0], sizes = [8, 1, 16, 256], strides = [1, 1, 1, 1]} : vector<8x2x16x256xf32> to vector<8x1x16x256xf32>
    %16 = vector.shape_cast %15 : vector<8x1x16x256xf32> to vector<8x16x256xf32>
    %17 = arith.maximumf %14, %16 : vector<8x16x256xf32>
    %18 = vector.extract_strided_slice %17 {offsets = [0, 0, 0], sizes = [8, 16, 128], strides = [1, 1, 1]} : vector<8x16x256xf32> to vector<8x16x128xf32>
    %19 = vector.extract_strided_slice %17 {offsets = [0, 0, 128], sizes = [8, 16, 128], strides = [1, 1, 1]} : vector<8x16x256xf32> to vector<8x16x128xf32>
    %20 = arith.maximumf %18, %19 : vector<8x16x128xf32>
    %c0_6 = arith.constant 0 : index
    %c0_7 = arith.constant 0 : index
    %c0_8 = arith.constant 0 : index
    %c0_9 = arith.constant 0 : index
    %21 = vector.load %arg3[%c0_6, %c0_7, %c0_8, %c0_9] : memref<1x8x16x128xf32, #tpu.memory_space<vmem>>, vector<1x8x16x128xf32>
    %22 = vector.shape_cast %21 : vector<1x8x16x128xf32> to vector<8x16x128xf32>
    %23 = vector.shape_cast %20 : vector<8x16x128xf32> to vector<1x8x16x128xf32>
    tpu.vector_store %arg3[%c0_6, %c0_7, %c0_8, %c0_9], %23 {strides = array<i32>} : memref<1x8x16x128xf32, #tpu.memory_space<vmem>>, vector<1x8x16x128xf32>,
    return
  }
  func.func @transform_0(%arg0: i32) -> (i32, i32, i32, i32) {
    %c0_i32 = arith.constant 0 : i32
    %c0_i32_0 = arith.constant 0 : i32
    %c0_i32_1 = arith.constant 0 : i32
    %c0_i32_2 = arith.constant 0 : i32
    return %arg0, %c0_i32, %c0_i32_0, %c0_i32_1 : i32, i32, i32, i32
  }
  func.func @transform_1(%arg0: i32) -> (i32, i32) {
    %c0_i32 = arith.constant 0 : i32
    %c0_i32_0 = arith.constant 0 : i32
    %c0_i32_1 = arith.constant 0 : i32
    return %c0_i32, %c0_i32_0 : i32, i32
  }
  func.func @transform_2(%arg0: i32) -> (i32, i32, i32, i32) {
    %c0_i32 = arith.constant 0 : i32
    %c0_i32_0 = arith.constant 0 : i32
    %c0_i32_1 = arith.constant 0 : i32
    %c0_i32_2 = arith.constant 0 : i32
    return %arg0, %c0_i32, %c0_i32_0, %c0_i32_1 : i32, i32, i32, i32
  }
}

</mosaic_0001>

<llo_original>
// kernel: vgg_block_forward.5
$region0: #{vgg_block_forward.5}
  #allocation0 [shape = 'u32[]', space=smem, size = 0x4, offset = 0x4, fixed_abs, tag = 'smem constant byte address 0x4 - core index']
  #allocation1 [shape = 'u32[144,128]{1,0:T(1,128)}', space=vmem, size = 0x12000, scoped, tag = 'internal scratch']
  %s0 = inlined_call_operand.vmem [shape: f32[2,18,32,128], index: 0, kind: input, shape index: {}]
  %s1 = inlined_call_operand.vmem [shape: f32[2,128], index: 1, kind: input, shape index: {}]
  %s2 = inlined_call_operand.vmem [shape: bf16[2,18,32,128], index: 2, kind: output, shape index: {}]
  %s3 = sld [smem:[#allocation0]]
  $region41: #{vgg_block_forward.5} parent=0
    _
  %s5 = ssub.s32 1, %s3
  %s6 = scalar_select 0, %s5, %s3
  loop: start=0, step=1, limit=4
  $region2: #{vgg_block_forward.5} parent=0 // loop_pre_header
    _
  $region3: #{vgg_block_forward.5} parent=0 // loop_header
    %s8 = sphi 0, %s12
    %p9 = scmp.ge.s32.totalorder %s8, 4
    %s18 = sphi 0, %s20
    %s21 = sphi 0, %s18
    %s22 = sphi 0, %s21
    %s38 = sphi 0, %s22
    %s42 = sphi 0, %s42
    %s44 = sphi 0, %s42
    %s45 = sphi 0, %s44
    %s59 = sphi 0, %s45
    %s65 = sphi 0, %s67
    %s68 = sphi 0, %s65
    %s69 = sphi 0, %s68
    %s85 = sphi 0, %s69
  $region4: #{vgg_block_forward.5} parent=0 // loop_header_branch
    %11 = sbr.rel (%p9) target = $region8
  $region5: #{vgg_block_forward.5} parent=0 // loop_body
    %s13 = ssub.s32 %s8, 1
    %s14 = ssub.s32 %s8, 2
    %s15 = sadd.s32 %s8, 1
    %s16 = ssub.s32 %s8, %s15
    %p17 = scmp.eq.s32.totalorder %s16, 0
    %s19 = sadd.s32 %s18, 1
    %s20 = scalar_select %p17, %s18, %s19
    %p23 = pneg %p17
    %p24 = scmp.eq.s32.totalorder %s8, 1
    %p25 = por %p23, %p24
    %p26 = scmp.ne.s32.totalorder %s18, %s21
    %p27 = scmp.eq.s32.totalorder %s8, 0
    %p28 = por %p26, %p27
    %p29 = scmp.ne.s32.totalorder %s18, %s21
    %p30 = scmp.eq.s32.totalorder %s13, 1
    %p31 = por %p29, %p30
    %p32 = scmp.ne.s32.totalorder %s21, %s22
    %p33 = scmp.eq.s32.totalorder %s13, 0
    %p34 = por %p32, %p33
    %p35 = scmp.ne.s32.totalorder %s21, %s22
    %p36 = scmp.eq.s32.totalorder %s14, 1
    %p37 = por %p35, %p36
    %p39 = scmp.ne.s32.totalorder %s22, %s38
    %p40 = scmp.eq.s32.totalorder %s14, 0
    %p41 = por %p39, %p40
    %s43 = sadd.s32 %s42, 1
    %p46 = scmp.eq.s32.totalorder %s8, 1
    %p47 = scmp.ne.s32.totalorder %s42, %s44
    %p48 = scmp.eq.s32.totalorder %s8, 0
    %p49 = por %p47, %p48
    %p50 = scmp.ne.s32.totalorder %s42, %s44
    %p51 = scmp.eq.s32.totalorder %s13, 1
    %p52 = por %p50, %p51
    %p53 = scmp.ne.s32.totalorder %s44, %s45
    %p54 = scmp.eq.s32.totalorder %s13, 0
    %p55 = por %p53, %p54
    %p56 = scmp.ne.s32.totalorder %s44, %s45
    %p57 = scmp.eq.s32.totalorder %s14, 1
    %p58 = por %p56, %p57
    %p60 = scmp.ne.s32.totalorder %s45, %s59
    %p61 = scmp.eq.s32.totalorder %s14, 0
    %p62 = por %p60, %p61
    %s63 = ssub.s32 %s8, %s15
    %p64 = scmp.eq.s32.totalorder %s63, 0
    %s66 = sadd.s32 %s65, 1
    %s67 = scalar_select %p64, %s65, %s66
    %p70 = pneg %p64
    %p71 = scmp.eq.s32.totalorder %s8, 1
    %p72 = por %p70, %p71
    %p73 = scmp.ne.s32.totalorder %s65, %s68
    %p74 = scmp.eq.s32.totalorder %s8, 0
    %p75 = por %p73, %p74
    %p76 = scmp.ne.s32.totalorder %s65, %s68
    %p77 = scmp.eq.s32.totalorder %s13, 1
    %p78 = por %p76, %p77
    %p79 = scmp.ne.s32.totalorder %s68, %s69
    %p80 = scmp.eq.s32.totalorder %s13, 0
    %p81 = por %p79, %p80
    %p82 = scmp.ne.s32.totalorder %s68, %s69
    %p83 = scmp.eq.s32.totalorder %s14, 1
    %p84 = por %p82, %p83
    %p86 = scmp.ne.s32.totalorder %s69, %s85
    %p87 = scmp.eq.s32.totalorder %s14, 0
    %p88 = por %p86, %p87
    %p89 = scmp.le.s32.totalorder 1, %s8
    %p90 = scmp.lt.s32.totalorder %s8, 3
    %p91 = pnand %p89, %p90
    %p92 = pneg %p91
    // Predicated region
    $region9: #{vgg_block_forward.5} parent=5 // pred_check
      _
    $region10: #{vgg_block_forward.5} parent=5 // pred_check_branch
      %94 = sbr.rel (%p91) target = $region12
    $region11: #{vgg_block_forward.5} parent=5 // pred_region
      %s95 = ssub.s32 %s8, 1
      // Predicated region
      $region13: #{vgg_block_forward.5} parent=11 // pred_check
        %p96 = pneg %p55
      $region14: #{vgg_block_forward.5} parent=11 // pred_check_branch
        %98 = sbr.rel (%p96) target = $region16
      $region15: #{vgg_block_forward.5} parent=11 // pred_region
        _
      $region16: #{vgg_block_forward.5} parent=11 // pred_fallthru
        _
    $region12: #{vgg_block_forward.5} parent=5 // pred_fallthru
      _
    %p99 = scmp.lt.s32.totalorder %s8, 2
    // Predicated region
    $region17: #{vgg_block_forward.5} parent=5 // pred_check
      %p100 = pneg %p99
    $region18: #{vgg_block_forward.5} parent=5 // pred_check_branch
      %102 = sbr.rel (%p100) target = $region20
    $region19: #{vgg_block_forward.5} parent=5 // pred_region
      // Predicated region
      $region21: #{vgg_block_forward.5} parent=19 // pred_check
        %p103 = pneg %p28
      $region22: #{vgg_block_forward.5} parent=19 // pred_check_branch
        %105 = sbr.rel (%p103) target = $region24
      $region23: #{vgg_block_forward.5} parent=19 // pred_region
        %p106 = scmp.lt.s32.totalorder %s8, 1
        %s107 = scalar_select %p106, %s8, 1
        %s108 = smul.addr %s107, 72
        %s109 = smul.addr %s108, 8
        %s110 = scalar_lea.vmem %s0, %s109
      $region24: #{vgg_block_forward.5} parent=19 // pred_fallthru
        _
    $region20: #{vgg_block_forward.5} parent=5 // pred_fallthru
      _
    %p111 = scmp.le.s32.totalorder 1, %s8
    %p112 = scmp.lt.s32.totalorder %s8, 3
    %p113 = pnand %p111, %p112
    %p114 = pneg %p113
    // Predicated region
    $region25: #{vgg_block_forward.5} parent=5 // pred_check
      _
    $region26: #{vgg_block_forward.5} parent=5 // pred_check_branch
      %116 = sbr.rel (%p113) target = $region28
    $region27: #{vgg_block_forward.5} parent=5 // pred_region
      %s117 = ssub.s32 %s8, 1
      %p118 = scmp.lt.s32.totalorder %s13, 1
      %s119 = scalar_select %p118, %s13, 1
      %s120 = smul.addr %s119, 72
      %s121 = smul.addr %s120, 8
      %s122 = scalar_lea.vmem %s0, %s121
      %p123 = pneg %p34
      %p124 = pneg %p31
      %p125 = pneg %p55
      %p126 = pneg %p52
      %p127 = pneg %p81
      %p128 = pneg %p78
      %p129 = scmp.lt.s32.totalorder %s13, 1
      %s130 = scalar_select %p129, %s13, 1
      %s131 = smul.addr %s130, 72
      %s132 = smul.addr %s131, 4
      %s133 = scalar_lea.vmem %s2, %s132
      %p134 = scmp.lt.s32.totalorder %s13, 1
      %s135 = scalar_select %p134, %s13, 1
      %s136 = smul.addr %s135, 72
      %s137 = smul.addr %s136, 8
      %s138 = scalar_lea.vmem %s0, %s137
      %p139 = scmp.lt.s32.totalorder %s13, 1
      %s140 = scalar_select %p139, %s13, 1
      %s141 = smul.addr %s140, 72
      %s142 = smul.addr %s141, 4
      %s143 = scalar_lea.vmem %s2, %s142
      %v144 = vld [vmem:[%s138] sm:$0xff]
      %v145 = vld [vmem:[%s138 + $0x8] sm:$0xff]
      %v146 = vld [vmem:[%s138 + $0x10] sm:$0xff]
      %v147 = vld [vmem:[%s138 + $0x18] sm:$0xff]
      %v148 = vld [vmem:[%s138 + $0x20] sm:$0xff]
      %v149 = vld [vmem:[%s138 + $0x28] sm:$0xff]
      %v150 = vld [vmem:[%s138 + $0x30] sm:$0xff]
      %v151 = vld [vmem:[%s138 + $0x38] sm:$0xff]
      %v152 = vld [vmem:[%s138 + $0x40] sm:$0xff]
      %v153 = vld [vmem:[%s138 + $0x48] sm:$0xff]
      %v154 = vld [vmem:[%s138 + $0x50] sm:$0xff]
      %v155 = vld [vmem:[%s138 + $0x58] sm:$0xff]
      %v156 = vld [vmem:[%s138 + $0x60] sm:$0xff]
      %v157 = vld [vmem:[%s138 + $0x68] sm:$0xff]
      %v158 = vld [vmem:[%s138 + $0x70] sm:$0xff]
      %v159 = vld [vmem:[%s138 + $0x78] sm:$0xff]
      %v160 = vld [vmem:[%s138 + $0x80] sm:$0xff]
      %v161 = vld [vmem:[%s138 + $0x88] sm:$0xff]
      %v162 = vld [vmem:[%s138 + $0x90] sm:$0xff]
      %v163 = vld [vmem:[%s138 + $0x98] sm:$0xff]
      %v164 = vld [vmem:[%s138 + $0xa0] sm:$0xff]
      %v165 = vld [vmem:[%s138 + $0xa8] sm:$0xff]
      %v166 = vld [vmem:[%s138 + $0xb0] sm:$0xff]
      %v167 = vld [vmem:[%s138 + $0xb8] sm:$0xff]
      %v168 = vld [vmem:[%s138 + $0xc0] sm:$0xff]
      %v169 = vld [vmem:[%s138 + $0xc8] sm:$0xff]
      %v170 = vld [vmem:[%s138 + $0xd0] sm:$0xff]
      %v171 = vld [vmem:[%s138 + $0xd8] sm:$0xff]
      %v172 = vld [vmem:[%s138 + $0xe0] sm:$0xff]
      %v173 = vld [vmem:[%s138 + $0xe8] sm:$0xff]
      %v174 = vld [vmem:[%s138 + $0xf0] sm:$0xff]
      %v175 = vld [vmem:[%s138 + $0xf8] sm:$0xff]
      %v176 = vld [vmem:[%s138 + $0x100] sm:$0xff]
      %v177 = vld [vmem:[%s138 + $0x108] sm:$0xff]
      %v178 = vld [vmem:[%s138 + $0x110] sm:$0xff]
      %v179 = vld [vmem:[%s138 + $0x118] sm:$0xff]
      %v180 = vld [vmem:[%s138 + $0x120] sm:$0xff]
      %v181 = vld [vmem:[%s138 + $0x128] sm:$0xff]
      %v182 = vld [vmem:[%s138 + $0x130] sm:$0xff]
      %v183 = vld [vmem:[%s138 + $0x138] sm:$0xff]
      %v184 = vld [vmem:[%s138 + $0x140] sm:$0xff]
      %v185 = vld [vmem:[%s138 + $0x148] sm:$0xff]
      %v186 = vld [vmem:[%s138 + $0x150] sm:$0xff]
      %v187 = vld [vmem:[%s138 + $0x158] sm:$0xff]
      %v188 = vld [vmem:[%s138 + $0x160] sm:$0xff]
      %v189 = vld [vmem:[%s138 + $0x168] sm:$0xff]
      %v190 = vld [vmem:[%s138 + $0x170] sm:$0xff]
      %v191 = vld [vmem:[%s138 + $0x178] sm:$0xff]
      %v192 = vld [vmem:[%s138 + $0x180] sm:$0xff]
      %v193 = vld [vmem:[%s138 + $0x188] sm:$0xff]
      %v194 = vld [vmem:[%s138 + $0x190] sm:$0xff]
      %v195 = vld [vmem:[%s138 + $0x198] sm:$0xff]
      %v196 = vld [vmem:[%s138 + $0x1a0] sm:$0xff]
      %v197 = vld [vmem:[%s138 + $0x1a8] sm:$0xff]
      %v198 = vld [vmem:[%s138 + $0x1b0] sm:$0xff]
      %v199 = vld [vmem:[%s138 + $0x1b8] sm:$0xff]
      %v200 = vld [vmem:[%s138 + $0x1c0] sm:$0xff]
      %v201 = vld [vmem:[%s138 + $0x1c8] sm:$0xff]
      %v202 = vld [vmem:[%s138 + $0x1d0] sm:$0xff]
      %v203 = vld [vmem:[%s138 + $0x1d8] sm:$0xff]
      %v204 = vld [vmem:[%s138 + $0x1e0] sm:$0xff]
      %v205 = vld [vmem:[%s138 + $0x1e8] sm:$0xff]
      %v206 = vld [vmem:[%s138 + $0x1f0] sm:$0xff]
      %v207 = vld [vmem:[%s138 + $0x1f8] sm:$0xff]
      %v208 = vld [vmem:[%s138 + $0x200] sm:$0xff]
      %v209 = vld [vmem:[%s138 + $0x208] sm:$0xff]
      %v210 = vld [vmem:[%s138 + $0x210] sm:$0xff]
      %v211 = vld [vmem:[%s138 + $0x218] sm:$0xff]
      %v212 = vld [vmem:[%s138 + $0x220] sm:$0xff]
      %v213 = vld [vmem:[%s138 + $0x228] sm:$0xff]
      %v214 = vld [vmem:[%s138 + $0x230] sm:$0xff]
      %v215 = vld [vmem:[%s138 + $0x238] sm:$0xff]
      %v216 = vld [vmem:[%s1] sm:$0x1]
      %v217 = vlaneseq
      %v218 = vshrl.u32 %v217, 7
      %v219 = vsub.s32 0, %v218
      %v220 = vrot.slane %v216, %v219
      %v221 = vmul.f32 %v144, %v220
      %v222 = vmul.f32 %v145, %v220
      %v223 = vmul.f32 %v146, %v220
      %v224 = vmul.f32 %v147, %v220
      %v225 = vmul.f32 %v148, %v220
      %v226 = vmul.f32 %v149, %v220
      %v227 = vmul.f32 %v150, %v220
      %v228 = vmul.f32 %v151, %v220
      %v229 = vmul.f32 %v152, %v220
      %v230 = vmul.f32 %v153, %v220
      %v231 = vmul.f32 %v154, %v220
      %v232 = vmul.f32 %v155, %v220
      %v233 = vmul.f32 %v156, %v220
      %v234 = vmul.f32 %v157, %v220
      %v235 = vmul.f32 %v158, %v220
      %v236 = vmul.f32 %v159, %v220
      %v237 = vmul.f32 %v160, %v220
      %v238 = vmul.f32 %v161, %v220
      %v239 = vmul.f32 %v162, %v220
      %v240 = vmul.f32 %v163, %v220
      %v241 = vmul.f32 %v164, %v220
      %v242 = vmul.f32 %v165, %v220
      %v243 = vmul.f32 %v166, %v220
      %v244 = vmul.f32 %v167, %v220
      %v245 = vmul.f32 %v168, %v220
      %v246 = vmul.f32 %v169, %v220
      %v247 = vmul.f32 %v170, %v220
      %v248 = vmul.f32 %v171, %v220
      %v249 = vmul.f32 %v172, %v220
      %v250 = vmul.f32 %v173, %v220
      %v251 = vmul.f32 %v174, %v220
      %v252 = vmul.f32 %v175, %v220
      %v253 = vmul.f32 %v176, %v220
      %v254 = vmul.f32 %v177, %v220
      %v255 = vmul.f32 %v178, %v220
      %v256 = vmul.f32 %v179, %v220
      %v257 = vmul.f32 %v180, %v220
      %v258 = vmul.f32 %v181, %v220
      %v259 = vmul.f32 %v182, %v220
      %v260 = vmul.f32 %v183, %v220
      %v261 = vmul.f32 %v184, %v220
      %v262 = vmul.f32 %v185, %v220
      %v263 = vmul.f32 %v186, %v220
      %v264 = vmul.f32 %v187, %v220
      %v265 = vmul.f32 %v188, %v220
      %v266 = vmul.f32 %v189, %v220
      %v267 = vmul.f32 %v190, %v220
      %v268 = vmul.f32 %v191, %v220
      %v269 = vmul.f32 %v192, %v220
      %v270 = vmul.f32 %v193, %v220
      %v271 = vmul.f32 %v194, %v220
      %v272 = vmul.f32 %v195, %v220
      %v273 = vmul.f32 %v196, %v220
      %v274 = vmul.f32 %v197, %v220
      %v275 = vmul.f32 %v198, %v220
      %v276 = vmul.f32 %v199, %v220
      %v277 = vmul.f32 %v200, %v220
      %v278 = vmul.f32 %v201, %v220
      %v279 = vmul.f32 %v202, %v220
      %v280 = vmul.f32 %v203, %v220
      %v281 = vmul.f32 %v204, %v220
      %v282 = vmul.f32 %v205, %v220
      %v283 = vmul.f32 %v206, %v220
      %v284 = vmul.f32 %v207, %v220
      %v285 = vmul.f32 %v208, %v220
      %v286 = vmul.f32 %v209, %v220
      %v287 = vmul.f32 %v210, %v220
      %v288 = vmul.f32 %v211, %v220
      %v289 = vmul.f32 %v212, %v220
      %v290 = vmul.f32 %v213, %v220
      %v291 = vmul.f32 %v214, %v220
      %v292 = vmul.f32 %v215, %v220
      %v293 = vld [vmem:[%s1 + $0x1] sm:$0x1]
      %v294 = vlaneseq
      %v295 = vshrl.u32 %v294, 7
      %v296 = vsub.s32 0, %v295
      %v297 = vrot.slane %v293, %v296
      %v298 = vadd.f32 %v221, %v297
      %v299 = vadd.f32 %v222, %v297
      %v300 = vadd.f32 %v223, %v297
      %v301 = vadd.f32 %v224, %v297
      %v302 = vadd.f32 %v225, %v297
      %v303 = vadd.f32 %v226, %v297
      %v304 = vadd.f32 %v227, %v297
      %v305 = vadd.f32 %v228, %v297
      %v306 = vadd.f32 %v229, %v297
      %v307 = vadd.f32 %v230, %v297
      %v308 = vadd.f32 %v231, %v297
      %v309 = vadd.f32 %v232, %v297
      %v310 = vadd.f32 %v233, %v297
      %v311 = vadd.f32 %v234, %v297
      %v312 = vadd.f32 %v235, %v297
      %v313 = vadd.f32 %v236, %v297
      %v314 = vadd.f32 %v237, %v297
      %v315 = vadd.f32 %v238, %v297
      %v316 = vadd.f32 %v239, %v297
      %v317 = vadd.f32 %v240, %v297
      %v318 = vadd.f32 %v241, %v297
      %v319 = vadd.f32 %v242, %v297
      %v320 = vadd.f32 %v243, %v297
      %v321 = vadd.f32 %v244, %v297
      %v322 = vadd.f32 %v245, %v297
      %v323 = vadd.f32 %v246, %v297
      %v324 = vadd.f32 %v247, %v297
      %v325 = vadd.f32 %v248, %v297
      %v326 = vadd.f32 %v249, %v297
      %v327 = vadd.f32 %v250, %v297
      %v328 = vadd.f32 %v251, %v297
      %v329 = vadd.f32 %v252, %v297
      %v330 = vadd.f32 %v253, %v297
      %v331 = vadd.f32 %v254, %v297
      %v332 = vadd.f32 %v255, %v297
      %v333 = vadd.f32 %v256, %v297
      %v334 = vadd.f32 %v257, %v297
      %v335 = vadd.f32 %v258, %v297
      %v336 = vadd.f32 %v259, %v297
      %v337 = vadd.f32 %v260, %v297
      %v338 = vadd.f32 %v261, %v297
      %v339 = vadd.f32 %v262, %v297
      %v340 = vadd.f32 %v263, %v297
      %v341 = vadd.f32 %v264, %v297
      %v342 = vadd.f32 %v265, %v297
      %v343 = vadd.f32 %v266, %v297
      %v344 = vadd.f32 %v267, %v297
      %v345 = vadd.f32 %v268, %v297
      %v346 = vadd.f32 %v269, %v297
      %v347 = vadd.f32 %v270, %v297
      %v348 = vadd.f32 %v271, %v297
      %v349 = vadd.f32 %v272, %v297
      %v350 = vadd.f32 %v273, %v297
      %v351 = vadd.f32 %v274, %v297
      %v352 = vadd.f32 %v275, %v297
      %v353 = vadd.f32 %v276, %v297
      %v354 = vadd.f32 %v277, %v297
      %v355 = vadd.f32 %v278, %v297
      %v356 = vadd.f32 %v279, %v297
      %v357 = vadd.f32 %v280, %v297
      %v358 = vadd.f32 %v281, %v297
      %v359 = vadd.f32 %v282, %v297
      %v360 = vadd.f32 %v283, %v297
      %v361 = vadd.f32 %v284, %v297
      %v362 = vadd.f32 %v285, %v297
      %v363 = vadd.f32 %v286, %v297
      %v364 = vadd.f32 %v287, %v297
      %v365 = vadd.f32 %v288, %v297
      %v366 = vadd.f32 %v289, %v297
      %v367 = vadd.f32 %v290, %v297
      %v368 = vadd.f32 %v291, %v297
      %v369 = vadd.f32 %v292, %v297
      %v370 = vmax.f32 %v298, 0.0
      %v371 = vmax.f32 %v299, 0.0
      %v372 = vmax.f32 %v300, 0.0
      %v373 = vmax.f32 %v301, 0.0
      %v374 = vmax.f32 %v302, 0.0
      %v375 = vmax.f32 %v303, 0.0
      %v376 = vmax.f32 %v304, 0.0
      %v377 = vmax.f32 %v305, 0.0
      %v378 = vmax.f32 %v306, 0.0
      %v379 = vmax.f32 %v307, 0.0
      %v380 = vmax.f32 %v308, 0.0
      %v381 = vmax.f32 %v309, 0.0
      %v382 = vmax.f32 %v310, 0.0
      %v383 = vmax.f32 %v311, 0.0
      %v384 = vmax.f32 %v312, 0.0
      %v385 = vmax.f32 %v313, 0.0
      %v386 = vmax.f32 %v314, 0.0
      %v387 = vmax.f32 %v315, 0.0
      %v388 = vmax.f32 %v316, 0.0
      %v389 = vmax.f32 %v317, 0.0
      %v390 = vmax.f32 %v318, 0.0
      %v391 = vmax.f32 %v319, 0.0
      %v392 = vmax.f32 %v320, 0.0
      %v393 = vmax.f32 %v321, 0.0
      %v394 = vmax.f32 %v322, 0.0
      %v395 = vmax.f32 %v323, 0.0
      %v396 = vmax.f32 %v324, 0.0
      %v397 = vmax.f32 %v325, 0.0
      %v398 = vmax.f32 %v326, 0.0
      %v399 = vmax.f32 %v327, 0.0
      %v400 = vmax.f32 %v328, 0.0
      %v401 = vmax.f32 %v329, 0.0
      %v402 = vmax.f32 %v330, 0.0
      %v403 = vmax.f32 %v331, 0.0
      %v404 = vmax.f32 %v332, 0.0
      %v405 = vmax.f32 %v333, 0.0
      %v406 = vmax.f32 %v334, 0.0
      %v407 = vmax.f32 %v335, 0.0
      %v408 = vmax.f32 %v336, 0.0
      %v409 = vmax.f32 %v337, 0.0
      %v410 = vmax.f32 %v338, 0.0
      %v411 = vmax.f32 %v339, 0.0
      %v412 = vmax.f32 %v340, 0.0
      %v413 = vmax.f32 %v341, 0.0
      %v414 = vmax.f32 %v342, 0.0
      %v415 = vmax.f32 %v343, 0.0
      %v416 = vmax.f32 %v344, 0.0
      %v417 = vmax.f32 %v345, 0.0
      %v418 = vmax.f32 %v346, 0.0
      %v419 = vmax.f32 %v347, 0.0
      %v420 = vmax.f32 %v348, 0.0
      %v421 = vmax.f32 %v349, 0.0
      %v422 = vmax.f32 %v350, 0.0
      %v423 = vmax.f32 %v351, 0.0
      %v424 = vmax.f32 %v352, 0.0
      %v425 = vmax.f32 %v353, 0.0
      %v426 = vmax.f32 %v354, 0.0
      %v427 = vmax.f32 %v355, 0.0
      %v428 = vmax.f32 %v356, 0.0
      %v429 = vmax.f32 %v357, 0.0
      %v430 = vmax.f32 %v358, 0.0
      %v431 = vmax.f32 %v359, 0.0
      %v432 = vmax.f32 %v360, 0.0
      %v433 = vmax.f32 %v361, 0.0
      %v434 = vmax.f32 %v362, 0.0
      %v435 = vmax.f32 %v363, 0.0
      %v436 = vmax.f32 %v364, 0.0
      %v437 = vmax.f32 %v365, 0.0
      %v438 = vmax.f32 %v366, 0.0
      %v439 = vmax.f32 %v367, 0.0
      %v440 = vmax.f32 %v368, 0.0
      %v441 = vmax.f32 %v369, 0.0
      %v442 = vlaneseq
      %v443 = vshrl.u32 %v442, 7
      %v444 = vadd.s32 %v443, 8
      %v445 = vadd.s32 %v443, 16
      %v446 = vadd.s32 %v443, 24
      %vm447 = vcmp.ge.s32.totalorder %v443, 1
      %vm448 = vcmp.ge.s32.totalorder %v444, 1
      %vm449 = vcmp.ge.s32.totalorder %v445, 1
      %vm450 = vcmp.ge.s32.totalorder %v446, 1
      %vm451 = vmand 0, %vm447
      %vm452 = vmand 0, %vm448
      %vm453 = vmand 0, %vm449
      %vm454 = vmand 0, %vm450
      %vm455 = vmand 1, %vm447
      %vm456 = vmand 1, %vm448
      %vm457 = vmand 1, %vm449
      %vm458 = vmand 1, %vm450
      %vm459 = vcmp.le.s32.totalorder %v443, 16
      %vm460 = vcmp.le.s32.totalorder %v444, 16
      %vm461 = vcmp.le.s32.totalorder %v445, 16
      %vm462 = vcmp.le.s32.totalorder %v446, 16
      %vm463 = vmand %vm451, %vm459
      %vm464 = vmand %vm452, %vm460
      %vm465 = vmand %vm453, %vm461
      %vm466 = vmand %vm454, %vm462
      %vm467 = vmand %vm455, %vm459
      %vm468 = vmand %vm456, %vm460
      %vm469 = vmand %vm457, %vm461
      %vm470 = vmand %vm458, %vm462
      %v471 = vsel %vm463, %v370, 0.0
      %v472 = vsel %vm464, %v371, 0.0
      %v473 = vsel %vm465, %v372, 0.0
      %v474 = vsel %vm466, %v373, 0.0
      %v475 = vsel %vm467, %v374, 0.0
      %v476 = vsel %vm468, %v375, 0.0
      %v477 = vsel %vm469, %v376, 0.0
      %v478 = vsel %vm470, %v377, 0.0
      %v479 = vsel %vm467, %v378, 0.0
      %v480 = vsel %vm468, %v379, 0.0
      %v481 = vsel %vm469, %v380, 0.0
      %v482 = vsel %vm470, %v381, 0.0
      %v483 = vsel %vm467, %v382, 0.0
      %v484 = vsel %vm468, %v383, 0.0
      %v485 = vsel %vm469, %v384, 0.0
      %v486 = vsel %vm470, %v385, 0.0
      %v487 = vsel %vm467, %v386, 0.0
      %v488 = vsel %vm468, %v387, 0.0
      %v489 = vsel %vm469, %v388, 0.0
      %v490 = vsel %vm470, %v389, 0.0
      %v491 = vsel %vm467, %v390, 0.0
      %v492 = vsel %vm468, %v391, 0.0
      %v493 = vsel %vm469, %v392, 0.0
      %v494 = vsel %vm470, %v393, 0.0
      %v495 = vsel %vm467, %v394, 0.0
      %v496 = vsel %vm468, %v395, 0.0
      %v497 = vsel %vm469, %v396, 0.0
      %v498 = vsel %vm470, %v397, 0.0
      %v499 = vsel %vm467, %v398, 0.0
      %v500 = vsel %vm468, %v399, 0.0
      %v501 = vsel %vm469, %v400, 0.0
      %v502 = vsel %vm470, %v401, 0.0
      %v503 = vsel %vm467, %v402, 0.0
      %v504 = vsel %vm468, %v403, 0.0
      %v505 = vsel %vm469, %v404, 0.0
      %v506 = vsel %vm470, %v405, 0.0
      %v507 = vsel %vm467, %v406, 0.0
      %v508 = vsel %vm468, %v407, 0.0
      %v509 = vsel %vm469, %v408, 0.0
      %v510 = vsel %vm470, %v409, 0.0
      %v511 = vsel %vm467, %v410, 0.0
      %v512 = vsel %vm468, %v411, 0.0
      %v513 = vsel %vm469, %v412, 0.0
      %v514 = vsel %vm470, %v413, 0.0
      %v515 = vsel %vm467, %v414, 0.0
      %v516 = vsel %vm468, %v415, 0.0
      %v517 = vsel %vm469, %v416, 0.0
      %v518 = vsel %vm470, %v417, 0.0
      %v519 = vsel %vm467, %v418, 0.0
      %v520 = vsel %vm468, %v419, 0.0
      %v521 = vsel %vm469, %v420, 0.0
      %v522 = vsel %vm470, %v421, 0.0
      %v523 = vsel %vm467, %v422, 0.0
      %v524 = vsel %vm468, %v423, 0.0
      %v525 = vsel %vm469, %v424, 0.0
      %v526 = vsel %vm470, %v425, 0.0
      %v527 = vsel %vm467, %v426, 0.0
      %v528 = vsel %vm468, %v427, 0.0
      %v529 = vsel %vm469, %v428, 0.0
      %v530 = vsel %vm470, %v429, 0.0
      %v531 = vsel %vm467, %v430, 0.0
      %v532 = vsel %vm468, %v431, 0.0
      %v533 = vsel %vm469, %v432, 0.0
      %v534 = vsel %vm470, %v433, 0.0
      %v535 = vsel %vm467, %v434, 0.0
      %v536 = vsel %vm468, %v435, 0.0
      %v537 = vsel %vm469, %v436, 0.0
      %v538 = vsel %vm470, %v437, 0.0
      %v539 = vsel %vm463, %v438, 0.0
      %v540 = vsel %vm464, %v439, 0.0
      %v541 = vsel %vm465, %v440, 0.0
      %v542 = vsel %vm466, %v441, 0.0
      %v543 = vpack.c.bf16 %v472, %v471
      %v544 = vpack.c.bf16 %v474, %v473
      %v545 = vpack.c.bf16 %v476, %v475
      %v546 = vpack.c.bf16 %v478, %v477
      %v547 = vpack.c.bf16 %v480, %v479
      %v548 = vpack.c.bf16 %v482, %v481
      %v549 = vpack.c.bf16 %v484, %v483
      %v550 = vpack.c.bf16 %v486, %v485
      %v551 = vpack.c.bf16 %v488, %v487
      %v552 = vpack.c.bf16 %v490, %v489
      %v553 = vpack.c.bf16 %v492, %v491
      %v554 = vpack.c.bf16 %v494, %v493
      %v555 = vpack.c.bf16 %v496, %v495
      %v556 = vpack.c.bf16 %v498, %v497
      %v557 = vpack.c.bf16 %v500, %v499
      %v558 = vpack.c.bf16 %v502, %v501
      %v559 = vpack.c.bf16 %v504, %v503
      %v560 = vpack.c.bf16 %v506, %v505
      %v561 = vpack.c.bf16 %v508, %v507
      %v562 = vpack.c.bf16 %v510, %v509
      %v563 = vpack.c.bf16 %v512, %v511
      %v564 = vpack.c.bf16 %v514, %v513
      %v565 = vpack.c.bf16 %v516, %v515
      %v566 = vpack.c.bf16 %v518, %v517
      %v567 = vpack.c.bf16 %v520, %v519
      %v568 = vpack.c.bf16 %v522, %v521
      %v569 = vpack.c.bf16 %v524, %v523
      %v570 = vpack.c.bf16 %v526, %v525
      %v571 = vpack.c.bf16 %v528, %v527
      %v572 = vpack.c.bf16 %v530, %v529
      %v573 = vpack.c.bf16 %v532, %v531
      %v574 = vpack.c.bf16 %v534, %v533
      %v575 = vpack.c.bf16 %v536, %v535
      %v576 = vpack.c.bf16 %v538, %v537
      %v577 = vpack.c.bf16 %v540, %v539
      %v578 = vpack.c.bf16 %v542, %v541
      %v615 = vunpack.c.l.b16 %v543
      %v616 = vunpack.c.h.b16 %v543
      %v617 = vunpack.c.l.b16 %v544
      %v618 = vunpack.c.h.b16 %v544
      %v619 = vunpack.c.l.b16 %v545
      %v620 = vunpack.c.h.b16 %v545
      %v621 = vunpack.c.l.b16 %v546
      %v622 = vunpack.c.h.b16 %v546
      %v623 = vunpack.c.l.b16 %v547
      %v624 = vunpack.c.h.b16 %v547
      %v625 = vunpack.c.l.b16 %v548
      %v626 = vunpack.c.h.b16 %v548
      %v627 = vunpack.c.l.b16 %v549
      %v628 = vunpack.c.h.b16 %v549
      %v629 = vunpack.c.l.b16 %v550
      %v630 = vunpack.c.h.b16 %v550
      %v631 = vunpack.c.l.b16 %v551
      %v632 = vunpack.c.h.b16 %v551
      %v633 = vunpack.c.l.b16 %v552
      %v634 = vunpack.c.h.b16 %v552
      %v635 = vunpack.c.l.b16 %v553
      %v636 = vunpack.c.h.b16 %v553
      %v637 = vunpack.c.l.b16 %v554
      %v638 = vunpack.c.h.b16 %v554
      %v639 = vunpack.c.l.b16 %v555
      %v640 = vunpack.c.h.b16 %v555
      %v641 = vunpack.c.l.b16 %v556
      %v642 = vunpack.c.h.b16 %v556
      %v643 = vunpack.c.l.b16 %v557
      %v644 = vunpack.c.h.b16 %v557
      %v645 = vunpack.c.l.b16 %v558
      %v646 = vunpack.c.h.b16 %v558
      %v647 = vunpack.c.l.b16 %v559
      %v648 = vunpack.c.h.b16 %v559
      %v649 = vunpack.c.l.b16 %v560
      %v650 = vunpack.c.h.b16 %v560
      %v651 = vunpack.c.l.b16 %v561
      %v652 = vunpack.c.h.b16 %v561
      %v653 = vunpack.c.l.b16 %v562
      %v654 = vunpack.c.h.b16 %v562
      %v655 = vunpack.c.l.b16 %v563
      %v656 = vunpack.c.h.b16 %v563
      %v657 = vunpack.c.l.b16 %v564
      %v658 = vunpack.c.h.b16 %v564
      %v659 = vunpack.c.l.b16 %v565
      %v660 = vunpack.c.h.b16 %v565
      %v661 = vunpack.c.l.b16 %v566
      %v662 = vunpack.c.h.b16 %v566
      %v663 = vunpack.c.l.b16 %v567
      %v664 = vunpack.c.h.b16 %v567
      %v665 = vunpack.c.l.b16 %v568
      %v666 = vunpack.c.h.b16 %v568
      %v667 = vunpack.c.l.b16 %v569
      %v668 = vunpack.c.h.b16 %v569
      %v669 = vunpack.c.l.b16 %v570
      %v670 = vunpack.c.h.b16 %v570
      %v671 = vunpack.c.l.b16 %v571
      %v672 = vunpack.c.h.b16 %v571
      %v673 = vunpack.c.l.b16 %v572
      %v674 = vunpack.c.h.b16 %v572
      %v675 = vunpack.c.l.b16 %v573
      %v676 = vunpack.c.h.b16 %v573
      %v677 = vunpack.c.l.b16 %v574
      %v678 = vunpack.c.h.b16 %v574
      %v679 = vunpack.c.l.b16 %v575
      %v680 = vunpack.c.h.b16 %v575
      %v681 = vunpack.c.l.b16 %v576
      %v682 = vunpack.c.h.b16 %v576
      %v683 = vunpack.c.l.b16 %v577
      %v684 = vunpack.c.h.b16 %v577
      %v685 = vunpack.c.l.b16 %v578
      %v686 = vunpack.c.h.b16 %v578
      %v687 = vpack.c.b16 %v615, %v615
      %v688 = vpack.c.b16 %v616, %v616
      %v689 = vpack.c.b16 %v617, %v617
      %v690 = vpack.c.b16 %v618, %v618
      %v691 = vpack.c.b16 %v619, %v619
      %v692 = vpack.c.b16 %v620, %v620
      %v693 = vpack.c.b16 %v621, %v621
      %v694 = vpack.c.b16 %v622, %v622
      %v695 = vpack.c.b16 %v623, %v623
      %v696 = vpack.c.b16 %v624, %v624
      %v697 = vpack.c.b16 %v625, %v625
      %v698 = vpack.c.b16 %v626, %v626
      %v699 = vpack.c.b16 %v627, %v627
      %v700 = vpack.c.b16 %v628, %v628
      %v701 = vpack.c.b16 %v629, %v629
      %v702 = vpack.c.b16 %v630, %v630
      %v703 = vpack.c.b16 %v631, %v631
      %v704 = vpack.c.b16 %v632, %v632
      %v705 = vpack.c.b16 %v633, %v633
      %v706 = vpack.c.b16 %v634, %v634
      %v707 = vpack.c.b16 %v635, %v635
      %v708 = vpack.c.b16 %v636, %v636
      %v709 = vpack.c.b16 %v637, %v637
      %v710 = vpack.c.b16 %v638, %v638
      %v711 = vpack.c.b16 %v639, %v639
      %v712 = vpack.c.b16 %v640, %v640
      %v713 = vpack.c.b16 %v641, %v641
      %v714 = vpack.c.b16 %v642, %v642
      %v715 = vpack.c.b16 %v643, %v643
      %v716 = vpack.c.b16 %v644, %v644
      %v717 = vpack.c.b16 %v645, %v645
      %v718 = vpack.c.b16 %v646, %v646
      %v719 = vpack.c.b16 %v647, %v647
      %v720 = vpack.c.b16 %v648, %v648
      %v721 = vpack.c.b16 %v649, %v649
      %v722 = vpack.c.b16 %v650, %v650
      %v723 = vpack.c.b16 %v651, %v651
      %v724 = vpack.c.b16 %v652, %v652
      %v725 = vpack.c.b16 %v653, %v653
      %v726 = vpack.c.b16 %v654, %v654
      %v727 = vpack.c.b16 %v655, %v655
      %v728 = vpack.c.b16 %v656, %v656
      %v729 = vpack.c.b16 %v657, %v657
      %v730 = vpack.c.b16 %v658, %v658
      %v731 = vpack.c.b16 %v659, %v659
      %v732 = vpack.c.b16 %v660, %v660
      %v733 = vpack.c.b16 %v661, %v661
      %v734 = vpack.c.b16 %v662, %v662
      %v735 = vpack.c.b16 %v663, %v663
      %v736 = vpack.c.b16 %v664, %v664
      %v737 = vpack.c.b16 %v665, %v665
      %v738 = vpack.c.b16 %v666, %v666
      %v739 = vpack.c.b16 %v667, %v667
      %v740 = vpack.c.b16 %v668, %v668
      %v741 = vpack.c.b16 %v669, %v669
      %v742 = vpack.c.b16 %v670, %v670
      %v743 = vpack.c.b16 %v671, %v671
      %v744 = vpack.c.b16 %v672, %v672
      %v745 = vpack.c.b16 %v673, %v673
      %v746 = vpack.c.b16 %v674, %v674
      %v747 = vpack.c.b16 %v675, %v675
      %v748 = vpack.c.b16 %v676, %v676
      %v749 = vpack.c.b16 %v677, %v677
      %v750 = vpack.c.b16 %v678, %v678
      %v751 = vpack.c.b16 %v679, %v679
      %v752 = vpack.c.b16 %v680, %v680
      %v753 = vpack.c.b16 %v681, %v681
      %v754 = vpack.c.b16 %v682, %v682
      %v755 = vpack.c.b16 %v683, %v683
      %v756 = vpack.c.b16 %v684, %v684
      %v757 = vpack.c.b16 %v685, %v685
      %v758 = vpack.c.b16 %v686, %v686
      %831 = vst [vmem:[%s143] sm:$0xf] %v687
      %832 = vst [vmem:[%s143 + $0x4] sm:$0xf] %v688
      %833 = vst [vmem:[%s143 + $0x8] sm:$0xf] %v689
      %834 = vst [vmem:[%s143 + $0xc] sm:$0xf] %v690
      %835 = vst [vmem:[%s143 + $0x10] sm:$0xf] %v691
      %836 = vst [vmem:[%s143 + $0x14] sm:$0xf] %v692
      %837 = vst [vmem:[%s143 + $0x18] sm:$0xf] %v693
      %838 = vst [vmem:[%s143 + $0x1c] sm:$0xf] %v694
      %839 = vst [vmem:[%s143 + $0x20] sm:$0xf] %v695
      %840 = vst [vmem:[%s143 + $0x24] sm:$0xf] %v696
      %841 = vst [vmem:[%s143 + $0x28] sm:$0xf] %v697
      %842 = vst [vmem:[%s143 + $0x2c] sm:$0xf] %v698
      %843 = vst [vmem:[%s143 + $0x30] sm:$0xf] %v699
      %844 = vst [vmem:[%s143 + $0x34] sm:$0xf] %v700
      %845 = vst [vmem:[%s143 + $0x38] sm:$0xf] %v701
      %846 = vst [vmem:[%s143 + $0x3c] sm:$0xf] %v702
      %847 = vst [vmem:[%s143 + $0x40] sm:$0xf] %v703
      %848 = vst [vmem:[%s143 + $0x44] sm:$0xf] %v704
      %849 = vst [vmem:[%s143 + $0x48] sm:$0xf] %v705
      %850 = vst [vmem:[%s143 + $0x4c] sm:$0xf] %v706
      %851 = vst [vmem:[%s143 + $0x50] sm:$0xf] %v707
      %852 = vst [vmem:[%s143 + $0x54] sm:$0xf] %v708
      %853 = vst [vmem:[%s143 + $0x58] sm:$0xf] %v709
      %854 = vst [vmem:[%s143 + $0x5c] sm:$0xf] %v710
      %855 = vst [vmem:[%s143 + $0x60] sm:$0xf] %v711
      %856 = vst [vmem:[%s143 + $0x64] sm:$0xf] %v712
      %857 = vst [vmem:[%s143 + $0x68] sm:$0xf] %v713
      %858 = vst [vmem:[%s143 + $0x6c] sm:$0xf] %v714
      %859 = vst [vmem:[%s143 + $0x70] sm:$0xf] %v715
      %860 = vst [vmem:[%s143 + $0x74] sm:$0xf] %v716
      %861 = vst [vmem:[%s143 + $0x78] sm:$0xf] %v717
      %862 = vst [vmem:[%s143 + $0x7c] sm:$0xf] %v718
      %863 = vst [vmem:[%s143 + $0x80] sm:$0xf] %v719
      %864 = vst [vmem:[%s143 + $0x84] sm:$0xf] %v720
      %865 = vst [vmem:[%s143 + $0x88] sm:$0xf] %v721
      %866 = vst [vmem:[%s143 + $0x8c] sm:$0xf] %v722
      %867 = vst [vmem:[%s143 + $0x90] sm:$0xf] %v723
      %868 = vst [vmem:[%s143 + $0x94] sm:$0xf] %v724
      %869 = vst [vmem:[%s143 + $0x98] sm:$0xf] %v725
      %870 = vst [vmem:[%s143 + $0x9c] sm:$0xf] %v726
      %871 = vst [vmem:[%s143 + $0xa0] sm:$0xf] %v727
      %872 = vst [vmem:[%s143 + $0xa4] sm:$0xf] %v728
      %873 = vst [vmem:[%s143 + $0xa8] sm:$0xf] %v729
      %874 = vst [vmem:[%s143 + $0xac] sm:$0xf] %v730
      %875 = vst [vmem:[%s143 + $0xb0] sm:$0xf] %v731
      %876 = vst [vmem:[%s143 + $0xb4] sm:$0xf] %v732
      %877 = vst [vmem:[%s143 + $0xb8] sm:$0xf] %v733
      %878 = vst [vmem:[%s143 + $0xbc] sm:$0xf] %v734
      %879 = vst [vmem:[%s143 + $0xc0] sm:$0xf] %v735
      %880 = vst [vmem:[%s143 + $0xc4] sm:$0xf] %v736
      %881 = vst [vmem:[%s143 + $0xc8] sm:$0xf] %v737
      %882 = vst [vmem:[%s143 + $0xcc] sm:$0xf] %v738
      %883 = vst [vmem:[%s143 + $0xd0] sm:$0xf] %v739
      %884 = vst [vmem:[%s143 + $0xd4] sm:$0xf] %v740
      %885 = vst [vmem:[%s143 + $0xd8] sm:$0xf] %v741
      %886 = vst [vmem:[%s143 + $0xdc] sm:$0xf] %v742
      %887 = vst [vmem:[%s143 + $0xe0] sm:$0xf] %v743
      %888 = vst [vmem:[%s143 + $0xe4] sm:$0xf] %v744
      %889 = vst [vmem:[%s143 + $0xe8] sm:$0xf] %v745
      %890 = vst [vmem:[%s143 + $0xec] sm:$0xf] %v746
      %891 = vst [vmem:[%s143 + $0xf0] sm:$0xf] %v747
      %892 = vst [vmem:[%s143 + $0xf4] sm:$0xf] %v748
      %893 = vst [vmem:[%s143 + $0xf8] sm:$0xf] %v749
      %894 = vst [vmem:[%s143 + $0xfc] sm:$0xf] %v750
      %895 = vst [vmem:[%s143 + $0x100] sm:$0xf] %v751
      %896 = vst [vmem:[%s143 + $0x104] sm:$0xf] %v752
      %897 = vst [vmem:[%s143 + $0x108] sm:$0xf] %v753
      %898 = vst [vmem:[%s143 + $0x10c] sm:$0xf] %v754
      %899 = vst [vmem:[%s143 + $0x110] sm:$0xf] %v755
      %900 = vst [vmem:[%s143 + $0x114] sm:$0xf] %v756
      %901 = vst [vmem:[%s143 + $0x118] sm:$0xf] %v757
      %902 = vst [vmem:[%s143 + $0x11c] sm:$0xf] %v758
      %p903 = scmp.lt.s32.totalorder %s13, 1
      %s904 = scalar_select %p903, %s13, 1
      %s905 = smul.addr %s904, 72
      %s906 = smul.addr %s905, 4
      %s907 = scalar_lea.vmem %s2, %s906
      // Predicated region
      $region29: #{vgg_block_forward.5} parent=27 // pred_check
        %p908 = pneg %p78
      $region30: #{vgg_block_forward.5} parent=27 // pred_check_branch
        %910 = sbr.rel (%p908) target = $region32
      $region31: #{vgg_block_forward.5} parent=27 // pred_region
        _
      $region32: #{vgg_block_forward.5} parent=27 // pred_fallthru
        _
    $region28: #{vgg_block_forward.5} parent=5 // pred_fallthru
      _
    %p911 = scmp.le.s32.totalorder 2, %s8
    // Predicated region
    $region33: #{vgg_block_forward.5} parent=5 // pred_check
      %p912 = pneg %p911
    $region34: #{vgg_block_forward.5} parent=5 // pred_check_branch
      %914 = sbr.rel (%p912) target = $region36
    $region35: #{vgg_block_forward.5} parent=5 // pred_region
      %s915 = ssub.s32 %s8, 2
      // Predicated region
      $region37: #{vgg_block_forward.5} parent=35 // pred_check
        %p916 = pneg %p84
      $region38: #{vgg_block_forward.5} parent=35 // pred_check_branch
        %918 = sbr.rel (%p916) target = $region40
      $region39: #{vgg_block_forward.5} parent=35 // pred_region
        %p919 = scmp.lt.s32.totalorder %s14, 1
        %s920 = scalar_select %p919, %s14, 1
        %s921 = smul.addr %s920, 72
        %s922 = smul.addr %s921, 4
        %s923 = scalar_lea.vmem %s2, %s922
      $region40: #{vgg_block_forward.5} parent=35 // pred_fallthru
        _
    $region36: #{vgg_block_forward.5} parent=5 // pred_fallthru
      _
  $region6: #{vgg_block_forward.5} parent=0 // loop_footer
    %s12 = sadd.s32 1, %s8
  $region7: #{vgg_block_forward.5} parent=0 // loop_footer_branch
    %7 = sbr.rel target = $region3
  $region8: #{vgg_block_forward.5} parent=0 // loop_exit
    _

// kernel: vgg_block_forward.7
$region0: #{vgg_block_forward.7}
  #allocation0 [shape = 'u32[]', space=smem, size = 0x4, offset = 0x4, fixed_abs, tag = 'smem constant byte address 0x4 - core index']
  #allocation1 [shape = 'u32[144,128]{1,0:T(1,128)}', space=vmem, size = 0x12000, scoped, tag = 'internal scratch']
  %s0 = inlined_call_operand.vmem [shape: f32[2,16,16,256], index: 0, kind: input, shape index: {}]
  %s1 = inlined_call_operand.vmem [shape: f32[2,256], index: 1, kind: input, shape index: {}]
  %s2 = inlined_call_operand.vmem [shape: f32[2,8,16,128], index: 2, kind: output, shape index: {}]
  %s3 = sld [smem:[#allocation0]]
  $region41: #{vgg_block_forward.7} parent=0
    _
  %s5 = ssub.s32 1, %s3
  %s6 = scalar_select 0, %s5, %s3
  loop: start=0, step=1, limit=4
  $region2: #{vgg_block_forward.7} parent=0 // loop_pre_header
    _
  $region3: #{vgg_block_forward.7} parent=0 // loop_header
    %s8 = sphi 0, %s12
    %p9 = scmp.ge.s32.totalorder %s8, 4
    %s18 = sphi 0, %s20
    %s21 = sphi 0, %s18
    %s22 = sphi 0, %s21
    %s38 = sphi 0, %s22
    %s42 = sphi 0, %s42
    %s44 = sphi 0, %s42
    %s45 = sphi 0, %s44
    %s59 = sphi 0, %s45
    %s65 = sphi 0, %s67
    %s68 = sphi 0, %s65
    %s69 = sphi 0, %s68
    %s85 = sphi 0, %s69
  $region4: #{vgg_block_forward.7} parent=0 // loop_header_branch
    %11 = sbr.rel (%p9) target = $region8
  $region5: #{vgg_block_forward.7} parent=0 // loop_body
    %s13 = ssub.s32 %s8, 1
    %s14 = ssub.s32 %s8, 2
    %s15 = sadd.s32 %s8, 1
    %s16 = ssub.s32 %s8, %s15
    %p17 = scmp.eq.s32.totalorder %s16, 0
    %s19 = sadd.s32 %s18, 1
    %s20 = scalar_select %p17, %s18, %s19
    %p23 = pneg %p17
    %p24 = scmp.eq.s32.totalorder %s8, 1
    %p25 = por %p23, %p24
    %p26 = scmp.ne.s32.totalorder %s18, %s21
    %p27 = scmp.eq.s32.totalorder %s8, 0
    %p28 = por %p26, %p27
    %p29 = scmp.ne.s32.totalorder %s18, %s21
    %p30 = scmp.eq.s32.totalorder %s13, 1
    %p31 = por %p29, %p30
    %p32 = scmp.ne.s32.totalorder %s21, %s22
    %p33 = scmp.eq.s32.totalorder %s13, 0
    %p34 = por %p32, %p33
    %p35 = scmp.ne.s32.totalorder %s21, %s22
    %p36 = scmp.eq.s32.totalorder %s14, 1
    %p37 = por %p35, %p36
    %p39 = scmp.ne.s32.totalorder %s22, %s38
    %p40 = scmp.eq.s32.totalorder %s14, 0
    %p41 = por %p39, %p40
    %s43 = sadd.s32 %s42, 1
    %p46 = scmp.eq.s32.totalorder %s8, 1
    %p47 = scmp.ne.s32.totalorder %s42, %s44
    %p48 = scmp.eq.s32.totalorder %s8, 0
    %p49 = por %p47, %p48
    %p50 = scmp.ne.s32.totalorder %s42, %s44
    %p51 = scmp.eq.s32.totalorder %s13, 1
    %p52 = por %p50, %p51
    %p53 = scmp.ne.s32.totalorder %s44, %s45
    %p54 = scmp.eq.s32.totalorder %s13, 0
    %p55 = por %p53, %p54
    %p56 = scmp.ne.s32.totalorder %s44, %s45
    %p57 = scmp.eq.s32.totalorder %s14, 1
    %p58 = por %p56, %p57
    %p60 = scmp.ne.s32.totalorder %s45, %s59
    %p61 = scmp.eq.s32.totalorder %s14, 0
    %p62 = por %p60, %p61
    %s63 = ssub.s32 %s8, %s15
    %p64 = scmp.eq.s32.totalorder %s63, 0
    %s66 = sadd.s32 %s65, 1
    %s67 = scalar_select %p64, %s65, %s66
    %p70 = pneg %p64
    %p71 = scmp.eq.s32.totalorder %s8, 1
    %p72 = por %p70, %p71
    %p73 = scmp.ne.s32.totalorder %s65, %s68
    %p74 = scmp.eq.s32.totalorder %s8, 0
    %p75 = por %p73, %p74
    %p76 = scmp.ne.s32.totalorder %s65, %s68
    %p77 = scmp.eq.s32.totalorder %s13, 1
    %p78 = por %p76, %p77
    %p79 = scmp.ne.s32.totalorder %s68, %s69
    %p80 = scmp.eq.s32.totalorder %s13, 0
    %p81 = por %p79, %p80
    %p82 = scmp.ne.s32.totalorder %s68, %s69
    %p83 = scmp.eq.s32.totalorder %s14, 1
    %p84 = por %p82, %p83
    %p86 = scmp.ne.s32.totalorder %s69, %s85
    %p87 = scmp.eq.s32.totalorder %s14, 0
    %p88 = por %p86, %p87
    %p89 = scmp.le.s32.totalorder 1, %s8
    %p90 = scmp.lt.s32.totalorder %s8, 3
    %p91 = pnand %p89, %p90
    %p92 = pneg %p91
    // Predicated region
    $region9: #{vgg_block_forward.7} parent=5 // pred_check
      _
    $region10: #{vgg_block_forward.7} parent=5 // pred_check_branch
      %94 = sbr.rel (%p91) target = $region12
    $region11: #{vgg_block_forward.7} parent=5 // pred_region
      %s95 = ssub.s32 %s8, 1
      // Predicated region
      $region13: #{vgg_block_forward.7} parent=11 // pred_check
        %p96 = pneg %p55
      $region14: #{vgg_block_forward.7} parent=11 // pred_check_branch
        %98 = sbr.rel (%p96) target = $region16
      $region15: #{vgg_block_forward.7} parent=11 // pred_region
        _
      $region16: #{vgg_block_forward.7} parent=11 // pred_fallthru
        _
    $region12: #{vgg_block_forward.7} parent=5 // pred_fallthru
      _
    %p99 = scmp.lt.s32.totalorder %s8, 2
    // Predicated region
    $region17: #{vgg_block_forward.7} parent=5 // pred_check
      %p100 = pneg %p99
    $region18: #{vgg_block_forward.7} parent=5 // pred_check_branch
      %102 = sbr.rel (%p100) target = $region20
    $region19: #{vgg_block_forward.7} parent=5 // pred_region
      // Predicated region
      $region21: #{vgg_block_forward.7} parent=19 // pred_check
        %p103 = pneg %p28
      $region22: #{vgg_block_forward.7} parent=19 // pred_check_branch
        %105 = sbr.rel (%p103) target = $region24
      $region23: #{vgg_block_forward.7} parent=19 // pred_region
        %p106 = scmp.lt.s32.totalorder %s8, 1
        %s107 = scalar_select %p106, %s8, 1
        %s108 = smul.addr %s107, 64
        %s109 = smul.addr %s108, 8
        %s110 = scalar_lea.vmem %s0, %s109
      $region24: #{vgg_block_forward.7} parent=19 // pred_fallthru
        _
    $region20: #{vgg_block_forward.7} parent=5 // pred_fallthru
      _
    %p111 = scmp.le.s32.totalorder 1, %s8
    %p112 = scmp.lt.s32.totalorder %s8, 3
    %p113 = pnand %p111, %p112
    %p114 = pneg %p113
    // Predicated region
    $region25: #{vgg_block_forward.7} parent=5 // pred_check
      _
    $region26: #{vgg_block_forward.7} parent=5 // pred_check_branch
      %116 = sbr.rel (%p113) target = $region28
    $region27: #{vgg_block_forward.7} parent=5 // pred_region
      %s117 = ssub.s32 %s8, 1
      %p118 = scmp.lt.s32.totalorder %s13, 1
      %s119 = scalar_select %p118, %s13, 1
      %s120 = smul.addr %s119, 64
      %s121 = smul.addr %s120, 8
      %s122 = scalar_lea.vmem %s0, %s121
      %p123 = pneg %p34
      %p124 = pneg %p31
      %p125 = pneg %p55
      %p126 = pneg %p52
      %p127 = pneg %p81
      %p128 = pneg %p78
      %p129 = scmp.lt.s32.totalorder %s13, 1
      %s130 = scalar_select %p129, %s13, 1
      %s131 = smul.addr %s130, 16
      %s132 = smul.addr %s131, 8
      %s133 = scalar_lea.vmem %s2, %s132
      %p134 = scmp.lt.s32.totalorder %s13, 1
      %s135 = scalar_select %p134, %s13, 1
      %s136 = smul.addr %s135, 64
      %s137 = smul.addr %s136, 8
      %s138 = scalar_lea.vmem %s0, %s137
      %p139 = scmp.lt.s32.totalorder %s13, 1
      %s140 = scalar_select %p139, %s13, 1
      %s141 = smul.addr %s140, 16
      %s142 = smul.addr %s141, 8
      %s143 = scalar_lea.vmem %s2, %s142
      %v144 = vld [vmem:[%s138] sm:$0xff]
      %v145 = vld [vmem:[%s138 + $0x8] sm:$0xff]
      %v146 = vld [vmem:[%s138 + $0x10] sm:$0xff]
      %v147 = vld [vmem:[%s138 + $0x18] sm:$0xff]
      %v148 = vld [vmem:[%s138 + $0x20] sm:$0xff]
      %v149 = vld [vmem:[%s138 + $0x28] sm:$0xff]
      %v150 = vld [vmem:[%s138 + $0x30] sm:$0xff]
      %v151 = vld [vmem:[%s138 + $0x38] sm:$0xff]
      %v152 = vld [vmem:[%s138 + $0x40] sm:$0xff]
      %v153 = vld [vmem:[%s138 + $0x48] sm:$0xff]
      %v154 = vld [vmem:[%s138 + $0x50] sm:$0xff]
      %v155 = vld [vmem:[%s138 + $0x58] sm:$0xff]
      %v156 = vld [vmem:[%s138 + $0x60] sm:$0xff]
      %v157 = vld [vmem:[%s138 + $0x68] sm:$0xff]
      %v158 = vld [vmem:[%s138 + $0x70] sm:$0xff]
      %v159 = vld [vmem:[%s138 + $0x78] sm:$0xff]
      %v160 = vld [vmem:[%s138 + $0x80] sm:$0xff]
      %v161 = vld [vmem:[%s138 + $0x88] sm:$0xff]
      %v162 = vld [vmem:[%s138 + $0x90] sm:$0xff]
      %v163 = vld [vmem:[%s138 + $0x98] sm:$0xff]
      %v164 = vld [vmem:[%s138 + $0xa0] sm:$0xff]
      %v165 = vld [vmem:[%s138 + $0xa8] sm:$0xff]
      %v166 = vld [vmem:[%s138 + $0xb0] sm:$0xff]
      %v167 = vld [vmem:[%s138 + $0xb8] sm:$0xff]
      %v168 = vld [vmem:[%s138 + $0xc0] sm:$0xff]
      %v169 = vld [vmem:[%s138 + $0xc8] sm:$0xff]
      %v170 = vld [vmem:[%s138 + $0xd0] sm:$0xff]
      %v171 = vld [vmem:[%s138 + $0xd8] sm:$0xff]
      %v172 = vld [vmem:[%s138 + $0xe0] sm:$0xff]
      %v173 = vld [vmem:[%s138 + $0xe8] sm:$0xff]
      %v174 = vld [vmem:[%s138 + $0xf0] sm:$0xff]
      %v175 = vld [vmem:[%s138 + $0xf8] sm:$0xff]
      %v176 = vld [vmem:[%s138 + $0x100] sm:$0xff]
      %v177 = vld [vmem:[%s138 + $0x108] sm:$0xff]
      %v178 = vld [vmem:[%s138 + $0x110] sm:$0xff]
      %v179 = vld [vmem:[%s138 + $0x118] sm:$0xff]
      %v180 = vld [vmem:[%s138 + $0x120] sm:$0xff]
      %v181 = vld [vmem:[%s138 + $0x128] sm:$0xff]
      %v182 = vld [vmem:[%s138 + $0x130] sm:$0xff]
      %v183 = vld [vmem:[%s138 + $0x138] sm:$0xff]
      %v184 = vld [vmem:[%s138 + $0x140] sm:$0xff]
      %v185 = vld [vmem:[%s138 + $0x148] sm:$0xff]
      %v186 = vld [vmem:[%s138 + $0x150] sm:$0xff]
      %v187 = vld [vmem:[%s138 + $0x158] sm:$0xff]
      %v188 = vld [vmem:[%s138 + $0x160] sm:$0xff]
      %v189 = vld [vmem:[%s138 + $0x168] sm:$0xff]
      %v190 = vld [vmem:[%s138 + $0x170] sm:$0xff]
      %v191 = vld [vmem:[%s138 + $0x178] sm:$0xff]
      %v192 = vld [vmem:[%s138 + $0x180] sm:$0xff]
      %v193 = vld [vmem:[%s138 + $0x188] sm:$0xff]
      %v194 = vld [vmem:[%s138 + $0x190] sm:$0xff]
      %v195 = vld [vmem:[%s138 + $0x198] sm:$0xff]
      %v196 = vld [vmem:[%s138 + $0x1a0] sm:$0xff]
      %v197 = vld [vmem:[%s138 + $0x1a8] sm:$0xff]
      %v198 = vld [vmem:[%s138 + $0x1b0] sm:$0xff]
      %v199 = vld [vmem:[%s138 + $0x1b8] sm:$0xff]
      %v200 = vld [vmem:[%s138 + $0x1c0] sm:$0xff]
      %v201 = vld [vmem:[%s138 + $0x1c8] sm:$0xff]
      %v202 = vld [vmem:[%s138 + $0x1d0] sm:$0xff]
      %v203 = vld [vmem:[%s138 + $0x1d8] sm:$0xff]
      %v204 = vld [vmem:[%s138 + $0x1e0] sm:$0xff]
      %v205 = vld [vmem:[%s138 + $0x1e8] sm:$0xff]
      %v206 = vld [vmem:[%s138 + $0x1f0] sm:$0xff]
      %v207 = vld [vmem:[%s138 + $0x1f8] sm:$0xff]
      %v208 = vld [vmem:[%s1] ss:$2 sm:$0x3]
      %v210 = vlaneseq
      %v211 = vshrl.u32 %v210, 7
      %v212 = vsub.s32 0, %v211
      %v213 = vrot.slane %v208, %v212
      %v214 = vlaneseq
      %v215 = vshrl.u32 %v214, 7
      %v216 = vsub.s32 1, %v215
      %v217 = vrot.slane %v208, %v216
      %v220 = vmul.f32 %v144, %v213
      %v221 = vmul.f32 %v145, %v217
      %v222 = vmul.f32 %v146, %v213
      %v223 = vmul.f32 %v147, %v217
      %v224 = vmul.f32 %v148, %v213
      %v225 = vmul.f32 %v149, %v217
      %v226 = vmul.f32 %v150, %v213
      %v227 = vmul.f32 %v151, %v217
      %v228 = vmul.f32 %v152, %v213
      %v229 = vmul.f32 %v153, %v217
      %v230 = vmul.f32 %v154, %v213
      %v231 = vmul.f32 %v155, %v217
      %v232 = vmul.f32 %v156, %v213
      %v233 = vmul.f32 %v157, %v217
      %v234 = vmul.f32 %v158, %v213
      %v235 = vmul.f32 %v159, %v217
      %v236 = vmul.f32 %v160, %v213
      %v237 = vmul.f32 %v161, %v217
      %v238 = vmul.f32 %v162, %v213
      %v239 = vmul.f32 %v163, %v217
      %v240 = vmul.f32 %v164, %v213
      %v241 = vmul.f32 %v165, %v217
      %v242 = vmul.f32 %v166, %v213
      %v243 = vmul.f32 %v167, %v217
      %v244 = vmul.f32 %v168, %v213
      %v245 = vmul.f32 %v169, %v217
      %v246 = vmul.f32 %v170, %v213
      %v247 = vmul.f32 %v171, %v217
      %v248 = vmul.f32 %v172, %v213
      %v249 = vmul.f32 %v173, %v217
      %v250 = vmul.f32 %v174, %v213
      %v251 = vmul.f32 %v175, %v217
      %v252 = vmul.f32 %v176, %v213
      %v253 = vmul.f32 %v177, %v217
      %v254 = vmul.f32 %v178, %v213
      %v255 = vmul.f32 %v179, %v217
      %v256 = vmul.f32 %v180, %v213
      %v257 = vmul.f32 %v181, %v217
      %v258 = vmul.f32 %v182, %v213
      %v259 = vmul.f32 %v183, %v217
      %v260 = vmul.f32 %v184, %v213
      %v261 = vmul.f32 %v185, %v217
      %v262 = vmul.f32 %v186, %v213
      %v263 = vmul.f32 %v187, %v217
      %v264 = vmul.f32 %v188, %v213
      %v265 = vmul.f32 %v189, %v217
      %v266 = vmul.f32 %v190, %v213
      %v267 = vmul.f32 %v191, %v217
      %v268 = vmul.f32 %v192, %v213
      %v269 = vmul.f32 %v193, %v217
      %v270 = vmul.f32 %v194, %v213
      %v271 = vmul.f32 %v195, %v217
      %v272 = vmul.f32 %v196, %v213
      %v273 = vmul.f32 %v197, %v217
      %v274 = vmul.f32 %v198, %v213
      %v275 = vmul.f32 %v199, %v217
      %v276 = vmul.f32 %v200, %v213
      %v277 = vmul.f32 %v201, %v217
      %v278 = vmul.f32 %v202, %v213
      %v279 = vmul.f32 %v203, %v217
      %v280 = vmul.f32 %v204, %v213
      %v281 = vmul.f32 %v205, %v217
      %v282 = vmul.f32 %v206, %v213
      %v283 = vmul.f32 %v207, %v217
      %s284 = scalar_lea.vmem %s1, 1
      %v285 = vld [vmem:[%s284] ss:$2 sm:$0x3]
      %v287 = vlaneseq
      %v288 = vshrl.u32 %v287, 7
      %v289 = vsub.s32 0, %v288
      %v290 = vrot.slane %v285, %v289
      %v291 = vlaneseq
      %v292 = vshrl.u32 %v291, 7
      %v293 = vsub.s32 1, %v292
      %v294 = vrot.slane %v285, %v293
      %v297 = vadd.f32 %v220, %v290
      %v298 = vadd.f32 %v221, %v294
      %v299 = vadd.f32 %v222, %v290
      %v300 = vadd.f32 %v223, %v294
      %v301 = vadd.f32 %v224, %v290
      %v302 = vadd.f32 %v225, %v294
      %v303 = vadd.f32 %v226, %v290
      %v304 = vadd.f32 %v227, %v294
      %v305 = vadd.f32 %v228, %v290
      %v306 = vadd.f32 %v229, %v294
      %v307 = vadd.f32 %v230, %v290
      %v308 = vadd.f32 %v231, %v294
      %v309 = vadd.f32 %v232, %v290
      %v310 = vadd.f32 %v233, %v294
      %v311 = vadd.f32 %v234, %v290
      %v312 = vadd.f32 %v235, %v294
      %v313 = vadd.f32 %v236, %v290
      %v314 = vadd.f32 %v237, %v294
      %v315 = vadd.f32 %v238, %v290
      %v316 = vadd.f32 %v239, %v294
      %v317 = vadd.f32 %v240, %v290
      %v318 = vadd.f32 %v241, %v294
      %v319 = vadd.f32 %v242, %v290
      %v320 = vadd.f32 %v243, %v294
      %v321 = vadd.f32 %v244, %v290
      %v322 = vadd.f32 %v245, %v294
      %v323 = vadd.f32 %v246, %v290
      %v324 = vadd.f32 %v247, %v294
      %v325 = vadd.f32 %v248, %v290
      %v326 = vadd.f32 %v249, %v294
      %v327 = vadd.f32 %v250, %v290
      %v328 = vadd.f32 %v251, %v294
      %v329 = vadd.f32 %v252, %v290
      %v330 = vadd.f32 %v253, %v294
      %v331 = vadd.f32 %v254, %v290
      %v332 = vadd.f32 %v255, %v294
      %v333 = vadd.f32 %v256, %v290
      %v334 = vadd.f32 %v257, %v294
      %v335 = vadd.f32 %v258, %v290
      %v336 = vadd.f32 %v259, %v294
      %v337 = vadd.f32 %v260, %v290
      %v338 = vadd.f32 %v261, %v294
      %v339 = vadd.f32 %v262, %v290
      %v340 = vadd.f32 %v263, %v294
      %v341 = vadd.f32 %v264, %v290
      %v342 = vadd.f32 %v265, %v294
      %v343 = vadd.f32 %v266, %v290
      %v344 = vadd.f32 %v267, %v294
      %v345 = vadd.f32 %v268, %v290
      %v346 = vadd.f32 %v269, %v294
      %v347 = vadd.f32 %v270, %v290
      %v348 = vadd.f32 %v271, %v294
      %v349 = vadd.f32 %v272, %v290
      %v350 = vadd.f32 %v273, %v294
      %v351 = vadd.f32 %v274, %v290
      %v352 = vadd.f32 %v275, %v294
      %v353 = vadd.f32 %v276, %v290
      %v354 = vadd.f32 %v277, %v294
      %v355 = vadd.f32 %v278, %v290
      %v356 = vadd.f32 %v279, %v294
      %v357 = vadd.f32 %v280, %v290
      %v358 = vadd.f32 %v281, %v294
      %v359 = vadd.f32 %v282, %v290
      %v360 = vadd.f32 %v283, %v294
      %v361 = vmax.f32 %v297, 0.0
      %v362 = vmax.f32 %v298, 0.0
      %v363 = vmax.f32 %v299, 0.0
      %v364 = vmax.f32 %v300, 0.0
      %v365 = vmax.f32 %v301, 0.0
      %v366 = vmax.f32 %v302, 0.0
      %v367 = vmax.f32 %v303, 0.0
      %v368 = vmax.f32 %v304, 0.0
      %v369 = vmax.f32 %v305, 0.0
      %v370 = vmax.f32 %v306, 0.0
      %v371 = vmax.f32 %v307, 0.0
      %v372 = vmax.f32 %v308, 0.0
      %v373 = vmax.f32 %v309, 0.0
      %v374 = vmax.f32 %v310, 0.0
      %v375 = vmax.f32 %v311, 0.0
      %v376 = vmax.f32 %v312, 0.0
      %v377 = vmax.f32 %v313, 0.0
      %v378 = vmax.f32 %v314, 0.0
      %v379 = vmax.f32 %v315, 0.0
      %v380 = vmax.f32 %v316, 0.0
      %v381 = vmax.f32 %v317, 0.0
      %v382 = vmax.f32 %v318, 0.0
      %v383 = vmax.f32 %v319, 0.0
      %v384 = vmax.f32 %v320, 0.0
      %v385 = vmax.f32 %v321, 0.0
      %v386 = vmax.f32 %v322, 0.0
      %v387 = vmax.f32 %v323, 0.0
      %v388 = vmax.f32 %v324, 0.0
      %v389 = vmax.f32 %v325, 0.0
      %v390 = vmax.f32 %v326, 0.0
      %v391 = vmax.f32 %v327, 0.0
      %v392 = vmax.f32 %v328, 0.0
      %v393 = vmax.f32 %v329, 0.0
      %v394 = vmax.f32 %v330, 0.0
      %v395 = vmax.f32 %v331, 0.0
      %v396 = vmax.f32 %v332, 0.0
      %v397 = vmax.f32 %v333, 0.0
      %v398 = vmax.f32 %v334, 0.0
      %v399 = vmax.f32 %v335, 0.0
      %v400 = vmax.f32 %v336, 0.0
      %v401 = vmax.f32 %v337, 0.0
      %v402 = vmax.f32 %v338, 0.0
      %v403 = vmax.f32 %v339, 0.0
      %v404 = vmax.f32 %v340, 0.0
      %v405 = vmax.f32 %v341, 0.0
      %v406 = vmax.f32 %v342, 0.0
      %v407 = vmax.f32 %v343, 0.0
      %v408 = vmax.f32 %v344, 0.0
      %v409 = vmax.f32 %v345, 0.0
      %v410 = vmax.f32 %v346, 0.0
      %v411 = vmax.f32 %v347, 0.0
      %v412 = vmax.f32 %v348, 0.0
      %v413 = vmax.f32 %v349, 0.0
      %v414 = vmax.f32 %v350, 0.0
      %v415 = vmax.f32 %v351, 0.0
      %v416 = vmax.f32 %v352, 0.0
      %v417 = vmax.f32 %v353, 0.0
      %v418 = vmax.f32 %v354, 0.0
      %v419 = vmax.f32 %v355, 0.0
      %v420 = vmax.f32 %v356, 0.0
      %v421 = vmax.f32 %v357, 0.0
      %v422 = vmax.f32 %v358, 0.0
      %v423 = vmax.f32 %v359, 0.0
      %v424 = vmax.f32 %v360, 0.0
      %v425 = vmax.f32 %v361, %v365
      %v426 = vmax.f32 %v362, %v366
      %v427 = vmax.f32 %v363, %v367
      %v428 = vmax.f32 %v364, %v368
      %v429 = vmax.f32 %v369, %v373
      %v430 = vmax.f32 %v370, %v374
      %v431 = vmax.f32 %v371, %v375
      %v432 = vmax.f32 %v372, %v376
      %v433 = vmax.f32 %v377, %v381
      %v434 = vmax.f32 %v378, %v382
      %v435 = vmax.f32 %v379, %v383
      %v436 = vmax.f32 %v380, %v384
      %v437 = vmax.f32 %v385, %v389
      %v438 = vmax.f32 %v386, %v390
      %v439 = vmax.f32 %v387, %v391
      %v440 = vmax.f32 %v388, %v392
      %v441 = vmax.f32 %v393, %v397
      %v442 = vmax.f32 %v394, %v398
      %v443 = vmax.f32 %v395, %v399
      %v444 = vmax.f32 %v396, %v400
      %v445 = vmax.f32 %v401, %v405
      %v446 = vmax.f32 %v402, %v406
      %v447 = vmax.f32 %v403, %v407
      %v448 = vmax.f32 %v404, %v408
      %v449 = vmax.f32 %v409, %v413
      %v450 = vmax.f32 %v410, %v414
      %v451 = vmax.f32 %v411, %v415
      %v452 = vmax.f32 %v412, %v416
      %v453 = vmax.f32 %v417, %v421
      %v454 = vmax.f32 %v418, %v422
      %v455 = vmax.f32 %v419, %v423
      %v456 = vmax.f32 %v420, %v424
      %v457 = vmax.f32 %v425, %v426
      %v458 = vmax.f32 %v427, %v428
      %v459 = vmax.f32 %v429, %v430
      %v460 = vmax.f32 %v431, %v432
      %v461 = vmax.f32 %v433, %v434
      %v462 = vmax.f32 %v435, %v436
      %v463 = vmax.f32 %v437, %v438
      %v464 = vmax.f32 %v439, %v440
      %v465 = vmax.f32 %v441, %v442
      %v466 = vmax.f32 %v443, %v444
      %v467 = vmax.f32 %v445, %v446
      %v468 = vmax.f32 %v447, %v448
      %v469 = vmax.f32 %v449, %v450
      %v470 = vmax.f32 %v451, %v452
      %v471 = vmax.f32 %v453, %v454
      %v472 = vmax.f32 %v455, %v456
      %473 = vst [vmem:[%s143] sm:$0xff] %v457
      %474 = vst [vmem:[%s143 + $0x8] sm:$0xff] %v458
      %475 = vst [vmem:[%s143 + $0x10] sm:$0xff] %v459
      %476 = vst [vmem:[%s143 + $0x18] sm:$0xff] %v460
      %477 = vst [vmem:[%s143 + $0x20] sm:$0xff] %v461
      %478 = vst [vmem:[%s143 + $0x28] sm:$0xff] %v462
      %479 = vst [vmem:[%s143 + $0x30] sm:$0xff] %v463
      %480 = vst [vmem:[%s143 + $0x38] sm:$0xff] %v464
      %481 = vst [vmem:[%s143 + $0x40] sm:$0xff] %v465
      %482 = vst [vmem:[%s143 + $0x48] sm:$0xff] %v466
      %483 = vst [vmem:[%s143 + $0x50] sm:$0xff] %v467
      %484 = vst [vmem:[%s143 + $0x58] sm:$0xff] %v468
      %485 = vst [vmem:[%s143 + $0x60] sm:$0xff] %v469
      %486 = vst [vmem:[%s143 + $0x68] sm:$0xff] %v470
      %487 = vst [vmem:[%s143 + $0x70] sm:$0xff] %v471
      %488 = vst [vmem:[%s143 + $0x78] sm:$0xff] %v472
      %p489 = scmp.lt.s32.totalorder %s13, 1
      %s490 = scalar_select %p489, %s13, 1
      %s491 = smul.addr %s490, 16
      %s492 = smul.addr %s491, 8
      %s493 = scalar_lea.vmem %s2, %s492
      // Predicated region
      $region29: #{vgg_block_forward.7} parent=27 // pred_check
        %p494 = pneg %p78
      $region30: #{vgg_block_forward.7} parent=27 // pred_check_branch
        %496 = sbr.rel (%p494) target = $region32
      $region31: #{vgg_block_forward.7} parent=27 // pred_region
        _
      $region32: #{vgg_block_forward.7} parent=27 // pred_fallthru
        _
    $region28: #{vgg_block_forward.7} parent=5 // pred_fallthru
      _
    %p497 = scmp.le.s32.totalorder 2, %s8
    // Predicated region
    $region33: #{vgg_block_forward.7} parent=5 // pred_check
      %p498 = pneg %p497
    $region34: #{vgg_block_forward.7} parent=5 // pred_check_branch
      %500 = sbr.rel (%p498) target = $region36
    $region35: #{vgg_block_forward.7} parent=5 // pred_region
      %s501 = ssub.s32 %s8, 2
      // Predicated region
      $region37: #{vgg_block_forward.7} parent=35 // pred_check
        %p502 = pneg %p84
      $region38: #{vgg_block_forward.7} parent=35 // pred_check_branch
        %504 = sbr.rel (%p502) target = $region40
      $region39: #{vgg_block_forward.7} parent=35 // pred_region
        %p505 = scmp.lt.s32.totalorder %s14, 1
        %s506 = scalar_select %p505, %s14, 1
        %s507 = smul.addr %s506, 16
        %s508 = smul.addr %s507, 8
        %s509 = scalar_lea.vmem %s2, %s508
      $region40: #{vgg_block_forward.7} parent=35 // pred_fallthru
        _
    $region36: #{vgg_block_forward.7} parent=5 // pred_fallthru
      _
  $region6: #{vgg_block_forward.7} parent=0 // loop_footer
    %s12 = sadd.s32 1, %s8
  $region7: #{vgg_block_forward.7} parent=0 // loop_footer_branch
    %7 = sbr.rel target = $region3
  $region8: #{vgg_block_forward.7} parent=0 // loop_exit
    _

// kernel: vgg_block_forward.6
$region0: #{vgg_block_forward.6}
  #allocation0 [shape = 'u32[]', space=smem, size = 0x4, offset = 0x4, fixed_abs, tag = 'smem constant byte address 0x4 - core index']
  #allocation1 [shape = 'u32[144,128]{1,0:T(1,128)}', space=vmem, size = 0x12000, scoped, tag = 'internal scratch']
  %s0 = inlined_call_operand.vmem [shape: bf16[2,18,32,128], index: 0, kind: input, shape index: {}]
  %s1 = inlined_call_operand.vmem [shape: bf16[9,128,128], index: 1, kind: input, shape index: {}]
  %s2 = inlined_call_operand.vmem [shape: f32[2,16,32,128], index: 2, kind: output, shape index: {0}]
  %s3 = inlined_call_operand.vmem [shape: f32[2,2,128], index: 3, kind: output, shape index: {1}]
  %4 = xla_tuple %s2, %s3
  %s5 = sld [smem:[#allocation0]]
  $region49: #{vgg_block_forward.6} parent=0
    _
  %s7 = ssub.s32 1, %s5
  %s8 = scalar_select 0, %s7, %s5
  loop: start=0, step=1, limit=4
  $region2: #{vgg_block_forward.6} parent=0 // loop_pre_header
    _
  $region3: #{vgg_block_forward.6} parent=0 // loop_header
    %s10 = sphi 0, %s14
    %p11 = scmp.ge.s32.totalorder %s10, 4
    %s20 = sphi 0, %s22
    %s23 = sphi 0, %s20
    %s24 = sphi 0, %s23
    %s40 = sphi 0, %s24
    %s44 = sphi 0, %s44
    %s46 = sphi 0, %s44
    %s47 = sphi 0, %s46
    %s61 = sphi 0, %s47
    %s67 = sphi 0, %s69
    %s70 = sphi 0, %s67
    %s71 = sphi 0, %s70
    %s87 = sphi 0, %s71
    %s93 = sphi 0, %s95
    %s96 = sphi 0, %s93
    %s97 = sphi 0, %s96
    %s113 = sphi 0, %s97
  $region4: #{vgg_block_forward.6} parent=0 // loop_header_branch
    %13 = sbr.rel (%p11) target = $region8
  $region5: #{vgg_block_forward.6} parent=0 // loop_body
    %s15 = ssub.s32 %s10, 1
    %s16 = ssub.s32 %s10, 2
    %s17 = sadd.s32 %s10, 1
    %s18 = ssub.s32 %s10, %s17
    %p19 = scmp.eq.s32.totalorder %s18, 0
    %s21 = sadd.s32 %s20, 1
    %s22 = scalar_select %p19, %s20, %s21
    %p25 = pneg %p19
    %p26 = scmp.eq.s32.totalorder %s10, 1
    %p27 = por %p25, %p26
    %p28 = scmp.ne.s32.totalorder %s20, %s23
    %p29 = scmp.eq.s32.totalorder %s10, 0
    %p30 = por %p28, %p29
    %p31 = scmp.ne.s32.totalorder %s20, %s23
    %p32 = scmp.eq.s32.totalorder %s15, 1
    %p33 = por %p31, %p32
    %p34 = scmp.ne.s32.totalorder %s23, %s24
    %p35 = scmp.eq.s32.totalorder %s15, 0
    %p36 = por %p34, %p35
    %p37 = scmp.ne.s32.totalorder %s23, %s24
    %p38 = scmp.eq.s32.totalorder %s16, 1
    %p39 = por %p37, %p38
    %p41 = scmp.ne.s32.totalorder %s24, %s40
    %p42 = scmp.eq.s32.totalorder %s16, 0
    %p43 = por %p41, %p42
    %s45 = sadd.s32 %s44, 1
    %p48 = scmp.eq.s32.totalorder %s10, 1
    %p49 = scmp.ne.s32.totalorder %s44, %s46
    %p50 = scmp.eq.s32.totalorder %s10, 0
    %p51 = por %p49, %p50
    %p52 = scmp.ne.s32.totalorder %s44, %s46
    %p53 = scmp.eq.s32.totalorder %s15, 1
    %p54 = por %p52, %p53
    %p55 = scmp.ne.s32.totalorder %s46, %s47
    %p56 = scmp.eq.s32.totalorder %s15, 0
    %p57 = por %p55, %p56
    %p58 = scmp.ne.s32.totalorder %s46, %s47
    %p59 = scmp.eq.s32.totalorder %s16, 1
    %p60 = por %p58, %p59
    %p62 = scmp.ne.s32.totalorder %s47, %s61
    %p63 = scmp.eq.s32.totalorder %s16, 0
    %p64 = por %p62, %p63
    %s65 = ssub.s32 %s10, %s17
    %p66 = scmp.eq.s32.totalorder %s65, 0
    %s68 = sadd.s32 %s67, 1
    %s69 = scalar_select %p66, %s67, %s68
    %p72 = pneg %p66
    %p73 = scmp.eq.s32.totalorder %s10, 1
    %p74 = por %p72, %p73
    %p75 = scmp.ne.s32.totalorder %s67, %s70
    %p76 = scmp.eq.s32.totalorder %s10, 0
    %p77 = por %p75, %p76
    %p78 = scmp.ne.s32.totalorder %s67, %s70
    %p79 = scmp.eq.s32.totalorder %s15, 1
    %p80 = por %p78, %p79
    %p81 = scmp.ne.s32.totalorder %s70, %s71
    %p82 = scmp.eq.s32.totalorder %s15, 0
    %p83 = por %p81, %p82
    %p84 = scmp.ne.s32.totalorder %s70, %s71
    %p85 = scmp.eq.s32.totalorder %s16, 1
    %p86 = por %p84, %p85
    %p88 = scmp.ne.s32.totalorder %s71, %s87
    %p89 = scmp.eq.s32.totalorder %s16, 0
    %p90 = por %p88, %p89
    %s91 = ssub.s32 %s10, %s17
    %p92 = scmp.eq.s32.totalorder %s91, 0
    %s94 = sadd.s32 %s93, 1
    %s95 = scalar_select %p92, %s93, %s94
    %p98 = pneg %p92
    %p99 = scmp.eq.s32.totalorder %s10, 1
    %p100 = por %p98, %p99
    %p101 = scmp.ne.s32.totalorder %s93, %s96
    %p102 = scmp.eq.s32.totalorder %s10, 0
    %p103 = por %p101, %p102
    %p104 = scmp.ne.s32.totalorder %s93, %s96
    %p105 = scmp.eq.s32.totalorder %s15, 1
    %p106 = por %p104, %p105
    %p107 = scmp.ne.s32.totalorder %s96, %s97
    %p108 = scmp.eq.s32.totalorder %s15, 0
    %p109 = por %p107, %p108
    %p110 = scmp.ne.s32.totalorder %s96, %s97
    %p111 = scmp.eq.s32.totalorder %s16, 1
    %p112 = por %p110, %p111
    %p114 = scmp.ne.s32.totalorder %s97, %s113
    %p115 = scmp.eq.s32.totalorder %s16, 0
    %p116 = por %p114, %p115
    %p117 = scmp.le.s32.totalorder 1, %s10
    %p118 = scmp.lt.s32.totalorder %s10, 3
    %p119 = pnand %p117, %p118
    %p120 = pneg %p119
    // Predicated region
    $region9: #{vgg_block_forward.6} parent=5 // pred_check
      _
    $region10: #{vgg_block_forward.6} parent=5 // pred_check_branch
      %122 = sbr.rel (%p119) target = $region12
    $region11: #{vgg_block_forward.6} parent=5 // pred_region
      %s123 = ssub.s32 %s10, 1
      // Predicated region
      $region13: #{vgg_block_forward.6} parent=11 // pred_check
        %p124 = pneg %p57
      $region14: #{vgg_block_forward.6} parent=11 // pred_check_branch
        %126 = sbr.rel (%p124) target = $region16
      $region15: #{vgg_block_forward.6} parent=11 // pred_region
        _
      $region16: #{vgg_block_forward.6} parent=11 // pred_fallthru
        _
    $region12: #{vgg_block_forward.6} parent=5 // pred_fallthru
      _
    %p127 = scmp.lt.s32.totalorder %s10, 2
    // Predicated region
    $region17: #{vgg_block_forward.6} parent=5 // pred_check
      %p128 = pneg %p127
    $region18: #{vgg_block_forward.6} parent=5 // pred_check_branch
      %130 = sbr.rel (%p128) target = $region20
    $region19: #{vgg_block_forward.6} parent=5 // pred_region
      // Predicated region
      $region21: #{vgg_block_forward.6} parent=19 // pred_check
        %p131 = pneg %p30
      $region22: #{vgg_block_forward.6} parent=19 // pred_check_branch
        %133 = sbr.rel (%p131) target = $region24
      $region23: #{vgg_block_forward.6} parent=19 // pred_region
        %p134 = scmp.lt.s32.totalorder %s10, 1
        %s135 = scalar_select %p134, %s10, 1
        %s136 = smul.addr %s135, 72
        %s137 = smul.addr %s136, 4
        %s138 = scalar_lea.vmem %s0, %s137
      $region24: #{vgg_block_forward.6} parent=19 // pred_fallthru
        _
    $region20: #{vgg_block_forward.6} parent=5 // pred_fallthru
      _
    %p139 = scmp.le.s32.totalorder 1, %s10
    %p140 = scmp.lt.s32.totalorder %s10, 3
    %p141 = pnand %p139, %p140
    %p142 = pneg %p141
    // Predicated region
    $region25: #{vgg_block_forward.6} parent=5 // pred_check
      _
    $region26: #{vgg_block_forward.6} parent=5 // pred_check_branch
      %144 = sbr.rel (%p141) target = $region28
    $region27: #{vgg_block_forward.6} parent=5 // pred_region
      %s145 = ssub.s32 %s10, 1
      %p146 = scmp.lt.s32.totalorder %s15, 1
      %s147 = scalar_select %p146, %s15, 1
      %s148 = smul.addr %s147, 72
      %s149 = smul.addr %s148, 4
      %s150 = scalar_lea.vmem %s0, %s149
      %p151 = pneg %p36
      %p152 = pneg %p33
      %p153 = pneg %p57
      %p154 = pneg %p54
      %p155 = pneg %p83
      %p156 = pneg %p80
      %p157 = scmp.lt.s32.totalorder %s15, 1
      %s158 = scalar_select %p157, %s15, 1
      %s159 = smul.addr %s158, 64
      %s160 = smul.addr %s159, 8
      %s161 = scalar_lea.vmem %s2, %s160
      %p162 = pneg %p109
      %p163 = pneg %p106
      %p164 = scmp.lt.s32.totalorder %s15, 1
      %s165 = scalar_select %p164, %s15, 1
      %s166 = smul.addr %s165, 2
      %s167 = scalar_lea.vmem %s3, %s166
      %p168 = scmp.lt.s32.totalorder %s15, 1
      %s169 = scalar_select %p168, %s15, 1
      %s170 = smul.addr %s169, 72
      %s171 = smul.addr %s170, 4
      %s172 = scalar_lea.vmem %s0, %s171
      %p173 = scmp.lt.s32.totalorder %s15, 1
      %s174 = scalar_select %p173, %s15, 1
      %s175 = smul.addr %s174, 64
      %s176 = smul.addr %s175, 8
      %s177 = scalar_lea.vmem %s2, %s176
      %p178 = scmp.lt.s32.totalorder %s15, 1
      %s179 = scalar_select %p178, %s15, 1
      %s180 = smul.addr %s179, 2
      %s181 = scalar_lea.vmem %s3, %s180
      %v183 = vld [vmem:[%s172] sm:$0xf]
      %v184 = vld [vmem:[%s172 + $0x4] sm:$0xf]
      %v185 = vld [vmem:[%s172 + $0x8] sm:$0xf]
      %v186 = vld [vmem:[%s172 + $0xc] sm:$0xf]
      %v187 = vld [vmem:[%s172 + $0x10] sm:$0xf]
      %v188 = vld [vmem:[%s172 + $0x14] sm:$0xf]
      %v189 = vld [vmem:[%s172 + $0x18] sm:$0xf]
      %v190 = vld [vmem:[%s172 + $0x1c] sm:$0xf]
      %v191 = vld [vmem:[%s172 + $0x20] sm:$0xf]
      %v192 = vld [vmem:[%s172 + $0x24] sm:$0xf]
      %v193 = vld [vmem:[%s172 + $0x28] sm:$0xf]
      %v194 = vld [vmem:[%s172 + $0x2c] sm:$0xf]
      %v195 = vld [vmem:[%s172 + $0x30] sm:$0xf]
      %v196 = vld [vmem:[%s172 + $0x34] sm:$0xf]
      %v197 = vld [vmem:[%s172 + $0x38] sm:$0xf]
      %v198 = vld [vmem:[%s172 + $0x3c] sm:$0xf]
      %v199 = vld [vmem:[%s172 + $0x40] sm:$0xf]
      %v200 = vld [vmem:[%s172 + $0x44] sm:$0xf]
      %v201 = vld [vmem:[%s172 + $0x48] sm:$0xf]
      %v202 = vld [vmem:[%s172 + $0x4c] sm:$0xf]
      %v203 = vld [vmem:[%s172 + $0x50] sm:$0xf]
      %v204 = vld [vmem:[%s172 + $0x54] sm:$0xf]
      %v205 = vld [vmem:[%s172 + $0x58] sm:$0xf]
      %v206 = vld [vmem:[%s172 + $0x5c] sm:$0xf]
      %v207 = vld [vmem:[%s172 + $0x60] sm:$0xf]
      %v208 = vld [vmem:[%s172 + $0x64] sm:$0xf]
      %v209 = vld [vmem:[%s172 + $0x68] sm:$0xf]
      %v210 = vld [vmem:[%s172 + $0x6c] sm:$0xf]
      %v211 = vld [vmem:[%s172 + $0x70] sm:$0xf]
      %v212 = vld [vmem:[%s172 + $0x74] sm:$0xf]
      %v213 = vld [vmem:[%s172 + $0x78] sm:$0xf]
      %v214 = vld [vmem:[%s172 + $0x7c] sm:$0xf]
      %v215 = vld [vmem:[%s172 + $0x80] sm:$0xf]
      %v216 = vld [vmem:[%s172 + $0x84] sm:$0xf]
      %v217 = vld [vmem:[%s172 + $0x88] sm:$0xf]
      %v218 = vld [vmem:[%s172 + $0x8c] sm:$0xf]
      %v219 = vld [vmem:[%s172 + $0x90] sm:$0xf]
      %v220 = vld [vmem:[%s172 + $0x94] sm:$0xf]
      %v221 = vld [vmem:[%s172 + $0x98] sm:$0xf]
      %v222 = vld [vmem:[%s172 + $0x9c] sm:$0xf]
      %v223 = vld [vmem:[%s172 + $0xa0] sm:$0xf]
      %v224 = vld [vmem:[%s172 + $0xa4] sm:$0xf]
      %v225 = vld [vmem:[%s172 + $0xa8] sm:$0xf]
      %v226 = vld [vmem:[%s172 + $0xac] sm:$0xf]
      %v227 = vld [vmem:[%s172 + $0xb0] sm:$0xf]
      %v228 = vld [vmem:[%s172 + $0xb4] sm:$0xf]
      %v229 = vld [vmem:[%s172 + $0xb8] sm:$0xf]
      %v230 = vld [vmem:[%s172 + $0xbc] sm:$0xf]
      %v231 = vld [vmem:[%s172 + $0xc0] sm:$0xf]
      %v232 = vld [vmem:[%s172 + $0xc4] sm:$0xf]
      %v233 = vld [vmem:[%s172 + $0xc8] sm:$0xf]
      %v234 = vld [vmem:[%s172 + $0xcc] sm:$0xf]
      %v235 = vld [vmem:[%s172 + $0xd0] sm:$0xf]
      %v236 = vld [vmem:[%s172 + $0xd4] sm:$0xf]
      %v237 = vld [vmem:[%s172 + $0xd8] sm:$0xf]
      %v238 = vld [vmem:[%s172 + $0xdc] sm:$0xf]
      %v239 = vld [vmem:[%s172 + $0xe0] sm:$0xf]
      %v240 = vld [vmem:[%s172 + $0xe4] sm:$0xf]
      %v241 = vld [vmem:[%s172 + $0xe8] sm:$0xf]
      %v242 = vld [vmem:[%s172 + $0xec] sm:$0xf]
      %v243 = vld [vmem:[%s172 + $0xf0] sm:$0xf]
      %v244 = vld [vmem:[%s172 + $0xf4] sm:$0xf]
      %v245 = vld [vmem:[%s172 + $0xf8] sm:$0xf]
      %v246 = vld [vmem:[%s172 + $0xfc] sm:$0xf]
      %v247 = vld [vmem:[%s1] sm:$0xf]
      %v248 = vld [vmem:[%s1 + $0x4] sm:$0xf]
      %v249 = vld [vmem:[%s1 + $0x8] sm:$0xf]
      %v250 = vld [vmem:[%s1 + $0xc] sm:$0xf]
      %v251 = vld [vmem:[%s1 + $0x10] sm:$0xf]
      %v252 = vld [vmem:[%s1 + $0x14] sm:$0xf]
      %v253 = vld [vmem:[%s1 + $0x18] sm:$0xf]
      %v254 = vld [vmem:[%s1 + $0x1c] sm:$0xf]
      %v255 = vld [vmem:[%s1 + $0x20] sm:$0xf]
      %v256 = vld [vmem:[%s1 + $0x24] sm:$0xf]
      %v257 = vld [vmem:[%s1 + $0x28] sm:$0xf]
      %v258 = vld [vmem:[%s1 + $0x2c] sm:$0xf]
      %v259 = vld [vmem:[%s1 + $0x30] sm:$0xf]
      %v260 = vld [vmem:[%s1 + $0x34] sm:$0xf]
      %v261 = vld [vmem:[%s1 + $0x38] sm:$0xf]
      %v262 = vld [vmem:[%s1 + $0x3c] sm:$0xf]
      %s263 = scalar_lea.vmem %s172, 16
      %v264 = vld [vmem:[%s263] sm:$0xf]
      %v265 = vld [vmem:[%s263 + $0x4] sm:$0xf]
      %v266 = vld [vmem:[%s263 + $0x8] sm:$0xf]
      %v267 = vld [vmem:[%s263 + $0xc] sm:$0xf]
      %v268 = vld [vmem:[%s263 + $0x10] sm:$0xf]
      %v269 = vld [vmem:[%s263 + $0x14] sm:$0xf]
      %v270 = vld [vmem:[%s263 + $0x18] sm:$0xf]
      %v271 = vld [vmem:[%s263 + $0x1c] sm:$0xf]
      %v272 = vld [vmem:[%s263 + $0x20] sm:$0xf]
      %v273 = vld [vmem:[%s263 + $0x24] sm:$0xf]
      %v274 = vld [vmem:[%s263 + $0x28] sm:$0xf]
      %v275 = vld [vmem:[%s263 + $0x2c] sm:$0xf]
      %v276 = vld [vmem:[%s263 + $0x30] sm:$0xf]
      %v277 = vld [vmem:[%s263 + $0x34] sm:$0xf]
      %v278 = vld [vmem:[%s263 + $0x38] sm:$0xf]
      %v279 = vld [vmem:[%s263 + $0x3c] sm:$0xf]
      %v280 = vld [vmem:[%s263 + $0x40] sm:$0xf]
      %v281 = vld [vmem:[%s263 + $0x44] sm:$0xf]
      %v282 = vld [vmem:[%s263 + $0x48] sm:$0xf]
      %v283 = vld [vmem:[%s263 + $0x4c] sm:$0xf]
      %v284 = vld [vmem:[%s263 + $0x50] sm:$0xf]
      %v285 = vld [vmem:[%s263 + $0x54] sm:$0xf]
      %v286 = vld [vmem:[%s263 + $0x58] sm:$0xf]
      %v287 = vld [vmem:[%s263 + $0x5c] sm:$0xf]
      %v288 = vld [vmem:[%s263 + $0x60] sm:$0xf]
      %v289 = vld [vmem:[%s263 + $0x64] sm:$0xf]
      %v290 = vld [vmem:[%s263 + $0x68] sm:$0xf]
      %v291 = vld [vmem:[%s263 + $0x6c] sm:$0xf]
      %v292 = vld [vmem:[%s263 + $0x70] sm:$0xf]
      %v293 = vld [vmem:[%s263 + $0x74] sm:$0xf]
      %v294 = vld [vmem:[%s263 + $0x78] sm:$0xf]
      %v295 = vld [vmem:[%s263 + $0x7c] sm:$0xf]
      %v296 = vld [vmem:[%s263 + $0x80] sm:$0xf]
      %v297 = vld [vmem:[%s263 + $0x84] sm:$0xf]
      %v298 = vld [vmem:[%s263 + $0x88] sm:$0xf]
      %v299 = vld [vmem:[%s263 + $0x8c] sm:$0xf]
      %v300 = vld [vmem:[%s263 + $0x90] sm:$0xf]
      %v301 = vld [vmem:[%s263 + $0x94] sm:$0xf]
      %v302 = vld [vmem:[%s263 + $0x98] sm:$0xf]
      %v303 = vld [vmem:[%s263 + $0x9c] sm:$0xf]
      %v304 = vld [vmem:[%s263 + $0xa0] sm:$0xf]
      %v305 = vld [vmem:[%s263 + $0xa4] sm:$0xf]
      %v306 = vld [vmem:[%s263 + $0xa8] sm:$0xf]
      %v307 = vld [vmem:[%s263 + $0xac] sm:$0xf]
      %v308 = vld [vmem:[%s263 + $0xb0] sm:$0xf]
      %v309 = vld [vmem:[%s263 + $0xb4] sm:$0xf]
      %v310 = vld [vmem:[%s263 + $0xb8] sm:$0xf]
      %v311 = vld [vmem:[%s263 + $0xbc] sm:$0xf]
      %v312 = vld [vmem:[%s263 + $0xc0] sm:$0xf]
      %v313 = vld [vmem:[%s263 + $0xc4] sm:$0xf]
      %v314 = vld [vmem:[%s263 + $0xc8] sm:$0xf]
      %v315 = vld [vmem:[%s263 + $0xcc] sm:$0xf]
      %v316 = vld [vmem:[%s263 + $0xd0] sm:$0xf]
      %v317 = vld [vmem:[%s263 + $0xd4] sm:$0xf]
      %v318 = vld [vmem:[%s263 + $0xd8] sm:$0xf]
      %v319 = vld [vmem:[%s263 + $0xdc] sm:$0xf]
      %v320 = vld [vmem:[%s263 + $0xe0] sm:$0xf]
      %v321 = vld [vmem:[%s263 + $0xe4] sm:$0xf]
      %v322 = vld [vmem:[%s263 + $0xe8] sm:$0xf]
      %v323 = vld [vmem:[%s263 + $0xec] sm:$0xf]
      %v324 = vld [vmem:[%s263 + $0xf0] sm:$0xf]
      %v325 = vld [vmem:[%s263 + $0xf4] sm:$0xf]
      %v326 = vld [vmem:[%s263 + $0xf8] sm:$0xf]
      %v327 = vld [vmem:[%s263 + $0xfc] sm:$0xf]
      %s328 = scalar_lea.vmem %s1, 192
      %v329 = vld [vmem:[%s328] sm:$0xf]
      %v330 = vld [vmem:[%s328 + $0x4] sm:$0xf]
      %v331 = vld [vmem:[%s328 + $0x8] sm:$0xf]
      %v332 = vld [vmem:[%s328 + $0xc] sm:$0xf]
      %v333 = vld [vmem:[%s328 + $0x10] sm:$0xf]
      %v334 = vld [vmem:[%s328 + $0x14] sm:$0xf]
      %v335 = vld [vmem:[%s328 + $0x18] sm:$0xf]
      %v336 = vld [vmem:[%s328 + $0x1c] sm:$0xf]
      %v337 = vld [vmem:[%s328 + $0x20] sm:$0xf]
      %v338 = vld [vmem:[%s328 + $0x24] sm:$0xf]
      %v339 = vld [vmem:[%s328 + $0x28] sm:$0xf]
      %v340 = vld [vmem:[%s328 + $0x2c] sm:$0xf]
      %v341 = vld [vmem:[%s328 + $0x30] sm:$0xf]
      %v342 = vld [vmem:[%s328 + $0x34] sm:$0xf]
      %v343 = vld [vmem:[%s328 + $0x38] sm:$0xf]
      %v344 = vld [vmem:[%s328 + $0x3c] sm:$0xf]
      %v409 = vunpack.c.l.b16 %v264
      %v410 = vunpack.c.l.b16 %v265
      %v411 = vunpack.c.l.b16 %v266
      %v412 = vunpack.c.l.b16 %v267
      %v413 = vunpack.c.l.b16 %v268
      %v414 = vunpack.c.l.b16 %v269
      %v415 = vunpack.c.l.b16 %v270
      %v416 = vunpack.c.l.b16 %v271
      %v417 = vunpack.c.l.b16 %v272
      %v418 = vunpack.c.l.b16 %v273
      %v419 = vunpack.c.l.b16 %v274
      %v420 = vunpack.c.l.b16 %v275
      %v421 = vunpack.c.l.b16 %v276
      %v422 = vunpack.c.l.b16 %v277
      %v423 = vunpack.c.l.b16 %v278
      %v424 = vunpack.c.l.b16 %v279
      %v425 = vunpack.c.l.b16 %v280
      %v426 = vunpack.c.l.b16 %v281
      %v427 = vunpack.c.l.b16 %v282
      %v428 = vunpack.c.l.b16 %v283
      %v429 = vunpack.c.l.b16 %v284
      %v430 = vunpack.c.l.b16 %v285
      %v431 = vunpack.c.l.b16 %v286
      %v432 = vunpack.c.l.b16 %v287
      %v433 = vunpack.c.l.b16 %v288
      %v434 = vunpack.c.l.b16 %v289
      %v435 = vunpack.c.l.b16 %v290
      %v436 = vunpack.c.l.b16 %v291
      %v437 = vunpack.c.l.b16 %v292
      %v438 = vunpack.c.l.b16 %v293
      %v439 = vunpack.c.l.b16 %v294
      %v440 = vunpack.c.l.b16 %v295
      %v441 = vunpack.c.l.b16 %v296
      %v442 = vunpack.c.l.b16 %v297
      %v443 = vunpack.c.l.b16 %v298
      %v444 = vunpack.c.l.b16 %v299
      %v445 = vunpack.c.l.b16 %v300
      %v446 = vunpack.c.l.b16 %v301
      %v447 = vunpack.c.l.b16 %v302
      %v448 = vunpack.c.l.b16 %v303
      %v449 = vunpack.c.l.b16 %v304
      %v450 = vunpack.c.l.b16 %v305
      %v451 = vunpack.c.l.b16 %v306
      %v452 = vunpack.c.l.b16 %v307
      %v453 = vunpack.c.l.b16 %v308
      %v454 = vunpack.c.l.b16 %v309
      %v455 = vunpack.c.l.b16 %v310
      %v456 = vunpack.c.l.b16 %v311
      %v457 = vunpack.c.l.b16 %v312
      %v458 = vunpack.c.l.b16 %v313
      %v459 = vunpack.c.l.b16 %v314
      %v460 = vunpack.c.l.b16 %v315
      %v461 = vunpack.c.l.b16 %v316
      %v462 = vunpack.c.l.b16 %v317
      %v463 = vunpack.c.l.b16 %v318
      %v464 = vunpack.c.l.b16 %v319
      %v465 = vunpack.c.l.b16 %v320
      %v466 = vunpack.c.l.b16 %v321
      %v467 = vunpack.c.l.b16 %v322
      %v468 = vunpack.c.l.b16 %v323
      %v469 = vunpack.c.l.b16 %v324
      %v470 = vunpack.c.l.b16 %v325
      %v471 = vunpack.c.l.b16 %v326
      %v472 = vunpack.c.l.b16 %v327
      %v473 = vpack.c.b16 %v410, %v409
      %v474 = vpack.c.b16 %v412, %v411
      %v475 = vpack.c.b16 %v414, %v413
      %v476 = vpack.c.b16 %v416, %v415
      %v477 = vpack.c.b16 %v418, %v417
      %v478 = vpack.c.b16 %v420, %v419
      %v479 = vpack.c.b16 %v422, %v421
      %v480 = vpack.c.b16 %v424, %v423
      %v481 = vpack.c.b16 %v426, %v425
      %v482 = vpack.c.b16 %v428, %v427
      %v483 = vpack.c.b16 %v430, %v429
      %v484 = vpack.c.b16 %v432, %v431
      %v485 = vpack.c.b16 %v434, %v433
      %v486 = vpack.c.b16 %v436, %v435
      %v487 = vpack.c.b16 %v438, %v437
      %v488 = vpack.c.b16 %v440, %v439
      %v489 = vpack.c.b16 %v442, %v441
      %v490 = vpack.c.b16 %v444, %v443
      %v491 = vpack.c.b16 %v446, %v445
      %v492 = vpack.c.b16 %v448, %v447
      %v493 = vpack.c.b16 %v450, %v449
      %v494 = vpack.c.b16 %v452, %v451
      %v495 = vpack.c.b16 %v454, %v453
      %v496 = vpack.c.b16 %v456, %v455
      %v497 = vpack.c.b16 %v458, %v457
      %v498 = vpack.c.b16 %v460, %v459
      %v499 = vpack.c.b16 %v462, %v461
      %v500 = vpack.c.b16 %v464, %v463
      %v501 = vpack.c.b16 %v466, %v465
      %v502 = vpack.c.b16 %v468, %v467
      %v503 = vpack.c.b16 %v470, %v469
      %v504 = vpack.c.b16 %v472, %v471
      %v553 = vunpack.c.l.b16 %v329
      %v554 = vunpack.c.l.b16 %v330
      %v555 = vunpack.c.l.b16 %v331
      %v556 = vunpack.c.l.b16 %v332
      %v557 = vunpack.c.l.b16 %v333
      %v558 = vunpack.c.l.b16 %v334
      %v559 = vunpack.c.l.b16 %v335
      %v560 = vunpack.c.l.b16 %v336
      %v561 = vunpack.c.l.b16 %v337
      %v562 = vunpack.c.l.b16 %v338
      %v563 = vunpack.c.l.b16 %v339
      %v564 = vunpack.c.l.b16 %v340
      %v565 = vunpack.c.l.b16 %v341
      %v566 = vunpack.c.l.b16 %v342
      %v567 = vunpack.c.l.b16 %v343
      %v568 = vunpack.c.l.b16 %v344
      %v569 = vpack.c.b16 %v554, %v553
      %v570 = vpack.c.b16 %v556, %v555
      %v571 = vpack.c.b16 %v558, %v557
      %v572 = vpack.c.b16 %v560, %v559
      %v573 = vpack.c.b16 %v562, %v561
      %v574 = vpack.c.b16 %v564, %v563
      %v575 = vpack.c.b16 %v566, %v565
      %v576 = vpack.c.b16 %v568, %v567
      %585 = vmatprep.subr.bf16.mxu0 0
      %586 = vmatpush1.bf16.msra.mxu0 %v576
      %587 = vmatprep.subr.bf16.mxu0 0
      %588 = vmatpush1.bf16.msra.mxu0 %v575
      %589 = vmatprep.subr.bf16.mxu0 0
      %590 = vmatpush1.bf16.msra.mxu0 %v574
      %591 = vmatprep.subr.bf16.mxu0 0
      %592 = vmatpush1.bf16.msra.mxu0 %v573
      %593 = vmatprep.subr.bf16.mxu0 0
      %594 = vmatpush1.bf16.msra.mxu0 %v572
      %595 = vmatprep.subr.bf16.mxu0 0
      %596 = vmatpush1.bf16.msra.mxu0 %v571
      %597 = vmatprep.subr.bf16.mxu0 0
      %598 = vmatpush1.bf16.msra.mxu0 %v570
      %599 = vmatprep.subr.bf16.mxu0 0
      %600 = vmatpush1.bf16.msra.mxu0 %v569
      %601 = vmatprep.subr.bf16.mxu0 0
      %602 = vmatpush2.bf16.msra.mxu0 0
      %603 = vmatprep.subr.bf16.mxu0 0
      %604 = vmatpush2.bf16.msra.mxu0 0
      %605 = vmatprep.subr.bf16.mxu0 0
      %606 = vmatpush2.bf16.msra.mxu0 0
      %607 = vmatprep.subr.bf16.mxu0 0
      %608 = vmatpush2.bf16.msra.mxu0 0
      %609 = vmatprep.subr.bf16.mxu0 0
      %610 = vmatpush2.bf16.msra.mxu0 0
      %611 = vmatprep.subr.bf16.mxu0 0
      %612 = vmatpush2.bf16.msra.mxu0 0
      %613 = vmatprep.subr.bf16.mxu0 0
      %614 = vmatpush2.bf16.msra.mxu0 0
      %615 = vmatprep.subr.bf16.mxu0 0
      %616 = vmatpush2.bf16.msra.mxu0 0
      %617 = vmatprep.mubr.bf16.mxu0 0
      %618 = vmatmul.mubr.bf16.gmra.mxu0 %v473
      %v619 = vpop.f32.mrf.mxu0
      %v620 = vadd.f32 0.0, %v619
      %v621 = vpop.f32.mrf.mxu0
      %v622 = vpop.f32.mrf.mxu0
      %v623 = vadd.f32 0.0, %v622
      %v624 = vpop.f32.mrf.mxu0
      %625 = vmatprep.mubr.bf16.mxu0 0
      %626 = vmatmul.mubr.bf16.gmra.mxu0 %v474
      %v627 = vpop.f32.mrf.mxu0
      %v628 = vadd.f32 0.0, %v627
      %v629 = vpop.f32.mrf.mxu0
      %v630 = vpop.f32.mrf.mxu0
      %v631 = vadd.f32 0.0, %v630
      %v632 = vpop.f32.mrf.mxu0
      %633 = vmatprep.mubr.bf16.mxu0 0
      %634 = vmatmul.mubr.bf16.gmra.mxu0 %v475
      %v635 = vpop.f32.mrf.mxu0
      %v636 = vadd.f32 0.0, %v635
      %v637 = vpop.f32.mrf.mxu0
      %v638 = vpop.f32.mrf.mxu0
      %v639 = vadd.f32 0.0, %v638
      %v640 = vpop.f32.mrf.mxu0
      %641 = vmatprep.mubr.bf16.mxu0 0
      %642 = vmatmul.mubr.bf16.gmra.mxu0 %v476
      %v643 = vpop.f32.mrf.mxu0
      %v644 = vadd.f32 0.0, %v643
      %v645 = vpop.f32.mrf.mxu0
      %v646 = vpop.f32.mrf.mxu0
      %v647 = vadd.f32 0.0, %v646
      %v648 = vpop.f32.mrf.mxu0
      %649 = vmatprep.mubr.bf16.mxu0 0
      %650 = vmatmul.mubr.bf16.gmra.mxu0 %v477
      %v651 = vpop.f32.mrf.mxu0
      %v652 = vadd.f32 0.0, %v651
      %v653 = vpop.f32.mrf.mxu0
      %v654 = vpop.f32.mrf.mxu0
      %v655 = vadd.f32 0.0, %v654
      %v656 = vpop.f32.mrf.mxu0
      %657 = vmatprep.mubr.bf16.mxu0 0
      %658 = vmatmul.mubr.bf16.gmra.mxu0 %v478
      %v659 = vpop.f32.mrf.mxu0
      %v660 = vadd.f32 0.0, %v659
      %v661 = vpop.f32.mrf.mxu0
      %v662 = vpop.f32.mrf.mxu0
      %v663 = vadd.f32 0.0, %v662
      %v664 = vpop.f32.mrf.mxu0
      %665 = vmatprep.mubr.bf16.mxu0 0
      %666 = vmatmul.mubr.bf16.gmra.mxu0 %v479
      %v667 = vpop.f32.mrf.mxu0
      %v668 = vadd.f32 0.0, %v667
      %v669 = vpop.f32.mrf.mxu0
      %v670 = vpop.f32.mrf.mxu0
      %v671 = vadd.f32 0.0, %v670
      %v672 = vpop.f32.mrf.mxu0
      %673 = vmatprep.mubr.bf16.mxu0 0
      %674 = vmatmul.mubr.bf16.gmra.mxu0 %v480
      %v675 = vpop.f32.mrf.mxu0
      %v676 = vadd.f32 0.0, %v675
      %v677 = vpop.f32.mrf.mxu0
      %v678 = vpop.f32.mrf.mxu0
      %v679 = vadd.f32 0.0, %v678
      %v680 = vpop.f32.mrf.mxu0
      %681 = vmatprep.mubr.bf16.mxu0 0
      %682 = vmatmul.mubr.bf16.gmra.mxu0 %v481
      %v683 = vpop.f32.mrf.mxu0
      %v684 = vadd.f32 0.0, %v683
      %v685 = vpop.f32.mrf.mxu0
      %v686 = vpop.f32.mrf.mxu0
      %v687 = vadd.f32 0.0, %v686
      %v688 = vpop.f32.mrf.mxu0
      %689 = vmatprep.mubr.bf16.mxu0 0
      %690 = vmatmul.mubr.bf16.gmra.mxu0 %v482
      %v691 = vpop.f32.mrf.mxu0
      %v692 = vadd.f32 0.0, %v691
      %v693 = vpop.f32.mrf.mxu0
      %v694 = vpop.f32.mrf.mxu0
      %v695 = vadd.f32 0.0, %v694
      %v696 = vpop.f32.mrf.mxu0
      %697 = vmatprep.mubr.bf16.mxu0 0
      %698 = vmatmul.mubr.bf16.gmra.mxu0 %v483
      %v699 = vpop.f32.mrf.mxu0
      %v700 = vadd.f32 0.0, %v699
      %v701 = vpop.f32.mrf.mxu0
      %v702 = vpop.f32.mrf.mxu0
      %v703 = vadd.f32 0.0, %v702
      %v704 = vpop.f32.mrf.mxu0
      %705 = vmatprep.mubr.bf16.mxu0 0
      %706 = vmatmul.mubr.bf16.gmra.mxu0 %v484
      %v707 = vpop.f32.mrf.mxu0
      %v708 = vadd.f32 0.0, %v707
      %v709 = vpop.f32.mrf.mxu0
      %v710 = vpop.f32.mrf.mxu0
      %v711 = vadd.f32 0.0, %v710
      %v712 = vpop.f32.mrf.mxu0
      %713 = vmatprep.mubr.bf16.mxu0 0
      %714 = vmatmul.mubr.bf16.gmra.mxu0 %v485
      %v715 = vpop.f32.mrf.mxu0
      %v716 = vadd.f32 0.0, %v715
      %v717 = vpop.f32.mrf.mxu0
      %v718 = vpop.f32.mrf.mxu0
      %v719 = vadd.f32 0.0, %v718
      %v720 = vpop.f32.mrf.mxu0
      %721 = vmatprep.mubr.bf16.mxu0 0
      %722 = vmatmul.mubr.bf16.gmra.mxu0 %v486
      %v723 = vpop.f32.mrf.mxu0
      %v724 = vadd.f32 0.0, %v723
      %v725 = vpop.f32.mrf.mxu0
      %v726 = vpop.f32.mrf.mxu0
      %v727 = vadd.f32 0.0, %v726
      %v728 = vpop.f32.mrf.mxu0
      %729 = vmatprep.mubr.bf16.mxu0 0
      %730 = vmatmul.mubr.bf16.gmra.mxu0 %v487
      %v731 = vpop.f32.mrf.mxu0
      %v732 = vadd.f32 0.0, %v731
      %v733 = vpop.f32.mrf.mxu0
      %v734 = vpop.f32.mrf.mxu0
      %v735 = vadd.f32 0.0, %v734
      %v736 = vpop.f32.mrf.mxu0
      %737 = vmatprep.mubr.bf16.mxu0 0
      %738 = vmatmul.mubr.bf16.gmra.mxu0 %v488
      %v739 = vpop.f32.mrf.mxu0
      %v740 = vadd.f32 0.0, %v739
      %v741 = vpop.f32.mrf.mxu0
      %v742 = vpop.f32.mrf.mxu0
      %v743 = vadd.f32 0.0, %v742
      %v744 = vpop.f32.mrf.mxu0
      %745 = vmatprep.mubr.bf16.mxu0 0
      %746 = vmatmul.mubr.bf16.gmra.mxu0 %v489
      %v747 = vpop.f32.mrf.mxu0
      %v748 = vadd.f32 0.0, %v747
      %v749 = vpop.f32.mrf.mxu0
      %v750 = vpop.f32.mrf.mxu0
      %v751 = vadd.f32 0.0, %v750
      %v752 = vpop.f32.mrf.mxu0
      %753 = vmatprep.mubr.bf16.mxu0 0
      %754 = vmatmul.mubr.bf16.gmra.mxu0 %v490
      %v755 = vpop.f32.mrf.mxu0
      %v756 = vadd.f32 0.0, %v755
      %v757 = vpop.f32.mrf.mxu0
      %v758 = vpop.f32.mrf.mxu0
      %v759 = vadd.f32 0.0, %v758
      %v760 = vpop.f32.mrf.mxu0
      %761 = vmatprep.mubr.bf16.mxu0 0
      %762 = vmatmul.mubr.bf16.gmra.mxu0 %v491
      %v763 = vpop.f32.mrf.mxu0
      %v764 = vadd.f32 0.0, %v763
      %v765 = vpop.f32.mrf.mxu0
      %v766 = vpop.f32.mrf.mxu0
      %v767 = vadd.f32 0.0, %v766
      %v768 = vpop.f32.mrf.mxu0
      %769 = vmatprep.mubr.bf16.mxu0 0
      %770 = vmatmul.mubr.bf16.gmra.mxu0 %v492
      %v771 = vpop.f32.mrf.mxu0
      %v772 = vadd.f32 0.0, %v771
      %v773 = vpop.f32.mrf.mxu0
      %v774 = vpop.f32.mrf.mxu0
      %v775 = vadd.f32 0.0, %v774
      %v776 = vpop.f32.mrf.mxu0
      %777 = vmatprep.mubr.bf16.mxu0 0
      %778 = vmatmul.mubr.bf16.gmra.mxu0 %v493
      %v779 = vpop.f32.mrf.mxu0
      %v780 = vadd.f32 0.0, %v779
      %v781 = vpop.f32.mrf.mxu0
      %v782 = vpop.f32.mrf.mxu0
      %v783 = vadd.f32 0.0, %v782
      %v784 = vpop.f32.mrf.mxu0
      %785 = vmatprep.mubr.bf16.mxu0 0
      %786 = vmatmul.mubr.bf16.gmra.mxu0 %v494
      %v787 = vpop.f32.mrf.mxu0
      %v788 = vadd.f32 0.0, %v787
      %v789 = vpop.f32.mrf.mxu0
      %v790 = vpop.f32.mrf.mxu0
      %v791 = vadd.f32 0.0, %v790
      %v792 = vpop.f32.mrf.mxu0
      %793 = vmatprep.mubr.bf16.mxu0 0
      %794 = vmatmul.mubr.bf16.gmra.mxu0 %v495
      %v795 = vpop.f32.mrf.mxu0
      %v796 = vadd.f32 0.0, %v795
      %v797 = vpop.f32.mrf.mxu0
      %v798 = vpop.f32.mrf.mxu0
      %v799 = vadd.f32 0.0, %v798
      %v800 = vpop.f32.mrf.mxu0
      %801 = vmatprep.mubr.bf16.mxu0 0
      %802 = vmatmul.mubr.bf16.gmra.mxu0 %v496
      %v803 = vpop.f32.mrf.mxu0
      %v804 = vadd.f32 0.0, %v803
      %v805 = vpop.f32.mrf.mxu0
      %v806 = vpop.f32.mrf.mxu0
      %v807 = vadd.f32 0.0, %v806
      %v808 = vpop.f32.mrf.mxu0
      %809 = vmatprep.mubr.bf16.mxu0 0
      %810 = vmatmul.mubr.bf16.gmra.mxu0 %v497
      %v811 = vpop.f32.mrf.mxu0
      %v812 = vadd.f32 0.0, %v811
      %v813 = vpop.f32.mrf.mxu0
      %v814 = vpop.f32.mrf.mxu0
      %v815 = vadd.f32 0.0, %v814
      %v816 = vpop.f32.mrf.mxu0
      %817 = vmatprep.mubr.bf16.mxu0 0
      %818 = vmatmul.mubr.bf16.gmra.mxu0 %v498
      %v819 = vpop.f32.mrf.mxu0
      %v820 = vadd.f32 0.0, %v819
      %v821 = vpop.f32.mrf.mxu0
      %v822 = vpop.f32.mrf.mxu0
      %v823 = vadd.f32 0.0, %v822
      %v824 = vpop.f32.mrf.mxu0
      %825 = vmatprep.mubr.bf16.mxu0 0
      %826 = vmatmul.mubr.bf16.gmra.mxu0 %v499
      %v827 = vpop.f32.mrf.mxu0
      %v828 = vadd.f32 0.0, %v827
      %v829 = vpop.f32.mrf.mxu0
      %v830 = vpop.f32.mrf.mxu0
      %v831 = vadd.f32 0.0, %v830
      %v832 = vpop.f32.mrf.mxu0
      %833 = vmatprep.mubr.bf16.mxu0 0
      %834 = vmatmul.mubr.bf16.gmra.mxu0 %v500
      %v835 = vpop.f32.mrf.mxu0
      %v836 = vadd.f32 0.0, %v835
      %v837 = vpop.f32.mrf.mxu0
      %v838 = vpop.f32.mrf.mxu0
      %v839 = vadd.f32 0.0, %v838
      %v840 = vpop.f32.mrf.mxu0
      %841 = vmatprep.mubr.bf16.mxu0 0
      %842 = vmatmul.mubr.bf16.gmra.mxu0 %v501
      %v843 = vpop.f32.mrf.mxu0
      %v844 = vadd.f32 0.0, %v843
      %v845 = vpop.f32.mrf.mxu0
      %v846 = vpop.f32.mrf.mxu0
      %v847 = vadd.f32 0.0, %v846
      %v848 = vpop.f32.mrf.mxu0
      %849 = vmatprep.mubr.bf16.mxu0 0
      %850 = vmatmul.mubr.bf16.gmra.mxu0 %v502
      %v851 = vpop.f32.mrf.mxu0
      %v852 = vadd.f32 0.0, %v851
      %v853 = vpop.f32.mrf.mxu0
      %v854 = vpop.f32.mrf.mxu0
      %v855 = vadd.f32 0.0, %v854
      %v856 = vpop.f32.mrf.mxu0
      %857 = vmatprep.mubr.bf16.mxu0 0
      %858 = vmatmul.mubr.bf16.gmra.mxu0 %v503
      %v859 = vpop.f32.mrf.mxu0
      %v860 = vadd.f32 0.0, %v859
      %v861 = vpop.f32.mrf.mxu0
      %v862 = vpop.f32.mrf.mxu0
      %v863 = vadd.f32 0.0, %v862
      %v864 = vpop.f32.mrf.mxu0
      %865 = vmatprep.mubr.bf16.mxu0 0
      %866 = vmatmul.mubr.bf16.gmra.mxu0 %v504
      %v867 = vpop.f32.mrf.mxu0
      %v868 = vadd.f32 0.0, %v867
      %v869 = vpop.f32.mrf.mxu0
      %v870 = vpop.f32.mrf.mxu0
      %v871 = vadd.f32 0.0, %v870
      %v872 = vpop.f32.mrf.mxu0
      %873 = vdwg.mxu0
      %v938 = vunpack.c.l.b16 %v183
      %v939 = vunpack.c.l.b16 %v184
      %v940 = vunpack.c.l.b16 %v185
      %v941 = vunpack.c.l.b16 %v186
      %v942 = vunpack.c.l.b16 %v187
      %v943 = vunpack.c.l.b16 %v188
      %v944 = vunpack.c.l.b16 %v189
      %v945 = vunpack.c.l.b16 %v190
      %v946 = vunpack.c.l.b16 %v191
      %v947 = vunpack.c.l.b16 %v192
      %v948 = vunpack.c.l.b16 %v193
      %v949 = vunpack.c.l.b16 %v194
      %v950 = vunpack.c.l.b16 %v195
      %v951 = vunpack.c.l.b16 %v196
      %v952 = vunpack.c.l.b16 %v197
      %v953 = vunpack.c.l.b16 %v198
      %v954 = vunpack.c.l.b16 %v199
      %v955 = vunpack.c.l.b16 %v200
      %v956 = vunpack.c.l.b16 %v201
      %v957 = vunpack.c.l.b16 %v202
      %v958 = vunpack.c.l.b16 %v203
      %v959 = vunpack.c.l.b16 %v204
      %v960 = vunpack.c.l.b16 %v205
      %v961 = vunpack.c.l.b16 %v206
      %v962 = vunpack.c.l.b16 %v207
      %v963 = vunpack.c.l.b16 %v208
      %v964 = vunpack.c.l.b16 %v209
      %v965 = vunpack.c.l.b16 %v210
      %v966 = vunpack.c.l.b16 %v211
      %v967 = vunpack.c.l.b16 %v212
      %v968 = vunpack.c.l.b16 %v213
      %v969 = vunpack.c.l.b16 %v214
      %v970 = vunpack.c.l.b16 %v215
      %v971 = vunpack.c.l.b16 %v216
      %v972 = vunpack.c.l.b16 %v217
      %v973 = vunpack.c.l.b16 %v218
      %v974 = vunpack.c.l.b16 %v219
      %v975 = vunpack.c.l.b16 %v220
      %v976 = vunpack.c.l.b16 %v221
      %v977 = vunpack.c.l.b16 %v222
      %v978 = vunpack.c.l.b16 %v223
      %v979 = vunpack.c.l.b16 %v224
      %v980 = vunpack.c.l.b16 %v225
      %v981 = vunpack.c.l.b16 %v226
      %v982 = vunpack.c.l.b16 %v227
      %v983 = vunpack.c.l.b16 %v228
      %v984 = vunpack.c.l.b16 %v229
      %v985 = vunpack.c.l.b16 %v230
      %v986 = vunpack.c.l.b16 %v231
      %v987 = vunpack.c.l.b16 %v232
      %v988 = vunpack.c.l.b16 %v233
      %v989 = vunpack.c.l.b16 %v234
      %v990 = vunpack.c.l.b16 %v235
      %v991 = vunpack.c.l.b16 %v236
      %v992 = vunpack.c.l.b16 %v237
      %v993 = vunpack.c.l.b16 %v238
      %v994 = vunpack.c.l.b16 %v239
      %v995 = vunpack.c.l.b16 %v240
      %v996 = vunpack.c.l.b16 %v241
      %v997 = vunpack.c.l.b16 %v242
      %v998 = vunpack.c.l.b16 %v243
      %v999 = vunpack.c.l.b16 %v244
      %v1000 = vunpack.c.l.b16 %v245
      %v1001 = vunpack.c.l.b16 %v246
      %v1002 = vpack.c.b16 %v939, %v938
      %v1003 = vpack.c.b16 %v941, %v940
      %v1004 = vpack.c.b16 %v943, %v942
      %v1005 = vpack.c.b16 %v945, %v944
      %v1006 = vpack.c.b16 %v947, %v946
      %v1007 = vpack.c.b16 %v949, %v948
      %v1008 = vpack.c.b16 %v951, %v950
      %v1009 = vpack.c.b16 %v953, %v952
      %v1010 = vpack.c.b16 %v955, %v954
      %v1011 = vpack.c.b16 %v957, %v956
      %v1012 = vpack.c.b16 %v959, %v958
      %v1013 = vpack.c.b16 %v961, %v960
      %v1014 = vpack.c.b16 %v963, %v962
      %v1015 = vpack.c.b16 %v965, %v964
      %v1016 = vpack.c.b16 %v967, %v966
      %v1017 = vpack.c.b16 %v969, %v968
      %v1018 = vpack.c.b16 %v971, %v970
      %v1019 = vpack.c.b16 %v973, %v972
      %v1020 = vpack.c.b16 %v975, %v974
      %v1021 = vpack.c.b16 %v977, %v976
      %v1022 = vpack.c.b16 %v979, %v978
      %v1023 = vpack.c.b16 %v981, %v980
      %v1024 = vpack.c.b16 %v983, %v982
      %v1025 = vpack.c.b16 %v985, %v984
      %v1026 = vpack.c.b16 %v987, %v986
      %v1027 = vpack.c.b16 %v989, %v988
      %v1028 = vpack.c.b16 %v991, %v990
      %v1029 = vpack.c.b16 %v993, %v992
      %v1030 = vpack.c.b16 %v995, %v994
      %v1031 = vpack.c.b16 %v997, %v996
      %v1032 = vpack.c.b16 %v999, %v998
      %v1033 = vpack.c.b16 %v1001, %v1000
      %v1082 = vunpack.c.l.b16 %v247
      %v1083 = vunpack.c.l.b16 %v248
      %v1084 = vunpack.c.l.b16 %v249
      %v1085 = vunpack.c.l.b16 %v250
      %v1086 = vunpack.c.l.b16 %v251
      %v1087 = vunpack.c.l.b16 %v252
      %v1088 = vunpack.c.l.b16 %v253
      %v1089 = vunpack.c.l.b16 %v254
      %v1090 = vunpack.c.l.b16 %v255
      %v1091 = vunpack.c.l.b16 %v256
      %v1092 = vunpack.c.l.b16 %v257
      %v1093 = vunpack.c.l.b16 %v258
      %v1094 = vunpack.c.l.b16 %v259
      %v1095 = vunpack.c.l.b16 %v260
      %v1096 = vunpack.c.l.b16 %v261
      %v1097 = vunpack.c.l.b16 %v262
      %v1098 = vpack.c.b16 %v1083, %v1082
      %v1099 = vpack.c.b16 %v1085, %v1084
      %v1100 = vpack.c.b16 %v1087, %v1086
      %v1101 = vpack.c.b16 %v1089, %v1088
      %v1102 = vpack.c.b16 %v1091, %v1090
      %v1103 = vpack.c.b16 %v1093, %v1092
      %v1104 = vpack.c.b16 %v1095, %v1094
      %v1105 = vpack.c.b16 %v1097, %v1096
      %1114 = vmatprep.subr.bf16.mxu0 0
      %1115 = vmatpush1.bf16.msra.mxu0 %v1105
      %1116 = vmatprep.subr.bf16.mxu0 0
      %1117 = vmatpush1.bf16.msra.mxu0 %v1104
      %1118 = vmatprep.subr.bf16.mxu0 0
      %1119 = vmatpush1.bf16.msra.mxu0 %v1103
      %1120 = vmatprep.subr.bf16.mxu0 0
      %1121 = vmatpush1.bf16.msra.mxu0 %v1102
      %1122 = vmatprep.subr.bf16.mxu0 0
      %1123 = vmatpush1.bf16.msra.mxu0 %v1101
      %1124 = vmatprep.subr.bf16.mxu0 0
      %1125 = vmatpush1.bf16.msra.mxu0 %v1100
      %1126 = vmatprep.subr.bf16.mxu0 0
      %1127 = vmatpush1.bf16.msra.mxu0 %v1099
      %1128 = vmatprep.subr.bf16.mxu0 0
      %1129 = vmatpush1.bf16.msra.mxu0 %v1098
      %1130 = vmatprep.subr.bf16.mxu0 0
      %1131 = vmatpush2.bf16.msra.mxu0 0
      %1132 = vmatprep.subr.bf16.mxu0 0
      %1133 = vmatpush2.bf16.msra.mxu0 0
      %1134 = vmatprep.subr.bf16.mxu0 0
      %1135 = vmatpush2.bf16.msra.mxu0 0
      %1136 = vmatprep.subr.bf16.mxu0 0
      %1137 = vmatpush2.bf16.msra.mxu0 0
      %1138 = vmatprep.subr.bf16.mxu0 0
      %1139 = vmatpush2.bf16.msra.mxu0 0
      %1140 = vmatprep.subr.bf16.mxu0 0
      %1141 = vmatpush2.bf16.msra.mxu0 0
      %1142 = vmatprep.subr.bf16.mxu0 0
      %1143 = vmatpush2.bf16.msra.mxu0 0
      %1144 = vmatprep.subr.bf16.mxu0 0
      %1145 = vmatpush2.bf16.msra.mxu0 0
      %1146 = vmatprep.mubr.bf16.mxu0 0
      %1147 = vmatmul.mubr.bf16.gmra.mxu0 %v1002
      %v1148 = vpop.f32.mrf.mxu0
      %v1149 = vadd.f32 %v620, %v1148
      %v1150 = vpop.f32.mrf.mxu0
      %v1151 = vpop.f32.mrf.mxu0
      %v1152 = vadd.f32 %v623, %v1151
      %v1153 = vpop.f32.mrf.mxu0
      %1154 = vmatprep.mubr.bf16.mxu0 0
      %1155 = vmatmul.mubr.bf16.gmra.mxu0 %v1003
      %v1156 = vpop.f32.mrf.mxu0
      %v1157 = vadd.f32 %v628, %v1156
      %v1158 = vpop.f32.mrf.mxu0
      %v1159 = vpop.f32.mrf.mxu0
      %v1160 = vadd.f32 %v631, %v1159
      %v1161 = vpop.f32.mrf.mxu0
      %1162 = vmatprep.mubr.bf16.mxu0 0
      %1163 = vmatmul.mubr.bf16.gmra.mxu0 %v1004
      %v1164 = vpop.f32.mrf.mxu0
      %v1165 = vadd.f32 %v636, %v1164
      %v1166 = vpop.f32.mrf.mxu0
      %v1167 = vpop.f32.mrf.mxu0
      %v1168 = vadd.f32 %v639, %v1167
      %v1169 = vpop.f32.mrf.mxu0
      %1170 = vmatprep.mubr.bf16.mxu0 0
      %1171 = vmatmul.mubr.bf16.gmra.mxu0 %v1005
      %v1172 = vpop.f32.mrf.mxu0
      %v1173 = vadd.f32 %v644, %v1172
      %v1174 = vpop.f32.mrf.mxu0
      %v1175 = vpop.f32.mrf.mxu0
      %v1176 = vadd.f32 %v647, %v1175
      %v1177 = vpop.f32.mrf.mxu0
      %1178 = vmatprep.mubr.bf16.mxu0 0
      %1179 = vmatmul.mubr.bf16.gmra.mxu0 %v1006
      %v1180 = vpop.f32.mrf.mxu0
      %v1181 = vadd.f32 %v652, %v1180
      %v1182 = vpop.f32.mrf.mxu0
      %v1183 = vpop.f32.mrf.mxu0
      %v1184 = vadd.f32 %v655, %v1183
      %v1185 = vpop.f32.mrf.mxu0
      %1186 = vmatprep.mubr.bf16.mxu0 0
      %1187 = vmatmul.mubr.bf16.gmra.mxu0 %v1007
      %v1188 = vpop.f32.mrf.mxu0
      %v1189 = vadd.f32 %v660, %v1188
      %v1190 = vpop.f32.mrf.mxu0
      %v1191 = vpop.f32.mrf.mxu0
      %v1192 = vadd.f32 %v663, %v1191
      %v1193 = vpop.f32.mrf.mxu0
      %1194 = vmatprep.mubr.bf16.mxu0 0
      %1195 = vmatmul.mubr.bf16.gmra.mxu0 %v1008
      %v1196 = vpop.f32.mrf.mxu0
      %v1197 = vadd.f32 %v668, %v1196
      %v1198 = vpop.f32.mrf.mxu0
      %v1199 = vpop.f32.mrf.mxu0
      %v1200 = vadd.f32 %v671, %v1199
      %v1201 = vpop.f32.mrf.mxu0
      %1202 = vmatprep.mubr.bf16.mxu0 0
      %1203 = vmatmul.mubr.bf16.gmra.mxu0 %v1009
      %v1204 = vpop.f32.mrf.mxu0
      %v1205 = vadd.f32 %v676, %v1204
      %v1206 = vpop.f32.mrf.mxu0
      %v1207 = vpop.f32.mrf.mxu0
      %v1208 = vadd.f32 %v679, %v1207
      %v1209 = vpop.f32.mrf.mxu0
      %1210 = vmatprep.mubr.bf16.mxu0 0
      %1211 = vmatmul.mubr.bf16.gmra.mxu0 %v1010
      %v1212 = vpop.f32.mrf.mxu0
      %v1213 = vadd.f32 %v684, %v1212
      %v1214 = vpop.f32.mrf.mxu0
      %v1215 = vpop.f32.mrf.mxu0
      %v1216 = vadd.f32 %v687, %v1215
      %v1217 = vpop.f32.mrf.mxu0
      %1218 = vmatprep.mubr.bf16.mxu0 0
      %1219 = vmatmul.mubr.bf16.gmra.mxu0 %v1011
      %v1220 = vpop.f32.mrf.mxu0
      %v1221 = vadd.f32 %v692, %v1220
      %v1222 = vpop.f32.mrf.mxu0
      %v1223 = vpop.f32.mrf.mxu0
      %v1224 = vadd.f32 %v695, %v1223
      %v1225 = vpop.f32.mrf.mxu0
      %1226 = vmatprep.mubr.bf16.mxu0 0
      %1227 = vmatmul.mubr.bf16.gmra.mxu0 %v1012
      %v1228 = vpop.f32.mrf.mxu0
      %v1229 = vadd.f32 %v700, %v1228
      %v1230 = vpop.f32.mrf.mxu0
      %v1231 = vpop.f32.mrf.mxu0
      %v1232 = vadd.f32 %v703, %v1231
      %v1233 = vpop.f32.mrf.mxu0
      %1234 = vmatprep.mubr.bf16.mxu0 0
      %1235 = vmatmul.mubr.bf16.gmra.mxu0 %v1013
      %v1236 = vpop.f32.mrf.mxu0
      %v1237 = vadd.f32 %v708, %v1236
      %v1238 = vpop.f32.mrf.mxu0
      %v1239 = vpop.f32.mrf.mxu0
      %v1240 = vadd.f32 %v711, %v1239
      %v1241 = vpop.f32.mrf.mxu0
      %1242 = vmatprep.mubr.bf16.mxu0 0
      %1243 = vmatmul.mubr.bf16.gmra.mxu0 %v1014
      %v1244 = vpop.f32.mrf.mxu0
      %v1245 = vadd.f32 %v716, %v1244
      %v1246 = vpop.f32.mrf.mxu0
      %v1247 = vpop.f32.mrf.mxu0
      %v1248 = vadd.f32 %v719, %v1247
      %v1249 = vpop.f32.mrf.mxu0
      %1250 = vmatprep.mubr.bf16.mxu0 0
      %1251 = vmatmul.mubr.bf16.gmra.mxu0 %v1015
      %v1252 = vpop.f32.mrf.mxu0
      %v1253 = vadd.f32 %v724, %v1252
      %v1254 = vpop.f32.mrf.mxu0
      %v1255 = vpop.f32.mrf.mxu0
      %v1256 = vadd.f32 %v727, %v1255
      %v1257 = vpop.f32.mrf.mxu0
      %1258 = vmatprep.mubr.bf16.mxu0 0
      %1259 = vmatmul.mubr.bf16.gmra.mxu0 %v1016
      %v1260 = vpop.f32.mrf.mxu0
      %v1261 = vadd.f32 %v732, %v1260
      %v1262 = vpop.f32.mrf.mxu0
      %v1263 = vpop.f32.mrf.mxu0
      %v1264 = vadd.f32 %v735, %v1263
      %v1265 = vpop.f32.mrf.mxu0
      %1266 = vmatprep.mubr.bf16.mxu0 0
      %1267 = vmatmul.mubr.bf16.gmra.mxu0 %v1017
      %v1268 = vpop.f32.mrf.mxu0
      %v1269 = vadd.f32 %v740, %v1268
      %v1270 = vpop.f32.mrf.mxu0
      %v1271 = vpop.f32.mrf.mxu0
      %v1272 = vadd.f32 %v743, %v1271
      %v1273 = vpop.f32.mrf.mxu0
      %1274 = vmatprep.mubr.bf16.mxu0 0
      %1275 = vmatmul.mubr.bf16.gmra.mxu0 %v1018
      %v1276 = vpop.f32.mrf.mxu0
      %v1277 = vadd.f32 %v748, %v1276
      %v1278 = vpop.f32.mrf.mxu0
      %v1279 = vpop.f32.mrf.mxu0
      %v1280 = vadd.f32 %v751, %v1279
      %v1281 = vpop.f32.mrf.mxu0
      %1282 = vmatprep.mubr.bf16.mxu0 0
      %1283 = vmatmul.mubr.bf16.gmra.mxu0 %v1019
      %v1284 = vpop.f32.mrf.mxu0
      %v1285 = vadd.f32 %v756, %v1284
      %v1286 = vpop.f32.mrf.mxu0
      %v1287 = vpop.f32.mrf.mxu0
      %v1288 = vadd.f32 %v759, %v1287
      %v1289 = vpop.f32.mrf.mxu0
      %1290 = vmatprep.mubr.bf16.mxu0 0
      %1291 = vmatmul.mubr.bf16.gmra.mxu0 %v1020
      %v1292 = vpop.f32.mrf.mxu0
      %v1293 = vadd.f32 %v764, %v1292
      %v1294 = vpop.f32.mrf.mxu0
      %v1295 = vpop.f32.mrf.mxu0
      %v1296 = vadd.f32 %v767, %v1295
      %v1297 = vpop.f32.mrf.mxu0
      %1298 = vmatprep.mubr.bf16.mxu0 0
      %1299 = vmatmul.mubr.bf16.gmra.mxu0 %v1021
      %v1300 = vpop.f32.mrf.mxu0
      %v1301 = vadd.f32 %v772, %v1300
      %v1302 = vpop.f32.mrf.mxu0
      %v1303 = vpop.f32.mrf.mxu0
      %v1304 = vadd.f32 %v775, %v1303
      %v1305 = vpop.f32.mrf.mxu0
      %1306 = vmatprep.mubr.bf16.mxu0 0
      %1307 = vmatmul.mubr.bf16.gmra.mxu0 %v1022
      %v1308 = vpop.f32.mrf.mxu0
      %v1309 = vadd.f32 %v780, %v1308
      %v1310 = vpop.f32.mrf.mxu0
      %v1311 = vpop.f32.mrf.mxu0
      %v1312 = vadd.f32 %v783, %v1311
      %v1313 = vpop.f32.mrf.mxu0
      %1314 = vmatprep.mubr.bf16.mxu0 0
      %1315 = vmatmul.mubr.bf16.gmra.mxu0 %v1023
      %v1316 = vpop.f32.mrf.mxu0
      %v1317 = vadd.f32 %v788, %v1316
      %v1318 = vpop.f32.mrf.mxu0
      %v1319 = vpop.f32.mrf.mxu0
      %v1320 = vadd.f32 %v791, %v1319
      %v1321 = vpop.f32.mrf.mxu0
      %1322 = vmatprep.mubr.bf16.mxu0 0
      %1323 = vmatmul.mubr.bf16.gmra.mxu0 %v1024
      %v1324 = vpop.f32.mrf.mxu0
      %v1325 = vadd.f32 %v796, %v1324
      %v1326 = vpop.f32.mrf.mxu0
      %v1327 = vpop.f32.mrf.mxu0
      %v1328 = vadd.f32 %v799, %v1327
      %v1329 = vpop.f32.mrf.mxu0
      %1330 = vmatprep.mubr.bf16.mxu0 0
      %1331 = vmatmul.mubr.bf16.gmra.mxu0 %v1025
      %v1332 = vpop.f32.mrf.mxu0
      %v1333 = vadd.f32 %v804, %v1332
      %v1334 = vpop.f32.mrf.mxu0
      %v1335 = vpop.f32.mrf.mxu0
      %v1336 = vadd.f32 %v807, %v1335
      %v1337 = vpop.f32.mrf.mxu0
      %1338 = vmatprep.mubr.bf16.mxu0 0
      %1339 = vmatmul.mubr.bf16.gmra.mxu0 %v1026
      %v1340 = vpop.f32.mrf.mxu0
      %v1341 = vadd.f32 %v812, %v1340
      %v1342 = vpop.f32.mrf.mxu0
      %v1343 = vpop.f32.mrf.mxu0
      %v1344 = vadd.f32 %v815, %v1343
      %v1345 = vpop.f32.mrf.mxu0
      %1346 = vmatprep.mubr.bf16.mxu0 0
      %1347 = vmatmul.mubr.bf16.gmra.mxu0 %v1027
      %v1348 = vpop.f32.mrf.mxu0
      %v1349 = vadd.f32 %v820, %v1348
      %v1350 = vpop.f32.mrf.mxu0
      %v1351 = vpop.f32.mrf.mxu0
      %v1352 = vadd.f32 %v823, %v1351
      %v1353 = vpop.f32.mrf.mxu0
      %1354 = vmatprep.mubr.bf16.mxu0 0
      %1355 = vmatmul.mubr.bf16.gmra.mxu0 %v1028
      %v1356 = vpop.f32.mrf.mxu0
      %v1357 = vadd.f32 %v828, %v1356
      %v1358 = vpop.f32.mrf.mxu0
      %v1359 = vpop.f32.mrf.mxu0
      %v1360 = vadd.f32 %v831, %v1359
      %v1361 = vpop.f32.mrf.mxu0
      %1362 = vmatprep.mubr.bf16.mxu0 0
      %1363 = vmatmul.mubr.bf16.gmra.mxu0 %v1029
      %v1364 = vpop.f32.mrf.mxu0
      %v1365 = vadd.f32 %v836, %v1364
      %v1366 = vpop.f32.mrf.mxu0
      %v1367 = vpop.f32.mrf.mxu0
      %v1368 = vadd.f32 %v839, %v1367
      %v1369 = vpop.f32.mrf.mxu0
      %1370 = vmatprep.mubr.bf16.mxu0 0
      %1371 = vmatmul.mubr.bf16.gmra.mxu0 %v1030
      %v1372 = vpop.f32.mrf.mxu0
      %v1373 = vadd.f32 %v844, %v1372
      %v1374 = vpop.f32.mrf.mxu0
      %v1375 = vpop.f32.mrf.mxu0
      %v1376 = vadd.f32 %v847, %v1375
      %v1377 = vpop.f32.mrf.mxu0
      %1378 = vmatprep.mubr.bf16.mxu0 0
      %1379 = vmatmul.mubr.bf16.gmra.mxu0 %v1031
      %v1380 = vpop.f32.mrf.mxu0
      %v1381 = vadd.f32 %v852, %v1380
      %v1382 = vpop.f32.mrf.mxu0
      %v1383 = vpop.f32.mrf.mxu0
      %v1384 = vadd.f32 %v855, %v1383
      %v1385 = vpop.f32.mrf.mxu0
      %1386 = vmatprep.mubr.bf16.mxu0 0
      %1387 = vmatmul.mubr.bf16.gmra.mxu0 %v1032
      %v1388 = vpop.f32.mrf.mxu0
      %v1389 = vadd.f32 %v860, %v1388
      %v1390 = vpop.f32.mrf.mxu0
      %v1391 = vpop.f32.mrf.mxu0
      %v1392 = vadd.f32 %v863, %v1391
      %v1393 = vpop.f32.mrf.mxu0
      %1394 = vmatprep.mubr.bf16.mxu0 0
      %1395 = vmatmul.mubr.bf16.gmra.mxu0 %v1033
      %v1396 = vpop.f32.mrf.mxu0
      %v1397 = vadd.f32 %v868, %v1396
      %v1398 = vpop.f32.mrf.mxu0
      %v1399 = vpop.f32.mrf.mxu0
      %v1400 = vadd.f32 %v871, %v1399
      %v1401 = vpop.f32.mrf.mxu0
      %1402 = vdwg.mxu0
      %s1403 = scalar_lea.vmem %s172, 32
      %v1404 = vld [vmem:[%s1403] sm:$0xf]
      %v1405 = vld [vmem:[%s1403 + $0x4] sm:$0xf]
      %v1406 = vld [vmem:[%s1403 + $0x8] sm:$0xf]
      %v1407 = vld [vmem:[%s1403 + $0xc] sm:$0xf]
      %v1408 = vld [vmem:[%s1403 + $0x10] sm:$0xf]
      %v1409 = vld [vmem:[%s1403 + $0x14] sm:$0xf]
      %v1410 = vld [vmem:[%s1403 + $0x18] sm:$0xf]
      %v1411 = vld [vmem:[%s1403 + $0x1c] sm:$0xf]
      %v1412 = vld [vmem:[%s1403 + $0x20] sm:$0xf]
      %v1413 = vld [vmem:[%s1403 + $0x24] sm:$0xf]
      %v1414 = vld [vmem:[%s1403 + $0x28] sm:$0xf]
      %v1415 = vld [vmem:[%s1403 + $0x2c] sm:$0xf]
      %v1416 = vld [vmem:[%s1403 + $0x30] sm:$0xf]
      %v1417 = vld [vmem:[%s1403 + $0x34] sm:$0xf]
      %v1418 = vld [vmem:[%s1403 + $0x38] sm:$0xf]
      %v1419 = vld [vmem:[%s1403 + $0x3c] sm:$0xf]
      %v1420 = vld [vmem:[%s1403 + $0x40] sm:$0xf]
      %v1421 = vld [vmem:[%s1403 + $0x44] sm:$0xf]
      %v1422 = vld [vmem:[%s1403 + $0x48] sm:$0xf]
      %v1423 = vld [vmem:[%s1403 + $0x4c] sm:$0xf]
      %v1424 = vld [vmem:[%s1403 + $0x50] sm:$0xf]
      %v1425 = vld [vmem:[%s1403 + $0x54] sm:$0xf]
      %v1426 = vld [vmem:[%s1403 + $0x58] sm:$0xf]
      %v1427 = vld [vmem:[%s1403 + $0x5c] sm:$0xf]
      %v1428 = vld [vmem:[%s1403 + $0x60] sm:$0xf]
      %v1429 = vld [vmem:[%s1403 + $0x64] sm:$0xf]
      %v1430 = vld [vmem:[%s1403 + $0x68] sm:$0xf]
      %v1431 = vld [vmem:[%s1403 + $0x6c] sm:$0xf]
      %v1432 = vld [vmem:[%s1403 + $0x70] sm:$0xf]
      %v1433 = vld [vmem:[%s1403 + $0x74] sm:$0xf]
      %v1434 = vld [vmem:[%s1403 + $0x78] sm:$0xf]
      %v1435 = vld [vmem:[%s1403 + $0x7c] sm:$0xf]
      %v1436 = vld [vmem:[%s1403 + $0x80] sm:$0xf]
      %v1437 = vld [vmem:[%s1403 + $0x84] sm:$0xf]
      %v1438 = vld [vmem:[%s1403 + $0x88] sm:$0xf]
      %v1439 = vld [vmem:[%s1403 + $0x8c] sm:$0xf]
      %v1440 = vld [vmem:[%s1403 + $0x90] sm:$0xf]
      %v1441 = vld [vmem:[%s1403 + $0x94] sm:$0xf]
      %v1442 = vld [vmem:[%s1403 + $0x98] sm:$0xf]
      %v1443 = vld [vmem:[%s1403 + $0x9c] sm:$0xf]
      %v1444 = vld [vmem:[%s1403 + $0xa0] sm:$0xf]
      %v1445 = vld [vmem:[%s1403 + $0xa4] sm:$0xf]
      %v1446 = vld [vmem:[%s1403 + $0xa8] sm:$0xf]
      %v1447 = vld [vmem:[%s1403 + $0xac] sm:$0xf]
      %v1448 = vld [vmem:[%s1403 + $0xb0] sm:$0xf]
      %v1449 = vld [vmem:[%s1403 + $0xb4] sm:$0xf]
      %v1450 = vld [vmem:[%s1403 + $0xb8] sm:$0xf]
      %v1451 = vld [vmem:[%s1403 + $0xbc] sm:$0xf]
      %v1452 = vld [vmem:[%s1403 + $0xc0] sm:$0xf]
      %v1453 = vld [vmem:[%s1403 + $0xc4] sm:$0xf]
      %v1454 = vld [vmem:[%s1403 + $0xc8] sm:$0xf]
      %v1455 = vld [vmem:[%s1403 + $0xcc] sm:$0xf]
      %v1456 = vld [vmem:[%s1403 + $0xd0] sm:$0xf]
      %v1457 = vld [vmem:[%s1403 + $0xd4] sm:$0xf]
      %v1458 = vld [vmem:[%s1403 + $0xd8] sm:$0xf]
      %v1459 = vld [vmem:[%s1403 + $0xdc] sm:$0xf]
      %v1460 = vld [vmem:[%s1403 + $0xe0] sm:$0xf]
      %v1461 = vld [vmem:[%s1403 + $0xe4] sm:$0xf]
      %v1462 = vld [vmem:[%s1403 + $0xe8] sm:$0xf]
      %v1463 = vld [vmem:[%s1403 + $0xec] sm:$0xf]
      %v1464 = vld [vmem:[%s1403 + $0xf0] sm:$0xf]
      %v1465 = vld [vmem:[%s1403 + $0xf4] sm:$0xf]
      %v1466 = vld [vmem:[%s1403 + $0xf8] sm:$0xf]
      %v1467 = vld [vmem:[%s1403 + $0xfc] sm:$0xf]
      %s1468 = scalar_lea.vmem %s1, 384
      %v1469 = vld [vmem:[%s1468] sm:$0xf]
      %v1470 = vld [vmem:[%s1468 + $0x4] sm:$0xf]
      %v1471 = vld [vmem:[%s1468 + $0x8] sm:$0xf]
      %v1472 = vld [vmem:[%s1468 + $0xc] sm:$0xf]
      %v1473 = vld [vmem:[%s1468 + $0x10] sm:$0xf]
      %v1474 = vld [vmem:[%s1468 + $0x14] sm:$0xf]
      %v1475 = vld [vmem:[%s1468 + $0x18] sm:$0xf]
      %v1476 = vld [vmem:[%s1468 + $0x1c] sm:$0xf]
      %v1477 = vld [vmem:[%s1468 + $0x20] sm:$0xf]
      %v1478 = vld [vmem:[%s1468 + $0x24] sm:$0xf]
      %v1479 = vld [vmem:[%s1468 + $0x28] sm:$0xf]
      %v1480 = vld [vmem:[%s1468 + $0x2c] sm:$0xf]
      %v1481 = vld [vmem:[%s1468 + $0x30] sm:$0xf]
      %v1482 = vld [vmem:[%s1468 + $0x34] sm:$0xf]
      %v1483 = vld [vmem:[%s1468 + $0x38] sm:$0xf]
      %v1484 = vld [vmem:[%s1468 + $0x3c] sm:$0xf]
      %v1549 = vunpack.c.l.b16 %v1404
      %v1550 = vunpack.c.l.b16 %v1405
      %v1551 = vunpack.c.l.b16 %v1406
      %v1552 = vunpack.c.l.b16 %v1407
      %v1553 = vunpack.c.l.b16 %v1408
      %v1554 = vunpack.c.l.b16 %v1409
      %v1555 = vunpack.c.l.b16 %v1410
      %v1556 = vunpack.c.l.b16 %v1411
      %v1557 = vunpack.c.l.b16 %v1412
      %v1558 = vunpack.c.l.b16 %v1413
      %v1559 = vunpack.c.l.b16 %v1414
      %v1560 = vunpack.c.l.b16 %v1415
      %v1561 = vunpack.c.l.b16 %v1416
      %v1562 = vunpack.c.l.b16 %v1417
      %v1563 = vunpack.c.l.b16 %v1418
      %v1564 = vunpack.c.l.b16 %v1419
      %v1565 = vunpack.c.l.b16 %v1420
      %v1566 = vunpack.c.l.b16 %v1421
      %v1567 = vunpack.c.l.b16 %v1422
      %v1568 = vunpack.c.l.b16 %v1423
      %v1569 = vunpack.c.l.b16 %v1424
      %v1570 = vunpack.c.l.b16 %v1425
      %v1571 = vunpack.c.l.b16 %v1426
      %v1572 = vunpack.c.l.b16 %v1427
      %v1573 = vunpack.c.l.b16 %v1428
      %v1574 = vunpack.c.l.b16 %v1429
      %v1575 = vunpack.c.l.b16 %v1430
      %v1576 = vunpack.c.l.b16 %v1431
      %v1577 = vunpack.c.l.b16 %v1432
      %v1578 = vunpack.c.l.b16 %v1433
      %v1579 = vunpack.c.l.b16 %v1434
      %v1580 = vunpack.c.l.b16 %v1435
      %v1581 = vunpack.c.l.b16 %v1436
      %v1582 = vunpack.c.l.b16 %v1437
      %v1583 = vunpack.c.l.b16 %v1438
      %v1584 = vunpack.c.l.b16 %v1439
      %v1585 = vunpack.c.l.b16 %v1440
      %v1586 = vunpack.c.l.b16 %v1441
      %v1587 = vunpack.c.l.b16 %v1442
      %v1588 = vunpack.c.l.b16 %v1443
      %v1589 = vunpack.c.l.b16 %v1444
      %v1590 = vunpack.c.l.b16 %v1445
      %v1591 = vunpack.c.l.b16 %v1446
      %v1592 = vunpack.c.l.b16 %v1447
      %v1593 = vunpack.c.l.b16 %v1448
      %v1594 = vunpack.c.l.b16 %v1449
      %v1595 = vunpack.c.l.b16 %v1450
      %v1596 = vunpack.c.l.b16 %v1451
      %v1597 = vunpack.c.l.b16 %v1452
      %v1598 = vunpack.c.l.b16 %v1453
      %v1599 = vunpack.c.l.b16 %v1454
      %v1600 = vunpack.c.l.b16 %v1455
      %v1601 = vunpack.c.l.b16 %v1456
      %v1602 = vunpack.c.l.b16 %v1457
      %v1603 = vunpack.c.l.b16 %v1458
      %v1604 = vunpack.c.l.b16 %v1459
      %v1605 = vunpack.c.l.b16 %v1460
      %v1606 = vunpack.c.l.b16 %v1461
      %v1607 = vunpack.c.l.b16 %v1462
      %v1608 = vunpack.c.l.b16 %v1463
      %v1609 = vunpack.c.l.b16 %v1464
      %v1610 = vunpack.c.l.b16 %v1465
      %v1611 = vunpack.c.l.b16 %v1466
      %v1612 = vunpack.c.l.b16 %v1467
      %v1613 = vpack.c.b16 %v1550, %v1549
      %v1614 = vpack.c.b16 %v1552, %v1551
      %v1615 = vpack.c.b16 %v1554, %v1553
      %v1616 = vpack.c.b16 %v1556, %v1555
      %v1617 = vpack.c.b16 %v1558, %v1557
      %v1618 = vpack.c.b16 %v1560, %v1559
      %v1619 = vpack.c.b16 %v1562, %v1561
      %v1620 = vpack.c.b16 %v1564, %v1563
      %v1621 = vpack.c.b16 %v1566, %v1565
      %v1622 = vpack.c.b16 %v1568, %v1567
      %v1623 = vpack.c.b16 %v1570, %v1569
      %v1624 = vpack.c.b16 %v1572, %v1571
      %v1625 = vpack.c.b16 %v1574, %v1573
      %v1626 = vpack.c.b16 %v1576, %v1575
      %v1627 = vpack.c.b16 %v1578, %v1577
      %v1628 = vpack.c.b16 %v1580, %v1579
      %v1629 = vpack.c.b16 %v1582, %v1581
      %v1630 = vpack.c.b16 %v1584, %v1583
      %v1631 = vpack.c.b16 %v1586, %v1585
      %v1632 = vpack.c.b16 %v1588, %v1587
      %v1633 = vpack.c.b16 %v1590, %v1589
      %v1634 = vpack.c.b16 %v1592, %v1591
      %v1635 = vpack.c.b16 %v1594, %v1593
      %v1636 = vpack.c.b16 %v1596, %v1595
      %v1637 = vpack.c.b16 %v1598, %v1597
      %v1638 = vpack.c.b16 %v1600, %v1599
      %v1639 = vpack.c.b16 %v1602, %v1601
      %v1640 = vpack.c.b16 %v1604, %v1603
      %v1641 = vpack.c.b16 %v1606, %v1605
      %v1642 = vpack.c.b16 %v1608, %v1607
      %v1643 = vpack.c.b16 %v1610, %v1609
      %v1644 = vpack.c.b16 %v1612, %v1611
      %v1693 = vunpack.c.l.b16 %v1469
      %v1694 = vunpack.c.l.b16 %v1470
      %v1695 = vunpack.c.l.b16 %v1471
      %v1696 = vunpack.c.l.b16 %v1472
      %v1697 = vunpack.c.l.b16 %v1473
      %v1698 = vunpack.c.l.b16 %v1474
      %v1699 = vunpack.c.l.b16 %v1475
      %v1700 = vunpack.c.l.b16 %v1476
      %v1701 = vunpack.c.l.b16 %v1477
      %v1702 = vunpack.c.l.b16 %v1478
      %v1703 = vunpack.c.l.b16 %v1479
      %v1704 = vunpack.c.l.b16 %v1480
      %v1705 = vunpack.c.l.b16 %v1481
      %v1706 = vunpack.c.l.b16 %v1482
      %v1707 = vunpack.c.l.b16 %v1483
      %v1708 = vunpack.c.l.b16 %v1484
      %v1709 = vpack.c.b16 %v1694, %v1693
      %v1710 = vpack.c.b16 %v1696, %v1695
      %v1711 = vpack.c.b16 %v1698, %v1697
      %v1712 = vpack.c.b16 %v1700, %v1699
      %v1713 = vpack.c.b16 %v1702, %v1701
      %v1714 = vpack.c.b16 %v1704, %v1703
      %v1715 = vpack.c.b16 %v1706, %v1705
      %v1716 = vpack.c.b16 %v1708, %v1707
      %1725 = vmatprep.subr.bf16.mxu0 0
      %1726 = vmatpush1.bf16.msra.mxu0 %v1716
      %1727 = vmatprep.subr.bf16.mxu0 0
      %1728 = vmatpush1.bf16.msra.mxu0 %v1715
      %1729 = vmatprep.subr.bf16.mxu0 0
      %1730 = vmatpush1.bf16.msra.mxu0 %v1714
      %1731 = vmatprep.subr.bf16.mxu0 0
      %1732 = vmatpush1.bf16.msra.mxu0 %v1713
      %1733 = vmatprep.subr.bf16.mxu0 0
      %1734 = vmatpush1.bf16.msra.mxu0 %v1712
      %1735 = vmatprep.subr.bf16.mxu0 0
      %1736 = vmatpush1.bf16.msra.mxu0 %v1711
      %1737 = vmatprep.subr.bf16.mxu0 0
      %1738 = vmatpush1.bf16.msra.mxu0 %v1710
      %1739 = vmatprep.subr.bf16.mxu0 0
      %1740 = vmatpush1.bf16.msra.mxu0 %v1709
      %1741 = vmatprep.subr.bf16.mxu0 0
      %1742 = vmatpush2.bf16.msra.mxu0 0
      %1743 = vmatprep.subr.bf16.mxu0 0
      %1744 = vmatpush2.bf16.msra.mxu0 0
      %1745 = vmatprep.subr.bf16.mxu0 0
      %1746 = vmatpush2.bf16.msra.mxu0 0
      %1747 = vmatprep.subr.bf16.mxu0 0
      %1748 = vmatpush2.bf16.msra.mxu0 0
      %1749 = vmatprep.subr.bf16.mxu0 0
      %1750 = vmatpush2.bf16.msra.mxu0 0
      %1751 = vmatprep.subr.bf16.mxu0 0
      %1752 = vmatpush2.bf16.msra.mxu0 0
      %1753 = vmatprep.subr.bf16.mxu0 0
      %1754 = vmatpush2.bf16.msra.mxu0 0
      %1755 = vmatprep.subr.bf16.mxu0 0
      %1756 = vmatpush2.bf16.msra.mxu0 0
      %1757 = vmatprep.mubr.bf16.mxu0 0
      %1758 = vmatmul.mubr.bf16.gmra.mxu0 %v1613
      %v1759 = vpop.f32.mrf.mxu0
      %v1760 = vadd.f32 0.0, %v1759
      %v1761 = vpop.f32.mrf.mxu0
      %v1762 = vpop.f32.mrf.mxu0
      %v1763 = vadd.f32 0.0, %v1762
      %v1764 = vpop.f32.mrf.mxu0
      %1765 = vmatprep.mubr.bf16.mxu0 0
      %1766 = vmatmul.mubr.bf16.gmra.mxu0 %v1614
      %v1767 = vpop.f32.mrf.mxu0
      %v1768 = vadd.f32 0.0, %v1767
      %v1769 = vpop.f32.mrf.mxu0
      %v1770 = vpop.f32.mrf.mxu0
      %v1771 = vadd.f32 0.0, %v1770
      %v1772 = vpop.f32.mrf.mxu0
      %1773 = vmatprep.mubr.bf16.mxu0 0
      %1774 = vmatmul.mubr.bf16.gmra.mxu0 %v1615
      %v1775 = vpop.f32.mrf.mxu0
      %v1776 = vadd.f32 0.0, %v1775
      %v1777 = vpop.f32.mrf.mxu0
      %v1778 = vpop.f32.mrf.mxu0
      %v1779 = vadd.f32 0.0, %v1778
      %v1780 = vpop.f32.mrf.mxu0
      %1781 = vmatprep.mubr.bf16.mxu0 0
      %1782 = vmatmul.mubr.bf16.gmra.mxu0 %v1616
      %v1783 = vpop.f32.mrf.mxu0
      %v1784 = vadd.f32 0.0, %v1783
      %v1785 = vpop.f32.mrf.mxu0
      %v1786 = vpop.f32.mrf.mxu0
      %v1787 = vadd.f32 0.0, %v1786
      %v1788 = vpop.f32.mrf.mxu0
      %1789 = vmatprep.mubr.bf16.mxu0 0
      %1790 = vmatmul.mubr.bf16.gmra.mxu0 %v1617
      %v1791 = vpop.f32.mrf.mxu0
      %v1792 = vadd.f32 0.0, %v1791
      %v1793 = vpop.f32.mrf.mxu0
      %v1794 = vpop.f32.mrf.mxu0
      %v1795 = vadd.f32 0.0, %v1794
      %v1796 = vpop.f32.mrf.mxu0
      %1797 = vmatprep.mubr.bf16.mxu0 0
      %1798 = vmatmul.mubr.bf16.gmra.mxu0 %v1618
      %v1799 = vpop.f32.mrf.mxu0
      %v1800 = vadd.f32 0.0, %v1799
      %v1801 = vpop.f32.mrf.mxu0
      %v1802 = vpop.f32.mrf.mxu0
      %v1803 = vadd.f32 0.0, %v1802
      %v1804 = vpop.f32.mrf.mxu0
      %1805 = vmatprep.mubr.bf16.mxu0 0
      %1806 = vmatmul.mubr.bf16.gmra.mxu0 %v1619
      %v1807 = vpop.f32.mrf.mxu0
      %v1808 = vadd.f32 0.0, %v1807
      %v1809 = vpop.f32.mrf.mxu0
      %v1810 = vpop.f32.mrf.mxu0
      %v1811 = vadd.f32 0.0, %v1810
      %v1812 = vpop.f32.mrf.mxu0
      %1813 = vmatprep.mubr.bf16.mxu0 0
      %1814 = vmatmul.mubr.bf16.gmra.mxu0 %v1620
      %v1815 = vpop.f32.mrf.mxu0
      %v1816 = vadd.f32 0.0, %v1815
      %v1817 = vpop.f32.mrf.mxu0
      %v1818 = vpop.f32.mrf.mxu0
      %v1819 = vadd.f32 0.0, %v1818
      %v1820 = vpop.f32.mrf.mxu0
      %1821 = vmatprep.mubr.bf16.mxu0 0
      %1822 = vmatmul.mubr.bf16.gmra.mxu0 %v1621
      %v1823 = vpop.f32.mrf.mxu0
      %v1824 = vadd.f32 0.0, %v1823
      %v1825 = vpop.f32.mrf.mxu0
      %v1826 = vpop.f32.mrf.mxu0
      %v1827 = vadd.f32 0.0, %v1826
      %v1828 = vpop.f32.mrf.mxu0
      %1829 = vmatprep.mubr.bf16.mxu0 0
      %1830 = vmatmul.mubr.bf16.gmra.mxu0 %v1622
      %v1831 = vpop.f32.mrf.mxu0
      %v1832 = vadd.f32 0.0, %v1831
      %v1833 = vpop.f32.mrf.mxu0
      %v1834 = vpop.f32.mrf.mxu0
      %v1835 = vadd.f32 0.0, %v1834
      %v1836 = vpop.f32.mrf.mxu0
      %1837 = vmatprep.mubr.bf16.mxu0 0
      %1838 = vmatmul.mubr.bf16.gmra.mxu0 %v1623
      %v1839 = vpop.f32.mrf.mxu0
      %v1840 = vadd.f32 0.0, %v1839
      %v1841 = vpop.f32.mrf.mxu0
      %v1842 = vpop.f32.mrf.mxu0
      %v1843 = vadd.f32 0.0, %v1842
      %v1844 = vpop.f32.mrf.mxu0
      %1845 = vmatprep.mubr.bf16.mxu0 0
      %1846 = vmatmul.mubr.bf16.gmra.mxu0 %v1624
      %v1847 = vpop.f32.mrf.mxu0
      %v1848 = vadd.f32 0.0, %v1847
      %v1849 = vpop.f32.mrf.mxu0
      %v1850 = vpop.f32.mrf.mxu0
      %v1851 = vadd.f32 0.0, %v1850
      %v1852 = vpop.f32.mrf.mxu0
      %1853 = vmatprep.mubr.bf16.mxu0 0
      %1854 = vmatmul.mubr.bf16.gmra.mxu0 %v1625
      %v1855 = vpop.f32.mrf.mxu0
      %v1856 = vadd.f32 0.0, %v1855
      %v1857 = vpop.f32.mrf.mxu0
      %v1858 = vpop.f32.mrf.mxu0
      %v1859 = vadd.f32 0.0, %v1858
      %v1860 = vpop.f32.mrf.mxu0
      %1861 = vmatprep.mubr.bf16.mxu0 0
      %1862 = vmatmul.mubr.bf16.gmra.mxu0 %v1626
      %v1863 = vpop.f32.mrf.mxu0
      %v1864 = vadd.f32 0.0, %v1863
      %v1865 = vpop.f32.mrf.mxu0
      %v1866 = vpop.f32.mrf.mxu0
      %v1867 = vadd.f32 0.0, %v1866
      %v1868 = vpop.f32.mrf.mxu0
      %1869 = vmatprep.mubr.bf16.mxu0 0
      %1870 = vmatmul.mubr.bf16.gmra.mxu0 %v1627
      %v1871 = vpop.f32.mrf.mxu0
      %v1872 = vadd.f32 0.0, %v1871
      %v1873 = vpop.f32.mrf.mxu0
      %v1874 = vpop.f32.mrf.mxu0
      %v1875 = vadd.f32 0.0, %v1874
      %v1876 = vpop.f32.mrf.mxu0
      %1877 = vmatprep.mubr.bf16.mxu0 0
      %1878 = vmatmul.mubr.bf16.gmra.mxu0 %v1628
      %v1879 = vpop.f32.mrf.mxu0
      %v1880 = vadd.f32 0.0, %v1879
      %v1881 = vpop.f32.mrf.mxu0
      %v1882 = vpop.f32.mrf.mxu0
      %v1883 = vadd.f32 0.0, %v1882
      %v1884 = vpop.f32.mrf.mxu0
      %1885 = vmatprep.mubr.bf16.mxu0 0
      %1886 = vmatmul.mubr.bf16.gmra.mxu0 %v1629
      %v1887 = vpop.f32.mrf.mxu0
      %v1888 = vadd.f32 0.0, %v1887
      %v1889 = vpop.f32.mrf.mxu0
      %v1890 = vpop.f32.mrf.mxu0
      %v1891 = vadd.f32 0.0, %v1890
      %v1892 = vpop.f32.mrf.mxu0
      %1893 = vmatprep.mubr.bf16.mxu0 0
      %1894 = vmatmul.mubr.bf16.gmra.mxu0 %v1630
      %v1895 = vpop.f32.mrf.mxu0
      %v1896 = vadd.f32 0.0, %v1895
      %v1897 = vpop.f32.mrf.mxu0
      %v1898 = vpop.f32.mrf.mxu0
      %v1899 = vadd.f32 0.0, %v1898
      %v1900 = vpop.f32.mrf.mxu0
      %1901 = vmatprep.mubr.bf16.mxu0 0
      %1902 = vmatmul.mubr.bf16.gmra.mxu0 %v1631
      %v1903 = vpop.f32.mrf.mxu0
      %v1904 = vadd.f32 0.0, %v1903
      %v1905 = vpop.f32.mrf.mxu0
      %v1906 = vpop.f32.mrf.mxu0
      %v1907 = vadd.f32 0.0, %v1906
      %v1908 = vpop.f32.mrf.mxu0
      %1909 = vmatprep.mubr.bf16.mxu0 0
      %1910 = vmatmul.mubr.bf16.gmra.mxu0 %v1632
      %v1911 = vpop.f32.mrf.mxu0
      %v1912 = vadd.f32 0.0, %v1911
      %v1913 = vpop.f32.mrf.mxu0
      %v1914 = vpop.f32.mrf.mxu0
      %v1915 = vadd.f32 0.0, %v1914
      %v1916 = vpop.f32.mrf.mxu0
      %1917 = vmatprep.mubr.bf16.mxu0 0
      %1918 = vmatmul.mubr.bf16.gmra.mxu0 %v1633
      %v1919 = vpop.f32.mrf.mxu0
      %v1920 = vadd.f32 0.0, %v1919
      %v1921 = vpop.f32.mrf.mxu0
      %v1922 = vpop.f32.mrf.mxu0
      %v1923 = vadd.f32 0.0, %v1922
      %v1924 = vpop.f32.mrf.mxu0
      %1925 = vmatprep.mubr.bf16.mxu0 0
      %1926 = vmatmul.mubr.bf16.gmra.mxu0 %v1634
      %v1927 = vpop.f32.mrf.mxu0
      %v1928 = vadd.f32 0.0, %v1927
      %v1929 = vpop.f32.mrf.mxu0
      %v1930 = vpop.f32.mrf.mxu0
      %v1931 = vadd.f32 0.0, %v1930
      %v1932 = vpop.f32.mrf.mxu0
      %1933 = vmatprep.mubr.bf16.mxu0 0
      %1934 = vmatmul.mubr.bf16.gmra.mxu0 %v1635
      %v1935 = vpop.f32.mrf.mxu0
      %v1936 = vadd.f32 0.0, %v1935
      %v1937 = vpop.f32.mrf.mxu0
      %v1938 = vpop.f32.mrf.mxu0
      %v1939 = vadd.f32 0.0, %v1938
      %v1940 = vpop.f32.mrf.mxu0
      %1941 = vmatprep.mubr.bf16.mxu0 0
      %1942 = vmatmul.mubr.bf16.gmra.mxu0 %v1636
      %v1943 = vpop.f32.mrf.mxu0
      %v1944 = vadd.f32 0.0, %v1943
      %v1945 = vpop.f32.mrf.mxu0
      %v1946 = vpop.f32.mrf.mxu0
      %v1947 = vadd.f32 0.0, %v1946
      %v1948 = vpop.f32.mrf.mxu0
      %1949 = vmatprep.mubr.bf16.mxu0 0
      %1950 = vmatmul.mubr.bf16.gmra.mxu0 %v1637
      %v1951 = vpop.f32.mrf.mxu0
      %v1952 = vadd.f32 0.0, %v1951
      %v1953 = vpop.f32.mrf.mxu0
      %v1954 = vpop.f32.mrf.mxu0
      %v1955 = vadd.f32 0.0, %v1954
      %v1956 = vpop.f32.mrf.mxu0
      %1957 = vmatprep.mubr.bf16.mxu0 0
      %1958 = vmatmul.mubr.bf16.gmra.mxu0 %v1638
      %v1959 = vpop.f32.mrf.mxu0
      %v1960 = vadd.f32 0.0, %v1959
      %v1961 = vpop.f32.mrf.mxu0
      %v1962 = vpop.f32.mrf.mxu0
      %v1963 = vadd.f32 0.0, %v1962
      %v1964 = vpop.f32.mrf.mxu0
      %1965 = vmatprep.mubr.bf16.mxu0 0
      %1966 = vmatmul.mubr.bf16.gmra.mxu0 %v1639
      %v1967 = vpop.f32.mrf.mxu0
      %v1968 = vadd.f32 0.0, %v1967
      %v1969 = vpop.f32.mrf.mxu0
      %v1970 = vpop.f32.mrf.mxu0
      %v1971 = vadd.f32 0.0, %v1970
      %v1972 = vpop.f32.mrf.mxu0
      %1973 = vmatprep.mubr.bf16.mxu0 0
      %1974 = vmatmul.mubr.bf16.gmra.mxu0 %v1640
      %v1975 = vpop.f32.mrf.mxu0
      %v1976 = vadd.f32 0.0, %v1975
      %v1977 = vpop.f32.mrf.mxu0
      %v1978 = vpop.f32.mrf.mxu0
      %v1979 = vadd.f32 0.0, %v1978
      %v1980 = vpop.f32.mrf.mxu0
      %1981 = vmatprep.mubr.bf16.mxu0 0
      %1982 = vmatmul.mubr.bf16.gmra.mxu0 %v1641
      %v1983 = vpop.f32.mrf.mxu0
      %v1984 = vadd.f32 0.0, %v1983
      %v1985 = vpop.f32.mrf.mxu0
      %v1986 = vpop.f32.mrf.mxu0
      %v1987 = vadd.f32 0.0, %v1986
      %v1988 = vpop.f32.mrf.mxu0
      %1989 = vmatprep.mubr.bf16.mxu0 0
      %1990 = vmatmul.mubr.bf16.gmra.mxu0 %v1642
      %v1991 = vpop.f32.mrf.mxu0
      %v1992 = vadd.f32 0.0, %v1991
      %v1993 = vpop.f32.mrf.mxu0
      %v1994 = vpop.f32.mrf.mxu0
      %v1995 = vadd.f32 0.0, %v1994
      %v1996 = vpop.f32.mrf.mxu0
      %1997 = vmatprep.mubr.bf16.mxu0 0
      %1998 = vmatmul.mubr.bf16.gmra.mxu0 %v1643
      %v1999 = vpop.f32.mrf.mxu0
      %v2000 = vadd.f32 0.0, %v1999
      %v2001 = vpop.f32.mrf.mxu0
      %v2002 = vpop.f32.mrf.mxu0
      %v2003 = vadd.f32 0.0, %v2002
      %v2004 = vpop.f32.mrf.mxu0
      %2005 = vmatprep.mubr.bf16.mxu0 0
      %2006 = vmatmul.mubr.bf16.gmra.mxu0 %v1644
      %v2007 = vpop.f32.mrf.mxu0
      %v2008 = vadd.f32 0.0, %v2007
      %v2009 = vpop.f32.mrf.mxu0
      %v2010 = vpop.f32.mrf.mxu0
      %v2011 = vadd.f32 0.0, %v2010
      %v2012 = vpop.f32.mrf.mxu0
      %2013 = vdwg.mxu0
      %v2014 = vadd.f32 %v1149, %v1760
      %v2015 = vadd.f32 %v1152, %v1763
      %v2016 = vadd.f32 %v1157, %v1768
      %v2017 = vadd.f32 %v1160, %v1771
      %v2018 = vadd.f32 %v1165, %v1776
      %v2019 = vadd.f32 %v1168, %v1779
      %v2020 = vadd.f32 %v1173, %v1784
      %v2021 = vadd.f32 %v1176, %v1787
      %v2022 = vadd.f32 %v1181, %v1792
      %v2023 = vadd.f32 %v1184, %v1795
      %v2024 = vadd.f32 %v1189, %v1800
      %v2025 = vadd.f32 %v1192, %v1803
      %v2026 = vadd.f32 %v1197, %v1808
      %v2027 = vadd.f32 %v1200, %v1811
      %v2028 = vadd.f32 %v1205, %v1816
      %v2029 = vadd.f32 %v1208, %v1819
      %v2030 = vadd.f32 %v1213, %v1824
      %v2031 = vadd.f32 %v1216, %v1827
      %v2032 = vadd.f32 %v1221, %v1832
      %v2033 = vadd.f32 %v1224, %v1835
      %v2034 = vadd.f32 %v1229, %v1840
      %v2035 = vadd.f32 %v1232, %v1843
      %v2036 = vadd.f32 %v1237, %v1848
      %v2037 = vadd.f32 %v1240, %v1851
      %v2038 = vadd.f32 %v1245, %v1856
      %v2039 = vadd.f32 %v1248, %v1859
      %v2040 = vadd.f32 %v1253, %v1864
      %v2041 = vadd.f32 %v1256, %v1867
      %v2042 = vadd.f32 %v1261, %v1872
      %v2043 = vadd.f32 %v1264, %v1875
      %v2044 = vadd.f32 %v1269, %v1880
      %v2045 = vadd.f32 %v1272, %v1883
      %v2046 = vadd.f32 %v1277, %v1888
      %v2047 = vadd.f32 %v1280, %v1891
      %v2048 = vadd.f32 %v1285, %v1896
      %v2049 = vadd.f32 %v1288, %v1899
      %v2050 = vadd.f32 %v1293, %v1904
      %v2051 = vadd.f32 %v1296, %v1907
      %v2052 = vadd.f32 %v1301, %v1912
      %v2053 = vadd.f32 %v1304, %v1915
      %v2054 = vadd.f32 %v1309, %v1920
      %v2055 = vadd.f32 %v1312, %v1923
      %v2056 = vadd.f32 %v1317, %v1928
      %v2057 = vadd.f32 %v1320, %v1931
      %v2058 = vadd.f32 %v1325, %v1936
      %v2059 = vadd.f32 %v1328, %v1939
      %v2060 = vadd.f32 %v1333, %v1944
      %v2061 = vadd.f32 %v1336, %v1947
      %v2062 = vadd.f32 %v1341, %v1952
      %v2063 = vadd.f32 %v1344, %v1955
      %v2064 = vadd.f32 %v1349, %v1960
      %v2065 = vadd.f32 %v1352, %v1963
      %v2066 = vadd.f32 %v1357, %v1968
      %v2067 = vadd.f32 %v1360, %v1971
      %v2068 = vadd.f32 %v1365, %v1976
      %v2069 = vadd.f32 %v1368, %v1979
      %v2070 = vadd.f32 %v1373, %v1984
      %v2071 = vadd.f32 %v1376, %v1987
      %v2072 = vadd.f32 %v1381, %v1992
      %v2073 = vadd.f32 %v1384, %v1995
      %v2074 = vadd.f32 %v1389, %v2000
      %v2075 = vadd.f32 %v1392, %v2003
      %v2076 = vadd.f32 %v1397, %v2008
      %v2077 = vadd.f32 %v1400, %v2011
      %s2078 = scalar_lea.vmem %s1, 64
      %v2079 = vld [vmem:[%s2078] sm:$0xf]
      %v2080 = vld [vmem:[%s2078 + $0x4] sm:$0xf]
      %v2081 = vld [vmem:[%s2078 + $0x8] sm:$0xf]
      %v2082 = vld [vmem:[%s2078 + $0xc] sm:$0xf]
      %v2083 = vld [vmem:[%s2078 + $0x10] sm:$0xf]
      %v2084 = vld [vmem:[%s2078 + $0x14] sm:$0xf]
      %v2085 = vld [vmem:[%s2078 + $0x18] sm:$0xf]
      %v2086 = vld [vmem:[%s2078 + $0x1c] sm:$0xf]
      %v2087 = vld [vmem:[%s2078 + $0x20] sm:$0xf]
      %v2088 = vld [vmem:[%s2078 + $0x24] sm:$0xf]
      %v2089 = vld [vmem:[%s2078 + $0x28] sm:$0xf]
      %v2090 = vld [vmem:[%s2078 + $0x2c] sm:$0xf]
      %v2091 = vld [vmem:[%s2078 + $0x30] sm:$0xf]
      %v2092 = vld [vmem:[%s2078 + $0x34] sm:$0xf]
      %v2093 = vld [vmem:[%s2078 + $0x38] sm:$0xf]
      %v2094 = vld [vmem:[%s2078 + $0x3c] sm:$0xf]
      %s2095 = scalar_lea.vmem %s1, 256
      %v2096 = vld [vmem:[%s2095] sm:$0xf]
      %v2097 = vld [vmem:[%s2095 + $0x4] sm:$0xf]
      %v2098 = vld [vmem:[%s2095 + $0x8] sm:$0xf]
      %v2099 = vld [vmem:[%s2095 + $0xc] sm:$0xf]
      %v2100 = vld [vmem:[%s2095 + $0x10] sm:$0xf]
      %v2101 = vld [vmem:[%s2095 + $0x14] sm:$0xf]
      %v2102 = vld [vmem:[%s2095 + $0x18] sm:$0xf]
      %v2103 = vld [vmem:[%s2095 + $0x1c] sm:$0xf]
      %v2104 = vld [vmem:[%s2095 + $0x20] sm:$0xf]
      %v2105 = vld [vmem:[%s2095 + $0x24] sm:$0xf]
      %v2106 = vld [vmem:[%s2095 + $0x28] sm:$0xf]
      %v2107 = vld [vmem:[%s2095 + $0x2c] sm:$0xf]
      %v2108 = vld [vmem:[%s2095 + $0x30] sm:$0xf]
      %v2109 = vld [vmem:[%s2095 + $0x34] sm:$0xf]
      %v2110 = vld [vmem:[%s2095 + $0x38] sm:$0xf]
      %v2111 = vld [vmem:[%s2095 + $0x3c] sm:$0xf]
      %v2128 = vunpack.c.l.b16 %v2096
      %v2129 = vunpack.c.l.b16 %v2097
      %v2130 = vunpack.c.l.b16 %v2098
      %v2131 = vunpack.c.l.b16 %v2099
      %v2132 = vunpack.c.l.b16 %v2100
      %v2133 = vunpack.c.l.b16 %v2101
      %v2134 = vunpack.c.l.b16 %v2102
      %v2135 = vunpack.c.l.b16 %v2103
      %v2136 = vunpack.c.l.b16 %v2104
      %v2137 = vunpack.c.l.b16 %v2105
      %v2138 = vunpack.c.l.b16 %v2106
      %v2139 = vunpack.c.l.b16 %v2107
      %v2140 = vunpack.c.l.b16 %v2108
      %v2141 = vunpack.c.l.b16 %v2109
      %v2142 = vunpack.c.l.b16 %v2110
      %v2143 = vunpack.c.l.b16 %v2111
      %v2144 = vpack.c.b16 %v2129, %v2128
      %v2145 = vpack.c.b16 %v2131, %v2130
      %v2146 = vpack.c.b16 %v2133, %v2132
      %v2147 = vpack.c.b16 %v2135, %v2134
      %v2148 = vpack.c.b16 %v2137, %v2136
      %v2149 = vpack.c.b16 %v2139, %v2138
      %v2150 = vpack.c.b16 %v2141, %v2140
      %v2151 = vpack.c.b16 %v2143, %v2142
      %2160 = vmatprep.subr.bf16.mxu0 0
      %2161 = vmatpush1.bf16.msra.mxu0 %v2151
      %2162 = vmatprep.subr.bf16.mxu0 0
      %2163 = vmatpush1.bf16.msra.mxu0 %v2150
      %2164 = vmatprep.subr.bf16.mxu0 0
      %2165 = vmatpush1.bf16.msra.mxu0 %v2149
      %2166 = vmatprep.subr.bf16.mxu0 0
      %2167 = vmatpush1.bf16.msra.mxu0 %v2148
      %2168 = vmatprep.subr.bf16.mxu0 0
      %2169 = vmatpush1.bf16.msra.mxu0 %v2147
      %2170 = vmatprep.subr.bf16.mxu0 0
      %2171 = vmatpush1.bf16.msra.mxu0 %v2146
      %2172 = vmatprep.subr.bf16.mxu0 0
      %2173 = vmatpush1.bf16.msra.mxu0 %v2145
      %2174 = vmatprep.subr.bf16.mxu0 0
      %2175 = vmatpush1.bf16.msra.mxu0 %v2144
      %2176 = vmatprep.subr.bf16.mxu0 0
      %2177 = vmatpush2.bf16.msra.mxu0 0
      %2178 = vmatprep.subr.bf16.mxu0 0
      %2179 = vmatpush2.bf16.msra.mxu0 0
      %2180 = vmatprep.subr.bf16.mxu0 0
      %2181 = vmatpush2.bf16.msra.mxu0 0
      %2182 = vmatprep.subr.bf16.mxu0 0
      %2183 = vmatpush2.bf16.msra.mxu0 0
      %2184 = vmatprep.subr.bf16.mxu0 0
      %2185 = vmatpush2.bf16.msra.mxu0 0
      %2186 = vmatprep.subr.bf16.mxu0 0
      %2187 = vmatpush2.bf16.msra.mxu0 0
      %2188 = vmatprep.subr.bf16.mxu0 0
      %2189 = vmatpush2.bf16.msra.mxu0 0
      %2190 = vmatprep.subr.bf16.mxu0 0
      %2191 = vmatpush2.bf16.msra.mxu0 0
      %2192 = vmatprep.mubr.bf16.mxu0 0
      %2193 = vmatmul.mubr.bf16.gmra.mxu0 %v473
      %v2194 = vpop.f32.mrf.mxu0
      %v2195 = vadd.f32 0.0, %v2194
      %v2196 = vpop.f32.mrf.mxu0
      %v2197 = vpop.f32.mrf.mxu0
      %v2198 = vadd.f32 0.0, %v2197
      %v2199 = vpop.f32.mrf.mxu0
      %2200 = vmatprep.mubr.bf16.mxu0 0
      %2201 = vmatmul.mubr.bf16.gmra.mxu0 %v474
      %v2202 = vpop.f32.mrf.mxu0
      %v2203 = vadd.f32 0.0, %v2202
      %v2204 = vpop.f32.mrf.mxu0
      %v2205 = vpop.f32.mrf.mxu0
      %v2206 = vadd.f32 0.0, %v2205
      %v2207 = vpop.f32.mrf.mxu0
      %2208 = vmatprep.mubr.bf16.mxu0 0
      %2209 = vmatmul.mubr.bf16.gmra.mxu0 %v475
      %v2210 = vpop.f32.mrf.mxu0
      %v2211 = vadd.f32 0.0, %v2210
      %v2212 = vpop.f32.mrf.mxu0
      %v2213 = vpop.f32.mrf.mxu0
      %v2214 = vadd.f32 0.0, %v2213
      %v2215 = vpop.f32.mrf.mxu0
      %2216 = vmatprep.mubr.bf16.mxu0 0
      %2217 = vmatmul.mubr.bf16.gmra.mxu0 %v476
      %v2218 = vpop.f32.mrf.mxu0
      %v2219 = vadd.f32 0.0, %v2218
      %v2220 = vpop.f32.mrf.mxu0
      %v2221 = vpop.f32.mrf.mxu0
      %v2222 = vadd.f32 0.0, %v2221
      %v2223 = vpop.f32.mrf.mxu0
      %2224 = vmatprep.mubr.bf16.mxu0 0
      %2225 = vmatmul.mubr.bf16.gmra.mxu0 %v477
      %v2226 = vpop.f32.mrf.mxu0
      %v2227 = vadd.f32 0.0, %v2226
      %v2228 = vpop.f32.mrf.mxu0
      %v2229 = vpop.f32.mrf.mxu0
      %v2230 = vadd.f32 0.0, %v2229
      %v2231 = vpop.f32.mrf.mxu0
      %2232 = vmatprep.mubr.bf16.mxu0 0
      %2233 = vmatmul.mubr.bf16.gmra.mxu0 %v478
      %v2234 = vpop.f32.mrf.mxu0
      %v2235 = vadd.f32 0.0, %v2234
      %v2236 = vpop.f32.mrf.mxu0
      %v2237 = vpop.f32.mrf.mxu0
      %v2238 = vadd.f32 0.0, %v2237
      %v2239 = vpop.f32.mrf.mxu0
      %2240 = vmatprep.mubr.bf16.mxu0 0
      %2241 = vmatmul.mubr.bf16.gmra.mxu0 %v479
      %v2242 = vpop.f32.mrf.mxu0
      %v2243 = vadd.f32 0.0, %v2242
      %v2244 = vpop.f32.mrf.mxu0
      %v2245 = vpop.f32.mrf.mxu0
      %v2246 = vadd.f32 0.0, %v2245
      %v2247 = vpop.f32.mrf.mxu0
      %2248 = vmatprep.mubr.bf16.mxu0 0
      %2249 = vmatmul.mubr.bf16.gmra.mxu0 %v480
      %v2250 = vpop.f32.mrf.mxu0
      %v2251 = vadd.f32 0.0, %v2250
      %v2252 = vpop.f32.mrf.mxu0
      %v2253 = vpop.f32.mrf.mxu0
      %v2254 = vadd.f32 0.0, %v2253
      %v2255 = vpop.f32.mrf.mxu0
      %2256 = vmatprep.mubr.bf16.mxu0 0
      %2257 = vmatmul.mubr.bf16.gmra.mxu0 %v481
      %v2258 = vpop.f32.mrf.mxu0
      %v2259 = vadd.f32 0.0, %v2258
      %v2260 = vpop.f32.mrf.mxu0
      %v2261 = vpop.f32.mrf.mxu0
      %v2262 = vadd.f32 0.0, %v2261
      %v2263 = vpop.f32.mrf.mxu0
      %2264 = vmatprep.mubr.bf16.mxu0 0
      %2265 = vmatmul.mubr.bf16.gmra.mxu0 %v482
      %v2266 = vpop.f32.mrf.mxu0
      %v2267 = vadd.f32 0.0, %v2266
      %v2268 = vpop.f32.mrf.mxu0
      %v2269 = vpop.f32.mrf.mxu0
      %v2270 = vadd.f32 0.0, %v2269
      %v2271 = vpop.f32.mrf.mxu0
      %2272 = vmatprep.mubr.bf16.mxu0 0
      %2273 = vmatmul.mubr.bf16.gmra.mxu0 %v483
      %v2274 = vpop.f32.mrf.mxu0
      %v2275 = vadd.f32 0.0, %v2274
      %v2276 = vpop.f32.mrf.mxu0
      %v2277 = vpop.f32.mrf.mxu0
      %v2278 = vadd.f32 0.0, %v2277
      %v2279 = vpop.f32.mrf.mxu0
      %2280 = vmatprep.mubr.bf16.mxu0 0
      %2281 = vmatmul.mubr.bf16.gmra.mxu0 %v484
      %v2282 = vpop.f32.mrf.mxu0
      %v2283 = vadd.f32 0.0, %v2282
      %v2284 = vpop.f32.mrf.mxu0
      %v2285 = vpop.f32.mrf.mxu0
      %v2286 = vadd.f32 0.0, %v2285
      %v2287 = vpop.f32.mrf.mxu0
      %2288 = vmatprep.mubr.bf16.mxu0 0
      %2289 = vmatmul.mubr.bf16.gmra.mxu0 %v485
      %v2290 = vpop.f32.mrf.mxu0
      %v2291 = vadd.f32 0.0, %v2290
      %v2292 = vpop.f32.mrf.mxu0
      %v2293 = vpop.f32.mrf.mxu0
      %v2294 = vadd.f32 0.0, %v2293
      %v2295 = vpop.f32.mrf.mxu0
      %2296 = vmatprep.mubr.bf16.mxu0 0
      %2297 = vmatmul.mubr.bf16.gmra.mxu0 %v486
      %v2298 = vpop.f32.mrf.mxu0
      %v2299 = vadd.f32 0.0, %v2298
      %v2300 = vpop.f32.mrf.mxu0
      %v2301 = vpop.f32.mrf.mxu0
      %v2302 = vadd.f32 0.0, %v2301
      %v2303 = vpop.f32.mrf.mxu0
      %2304 = vmatprep.mubr.bf16.mxu0 0
      %2305 = vmatmul.mubr.bf16.gmra.mxu0 %v487
      %v2306 = vpop.f32.mrf.mxu0
      %v2307 = vadd.f32 0.0, %v2306
      %v2308 = vpop.f32.mrf.mxu0
      %v2309 = vpop.f32.mrf.mxu0
      %v2310 = vadd.f32 0.0, %v2309
      %v2311 = vpop.f32.mrf.mxu0
      %2312 = vmatprep.mubr.bf16.mxu0 0
      %2313 = vmatmul.mubr.bf16.gmra.mxu0 %v488
      %v2314 = vpop.f32.mrf.mxu0
      %v2315 = vadd.f32 0.0, %v2314
      %v2316 = vpop.f32.mrf.mxu0
      %v2317 = vpop.f32.mrf.mxu0
      %v2318 = vadd.f32 0.0, %v2317
      %v2319 = vpop.f32.mrf.mxu0
      %2320 = vmatprep.mubr.bf16.mxu0 0
      %2321 = vmatmul.mubr.bf16.gmra.mxu0 %v489
      %v2322 = vpop.f32.mrf.mxu0
      %v2323 = vadd.f32 0.0, %v2322
      %v2324 = vpop.f32.mrf.mxu0
      %v2325 = vpop.f32.mrf.mxu0
      %v2326 = vadd.f32 0.0, %v2325
      %v2327 = vpop.f32.mrf.mxu0
      %2328 = vmatprep.mubr.bf16.mxu0 0
      %2329 = vmatmul.mubr.bf16.gmra.mxu0 %v490
      %v2330 = vpop.f32.mrf.mxu0
      %v2331 = vadd.f32 0.0, %v2330
      %v2332 = vpop.f32.mrf.mxu0
      %v2333 = vpop.f32.mrf.mxu0
      %v2334 = vadd.f32 0.0, %v2333
      %v2335 = vpop.f32.mrf.mxu0
      %2336 = vmatprep.mubr.bf16.mxu0 0
      %2337 = vmatmul.mubr.bf16.gmra.mxu0 %v491
      %v2338 = vpop.f32.mrf.mxu0
      %v2339 = vadd.f32 0.0, %v2338
      %v2340 = vpop.f32.mrf.mxu0
      %v2341 = vpop.f32.mrf.mxu0
      %v2342 = vadd.f32 0.0, %v2341
      %v2343 = vpop.f32.mrf.mxu0
      %2344 = vmatprep.mubr.bf16.mxu0 0
      %2345 = vmatmul.mubr.bf16.gmra.mxu0 %v492
      %v2346 = vpop.f32.mrf.mxu0
      %v2347 = vadd.f32 0.0, %v2346
      %v2348 = vpop.f32.mrf.mxu0
      %v2349 = vpop.f32.mrf.mxu0
      %v2350 = vadd.f32 0.0, %v2349
      %v2351 = vpop.f32.mrf.mxu0
      %2352 = vmatprep.mubr.bf16.mxu0 0
      %2353 = vmatmul.mubr.bf16.gmra.mxu0 %v493
      %v2354 = vpop.f32.mrf.mxu0
      %v2355 = vadd.f32 0.0, %v2354
      %v2356 = vpop.f32.mrf.mxu0
      %v2357 = vpop.f32.mrf.mxu0
      %v2358 = vadd.f32 0.0, %v2357
      %v2359 = vpop.f32.mrf.mxu0
      %2360 = vmatprep.mubr.bf16.mxu0 0
      %2361 = vmatmul.mubr.bf16.gmra.mxu0 %v494
      %v2362 = vpop.f32.mrf.mxu0
      %v2363 = vadd.f32 0.0, %v2362
      %v2364 = vpop.f32.mrf.mxu0
      %v2365 = vpop.f32.mrf.mxu0
      %v2366 = vadd.f32 0.0, %v2365
      %v2367 = vpop.f32.mrf.mxu0
      %2368 = vmatprep.mubr.bf16.mxu0 0
      %2369 = vmatmul.mubr.bf16.gmra.mxu0 %v495
      %v2370 = vpop.f32.mrf.mxu0
      %v2371 = vadd.f32 0.0, %v2370
      %v2372 = vpop.f32.mrf.mxu0
      %v2373 = vpop.f32.mrf.mxu0
      %v2374 = vadd.f32 0.0, %v2373
      %v2375 = vpop.f32.mrf.mxu0
      %2376 = vmatprep.mubr.bf16.mxu0 0
      %2377 = vmatmul.mubr.bf16.gmra.mxu0 %v496
      %v2378 = vpop.f32.mrf.mxu0
      %v2379 = vadd.f32 0.0, %v2378
      %v2380 = vpop.f32.mrf.mxu0
      %v2381 = vpop.f32.mrf.mxu0
      %v2382 = vadd.f32 0.0, %v2381
      %v2383 = vpop.f32.mrf.mxu0
      %2384 = vmatprep.mubr.bf16.mxu0 0
      %2385 = vmatmul.mubr.bf16.gmra.mxu0 %v497
      %v2386 = vpop.f32.mrf.mxu0
      %v2387 = vadd.f32 0.0, %v2386
      %v2388 = vpop.f32.mrf.mxu0
      %v2389 = vpop.f32.mrf.mxu0
      %v2390 = vadd.f32 0.0, %v2389
      %v2391 = vpop.f32.mrf.mxu0
      %2392 = vmatprep.mubr.bf16.mxu0 0
      %2393 = vmatmul.mubr.bf16.gmra.mxu0 %v498
      %v2394 = vpop.f32.mrf.mxu0
      %v2395 = vadd.f32 0.0, %v2394
      %v2396 = vpop.f32.mrf.mxu0
      %v2397 = vpop.f32.mrf.mxu0
      %v2398 = vadd.f32 0.0, %v2397
      %v2399 = vpop.f32.mrf.mxu0
      %2400 = vmatprep.mubr.bf16.mxu0 0
      %2401 = vmatmul.mubr.bf16.gmra.mxu0 %v499
      %v2402 = vpop.f32.mrf.mxu0
      %v2403 = vadd.f32 0.0, %v2402
      %v2404 = vpop.f32.mrf.mxu0
      %v2405 = vpop.f32.mrf.mxu0
      %v2406 = vadd.f32 0.0, %v2405
      %v2407 = vpop.f32.mrf.mxu0
      %2408 = vmatprep.mubr.bf16.mxu0 0
      %2409 = vmatmul.mubr.bf16.gmra.mxu0 %v500
      %v2410 = vpop.f32.mrf.mxu0
      %v2411 = vadd.f32 0.0, %v2410
      %v2412 = vpop.f32.mrf.mxu0
      %v2413 = vpop.f32.mrf.mxu0
      %v2414 = vadd.f32 0.0, %v2413
      %v2415 = vpop.f32.mrf.mxu0
      %2416 = vmatprep.mubr.bf16.mxu0 0
      %2417 = vmatmul.mubr.bf16.gmra.mxu0 %v501
      %v2418 = vpop.f32.mrf.mxu0
      %v2419 = vadd.f32 0.0, %v2418
      %v2420 = vpop.f32.mrf.mxu0
      %v2421 = vpop.f32.mrf.mxu0
      %v2422 = vadd.f32 0.0, %v2421
      %v2423 = vpop.f32.mrf.mxu0
      %2424 = vmatprep.mubr.bf16.mxu0 0
      %2425 = vmatmul.mubr.bf16.gmra.mxu0 %v502
      %v2426 = vpop.f32.mrf.mxu0
      %v2427 = vadd.f32 0.0, %v2426
      %v2428 = vpop.f32.mrf.mxu0
      %v2429 = vpop.f32.mrf.mxu0
      %v2430 = vadd.f32 0.0, %v2429
      %v2431 = vpop.f32.mrf.mxu0
      %2432 = vmatprep.mubr.bf16.mxu0 0
      %2433 = vmatmul.mubr.bf16.gmra.mxu0 %v503
      %v2434 = vpop.f32.mrf.mxu0
      %v2435 = vadd.f32 0.0, %v2434
      %v2436 = vpop.f32.mrf.mxu0
      %v2437 = vpop.f32.mrf.mxu0
      %v2438 = vadd.f32 0.0, %v2437
      %v2439 = vpop.f32.mrf.mxu0
      %2440 = vmatprep.mubr.bf16.mxu0 0
      %2441 = vmatmul.mubr.bf16.gmra.mxu0 %v504
      %v2442 = vpop.f32.mrf.mxu0
      %v2443 = vadd.f32 0.0, %v2442
      %v2444 = vpop.f32.mrf.mxu0
      %v2445 = vpop.f32.mrf.mxu0
      %v2446 = vadd.f32 0.0, %v2445
      %v2447 = vpop.f32.mrf.mxu0
      %2448 = vdwg.mxu0
      %v2465 = vunpack.c.l.b16 %v2079
      %v2466 = vunpack.c.l.b16 %v2080
      %v2467 = vunpack.c.l.b16 %v2081
      %v2468 = vunpack.c.l.b16 %v2082
      %v2469 = vunpack.c.l.b16 %v2083
      %v2470 = vunpack.c.l.b16 %v2084
      %v2471 = vunpack.c.l.b16 %v2085
      %v2472 = vunpack.c.l.b16 %v2086
      %v2473 = vunpack.c.l.b16 %v2087
      %v2474 = vunpack.c.l.b16 %v2088
      %v2475 = vunpack.c.l.b16 %v2089
      %v2476 = vunpack.c.l.b16 %v2090
      %v2477 = vunpack.c.l.b16 %v2091
      %v2478 = vunpack.c.l.b16 %v2092
      %v2479 = vunpack.c.l.b16 %v2093
      %v2480 = vunpack.c.l.b16 %v2094
      %v2481 = vpack.c.b16 %v2466, %v2465
      %v2482 = vpack.c.b16 %v2468, %v2467
      %v2483 = vpack.c.b16 %v2470, %v2469
      %v2484 = vpack.c.b16 %v2472, %v2471
      %v2485 = vpack.c.b16 %v2474, %v2473
      %v2486 = vpack.c.b16 %v2476, %v2475
      %v2487 = vpack.c.b16 %v2478, %v2477
      %v2488 = vpack.c.b16 %v2480, %v2479
      %2497 = vmatprep.subr.bf16.mxu0 0
      %2498 = vmatpush1.bf16.msra.mxu0 %v2488
      %2499 = vmatprep.subr.bf16.mxu0 0
      %2500 = vmatpush1.bf16.msra.mxu0 %v2487
      %2501 = vmatprep.subr.bf16.mxu0 0
      %2502 = vmatpush1.bf16.msra.mxu0 %v2486
      %2503 = vmatprep.subr.bf16.mxu0 0
      %2504 = vmatpush1.bf16.msra.mxu0 %v2485
      %2505 = vmatprep.subr.bf16.mxu0 0
      %2506 = vmatpush1.bf16.msra.mxu0 %v2484
      %2507 = vmatprep.subr.bf16.mxu0 0
      %2508 = vmatpush1.bf16.msra.mxu0 %v2483
      %2509 = vmatprep.subr.bf16.mxu0 0
      %2510 = vmatpush1.bf16.msra.mxu0 %v2482
      %2511 = vmatprep.subr.bf16.mxu0 0
      %2512 = vmatpush1.bf16.msra.mxu0 %v2481
      %2513 = vmatprep.subr.bf16.mxu0 0
      %2514 = vmatpush2.bf16.msra.mxu0 0
      %2515 = vmatprep.subr.bf16.mxu0 0
      %2516 = vmatpush2.bf16.msra.mxu0 0
      %2517 = vmatprep.subr.bf16.mxu0 0
      %2518 = vmatpush2.bf16.msra.mxu0 0
      %2519 = vmatprep.subr.bf16.mxu0 0
      %2520 = vmatpush2.bf16.msra.mxu0 0
      %2521 = vmatprep.subr.bf16.mxu0 0
      %2522 = vmatpush2.bf16.msra.mxu0 0
      %2523 = vmatprep.subr.bf16.mxu0 0
      %2524 = vmatpush2.bf16.msra.mxu0 0
      %2525 = vmatprep.subr.bf16.mxu0 0
      %2526 = vmatpush2.bf16.msra.mxu0 0
      %2527 = vmatprep.subr.bf16.mxu0 0
      %2528 = vmatpush2.bf16.msra.mxu0 0
      %2529 = vmatprep.mubr.bf16.mxu0 0
      %2530 = vmatmul.mubr.bf16.gmra.mxu0 %v1002
      %v2531 = vpop.f32.mrf.mxu0
      %v2532 = vadd.f32 %v2195, %v2531
      %v2533 = vpop.f32.mrf.mxu0
      %v2534 = vpop.f32.mrf.mxu0
      %v2535 = vadd.f32 %v2198, %v2534
      %v2536 = vpop.f32.mrf.mxu0
      %2537 = vmatprep.mubr.bf16.mxu0 0
      %2538 = vmatmul.mubr.bf16.gmra.mxu0 %v1003
      %v2539 = vpop.f32.mrf.mxu0
      %v2540 = vadd.f32 %v2203, %v2539
      %v2541 = vpop.f32.mrf.mxu0
      %v2542 = vpop.f32.mrf.mxu0
      %v2543 = vadd.f32 %v2206, %v2542
      %v2544 = vpop.f32.mrf.mxu0
      %2545 = vmatprep.mubr.bf16.mxu0 0
      %2546 = vmatmul.mubr.bf16.gmra.mxu0 %v1004
      %v2547 = vpop.f32.mrf.mxu0
      %v2548 = vadd.f32 %v2211, %v2547
      %v2549 = vpop.f32.mrf.mxu0
      %v2550 = vpop.f32.mrf.mxu0
      %v2551 = vadd.f32 %v2214, %v2550
      %v2552 = vpop.f32.mrf.mxu0
      %2553 = vmatprep.mubr.bf16.mxu0 0
      %2554 = vmatmul.mubr.bf16.gmra.mxu0 %v1005
      %v2555 = vpop.f32.mrf.mxu0
      %v2556 = vadd.f32 %v2219, %v2555
      %v2557 = vpop.f32.mrf.mxu0
      %v2558 = vpop.f32.mrf.mxu0
      %v2559 = vadd.f32 %v2222, %v2558
      %v2560 = vpop.f32.mrf.mxu0
      %2561 = vmatprep.mubr.bf16.mxu0 0
      %2562 = vmatmul.mubr.bf16.gmra.mxu0 %v1006
      %v2563 = vpop.f32.mrf.mxu0
      %v2564 = vadd.f32 %v2227, %v2563
      %v2565 = vpop.f32.mrf.mxu0
      %v2566 = vpop.f32.mrf.mxu0
      %v2567 = vadd.f32 %v2230, %v2566
      %v2568 = vpop.f32.mrf.mxu0
      %2569 = vmatprep.mubr.bf16.mxu0 0
      %2570 = vmatmul.mubr.bf16.gmra.mxu0 %v1007
      %v2571 = vpop.f32.mrf.mxu0
      %v2572 = vadd.f32 %v2235, %v2571
      %v2573 = vpop.f32.mrf.mxu0
      %v2574 = vpop.f32.mrf.mxu0
      %v2575 = vadd.f32 %v2238, %v2574
      %v2576 = vpop.f32.mrf.mxu0
      %2577 = vmatprep.mubr.bf16.mxu0 0
      %2578 = vmatmul.mubr.bf16.gmra.mxu0 %v1008
      %v2579 = vpop.f32.mrf.mxu0
      %v2580 = vadd.f32 %v2243, %v2579
      %v2581 = vpop.f32.mrf.mxu0
      %v2582 = vpop.f32.mrf.mxu0
      %v2583 = vadd.f32 %v2246, %v2582
      %v2584 = vpop.f32.mrf.mxu0
      %2585 = vmatprep.mubr.bf16.mxu0 0
      %2586 = vmatmul.mubr.bf16.gmra.mxu0 %v1009
      %v2587 = vpop.f32.mrf.mxu0
      %v2588 = vadd.f32 %v2251, %v2587
      %v2589 = vpop.f32.mrf.mxu0
      %v2590 = vpop.f32.mrf.mxu0
      %v2591 = vadd.f32 %v2254, %v2590
      %v2592 = vpop.f32.mrf.mxu0
      %2593 = vmatprep.mubr.bf16.mxu0 0
      %2594 = vmatmul.mubr.bf16.gmra.mxu0 %v1010
      %v2595 = vpop.f32.mrf.mxu0
      %v2596 = vadd.f32 %v2259, %v2595
      %v2597 = vpop.f32.mrf.mxu0
      %v2598 = vpop.f32.mrf.mxu0
      %v2599 = vadd.f32 %v2262, %v2598
      %v2600 = vpop.f32.mrf.mxu0
      %2601 = vmatprep.mubr.bf16.mxu0 0
      %2602 = vmatmul.mubr.bf16.gmra.mxu0 %v1011
      %v2603 = vpop.f32.mrf.mxu0
      %v2604 = vadd.f32 %v2267, %v2603
      %v2605 = vpop.f32.mrf.mxu0
      %v2606 = vpop.f32.mrf.mxu0
      %v2607 = vadd.f32 %v2270, %v2606
      %v2608 = vpop.f32.mrf.mxu0
      %2609 = vmatprep.mubr.bf16.mxu0 0
      %2610 = vmatmul.mubr.bf16.gmra.mxu0 %v1012
      %v2611 = vpop.f32.mrf.mxu0
      %v2612 = vadd.f32 %v2275, %v2611
      %v2613 = vpop.f32.mrf.mxu0
      %v2614 = vpop.f32.mrf.mxu0
      %v2615 = vadd.f32 %v2278, %v2614
      %v2616 = vpop.f32.mrf.mxu0
      %2617 = vmatprep.mubr.bf16.mxu0 0
      %2618 = vmatmul.mubr.bf16.gmra.mxu0 %v1013
      %v2619 = vpop.f32.mrf.mxu0
      %v2620 = vadd.f32 %v2283, %v2619
      %v2621 = vpop.f32.mrf.mxu0
      %v2622 = vpop.f32.mrf.mxu0
      %v2623 = vadd.f32 %v2286, %v2622
      %v2624 = vpop.f32.mrf.mxu0
      %2625 = vmatprep.mubr.bf16.mxu0 0
      %2626 = vmatmul.mubr.bf16.gmra.mxu0 %v1014
      %v2627 = vpop.f32.mrf.mxu0
      %v2628 = vadd.f32 %v2291, %v2627
      %v2629 = vpop.f32.mrf.mxu0
      %v2630 = vpop.f32.mrf.mxu0
      %v2631 = vadd.f32 %v2294, %v2630
      %v2632 = vpop.f32.mrf.mxu0
      %2633 = vmatprep.mubr.bf16.mxu0 0
      %2634 = vmatmul.mubr.bf16.gmra.mxu0 %v1015
      %v2635 = vpop.f32.mrf.mxu0
      %v2636 = vadd.f32 %v2299, %v2635
      %v2637 = vpop.f32.mrf.mxu0
      %v2638 = vpop.f32.mrf.mxu0
      %v2639 = vadd.f32 %v2302, %v2638
      %v2640 = vpop.f32.mrf.mxu0
      %2641 = vmatprep.mubr.bf16.mxu0 0
      %2642 = vmatmul.mubr.bf16.gmra.mxu0 %v1016
      %v2643 = vpop.f32.mrf.mxu0
      %v2644 = vadd.f32 %v2307, %v2643
      %v2645 = vpop.f32.mrf.mxu0
      %v2646 = vpop.f32.mrf.mxu0
      %v2647 = vadd.f32 %v2310, %v2646
      %v2648 = vpop.f32.mrf.mxu0
      %2649 = vmatprep.mubr.bf16.mxu0 0
      %2650 = vmatmul.mubr.bf16.gmra.mxu0 %v1017
      %v2651 = vpop.f32.mrf.mxu0
      %v2652 = vadd.f32 %v2315, %v2651
      %v2653 = vpop.f32.mrf.mxu0
      %v2654 = vpop.f32.mrf.mxu0
      %v2655 = vadd.f32 %v2318, %v2654
      %v2656 = vpop.f32.mrf.mxu0
      %2657 = vmatprep.mubr.bf16.mxu0 0
      %2658 = vmatmul.mubr.bf16.gmra.mxu0 %v1018
      %v2659 = vpop.f32.mrf.mxu0
      %v2660 = vadd.f32 %v2323, %v2659
      %v2661 = vpop.f32.mrf.mxu0
      %v2662 = vpop.f32.mrf.mxu0
      %v2663 = vadd.f32 %v2326, %v2662
      %v2664 = vpop.f32.mrf.mxu0
      %2665 = vmatprep.mubr.bf16.mxu0 0
      %2666 = vmatmul.mubr.bf16.gmra.mxu0 %v1019
      %v2667 = vpop.f32.mrf.mxu0
      %v2668 = vadd.f32 %v2331, %v2667
      %v2669 = vpop.f32.mrf.mxu0
      %v2670 = vpop.f32.mrf.mxu0
      %v2671 = vadd.f32 %v2334, %v2670
      %v2672 = vpop.f32.mrf.mxu0
      %2673 = vmatprep.mubr.bf16.mxu0 0
      %2674 = vmatmul.mubr.bf16.gmra.mxu0 %v1020
      %v2675 = vpop.f32.mrf.mxu0
      %v2676 = vadd.f32 %v2339, %v2675
      %v2677 = vpop.f32.mrf.mxu0
      %v2678 = vpop.f32.mrf.mxu0
      %v2679 = vadd.f32 %v2342, %v2678
      %v2680 = vpop.f32.mrf.mxu0
      %2681 = vmatprep.mubr.bf16.mxu0 0
      %2682 = vmatmul.mubr.bf16.gmra.mxu0 %v1021
      %v2683 = vpop.f32.mrf.mxu0
      %v2684 = vadd.f32 %v2347, %v2683
      %v2685 = vpop.f32.mrf.mxu0
      %v2686 = vpop.f32.mrf.mxu0
      %v2687 = vadd.f32 %v2350, %v2686
      %v2688 = vpop.f32.mrf.mxu0
      %2689 = vmatprep.mubr.bf16.mxu0 0
      %2690 = vmatmul.mubr.bf16.gmra.mxu0 %v1022
      %v2691 = vpop.f32.mrf.mxu0
      %v2692 = vadd.f32 %v2355, %v2691
      %v2693 = vpop.f32.mrf.mxu0
      %v2694 = vpop.f32.mrf.mxu0
      %v2695 = vadd.f32 %v2358, %v2694
      %v2696 = vpop.f32.mrf.mxu0
      %2697 = vmatprep.mubr.bf16.mxu0 0
      %2698 = vmatmul.mubr.bf16.gmra.mxu0 %v1023
      %v2699 = vpop.f32.mrf.mxu0
      %v2700 = vadd.f32 %v2363, %v2699
      %v2701 = vpop.f32.mrf.mxu0
      %v2702 = vpop.f32.mrf.mxu0
      %v2703 = vadd.f32 %v2366, %v2702
      %v2704 = vpop.f32.mrf.mxu0
      %2705 = vmatprep.mubr.bf16.mxu0 0
      %2706 = vmatmul.mubr.bf16.gmra.mxu0 %v1024
      %v2707 = vpop.f32.mrf.mxu0
      %v2708 = vadd.f32 %v2371, %v2707
      %v2709 = vpop.f32.mrf.mxu0
      %v2710 = vpop.f32.mrf.mxu0
      %v2711 = vadd.f32 %v2374, %v2710
      %v2712 = vpop.f32.mrf.mxu0
      %2713 = vmatprep.mubr.bf16.mxu0 0
      %2714 = vmatmul.mubr.bf16.gmra.mxu0 %v1025
      %v2715 = vpop.f32.mrf.mxu0
      %v2716 = vadd.f32 %v2379, %v2715
      %v2717 = vpop.f32.mrf.mxu0
      %v2718 = vpop.f32.mrf.mxu0
      %v2719 = vadd.f32 %v2382, %v2718
      %v2720 = vpop.f32.mrf.mxu0
      %2721 = vmatprep.mubr.bf16.mxu0 0
      %2722 = vmatmul.mubr.bf16.gmra.mxu0 %v1026
      %v2723 = vpop.f32.mrf.mxu0
      %v2724 = vadd.f32 %v2387, %v2723
      %v2725 = vpop.f32.mrf.mxu0
      %v2726 = vpop.f32.mrf.mxu0
      %v2727 = vadd.f32 %v2390, %v2726
      %v2728 = vpop.f32.mrf.mxu0
      %2729 = vmatprep.mubr.bf16.mxu0 0
      %2730 = vmatmul.mubr.bf16.gmra.mxu0 %v1027
      %v2731 = vpop.f32.mrf.mxu0
      %v2732 = vadd.f32 %v2395, %v2731
      %v2733 = vpop.f32.mrf.mxu0
      %v2734 = vpop.f32.mrf.mxu0
      %v2735 = vadd.f32 %v2398, %v2734
      %v2736 = vpop.f32.mrf.mxu0
      %2737 = vmatprep.mubr.bf16.mxu0 0
      %2738 = vmatmul.mubr.bf16.gmra.mxu0 %v1028
      %v2739 = vpop.f32.mrf.mxu0
      %v2740 = vadd.f32 %v2403, %v2739
      %v2741 = vpop.f32.mrf.mxu0
      %v2742 = vpop.f32.mrf.mxu0
      %v2743 = vadd.f32 %v2406, %v2742
      %v2744 = vpop.f32.mrf.mxu0
      %2745 = vmatprep.mubr.bf16.mxu0 0
      %2746 = vmatmul.mubr.bf16.gmra.mxu0 %v1029
      %v2747 = vpop.f32.mrf.mxu0
      %v2748 = vadd.f32 %v2411, %v2747
      %v2749 = vpop.f32.mrf.mxu0
      %v2750 = vpop.f32.mrf.mxu0
      %v2751 = vadd.f32 %v2414, %v2750
      %v2752 = vpop.f32.mrf.mxu0
      %2753 = vmatprep.mubr.bf16.mxu0 0
      %2754 = vmatmul.mubr.bf16.gmra.mxu0 %v1030
      %v2755 = vpop.f32.mrf.mxu0
      %v2756 = vadd.f32 %v2419, %v2755
      %v2757 = vpop.f32.mrf.mxu0
      %v2758 = vpop.f32.mrf.mxu0
      %v2759 = vadd.f32 %v2422, %v2758
      %v2760 = vpop.f32.mrf.mxu0
      %2761 = vmatprep.mubr.bf16.mxu0 0
      %2762 = vmatmul.mubr.bf16.gmra.mxu0 %v1031
      %v2763 = vpop.f32.mrf.mxu0
      %v2764 = vadd.f32 %v2427, %v2763
      %v2765 = vpop.f32.mrf.mxu0
      %v2766 = vpop.f32.mrf.mxu0
      %v2767 = vadd.f32 %v2430, %v2766
      %v2768 = vpop.f32.mrf.mxu0
      %2769 = vmatprep.mubr.bf16.mxu0 0
      %2770 = vmatmul.mubr.bf16.gmra.mxu0 %v1032
      %v2771 = vpop.f32.mrf.mxu0
      %v2772 = vadd.f32 %v2435, %v2771
      %v2773 = vpop.f32.mrf.mxu0
      %v2774 = vpop.f32.mrf.mxu0
      %v2775 = vadd.f32 %v2438, %v2774
      %v2776 = vpop.f32.mrf.mxu0
      %2777 = vmatprep.mubr.bf16.mxu0 0
      %2778 = vmatmul.mubr.bf16.gmra.mxu0 %v1033
      %v2779 = vpop.f32.mrf.mxu0
      %v2780 = vadd.f32 %v2443, %v2779
      %v2781 = vpop.f32.mrf.mxu0
      %v2782 = vpop.f32.mrf.mxu0
      %v2783 = vadd.f32 %v2446, %v2782
      %v2784 = vpop.f32.mrf.mxu0
      %2785 = vdwg.mxu0
      %s2786 = scalar_lea.vmem %s1, 448
      %v2787 = vld [vmem:[%s2786] sm:$0xf]
      %v2788 = vld [vmem:[%s2786 + $0x4] sm:$0xf]
      %v2789 = vld [vmem:[%s2786 + $0x8] sm:$0xf]
      %v2790 = vld [vmem:[%s2786 + $0xc] sm:$0xf]
      %v2791 = vld [vmem:[%s2786 + $0x10] sm:$0xf]
      %v2792 = vld [vmem:[%s2786 + $0x14] sm:$0xf]
      %v2793 = vld [vmem:[%s2786 + $0x18] sm:$0xf]
      %v2794 = vld [vmem:[%s2786 + $0x1c] sm:$0xf]
      %v2795 = vld [vmem:[%s2786 + $0x20] sm:$0xf]
      %v2796 = vld [vmem:[%s2786 + $0x24] sm:$0xf]
      %v2797 = vld [vmem:[%s2786 + $0x28] sm:$0xf]
      %v2798 = vld [vmem:[%s2786 + $0x2c] sm:$0xf]
      %v2799 = vld [vmem:[%s2786 + $0x30] sm:$0xf]
      %v2800 = vld [vmem:[%s2786 + $0x34] sm:$0xf]
      %v2801 = vld [vmem:[%s2786 + $0x38] sm:$0xf]
      %v2802 = vld [vmem:[%s2786 + $0x3c] sm:$0xf]
      %v2819 = vunpack.c.l.b16 %v2787
      %v2820 = vunpack.c.l.b16 %v2788
      %v2821 = vunpack.c.l.b16 %v2789
      %v2822 = vunpack.c.l.b16 %v2790
      %v2823 = vunpack.c.l.b16 %v2791
      %v2824 = vunpack.c.l.b16 %v2792
      %v2825 = vunpack.c.l.b16 %v2793
      %v2826 = vunpack.c.l.b16 %v2794
      %v2827 = vunpack.c.l.b16 %v2795
      %v2828 = vunpack.c.l.b16 %v2796
      %v2829 = vunpack.c.l.b16 %v2797
      %v2830 = vunpack.c.l.b16 %v2798
      %v2831 = vunpack.c.l.b16 %v2799
      %v2832 = vunpack.c.l.b16 %v2800
      %v2833 = vunpack.c.l.b16 %v2801
      %v2834 = vunpack.c.l.b16 %v2802
      %v2835 = vpack.c.b16 %v2820, %v2819
      %v2836 = vpack.c.b16 %v2822, %v2821
      %v2837 = vpack.c.b16 %v2824, %v2823
      %v2838 = vpack.c.b16 %v2826, %v2825
      %v2839 = vpack.c.b16 %v2828, %v2827
      %v2840 = vpack.c.b16 %v2830, %v2829
      %v2841 = vpack.c.b16 %v2832, %v2831
      %v2842 = vpack.c.b16 %v2834, %v2833
      %2851 = vmatprep.subr.bf16.mxu0 0
      %2852 = vmatpush1.bf16.msra.mxu0 %v2842
      %2853 = vmatprep.subr.bf16.mxu0 0
      %2854 = vmatpush1.bf16.msra.mxu0 %v2841
      %2855 = vmatprep.subr.bf16.mxu0 0
      %2856 = vmatpush1.bf16.msra.mxu0 %v2840
      %2857 = vmatprep.subr.bf16.mxu0 0
      %2858 = vmatpush1.bf16.msra.mxu0 %v2839
      %2859 = vmatprep.subr.bf16.mxu0 0
      %2860 = vmatpush1.bf16.msra.mxu0 %v2838
      %2861 = vmatprep.subr.bf16.mxu0 0
      %2862 = vmatpush1.bf16.msra.mxu0 %v2837
      %2863 = vmatprep.subr.bf16.mxu0 0
      %2864 = vmatpush1.bf16.msra.mxu0 %v2836
      %2865 = vmatprep.subr.bf16.mxu0 0
      %2866 = vmatpush1.bf16.msra.mxu0 %v2835
      %2867 = vmatprep.subr.bf16.mxu0 0
      %2868 = vmatpush2.bf16.msra.mxu0 0
      %2869 = vmatprep.subr.bf16.mxu0 0
      %2870 = vmatpush2.bf16.msra.mxu0 0
      %2871 = vmatprep.subr.bf16.mxu0 0
      %2872 = vmatpush2.bf16.msra.mxu0 0
      %2873 = vmatprep.subr.bf16.mxu0 0
      %2874 = vmatpush2.bf16.msra.mxu0 0
      %2875 = vmatprep.subr.bf16.mxu0 0
      %2876 = vmatpush2.bf16.msra.mxu0 0
      %2877 = vmatprep.subr.bf16.mxu0 0
      %2878 = vmatpush2.bf16.msra.mxu0 0
      %2879 = vmatprep.subr.bf16.mxu0 0
      %2880 = vmatpush2.bf16.msra.mxu0 0
      %2881 = vmatprep.subr.bf16.mxu0 0
      %2882 = vmatpush2.bf16.msra.mxu0 0
      %2883 = vmatprep.mubr.bf16.mxu0 0
      %2884 = vmatmul.mubr.bf16.gmra.mxu0 %v1613
      %v2885 = vpop.f32.mrf.mxu0
      %v2886 = vadd.f32 0.0, %v2885
      %v2887 = vpop.f32.mrf.mxu0
      %v2888 = vpop.f32.mrf.mxu0
      %v2889 = vadd.f32 0.0, %v2888
      %v2890 = vpop.f32.mrf.mxu0
      %2891 = vmatprep.mubr.bf16.mxu0 0
      %2892 = vmatmul.mubr.bf16.gmra.mxu0 %v1614
      %v2893 = vpop.f32.mrf.mxu0
      %v2894 = vadd.f32 0.0, %v2893
      %v2895 = vpop.f32.mrf.mxu0
      %v2896 = vpop.f32.mrf.mxu0
      %v2897 = vadd.f32 0.0, %v2896
      %v2898 = vpop.f32.mrf.mxu0
      %2899 = vmatprep.mubr.bf16.mxu0 0
      %2900 = vmatmul.mubr.bf16.gmra.mxu0 %v1615
      %v2901 = vpop.f32.mrf.mxu0
      %v2902 = vadd.f32 0.0, %v2901
      %v2903 = vpop.f32.mrf.mxu0
      %v2904 = vpop.f32.mrf.mxu0
      %v2905 = vadd.f32 0.0, %v2904
      %v2906 = vpop.f32.mrf.mxu0
      %2907 = vmatprep.mubr.bf16.mxu0 0
      %2908 = vmatmul.mubr.bf16.gmra.mxu0 %v1616
      %v2909 = vpop.f32.mrf.mxu0
      %v2910 = vadd.f32 0.0, %v2909
      %v2911 = vpop.f32.mrf.mxu0
      %v2912 = vpop.f32.mrf.mxu0
      %v2913 = vadd.f32 0.0, %v2912
      %v2914 = vpop.f32.mrf.mxu0
      %2915 = vmatprep.mubr.bf16.mxu0 0
      %2916 = vmatmul.mubr.bf16.gmra.mxu0 %v1617
      %v2917 = vpop.f32.mrf.mxu0
      %v2918 = vadd.f32 0.0, %v2917
      %v2919 = vpop.f32.mrf.mxu0
      %v2920 = vpop.f32.mrf.mxu0
      %v2921 = vadd.f32 0.0, %v2920
      %v2922 = vpop.f32.mrf.mxu0
      %2923 = vmatprep.mubr.bf16.mxu0 0
      %2924 = vmatmul.mubr.bf16.gmra.mxu0 %v1618
      %v2925 = vpop.f32.mrf.mxu0
      %v2926 = vadd.f32 0.0, %v2925
      %v2927 = vpop.f32.mrf.mxu0
      %v2928 = vpop.f32.mrf.mxu0
      %v2929 = vadd.f32 0.0, %v2928
      %v2930 = vpop.f32.mrf.mxu0
      %2931 = vmatprep.mubr.bf16.mxu0 0
      %2932 = vmatmul.mubr.bf16.gmra.mxu0 %v1619
      %v2933 = vpop.f32.mrf.mxu0
      %v2934 = vadd.f32 0.0, %v2933
      %v2935 = vpop.f32.mrf.mxu0
      %v2936 = vpop.f32.mrf.mxu0
      %v2937 = vadd.f32 0.0, %v2936
      %v2938 = vpop.f32.mrf.mxu0
      %2939 = vmatprep.mubr.bf16.mxu0 0
      %2940 = vmatmul.mubr.bf16.gmra.mxu0 %v1620
      %v2941 = vpop.f32.mrf.mxu0
      %v2942 = vadd.f32 0.0, %v2941
      %v2943 = vpop.f32.mrf.mxu0
      %v2944 = vpop.f32.mrf.mxu0
      %v2945 = vadd.f32 0.0, %v2944
      %v2946 = vpop.f32.mrf.mxu0
      %2947 = vmatprep.mubr.bf16.mxu0 0
      %2948 = vmatmul.mubr.bf16.gmra.mxu0 %v1621
      %v2949 = vpop.f32.mrf.mxu0
      %v2950 = vadd.f32 0.0, %v2949
      %v2951 = vpop.f32.mrf.mxu0
      %v2952 = vpop.f32.mrf.mxu0
      %v2953 = vadd.f32 0.0, %v2952
      %v2954 = vpop.f32.mrf.mxu0
      %2955 = vmatprep.mubr.bf16.mxu0 0
      %2956 = vmatmul.mubr.bf16.gmra.mxu0 %v1622
      %v2957 = vpop.f32.mrf.mxu0
      %v2958 = vadd.f32 0.0, %v2957
      %v2959 = vpop.f32.mrf.mxu0
      %v2960 = vpop.f32.mrf.mxu0
      %v2961 = vadd.f32 0.0, %v2960
      %v2962 = vpop.f32.mrf.mxu0
      %2963 = vmatprep.mubr.bf16.mxu0 0
      %2964 = vmatmul.mubr.bf16.gmra.mxu0 %v1623
      %v2965 = vpop.f32.mrf.mxu0
      %v2966 = vadd.f32 0.0, %v2965
      %v2967 = vpop.f32.mrf.mxu0
      %v2968 = vpop.f32.mrf.mxu0
      %v2969 = vadd.f32 0.0, %v2968
      %v2970 = vpop.f32.mrf.mxu0
      %2971 = vmatprep.mubr.bf16.mxu0 0
      %2972 = vmatmul.mubr.bf16.gmra.mxu0 %v1624
      %v2973 = vpop.f32.mrf.mxu0
      %v2974 = vadd.f32 0.0, %v2973
      %v2975 = vpop.f32.mrf.mxu0
      %v2976 = vpop.f32.mrf.mxu0
      %v2977 = vadd.f32 0.0, %v2976
      %v2978 = vpop.f32.mrf.mxu0
      %2979 = vmatprep.mubr.bf16.mxu0 0
      %2980 = vmatmul.mubr.bf16.gmra.mxu0 %v1625
      %v2981 = vpop.f32.mrf.mxu0
      %v2982 = vadd.f32 0.0, %v2981
      %v2983 = vpop.f32.mrf.mxu0
      %v2984 = vpop.f32.mrf.mxu0
      %v2985 = vadd.f32 0.0, %v2984
      %v2986 = vpop.f32.mrf.mxu0
      %2987 = vmatprep.mubr.bf16.mxu0 0
      %2988 = vmatmul.mubr.bf16.gmra.mxu0 %v1626
      %v2989 = vpop.f32.mrf.mxu0
      %v2990 = vadd.f32 0.0, %v2989
      %v2991 = vpop.f32.mrf.mxu0
      %v2992 = vpop.f32.mrf.mxu0
      %v2993 = vadd.f32 0.0, %v2992
      %v2994 = vpop.f32.mrf.mxu0
      %2995 = vmatprep.mubr.bf16.mxu0 0
      %2996 = vmatmul.mubr.bf16.gmra.mxu0 %v1627
      %v2997 = vpop.f32.mrf.mxu0
      %v2998 = vadd.f32 0.0, %v2997
      %v2999 = vpop.f32.mrf.mxu0
      %v3000 = vpop.f32.mrf.mxu0
      %v3001 = vadd.f32 0.0, %v3000
      %v3002 = vpop.f32.mrf.mxu0
      %3003 = vmatprep.mubr.bf16.mxu0 0
      %3004 = vmatmul.mubr.bf16.gmra.mxu0 %v1628
      %v3005 = vpop.f32.mrf.mxu0
      %v3006 = vadd.f32 0.0, %v3005
      %v3007 = vpop.f32.mrf.mxu0
      %v3008 = vpop.f32.mrf.mxu0
      %v3009 = vadd.f32 0.0, %v3008
      %v3010 = vpop.f32.mrf.mxu0
      %3011 = vmatprep.mubr.bf16.mxu0 0
      %3012 = vmatmul.mubr.bf16.gmra.mxu0 %v1629
      %v3013 = vpop.f32.mrf.mxu0
      %v3014 = vadd.f32 0.0, %v3013
      %v3015 = vpop.f32.mrf.mxu0
      %v3016 = vpop.f32.mrf.mxu0
      %v3017 = vadd.f32 0.0, %v3016
      %v3018 = vpop.f32.mrf.mxu0
      %3019 = vmatprep.mubr.bf16.mxu0 0
      %3020 = vmatmul.mubr.bf16.gmra.mxu0 %v1630
      %v3021 = vpop.f32.mrf.mxu0
      %v3022 = vadd.f32 0.0, %v3021
      %v3023 = vpop.f32.mrf.mxu0
      %v3024 = vpop.f32.mrf.mxu0
      %v3025 = vadd.f32 0.0, %v3024
      %v3026 = vpop.f32.mrf.mxu0
      %3027 = vmatprep.mubr.bf16.mxu0 0
      %3028 = vmatmul.mubr.bf16.gmra.mxu0 %v1631
      %v3029 = vpop.f32.mrf.mxu0
      %v3030 = vadd.f32 0.0, %v3029
      %v3031 = vpop.f32.mrf.mxu0
      %v3032 = vpop.f32.mrf.mxu0
      %v3033 = vadd.f32 0.0, %v3032
      %v3034 = vpop.f32.mrf.mxu0
      %3035 = vmatprep.mubr.bf16.mxu0 0
      %3036 = vmatmul.mubr.bf16.gmra.mxu0 %v1632
      %v3037 = vpop.f32.mrf.mxu0
      %v3038 = vadd.f32 0.0, %v3037
      %v3039 = vpop.f32.mrf.mxu0
      %v3040 = vpop.f32.mrf.mxu0
      %v3041 = vadd.f32 0.0, %v3040
      %v3042 = vpop.f32.mrf.mxu0
      %3043 = vmatprep.mubr.bf16.mxu0 0
      %3044 = vmatmul.mubr.bf16.gmra.mxu0 %v1633
      %v3045 = vpop.f32.mrf.mxu0
      %v3046 = vadd.f32 0.0, %v3045
      %v3047 = vpop.f32.mrf.mxu0
      %v3048 = vpop.f32.mrf.mxu0
      %v3049 = vadd.f32 0.0, %v3048
      %v3050 = vpop.f32.mrf.mxu0
      %3051 = vmatprep.mubr.bf16.mxu0 0
      %3052 = vmatmul.mubr.bf16.gmra.mxu0 %v1634
      %v3053 = vpop.f32.mrf.mxu0
      %v3054 = vadd.f32 0.0, %v3053
      %v3055 = vpop.f32.mrf.mxu0
      %v3056 = vpop.f32.mrf.mxu0
      %v3057 = vadd.f32 0.0, %v3056
      %v3058 = vpop.f32.mrf.mxu0
      %3059 = vmatprep.mubr.bf16.mxu0 0
      %3060 = vmatmul.mubr.bf16.gmra.mxu0 %v1635
      %v3061 = vpop.f32.mrf.mxu0
      %v3062 = vadd.f32 0.0, %v3061
      %v3063 = vpop.f32.mrf.mxu0
      %v3064 = vpop.f32.mrf.mxu0
      %v3065 = vadd.f32 0.0, %v3064
      %v3066 = vpop.f32.mrf.mxu0
      %3067 = vmatprep.mubr.bf16.mxu0 0
      %3068 = vmatmul.mubr.bf16.gmra.mxu0 %v1636
      %v3069 = vpop.f32.mrf.mxu0
      %v3070 = vadd.f32 0.0, %v3069
      %v3071 = vpop.f32.mrf.mxu0
      %v3072 = vpop.f32.mrf.mxu0
      %v3073 = vadd.f32 0.0, %v3072
      %v3074 = vpop.f32.mrf.mxu0
      %3075 = vmatprep.mubr.bf16.mxu0 0
      %3076 = vmatmul.mubr.bf16.gmra.mxu0 %v1637
      %v3077 = vpop.f32.mrf.mxu0
      %v3078 = vadd.f32 0.0, %v3077
      %v3079 = vpop.f32.mrf.mxu0
      %v3080 = vpop.f32.mrf.mxu0
      %v3081 = vadd.f32 0.0, %v3080
      %v3082 = vpop.f32.mrf.mxu0
      %3083 = vmatprep.mubr.bf16.mxu0 0
      %3084 = vmatmul.mubr.bf16.gmra.mxu0 %v1638
      %v3085 = vpop.f32.mrf.mxu0
      %v3086 = vadd.f32 0.0, %v3085
      %v3087 = vpop.f32.mrf.mxu0
      %v3088 = vpop.f32.mrf.mxu0
      %v3089 = vadd.f32 0.0, %v3088
      %v3090 = vpop.f32.mrf.mxu0
      %3091 = vmatprep.mubr.bf16.mxu0 0
      %3092 = vmatmul.mubr.bf16.gmra.mxu0 %v1639
      %v3093 = vpop.f32.mrf.mxu0
      %v3094 = vadd.f32 0.0, %v3093
      %v3095 = vpop.f32.mrf.mxu0
      %v3096 = vpop.f32.mrf.mxu0
      %v3097 = vadd.f32 0.0, %v3096
      %v3098 = vpop.f32.mrf.mxu0
      %3099 = vmatprep.mubr.bf16.mxu0 0
      %3100 = vmatmul.mubr.bf16.gmra.mxu0 %v1640
      %v3101 = vpop.f32.mrf.mxu0
      %v3102 = vadd.f32 0.0, %v3101
      %v3103 = vpop.f32.mrf.mxu0
      %v3104 = vpop.f32.mrf.mxu0
      %v3105 = vadd.f32 0.0, %v3104
      %v3106 = vpop.f32.mrf.mxu0
      %3107 = vmatprep.mubr.bf16.mxu0 0
      %3108 = vmatmul.mubr.bf16.gmra.mxu0 %v1641
      %v3109 = vpop.f32.mrf.mxu0
      %v3110 = vadd.f32 0.0, %v3109
      %v3111 = vpop.f32.mrf.mxu0
      %v3112 = vpop.f32.mrf.mxu0
      %v3113 = vadd.f32 0.0, %v3112
      %v3114 = vpop.f32.mrf.mxu0
      %3115 = vmatprep.mubr.bf16.mxu0 0
      %3116 = vmatmul.mubr.bf16.gmra.mxu0 %v1642
      %v3117 = vpop.f32.mrf.mxu0
      %v3118 = vadd.f32 0.0, %v3117
      %v3119 = vpop.f32.mrf.mxu0
      %v3120 = vpop.f32.mrf.mxu0
      %v3121 = vadd.f32 0.0, %v3120
      %v3122 = vpop.f32.mrf.mxu0
      %3123 = vmatprep.mubr.bf16.mxu0 0
      %3124 = vmatmul.mubr.bf16.gmra.mxu0 %v1643
      %v3125 = vpop.f32.mrf.mxu0
      %v3126 = vadd.f32 0.0, %v3125
      %v3127 = vpop.f32.mrf.mxu0
      %v3128 = vpop.f32.mrf.mxu0
      %v3129 = vadd.f32 0.0, %v3128
      %v3130 = vpop.f32.mrf.mxu0
      %3131 = vmatprep.mubr.bf16.mxu0 0
      %3132 = vmatmul.mubr.bf16.gmra.mxu0 %v1644
      %v3133 = vpop.f32.mrf.mxu0
      %v3134 = vadd.f32 0.0, %v3133
      %v3135 = vpop.f32.mrf.mxu0
      %v3136 = vpop.f32.mrf.mxu0
      %v3137 = vadd.f32 0.0, %v3136
      %v3138 = vpop.f32.mrf.mxu0
      %3139 = vdwg.mxu0
      %v3140 = vadd.f32 %v2532, %v2886
      %v3141 = vadd.f32 %v2535, %v2889
      %v3142 = vadd.f32 %v2540, %v2894
      %v3143 = vadd.f32 %v2543, %v2897
      %v3144 = vadd.f32 %v2548, %v2902
      %v3145 = vadd.f32 %v2551, %v2905
      %v3146 = vadd.f32 %v2556, %v2910
      %v3147 = vadd.f32 %v2559, %v2913
      %v3148 = vadd.f32 %v2564, %v2918
      %v3149 = vadd.f32 %v2567, %v2921
      %v3150 = vadd.f32 %v2572, %v2926
      %v3151 = vadd.f32 %v2575, %v2929
      %v3152 = vadd.f32 %v2580, %v2934
      %v3153 = vadd.f32 %v2583, %v2937
      %v3154 = vadd.f32 %v2588, %v2942
      %v3155 = vadd.f32 %v2591, %v2945
      %v3156 = vadd.f32 %v2596, %v2950
      %v3157 = vadd.f32 %v2599, %v2953
      %v3158 = vadd.f32 %v2604, %v2958
      %v3159 = vadd.f32 %v2607, %v2961
      %v3160 = vadd.f32 %v2612, %v2966
      %v3161 = vadd.f32 %v2615, %v2969
      %v3162 = vadd.f32 %v2620, %v2974
      %v3163 = vadd.f32 %v2623, %v2977
      %v3164 = vadd.f32 %v2628, %v2982
      %v3165 = vadd.f32 %v2631, %v2985
      %v3166 = vadd.f32 %v2636, %v2990
      %v3167 = vadd.f32 %v2639, %v2993
      %v3168 = vadd.f32 %v2644, %v2998
      %v3169 = vadd.f32 %v2647, %v3001
      %v3170 = vadd.f32 %v2652, %v3006
      %v3171 = vadd.f32 %v2655, %v3009
      %v3172 = vadd.f32 %v2660, %v3014
      %v3173 = vadd.f32 %v2663, %v3017
      %v3174 = vadd.f32 %v2668, %v3022
      %v3175 = vadd.f32 %v2671, %v3025
      %v3176 = vadd.f32 %v2676, %v3030
      %v3177 = vadd.f32 %v2679, %v3033
      %v3178 = vadd.f32 %v2684, %v3038
      %v3179 = vadd.f32 %v2687, %v3041
      %v3180 = vadd.f32 %v2692, %v3046
      %v3181 = vadd.f32 %v2695, %v3049
      %v3182 = vadd.f32 %v2700, %v3054
      %v3183 = vadd.f32 %v2703, %v3057
      %v3184 = vadd.f32 %v2708, %v3062
      %v3185 = vadd.f32 %v2711, %v3065
      %v3186 = vadd.f32 %v2716, %v3070
      %v3187 = vadd.f32 %v2719, %v3073
      %v3188 = vadd.f32 %v2724, %v3078
      %v3189 = vadd.f32 %v2727, %v3081
      %v3190 = vadd.f32 %v2732, %v3086
      %v3191 = vadd.f32 %v2735, %v3089
      %v3192 = vadd.f32 %v2740, %v3094
      %v3193 = vadd.f32 %v2743, %v3097
      %v3194 = vadd.f32 %v2748, %v3102
      %v3195 = vadd.f32 %v2751, %v3105
      %v3196 = vadd.f32 %v2756, %v3110
      %v3197 = vadd.f32 %v2759, %v3113
      %v3198 = vadd.f32 %v2764, %v3118
      %v3199 = vadd.f32 %v2767, %v3121
      %v3200 = vadd.f32 %v2772, %v3126
      %v3201 = vadd.f32 %v2775, %v3129
      %v3202 = vadd.f32 %v2780, %v3134
      %v3203 = vadd.f32 %v2783, %v3137
      %v3204 = vrot.slane %v3140, 1
      %v3205 = vrot.slane %v3141, 1
      %v3206 = vrot.slane %v3142, 1
      %v3207 = vrot.slane %v3143, 1
      %v3208 = vrot.slane %v3144, 1
      %v3209 = vrot.slane %v3145, 1
      %v3210 = vrot.slane %v3146, 1
      %v3211 = vrot.slane %v3147, 1
      %v3212 = vrot.slane %v3148, 1
      %v3213 = vrot.slane %v3149, 1
      %v3214 = vrot.slane %v3150, 1
      %v3215 = vrot.slane %v3151, 1
      %v3216 = vrot.slane %v3152, 1
      %v3217 = vrot.slane %v3153, 1
      %v3218 = vrot.slane %v3154, 1
      %v3219 = vrot.slane %v3155, 1
      %v3220 = vrot.slane %v3156, 1
      %v3221 = vrot.slane %v3157, 1
      %v3222 = vrot.slane %v3158, 1
      %v3223 = vrot.slane %v3159, 1
      %v3224 = vrot.slane %v3160, 1
      %v3225 = vrot.slane %v3161, 1
      %v3226 = vrot.slane %v3162, 1
      %v3227 = vrot.slane %v3163, 1
      %v3228 = vrot.slane %v3164, 1
      %v3229 = vrot.slane %v3165, 1
      %v3230 = vrot.slane %v3166, 1
      %v3231 = vrot.slane %v3167, 1
      %v3232 = vrot.slane %v3168, 1
      %v3233 = vrot.slane %v3169, 1
      %v3234 = vrot.slane %v3170, 1
      %v3235 = vrot.slane %v3171, 1
      %v3236 = vrot.slane %v3172, 1
      %v3237 = vrot.slane %v3173, 1
      %v3238 = vrot.slane %v3174, 1
      %v3239 = vrot.slane %v3175, 1
      %v3240 = vrot.slane %v3176, 1
      %v3241 = vrot.slane %v3177, 1
      %v3242 = vrot.slane %v3178, 1
      %v3243 = vrot.slane %v3179, 1
      %v3244 = vrot.slane %v3180, 1
      %v3245 = vrot.slane %v3181, 1
      %v3246 = vrot.slane %v3182, 1
      %v3247 = vrot.slane %v3183, 1
      %v3248 = vrot.slane %v3184, 1
      %v3249 = vrot.slane %v3185, 1
      %v3250 = vrot.slane %v3186, 1
      %v3251 = vrot.slane %v3187, 1
      %v3252 = vrot.slane %v3188, 1
      %v3253 = vrot.slane %v3189, 1
      %v3254 = vrot.slane %v3190, 1
      %v3255 = vrot.slane %v3191, 1
      %v3256 = vrot.slane %v3192, 1
      %v3257 = vrot.slane %v3193, 1
      %v3258 = vrot.slane %v3194, 1
      %v3259 = vrot.slane %v3195, 1
      %v3260 = vrot.slane %v3196, 1
      %v3261 = vrot.slane %v3197, 1
      %v3262 = vrot.slane %v3198, 1
      %v3263 = vrot.slane %v3199, 1
      %v3264 = vrot.slane %v3200, 1
      %v3265 = vrot.slane %v3201, 1
      %v3266 = vrot.slane %v3202, 1
      %v3267 = vrot.slane %v3203, 1
      %v3268 = vlaneseq
      %v3269 = vshrl.u32 %v3268, 7
      %vm3270 = vcmp.lt.s32.totalorder %v3269, 7
      %v3271 = vsel %vm3270, %v3266, %v3267
      %v3272 = vsel %vm3270, %v3265, %v3266
      %v3273 = vsel %vm3270, %v3264, %v3265
      %v3274 = vsel %vm3270, %v3263, %v3264
      %v3275 = vsel %vm3270, %v3262, %v3263
      %v3276 = vsel %vm3270, %v3261, %v3262
      %v3277 = vsel %vm3270, %v3260, %v3261
      %v3278 = vsel %vm3270, %v3259, %v3260
      %v3279 = vsel %vm3270, %v3258, %v3259
      %v3280 = vsel %vm3270, %v3257, %v3258
      %v3281 = vsel %vm3270, %v3256, %v3257
      %v3282 = vsel %vm3270, %v3255, %v3256
      %v3283 = vsel %vm3270, %v3254, %v3255
      %v3284 = vsel %vm3270, %v3253, %v3254
      %v3285 = vsel %vm3270, %v3252, %v3253
      %v3286 = vsel %vm3270, %v3251, %v3252
      %v3287 = vsel %vm3270, %v3250, %v3251
      %v3288 = vsel %vm3270, %v3249, %v3250
      %v3289 = vsel %vm3270, %v3248, %v3249
      %v3290 = vsel %vm3270, %v3247, %v3248
      %v3291 = vsel %vm3270, %v3246, %v3247
      %v3292 = vsel %vm3270, %v3245, %v3246
      %v3293 = vsel %vm3270, %v3244, %v3245
      %v3294 = vsel %vm3270, %v3243, %v3244
      %v3295 = vsel %vm3270, %v3242, %v3243
      %v3296 = vsel %vm3270, %v3241, %v3242
      %v3297 = vsel %vm3270, %v3240, %v3241
      %v3298 = vsel %vm3270, %v3239, %v3240
      %v3299 = vsel %vm3270, %v3238, %v3239
      %v3300 = vsel %vm3270, %v3237, %v3238
      %v3301 = vsel %vm3270, %v3236, %v3237
      %v3302 = vsel %vm3270, %v3235, %v3236
      %v3303 = vsel %vm3270, %v3234, %v3235
      %v3304 = vsel %vm3270, %v3233, %v3234
      %v3305 = vsel %vm3270, %v3232, %v3233
      %v3306 = vsel %vm3270, %v3231, %v3232
      %v3307 = vsel %vm3270, %v3230, %v3231
      %v3308 = vsel %vm3270, %v3229, %v3230
      %v3309 = vsel %vm3270, %v3228, %v3229
      %v3310 = vsel %vm3270, %v3227, %v3228
      %v3311 = vsel %vm3270, %v3226, %v3227
      %v3312 = vsel %vm3270, %v3225, %v3226
      %v3313 = vsel %vm3270, %v3224, %v3225
      %v3314 = vsel %vm3270, %v3223, %v3224
      %v3315 = vsel %vm3270, %v3222, %v3223
      %v3316 = vsel %vm3270, %v3221, %v3222
      %v3317 = vsel %vm3270, %v3220, %v3221
      %v3318 = vsel %vm3270, %v3219, %v3220
      %v3319 = vsel %vm3270, %v3218, %v3219
      %v3320 = vsel %vm3270, %v3217, %v3218
      %v3321 = vsel %vm3270, %v3216, %v3217
      %v3322 = vsel %vm3270, %v3215, %v3216
      %v3323 = vsel %vm3270, %v3214, %v3215
      %v3324 = vsel %vm3270, %v3213, %v3214
      %v3325 = vsel %vm3270, %v3212, %v3213
      %v3326 = vsel %vm3270, %v3211, %v3212
      %v3327 = vsel %vm3270, %v3210, %v3211
      %v3328 = vsel %vm3270, %v3209, %v3210
      %v3329 = vsel %vm3270, %v3208, %v3209
      %v3330 = vsel %vm3270, %v3207, %v3208
      %v3331 = vsel %vm3270, %v3206, %v3207
      %v3332 = vsel %vm3270, %v3205, %v3206
      %v3333 = vsel %vm3270, %v3204, %v3205
      %v3334 = vsel %vm3270, %v3267, %v3204
      %v3335 = vadd.f32 %v2014, %v3333
      %v3336 = vadd.f32 %v2015, %v3332
      %v3337 = vadd.f32 %v2016, %v3331
      %v3338 = vadd.f32 %v2017, %v3330
      %v3339 = vadd.f32 %v2018, %v3329
      %v3340 = vadd.f32 %v2019, %v3328
      %v3341 = vadd.f32 %v2020, %v3327
      %v3342 = vadd.f32 %v2021, %v3326
      %v3343 = vadd.f32 %v2022, %v3325
      %v3344 = vadd.f32 %v2023, %v3324
      %v3345 = vadd.f32 %v2024, %v3323
      %v3346 = vadd.f32 %v2025, %v3322
      %v3347 = vadd.f32 %v2026, %v3321
      %v3348 = vadd.f32 %v2027, %v3320
      %v3349 = vadd.f32 %v2028, %v3319
      %v3350 = vadd.f32 %v2029, %v3318
      %v3351 = vadd.f32 %v2030, %v3317
      %v3352 = vadd.f32 %v2031, %v3316
      %v3353 = vadd.f32 %v2032, %v3315
      %v3354 = vadd.f32 %v2033, %v3314
      %v3355 = vadd.f32 %v2034, %v3313
      %v3356 = vadd.f32 %v2035, %v3312
      %v3357 = vadd.f32 %v2036, %v3311
      %v3358 = vadd.f32 %v2037, %v3310
      %v3359 = vadd.f32 %v2038, %v3309
      %v3360 = vadd.f32 %v2039, %v3308
      %v3361 = vadd.f32 %v2040, %v3307
      %v3362 = vadd.f32 %v2041, %v3306
      %v3363 = vadd.f32 %v2042, %v3305
      %v3364 = vadd.f32 %v2043, %v3304
      %v3365 = vadd.f32 %v2044, %v3303
      %v3366 = vadd.f32 %v2045, %v3302
      %v3367 = vadd.f32 %v2046, %v3301
      %v3368 = vadd.f32 %v2047, %v3300
      %v3369 = vadd.f32 %v2048, %v3299
      %v3370 = vadd.f32 %v2049, %v3298
      %v3371 = vadd.f32 %v2050, %v3297
      %v3372 = vadd.f32 %v2051, %v3296
      %v3373 = vadd.f32 %v2052, %v3295
      %v3374 = vadd.f32 %v2053, %v3294
      %v3375 = vadd.f32 %v2054, %v3293
      %v3376 = vadd.f32 %v2055, %v3292
      %v3377 = vadd.f32 %v2056, %v3291
      %v3378 = vadd.f32 %v2057, %v3290
      %v3379 = vadd.f32 %v2058, %v3289
      %v3380 = vadd.f32 %v2059, %v3288
      %v3381 = vadd.f32 %v2060, %v3287
      %v3382 = vadd.f32 %v2061, %v3286
      %v3383 = vadd.f32 %v2062, %v3285
      %v3384 = vadd.f32 %v2063, %v3284
      %v3385 = vadd.f32 %v2064, %v3283
      %v3386 = vadd.f32 %v2065, %v3282
      %v3387 = vadd.f32 %v2066, %v3281
      %v3388 = vadd.f32 %v2067, %v3280
      %v3389 = vadd.f32 %v2068, %v3279
      %v3390 = vadd.f32 %v2069, %v3278
      %v3391 = vadd.f32 %v2070, %v3277
      %v3392 = vadd.f32 %v2071, %v3276
      %v3393 = vadd.f32 %v2072, %v3275
      %v3394 = vadd.f32 %v2073, %v3274
      %v3395 = vadd.f32 %v2074, %v3273
      %v3396 = vadd.f32 %v2075, %v3272
      %v3397 = vadd.f32 %v2076, %v3271
      %v3398 = vadd.f32 %v2077, %v3334
      %s3399 = scalar_lea.vmem %s1, 128
      %v3400 = vld [vmem:[%s3399] sm:$0xf]
      %v3401 = vld [vmem:[%s3399 + $0x4] sm:$0xf]
      %v3402 = vld [vmem:[%s3399 + $0x8] sm:$0xf]
      %v3403 = vld [vmem:[%s3399 + $0xc] sm:$0xf]
      %v3404 = vld [vmem:[%s3399 + $0x10] sm:$0xf]
      %v3405 = vld [vmem:[%s3399 + $0x14] sm:$0xf]
      %v3406 = vld [vmem:[%s3399 + $0x18] sm:$0xf]
      %v3407 = vld [vmem:[%s3399 + $0x1c] sm:$0xf]
      %v3408 = vld [vmem:[%s3399 + $0x20] sm:$0xf]
      %v3409 = vld [vmem:[%s3399 + $0x24] sm:$0xf]
      %v3410 = vld [vmem:[%s3399 + $0x28] sm:$0xf]
      %v3411 = vld [vmem:[%s3399 + $0x2c] sm:$0xf]
      %v3412 = vld [vmem:[%s3399 + $0x30] sm:$0xf]
      %v3413 = vld [vmem:[%s3399 + $0x34] sm:$0xf]
      %v3414 = vld [vmem:[%s3399 + $0x38] sm:$0xf]
      %v3415 = vld [vmem:[%s3399 + $0x3c] sm:$0xf]
      %s3416 = scalar_lea.vmem %s1, 320
      %v3417 = vld [vmem:[%s3416] sm:$0xf]
      %v3418 = vld [vmem:[%s3416 + $0x4] sm:$0xf]
      %v3419 = vld [vmem:[%s3416 + $0x8] sm:$0xf]
      %v3420 = vld [vmem:[%s3416 + $0xc] sm:$0xf]
      %v3421 = vld [vmem:[%s3416 + $0x10] sm:$0xf]
      %v3422 = vld [vmem:[%s3416 + $0x14] sm:$0xf]
      %v3423 = vld [vmem:[%s3416 + $0x18] sm:$0xf]
      %v3424 = vld [vmem:[%s3416 + $0x1c] sm:$0xf]
      %v3425 = vld [vmem:[%s3416 + $0x20] sm:$0xf]
      %v3426 = vld [vmem:[%s3416 + $0x24] sm:$0xf]
      %v3427 = vld [vmem:[%s3416 + $0x28] sm:$0xf]
      %v3428 = vld [vmem:[%s3416 + $0x2c] sm:$0xf]
      %v3429 = vld [vmem:[%s3416 + $0x30] sm:$0xf]
      %v3430 = vld [vmem:[%s3416 + $0x34] sm:$0xf]
      %v3431 = vld [vmem:[%s3416 + $0x38] sm:$0xf]
      %v3432 = vld [vmem:[%s3416 + $0x3c] sm:$0xf]
      %v3449 = vunpack.c.l.b16 %v3417
      %v3450 = vunpack.c.l.b16 %v3418
      %v3451 = vunpack.c.l.b16 %v3419
      %v3452 = vunpack.c.l.b16 %v3420
      %v3453 = vunpack.c.l.b16 %v3421
      %v3454 = vunpack.c.l.b16 %v3422
      %v3455 = vunpack.c.l.b16 %v3423
      %v3456 = vunpack.c.l.b16 %v3424
      %v3457 = vunpack.c.l.b16 %v3425
      %v3458 = vunpack.c.l.b16 %v3426
      %v3459 = vunpack.c.l.b16 %v3427
      %v3460 = vunpack.c.l.b16 %v3428
      %v3461 = vunpack.c.l.b16 %v3429
      %v3462 = vunpack.c.l.b16 %v3430
      %v3463 = vunpack.c.l.b16 %v3431
      %v3464 = vunpack.c.l.b16 %v3432
      %v3465 = vpack.c.b16 %v3450, %v3449
      %v3466 = vpack.c.b16 %v3452, %v3451
      %v3467 = vpack.c.b16 %v3454, %v3453
      %v3468 = vpack.c.b16 %v3456, %v3455
      %v3469 = vpack.c.b16 %v3458, %v3457
      %v3470 = vpack.c.b16 %v3460, %v3459
      %v3471 = vpack.c.b16 %v3462, %v3461
      %v3472 = vpack.c.b16 %v3464, %v3463
      %3481 = vmatprep.subr.bf16.mxu0 0
      %3482 = vmatpush1.bf16.msra.mxu0 %v3472
      %3483 = vmatprep.subr.bf16.mxu0 0
      %3484 = vmatpush1.bf16.msra.mxu0 %v3471
      %3485 = vmatprep.subr.bf16.mxu0 0
      %3486 = vmatpush1.bf16.msra.mxu0 %v3470
      %3487 = vmatprep.subr.bf16.mxu0 0
      %3488 = vmatpush1.bf16.msra.mxu0 %v3469
      %3489 = vmatprep.subr.bf16.mxu0 0
      %3490 = vmatpush1.bf16.msra.mxu0 %v3468
      %3491 = vmatprep.subr.bf16.mxu0 0
      %3492 = vmatpush1.bf16.msra.mxu0 %v3467
      %3493 = vmatprep.subr.bf16.mxu0 0
      %3494 = vmatpush1.bf16.msra.mxu0 %v3466
      %3495 = vmatprep.subr.bf16.mxu0 0
      %3496 = vmatpush1.bf16.msra.mxu0 %v3465
      %3497 = vmatprep.subr.bf16.mxu0 0
      %3498 = vmatpush2.bf16.msra.mxu0 0
      %3499 = vmatprep.subr.bf16.mxu0 0
      %3500 = vmatpush2.bf16.msra.mxu0 0
      %3501 = vmatprep.subr.bf16.mxu0 0
      %3502 = vmatpush2.bf16.msra.mxu0 0
      %3503 = vmatprep.subr.bf16.mxu0 0
      %3504 = vmatpush2.bf16.msra.mxu0 0
      %3505 = vmatprep.subr.bf16.mxu0 0
      %3506 = vmatpush2.bf16.msra.mxu0 0
      %3507 = vmatprep.subr.bf16.mxu0 0
      %3508 = vmatpush2.bf16.msra.mxu0 0
      %3509 = vmatprep.subr.bf16.mxu0 0
      %3510 = vmatpush2.bf16.msra.mxu0 0
      %3511 = vmatprep.subr.bf16.mxu0 0
      %3512 = vmatpush2.bf16.msra.mxu0 0
      %3513 = vmatprep.mubr.bf16.mxu0 0
      %3514 = vmatmul.mubr.bf16.gmra.mxu0 %v473
      %v3515 = vpop.f32.mrf.mxu0
      %v3516 = vadd.f32 0.0, %v3515
      %v3517 = vpop.f32.mrf.mxu0
      %v3518 = vpop.f32.mrf.mxu0
      %v3519 = vadd.f32 0.0, %v3518
      %v3520 = vpop.f32.mrf.mxu0
      %3521 = vmatprep.mubr.bf16.mxu0 0
      %3522 = vmatmul.mubr.bf16.gmra.mxu0 %v474
      %v3523 = vpop.f32.mrf.mxu0
      %v3524 = vadd.f32 0.0, %v3523
      %v3525 = vpop.f32.mrf.mxu0
      %v3526 = vpop.f32.mrf.mxu0
      %v3527 = vadd.f32 0.0, %v3526
      %v3528 = vpop.f32.mrf.mxu0
      %3529 = vmatprep.mubr.bf16.mxu0 0
      %3530 = vmatmul.mubr.bf16.gmra.mxu0 %v475
      %v3531 = vpop.f32.mrf.mxu0
      %v3532 = vadd.f32 0.0, %v3531
      %v3533 = vpop.f32.mrf.mxu0
      %v3534 = vpop.f32.mrf.mxu0
      %v3535 = vadd.f32 0.0, %v3534
      %v3536 = vpop.f32.mrf.mxu0
      %3537 = vmatprep.mubr.bf16.mxu0 0
      %3538 = vmatmul.mubr.bf16.gmra.mxu0 %v476
      %v3539 = vpop.f32.mrf.mxu0
      %v3540 = vadd.f32 0.0, %v3539
      %v3541 = vpop.f32.mrf.mxu0
      %v3542 = vpop.f32.mrf.mxu0
      %v3543 = vadd.f32 0.0, %v3542
      %v3544 = vpop.f32.mrf.mxu0
      %3545 = vmatprep.mubr.bf16.mxu0 0
      %3546 = vmatmul.mubr.bf16.gmra.mxu0 %v477
      %v3547 = vpop.f32.mrf.mxu0
      %v3548 = vadd.f32 0.0, %v3547
      %v3549 = vpop.f32.mrf.mxu0
      %v3550 = vpop.f32.mrf.mxu0
      %v3551 = vadd.f32 0.0, %v3550
      %v3552 = vpop.f32.mrf.mxu0
      %3553 = vmatprep.mubr.bf16.mxu0 0
      %3554 = vmatmul.mubr.bf16.gmra.mxu0 %v478
      %v3555 = vpop.f32.mrf.mxu0
      %v3556 = vadd.f32 0.0, %v3555
      %v3557 = vpop.f32.mrf.mxu0
      %v3558 = vpop.f32.mrf.mxu0
      %v3559 = vadd.f32 0.0, %v3558
      %v3560 = vpop.f32.mrf.mxu0
      %3561 = vmatprep.mubr.bf16.mxu0 0
      %3562 = vmatmul.mubr.bf16.gmra.mxu0 %v479
      %v3563 = vpop.f32.mrf.mxu0
      %v3564 = vadd.f32 0.0, %v3563
      %v3565 = vpop.f32.mrf.mxu0
      %v3566 = vpop.f32.mrf.mxu0
      %v3567 = vadd.f32 0.0, %v3566
      %v3568 = vpop.f32.mrf.mxu0
      %3569 = vmatprep.mubr.bf16.mxu0 0
      %3570 = vmatmul.mubr.bf16.gmra.mxu0 %v480
      %v3571 = vpop.f32.mrf.mxu0
      %v3572 = vadd.f32 0.0, %v3571
      %v3573 = vpop.f32.mrf.mxu0
      %v3574 = vpop.f32.mrf.mxu0
      %v3575 = vadd.f32 0.0, %v3574
      %v3576 = vpop.f32.mrf.mxu0
      %3577 = vmatprep.mubr.bf16.mxu0 0
      %3578 = vmatmul.mubr.bf16.gmra.mxu0 %v481
      %v3579 = vpop.f32.mrf.mxu0
      %v3580 = vadd.f32 0.0, %v3579
      %v3581 = vpop.f32.mrf.mxu0
      %v3582 = vpop.f32.mrf.mxu0
      %v3583 = vadd.f32 0.0, %v3582
      %v3584 = vpop.f32.mrf.mxu0
      %3585 = vmatprep.mubr.bf16.mxu0 0
      %3586 = vmatmul.mubr.bf16.gmra.mxu0 %v482
      %v3587 = vpop.f32.mrf.mxu0
      %v3588 = vadd.f32 0.0, %v3587
      %v3589 = vpop.f32.mrf.mxu0
      %v3590 = vpop.f32.mrf.mxu0
      %v3591 = vadd.f32 0.0, %v3590
      %v3592 = vpop.f32.mrf.mxu0
      %3593 = vmatprep.mubr.bf16.mxu0 0
      %3594 = vmatmul.mubr.bf16.gmra.mxu0 %v483
      %v3595 = vpop.f32.mrf.mxu0
      %v3596 = vadd.f32 0.0, %v3595
      %v3597 = vpop.f32.mrf.mxu0
      %v3598 = vpop.f32.mrf.mxu0
      %v3599 = vadd.f32 0.0, %v3598
      %v3600 = vpop.f32.mrf.mxu0
      %3601 = vmatprep.mubr.bf16.mxu0 0
      %3602 = vmatmul.mubr.bf16.gmra.mxu0 %v484
      %v3603 = vpop.f32.mrf.mxu0
      %v3604 = vadd.f32 0.0, %v3603
      %v3605 = vpop.f32.mrf.mxu0
      %v3606 = vpop.f32.mrf.mxu0
      %v3607 = vadd.f32 0.0, %v3606
      %v3608 = vpop.f32.mrf.mxu0
      %3609 = vmatprep.mubr.bf16.mxu0 0
      %3610 = vmatmul.mubr.bf16.gmra.mxu0 %v485
      %v3611 = vpop.f32.mrf.mxu0
      %v3612 = vadd.f32 0.0, %v3611
      %v3613 = vpop.f32.mrf.mxu0
      %v3614 = vpop.f32.mrf.mxu0
      %v3615 = vadd.f32 0.0, %v3614
      %v3616 = vpop.f32.mrf.mxu0
      %3617 = vmatprep.mubr.bf16.mxu0 0
      %3618 = vmatmul.mubr.bf16.gmra.mxu0 %v486
      %v3619 = vpop.f32.mrf.mxu0
      %v3620 = vadd.f32 0.0, %v3619
      %v3621 = vpop.f32.mrf.mxu0
      %v3622 = vpop.f32.mrf.mxu0
      %v3623 = vadd.f32 0.0, %v3622
      %v3624 = vpop.f32.mrf.mxu0
      %3625 = vmatprep.mubr.bf16.mxu0 0
      %3626 = vmatmul.mubr.bf16.gmra.mxu0 %v487
      %v3627 = vpop.f32.mrf.mxu0
      %v3628 = vadd.f32 0.0, %v3627
      %v3629 = vpop.f32.mrf.mxu0
      %v3630 = vpop.f32.mrf.mxu0
      %v3631 = vadd.f32 0.0, %v3630
      %v3632 = vpop.f32.mrf.mxu0
      %3633 = vmatprep.mubr.bf16.mxu0 0
      %3634 = vmatmul.mubr.bf16.gmra.mxu0 %v488
      %v3635 = vpop.f32.mrf.mxu0
      %v3636 = vadd.f32 0.0, %v3635
      %v3637 = vpop.f32.mrf.mxu0
      %v3638 = vpop.f32.mrf.mxu0
      %v3639 = vadd.f32 0.0, %v3638
      %v3640 = vpop.f32.mrf.mxu0
      %3641 = vmatprep.mubr.bf16.mxu0 0
      %3642 = vmatmul.mubr.bf16.gmra.mxu0 %v489
      %v3643 = vpop.f32.mrf.mxu0
      %v3644 = vadd.f32 0.0, %v3643
      %v3645 = vpop.f32.mrf.mxu0
      %v3646 = vpop.f32.mrf.mxu0
      %v3647 = vadd.f32 0.0, %v3646
      %v3648 = vpop.f32.mrf.mxu0
      %3649 = vmatprep.mubr.bf16.mxu0 0
      %3650 = vmatmul.mubr.bf16.gmra.mxu0 %v490
      %v3651 = vpop.f32.mrf.mxu0
      %v3652 = vadd.f32 0.0, %v3651
      %v3653 = vpop.f32.mrf.mxu0
      %v3654 = vpop.f32.mrf.mxu0
      %v3655 = vadd.f32 0.0, %v3654
      %v3656 = vpop.f32.mrf.mxu0
      %3657 = vmatprep.mubr.bf16.mxu0 0
      %3658 = vmatmul.mubr.bf16.gmra.mxu0 %v491
      %v3659 = vpop.f32.mrf.mxu0
      %v3660 = vadd.f32 0.0, %v3659
      %v3661 = vpop.f32.mrf.mxu0
      %v3662 = vpop.f32.mrf.mxu0
      %v3663 = vadd.f32 0.0, %v3662
      %v3664 = vpop.f32.mrf.mxu0
      %3665 = vmatprep.mubr.bf16.mxu0 0
      %3666 = vmatmul.mubr.bf16.gmra.mxu0 %v492
      %v3667 = vpop.f32.mrf.mxu0
      %v3668 = vadd.f32 0.0, %v3667
      %v3669 = vpop.f32.mrf.mxu0
      %v3670 = vpop.f32.mrf.mxu0
      %v3671 = vadd.f32 0.0, %v3670
      %v3672 = vpop.f32.mrf.mxu0
      %3673 = vmatprep.mubr.bf16.mxu0 0
      %3674 = vmatmul.mubr.bf16.gmra.mxu0 %v493
      %v3675 = vpop.f32.mrf.mxu0
      %v3676 = vadd.f32 0.0, %v3675
      %v3677 = vpop.f32.mrf.mxu0
      %v3678 = vpop.f32.mrf.mxu0
      %v3679 = vadd.f32 0.0, %v3678
      %v3680 = vpop.f32.mrf.mxu0
      %3681 = vmatprep.mubr.bf16.mxu0 0
      %3682 = vmatmul.mubr.bf16.gmra.mxu0 %v494
      %v3683 = vpop.f32.mrf.mxu0
      %v3684 = vadd.f32 0.0, %v3683
      %v3685 = vpop.f32.mrf.mxu0
      %v3686 = vpop.f32.mrf.mxu0
      %v3687 = vadd.f32 0.0, %v3686
      %v3688 = vpop.f32.mrf.mxu0
      %3689 = vmatprep.mubr.bf16.mxu0 0
      %3690 = vmatmul.mubr.bf16.gmra.mxu0 %v495
      %v3691 = vpop.f32.mrf.mxu0
      %v3692 = vadd.f32 0.0, %v3691
      %v3693 = vpop.f32.mrf.mxu0
      %v3694 = vpop.f32.mrf.mxu0
      %v3695 = vadd.f32 0.0, %v3694
      %v3696 = vpop.f32.mrf.mxu0
      %3697 = vmatprep.mubr.bf16.mxu0 0
      %3698 = vmatmul.mubr.bf16.gmra.mxu0 %v496
      %v3699 = vpop.f32.mrf.mxu0
      %v3700 = vadd.f32 0.0, %v3699
      %v3701 = vpop.f32.mrf.mxu0
      %v3702 = vpop.f32.mrf.mxu0
      %v3703 = vadd.f32 0.0, %v3702
      %v3704 = vpop.f32.mrf.mxu0
      %3705 = vmatprep.mubr.bf16.mxu0 0
      %3706 = vmatmul.mubr.bf16.gmra.mxu0 %v497
      %v3707 = vpop.f32.mrf.mxu0
      %v3708 = vadd.f32 0.0, %v3707
      %v3709 = vpop.f32.mrf.mxu0
      %v3710 = vpop.f32.mrf.mxu0
      %v3711 = vadd.f32 0.0, %v3710
      %v3712 = vpop.f32.mrf.mxu0
      %3713 = vmatprep.mubr.bf16.mxu0 0
      %3714 = vmatmul.mubr.bf16.gmra.mxu0 %v498
      %v3715 = vpop.f32.mrf.mxu0
      %v3716 = vadd.f32 0.0, %v3715
      %v3717 = vpop.f32.mrf.mxu0
      %v3718 = vpop.f32.mrf.mxu0
      %v3719 = vadd.f32 0.0, %v3718
      %v3720 = vpop.f32.mrf.mxu0
      %3721 = vmatprep.mubr.bf16.mxu0 0
      %3722 = vmatmul.mubr.bf16.gmra.mxu0 %v499
      %v3723 = vpop.f32.mrf.mxu0
      %v3724 = vadd.f32 0.0, %v3723
      %v3725 = vpop.f32.mrf.mxu0
      %v3726 = vpop.f32.mrf.mxu0
      %v3727 = vadd.f32 0.0, %v3726
      %v3728 = vpop.f32.mrf.mxu0
      %3729 = vmatprep.mubr.bf16.mxu0 0
      %3730 = vmatmul.mubr.bf16.gmra.mxu0 %v500
      %v3731 = vpop.f32.mrf.mxu0
      %v3732 = vadd.f32 0.0, %v3731
      %v3733 = vpop.f32.mrf.mxu0
      %v3734 = vpop.f32.mrf.mxu0
      %v3735 = vadd.f32 0.0, %v3734
      %v3736 = vpop.f32.mrf.mxu0
      %3737 = vmatprep.mubr.bf16.mxu0 0
      %3738 = vmatmul.mubr.bf16.gmra.mxu0 %v501
      %v3739 = vpop.f32.mrf.mxu0
      %v3740 = vadd.f32 0.0, %v3739
      %v3741 = vpop.f32.mrf.mxu0
      %v3742 = vpop.f32.mrf.mxu0
      %v3743 = vadd.f32 0.0, %v3742
      %v3744 = vpop.f32.mrf.mxu0
      %3745 = vmatprep.mubr.bf16.mxu0 0
      %3746 = vmatmul.mubr.bf16.gmra.mxu0 %v502
      %v3747 = vpop.f32.mrf.mxu0
      %v3748 = vadd.f32 0.0, %v3747
      %v3749 = vpop.f32.mrf.mxu0
      %v3750 = vpop.f32.mrf.mxu0
      %v3751 = vadd.f32 0.0, %v3750
      %v3752 = vpop.f32.mrf.mxu0
      %3753 = vmatprep.mubr.bf16.mxu0 0
      %3754 = vmatmul.mubr.bf16.gmra.mxu0 %v503
      %v3755 = vpop.f32.mrf.mxu0
      %v3756 = vadd.f32 0.0, %v3755
      %v3757 = vpop.f32.mrf.mxu0
      %v3758 = vpop.f32.mrf.mxu0
      %v3759 = vadd.f32 0.0, %v3758
      %v3760 = vpop.f32.mrf.mxu0
      %3761 = vmatprep.mubr.bf16.mxu0 0
      %3762 = vmatmul.mubr.bf16.gmra.mxu0 %v504
      %v3763 = vpop.f32.mrf.mxu0
      %v3764 = vadd.f32 0.0, %v3763
      %v3765 = vpop.f32.mrf.mxu0
      %v3766 = vpop.f32.mrf.mxu0
      %v3767 = vadd.f32 0.0, %v3766
      %v3768 = vpop.f32.mrf.mxu0
      %3769 = vdwg.mxu0
      %v3786 = vunpack.c.l.b16 %v3400
      %v3787 = vunpack.c.l.b16 %v3401
      %v3788 = vunpack.c.l.b16 %v3402
      %v3789 = vunpack.c.l.b16 %v3403
      %v3790 = vunpack.c.l.b16 %v3404
      %v3791 = vunpack.c.l.b16 %v3405
      %v3792 = vunpack.c.l.b16 %v3406
      %v3793 = vunpack.c.l.b16 %v3407
      %v3794 = vunpack.c.l.b16 %v3408
      %v3795 = vunpack.c.l.b16 %v3409
      %v3796 = vunpack.c.l.b16 %v3410
      %v3797 = vunpack.c.l.b16 %v3411
      %v3798 = vunpack.c.l.b16 %v3412
      %v3799 = vunpack.c.l.b16 %v3413
      %v3800 = vunpack.c.l.b16 %v3414
      %v3801 = vunpack.c.l.b16 %v3415
      %v3802 = vpack.c.b16 %v3787, %v3786
      %v3803 = vpack.c.b16 %v3789, %v3788
      %v3804 = vpack.c.b16 %v3791, %v3790
      %v3805 = vpack.c.b16 %v3793, %v3792
      %v3806 = vpack.c.b16 %v3795, %v3794
      %v3807 = vpack.c.b16 %v3797, %v3796
      %v3808 = vpack.c.b16 %v3799, %v3798
      %v3809 = vpack.c.b16 %v3801, %v3800
      %3818 = vmatprep.subr.bf16.mxu0 0
      %3819 = vmatpush1.bf16.msra.mxu0 %v3809
      %3820 = vmatprep.subr.bf16.mxu0 0
      %3821 = vmatpush1.bf16.msra.mxu0 %v3808
      %3822 = vmatprep.subr.bf16.mxu0 0
      %3823 = vmatpush1.bf16.msra.mxu0 %v3807
      %3824 = vmatprep.subr.bf16.mxu0 0
      %3825 = vmatpush1.bf16.msra.mxu0 %v3806
      %3826 = vmatprep.subr.bf16.mxu0 0
      %3827 = vmatpush1.bf16.msra.mxu0 %v3805
      %3828 = vmatprep.subr.bf16.mxu0 0
      %3829 = vmatpush1.bf16.msra.mxu0 %v3804
      %3830 = vmatprep.subr.bf16.mxu0 0
      %3831 = vmatpush1.bf16.msra.mxu0 %v3803
      %3832 = vmatprep.subr.bf16.mxu0 0
      %3833 = vmatpush1.bf16.msra.mxu0 %v3802
      %3834 = vmatprep.subr.bf16.mxu0 0
      %3835 = vmatpush2.bf16.msra.mxu0 0
      %3836 = vmatprep.subr.bf16.mxu0 0
      %3837 = vmatpush2.bf16.msra.mxu0 0
      %3838 = vmatprep.subr.bf16.mxu0 0
      %3839 = vmatpush2.bf16.msra.mxu0 0
      %3840 = vmatprep.subr.bf16.mxu0 0
      %3841 = vmatpush2.bf16.msra.mxu0 0
      %3842 = vmatprep.subr.bf16.mxu0 0
      %3843 = vmatpush2.bf16.msra.mxu0 0
      %3844 = vmatprep.subr.bf16.mxu0 0
      %3845 = vmatpush2.bf16.msra.mxu0 0
      %3846 = vmatprep.subr.bf16.mxu0 0
      %3847 = vmatpush2.bf16.msra.mxu0 0
      %3848 = vmatprep.subr.bf16.mxu0 0
      %3849 = vmatpush2.bf16.msra.mxu0 0
      %3850 = vmatprep.mubr.bf16.mxu0 0
      %3851 = vmatmul.mubr.bf16.gmra.mxu0 %v1002
      %v3852 = vpop.f32.mrf.mxu0
      %v3853 = vadd.f32 %v3516, %v3852
      %v3854 = vpop.f32.mrf.mxu0
      %v3855 = vpop.f32.mrf.mxu0
      %v3856 = vadd.f32 %v3519, %v3855
      %v3857 = vpop.f32.mrf.mxu0
      %3858 = vmatprep.mubr.bf16.mxu0 0
      %3859 = vmatmul.mubr.bf16.gmra.mxu0 %v1003
      %v3860 = vpop.f32.mrf.mxu0
      %v3861 = vadd.f32 %v3524, %v3860
      %v3862 = vpop.f32.mrf.mxu0
      %v3863 = vpop.f32.mrf.mxu0
      %v3864 = vadd.f32 %v3527, %v3863
      %v3865 = vpop.f32.mrf.mxu0
      %3866 = vmatprep.mubr.bf16.mxu0 0
      %3867 = vmatmul.mubr.bf16.gmra.mxu0 %v1004
      %v3868 = vpop.f32.mrf.mxu0
      %v3869 = vadd.f32 %v3532, %v3868
      %v3870 = vpop.f32.mrf.mxu0
      %v3871 = vpop.f32.mrf.mxu0
      %v3872 = vadd.f32 %v3535, %v3871
      %v3873 = vpop.f32.mrf.mxu0
      %3874 = vmatprep.mubr.bf16.mxu0 0
      %3875 = vmatmul.mubr.bf16.gmra.mxu0 %v1005
      %v3876 = vpop.f32.mrf.mxu0
      %v3877 = vadd.f32 %v3540, %v3876
      %v3878 = vpop.f32.mrf.mxu0
      %v3879 = vpop.f32.mrf.mxu0
      %v3880 = vadd.f32 %v3543, %v3879
      %v3881 = vpop.f32.mrf.mxu0
      %3882 = vmatprep.mubr.bf16.mxu0 0
      %3883 = vmatmul.mubr.bf16.gmra.mxu0 %v1006
      %v3884 = vpop.f32.mrf.mxu0
      %v3885 = vadd.f32 %v3548, %v3884
      %v3886 = vpop.f32.mrf.mxu0
      %v3887 = vpop.f32.mrf.mxu0
      %v3888 = vadd.f32 %v3551, %v3887
      %v3889 = vpop.f32.mrf.mxu0
      %3890 = vmatprep.mubr.bf16.mxu0 0
      %3891 = vmatmul.mubr.bf16.gmra.mxu0 %v1007
      %v3892 = vpop.f32.mrf.mxu0
      %v3893 = vadd.f32 %v3556, %v3892
      %v3894 = vpop.f32.mrf.mxu0
      %v3895 = vpop.f32.mrf.mxu0
      %v3896 = vadd.f32 %v3559, %v3895
      %v3897 = vpop.f32.mrf.mxu0
      %3898 = vmatprep.mubr.bf16.mxu0 0
      %3899 = vmatmul.mubr.bf16.gmra.mxu0 %v1008
      %v3900 = vpop.f32.mrf.mxu0
      %v3901 = vadd.f32 %v3564, %v3900
      %v3902 = vpop.f32.mrf.mxu0
      %v3903 = vpop.f32.mrf.mxu0
      %v3904 = vadd.f32 %v3567, %v3903
      %v3905 = vpop.f32.mrf.mxu0
      %3906 = vmatprep.mubr.bf16.mxu0 0
      %3907 = vmatmul.mubr.bf16.gmra.mxu0 %v1009
      %v3908 = vpop.f32.mrf.mxu0
      %v3909 = vadd.f32 %v3572, %v3908
      %v3910 = vpop.f32.mrf.mxu0
      %v3911 = vpop.f32.mrf.mxu0
      %v3912 = vadd.f32 %v3575, %v3911
      %v3913 = vpop.f32.mrf.mxu0
      %3914 = vmatprep.mubr.bf16.mxu0 0
      %3915 = vmatmul.mubr.bf16.gmra.mxu0 %v1010
      %v3916 = vpop.f32.mrf.mxu0
      %v3917 = vadd.f32 %v3580, %v3916
      %v3918 = vpop.f32.mrf.mxu0
      %v3919 = vpop.f32.mrf.mxu0
      %v3920 = vadd.f32 %v3583, %v3919
      %v3921 = vpop.f32.mrf.mxu0
      %3922 = vmatprep.mubr.bf16.mxu0 0
      %3923 = vmatmul.mubr.bf16.gmra.mxu0 %v1011
      %v3924 = vpop.f32.mrf.mxu0
      %v3925 = vadd.f32 %v3588, %v3924
      %v3926 = vpop.f32.mrf.mxu0
      %v3927 = vpop.f32.mrf.mxu0
      %v3928 = vadd.f32 %v3591, %v3927
      %v3929 = vpop.f32.mrf.mxu0
      %3930 = vmatprep.mubr.bf16.mxu0 0
      %3931 = vmatmul.mubr.bf16.gmra.mxu0 %v1012
      %v3932 = vpop.f32.mrf.mxu0
      %v3933 = vadd.f32 %v3596, %v3932
      %v3934 = vpop.f32.mrf.mxu0
      %v3935 = vpop.f32.mrf.mxu0
      %v3936 = vadd.f32 %v3599, %v3935
      %v3937 = vpop.f32.mrf.mxu0
      %3938 = vmatprep.mubr.bf16.mxu0 0
      %3939 = vmatmul.mubr.bf16.gmra.mxu0 %v1013
      %v3940 = vpop.f32.mrf.mxu0
      %v3941 = vadd.f32 %v3604, %v3940
      %v3942 = vpop.f32.mrf.mxu0
      %v3943 = vpop.f32.mrf.mxu0
      %v3944 = vadd.f32 %v3607, %v3943
      %v3945 = vpop.f32.mrf.mxu0
      %3946 = vmatprep.mubr.bf16.mxu0 0
      %3947 = vmatmul.mubr.bf16.gmra.mxu0 %v1014
      %v3948 = vpop.f32.mrf.mxu0
      %v3949 = vadd.f32 %v3612, %v3948
      %v3950 = vpop.f32.mrf.mxu0
      %v3951 = vpop.f32.mrf.mxu0
      %v3952 = vadd.f32 %v3615, %v3951
      %v3953 = vpop.f32.mrf.mxu0
      %3954 = vmatprep.mubr.bf16.mxu0 0
      %3955 = vmatmul.mubr.bf16.gmra.mxu0 %v1015
      %v3956 = vpop.f32.mrf.mxu0
      %v3957 = vadd.f32 %v3620, %v3956
      %v3958 = vpop.f32.mrf.mxu0
      %v3959 = vpop.f32.mrf.mxu0
      %v3960 = vadd.f32 %v3623, %v3959
      %v3961 = vpop.f32.mrf.mxu0
      %3962 = vmatprep.mubr.bf16.mxu0 0
      %3963 = vmatmul.mubr.bf16.gmra.mxu0 %v1016
      %v3964 = vpop.f32.mrf.mxu0
      %v3965 = vadd.f32 %v3628, %v3964
      %v3966 = vpop.f32.mrf.mxu0
      %v3967 = vpop.f32.mrf.mxu0
      %v3968 = vadd.f32 %v3631, %v3967
      %v3969 = vpop.f32.mrf.mxu0
      %3970 = vmatprep.mubr.bf16.mxu0 0
      %3971 = vmatmul.mubr.bf16.gmra.mxu0 %v1017
      %v3972 = vpop.f32.mrf.mxu0
      %v3973 = vadd.f32 %v3636, %v3972
      %v3974 = vpop.f32.mrf.mxu0
      %v3975 = vpop.f32.mrf.mxu0
      %v3976 = vadd.f32 %v3639, %v3975
      %v3977 = vpop.f32.mrf.mxu0
      %3978 = vmatprep.mubr.bf16.mxu0 0
      %3979 = vmatmul.mubr.bf16.gmra.mxu0 %v1018
      %v3980 = vpop.f32.mrf.mxu0
      %v3981 = vadd.f32 %v3644, %v3980
      %v3982 = vpop.f32.mrf.mxu0
      %v3983 = vpop.f32.mrf.mxu0
      %v3984 = vadd.f32 %v3647, %v3983
      %v3985 = vpop.f32.mrf.mxu0
      %3986 = vmatprep.mubr.bf16.mxu0 0
      %3987 = vmatmul.mubr.bf16.gmra.mxu0 %v1019
      %v3988 = vpop.f32.mrf.mxu0
      %v3989 = vadd.f32 %v3652, %v3988
      %v3990 = vpop.f32.mrf.mxu0
      %v3991 = vpop.f32.mrf.mxu0
      %v3992 = vadd.f32 %v3655, %v3991
      %v3993 = vpop.f32.mrf.mxu0
      %3994 = vmatprep.mubr.bf16.mxu0 0
      %3995 = vmatmul.mubr.bf16.gmra.mxu0 %v1020
      %v3996 = vpop.f32.mrf.mxu0
      %v3997 = vadd.f32 %v3660, %v3996
      %v3998 = vpop.f32.mrf.mxu0
      %v3999 = vpop.f32.mrf.mxu0
      %v4000 = vadd.f32 %v3663, %v3999
      %v4001 = vpop.f32.mrf.mxu0
      %4002 = vmatprep.mubr.bf16.mxu0 0
      %4003 = vmatmul.mubr.bf16.gmra.mxu0 %v1021
      %v4004 = vpop.f32.mrf.mxu0
      %v4005 = vadd.f32 %v3668, %v4004
      %v4006 = vpop.f32.mrf.mxu0
      %v4007 = vpop.f32.mrf.mxu0
      %v4008 = vadd.f32 %v3671, %v4007
      %v4009 = vpop.f32.mrf.mxu0
      %4010 = vmatprep.mubr.bf16.mxu0 0
      %4011 = vmatmul.mubr.bf16.gmra.mxu0 %v1022
      %v4012 = vpop.f32.mrf.mxu0
      %v4013 = vadd.f32 %v3676, %v4012
      %v4014 = vpop.f32.mrf.mxu0
      %v4015 = vpop.f32.mrf.mxu0
      %v4016 = vadd.f32 %v3679, %v4015
      %v4017 = vpop.f32.mrf.mxu0
      %4018 = vmatprep.mubr.bf16.mxu0 0
      %4019 = vmatmul.mubr.bf16.gmra.mxu0 %v1023
      %v4020 = vpop.f32.mrf.mxu0
      %v4021 = vadd.f32 %v3684, %v4020
      %v4022 = vpop.f32.mrf.mxu0
      %v4023 = vpop.f32.mrf.mxu0
      %v4024 = vadd.f32 %v3687, %v4023
      %v4025 = vpop.f32.mrf.mxu0
      %4026 = vmatprep.mubr.bf16.mxu0 0
      %4027 = vmatmul.mubr.bf16.gmra.mxu0 %v1024
      %v4028 = vpop.f32.mrf.mxu0
      %v4029 = vadd.f32 %v3692, %v4028
      %v4030 = vpop.f32.mrf.mxu0
      %v4031 = vpop.f32.mrf.mxu0
      %v4032 = vadd.f32 %v3695, %v4031
      %v4033 = vpop.f32.mrf.mxu0
      %4034 = vmatprep.mubr.bf16.mxu0 0
      %4035 = vmatmul.mubr.bf16.gmra.mxu0 %v1025
      %v4036 = vpop.f32.mrf.mxu0
      %v4037 = vadd.f32 %v3700, %v4036
      %v4038 = vpop.f32.mrf.mxu0
      %v4039 = vpop.f32.mrf.mxu0
      %v4040 = vadd.f32 %v3703, %v4039
      %v4041 = vpop.f32.mrf.mxu0
      %4042 = vmatprep.mubr.bf16.mxu0 0
      %4043 = vmatmul.mubr.bf16.gmra.mxu0 %v1026
      %v4044 = vpop.f32.mrf.mxu0
      %v4045 = vadd.f32 %v3708, %v4044
      %v4046 = vpop.f32.mrf.mxu0
      %v4047 = vpop.f32.mrf.mxu0
      %v4048 = vadd.f32 %v3711, %v4047
      %v4049 = vpop.f32.mrf.mxu0
      %4050 = vmatprep.mubr.bf16.mxu0 0
      %4051 = vmatmul.mubr.bf16.gmra.mxu0 %v1027
      %v4052 = vpop.f32.mrf.mxu0
      %v4053 = vadd.f32 %v3716, %v4052
      %v4054 = vpop.f32.mrf.mxu0
      %v4055 = vpop.f32.mrf.mxu0
      %v4056 = vadd.f32 %v3719, %v4055
      %v4057 = vpop.f32.mrf.mxu0
      %4058 = vmatprep.mubr.bf16.mxu0 0
      %4059 = vmatmul.mubr.bf16.gmra.mxu0 %v1028
      %v4060 = vpop.f32.mrf.mxu0
      %v4061 = vadd.f32 %v3724, %v4060
      %v4062 = vpop.f32.mrf.mxu0
      %v4063 = vpop.f32.mrf.mxu0
      %v4064 = vadd.f32 %v3727, %v4063
      %v4065 = vpop.f32.mrf.mxu0
      %4066 = vmatprep.mubr.bf16.mxu0 0
      %4067 = vmatmul.mubr.bf16.gmra.mxu0 %v1029
      %v4068 = vpop.f32.mrf.mxu0
      %v4069 = vadd.f32 %v3732, %v4068
      %v4070 = vpop.f32.mrf.mxu0
      %v4071 = vpop.f32.mrf.mxu0
      %v4072 = vadd.f32 %v3735, %v4071
      %v4073 = vpop.f32.mrf.mxu0
      %4074 = vmatprep.mubr.bf16.mxu0 0
      %4075 = vmatmul.mubr.bf16.gmra.mxu0 %v1030
      %v4076 = vpop.f32.mrf.mxu0
      %v4077 = vadd.f32 %v3740, %v4076
      %v4078 = vpop.f32.mrf.mxu0
      %v4079 = vpop.f32.mrf.mxu0
      %v4080 = vadd.f32 %v3743, %v4079
      %v4081 = vpop.f32.mrf.mxu0
      %4082 = vmatprep.mubr.bf16.mxu0 0
      %4083 = vmatmul.mubr.bf16.gmra.mxu0 %v1031
      %v4084 = vpop.f32.mrf.mxu0
      %v4085 = vadd.f32 %v3748, %v4084
      %v4086 = vpop.f32.mrf.mxu0
      %v4087 = vpop.f32.mrf.mxu0
      %v4088 = vadd.f32 %v3751, %v4087
      %v4089 = vpop.f32.mrf.mxu0
      %4090 = vmatprep.mubr.bf16.mxu0 0
      %4091 = vmatmul.mubr.bf16.gmra.mxu0 %v1032
      %v4092 = vpop.f32.mrf.mxu0
      %v4093 = vadd.f32 %v3756, %v4092
      %v4094 = vpop.f32.mrf.mxu0
      %v4095 = vpop.f32.mrf.mxu0
      %v4096 = vadd.f32 %v3759, %v4095
      %v4097 = vpop.f32.mrf.mxu0
      %4098 = vmatprep.mubr.bf16.mxu0 0
      %4099 = vmatmul.mubr.bf16.gmra.mxu0 %v1033
      %v4100 = vpop.f32.mrf.mxu0
      %v4101 = vadd.f32 %v3764, %v4100
      %v4102 = vpop.f32.mrf.mxu0
      %v4103 = vpop.f32.mrf.mxu0
      %v4104 = vadd.f32 %v3767, %v4103
      %v4105 = vpop.f32.mrf.mxu0
      %4106 = vdwg.mxu0
      %s4107 = scalar_lea.vmem %s1, 512
      %v4108 = vld [vmem:[%s4107] sm:$0xf]
      %v4109 = vld [vmem:[%s4107 + $0x4] sm:$0xf]
      %v4110 = vld [vmem:[%s4107 + $0x8] sm:$0xf]
      %v4111 = vld [vmem:[%s4107 + $0xc] sm:$0xf]
      %v4112 = vld [vmem:[%s4107 + $0x10] sm:$0xf]
      %v4113 = vld [vmem:[%s4107 + $0x14] sm:$0xf]
      %v4114 = vld [vmem:[%s4107 + $0x18] sm:$0xf]
      %v4115 = vld [vmem:[%s4107 + $0x1c] sm:$0xf]
      %v4116 = vld [vmem:[%s4107 + $0x20] sm:$0xf]
      %v4117 = vld [vmem:[%s4107 + $0x24] sm:$0xf]
      %v4118 = vld [vmem:[%s4107 + $0x28] sm:$0xf]
      %v4119 = vld [vmem:[%s4107 + $0x2c] sm:$0xf]
      %v4120 = vld [vmem:[%s4107 + $0x30] sm:$0xf]
      %v4121 = vld [vmem:[%s4107 + $0x34] sm:$0xf]
      %v4122 = vld [vmem:[%s4107 + $0x38] sm:$0xf]
      %v4123 = vld [vmem:[%s4107 + $0x3c] sm:$0xf]
      %v4140 = vunpack.c.l.b16 %v4108
      %v4141 = vunpack.c.l.b16 %v4109
      %v4142 = vunpack.c.l.b16 %v4110
      %v4143 = vunpack.c.l.b16 %v4111
      %v4144 = vunpack.c.l.b16 %v4112
      %v4145 = vunpack.c.l.b16 %v4113
      %v4146 = vunpack.c.l.b16 %v4114
      %v4147 = vunpack.c.l.b16 %v4115
      %v4148 = vunpack.c.l.b16 %v4116
      %v4149 = vunpack.c.l.b16 %v4117
      %v4150 = vunpack.c.l.b16 %v4118
      %v4151 = vunpack.c.l.b16 %v4119
      %v4152 = vunpack.c.l.b16 %v4120
      %v4153 = vunpack.c.l.b16 %v4121
      %v4154 = vunpack.c.l.b16 %v4122
      %v4155 = vunpack.c.l.b16 %v4123
      %v4156 = vpack.c.b16 %v4141, %v4140
      %v4157 = vpack.c.b16 %v4143, %v4142
      %v4158 = vpack.c.b16 %v4145, %v4144
      %v4159 = vpack.c.b16 %v4147, %v4146
      %v4160 = vpack.c.b16 %v4149, %v4148
      %v4161 = vpack.c.b16 %v4151, %v4150
      %v4162 = vpack.c.b16 %v4153, %v4152
      %v4163 = vpack.c.b16 %v4155, %v4154
      %4172 = vmatprep.subr.bf16.mxu0 0
      %4173 = vmatpush1.bf16.msra.mxu0 %v4163
      %4174 = vmatprep.subr.bf16.mxu0 0
      %4175 = vmatpush1.bf16.msra.mxu0 %v4162
      %4176 = vmatprep.subr.bf16.mxu0 0
      %4177 = vmatpush1.bf16.msra.mxu0 %v4161
      %4178 = vmatprep.subr.bf16.mxu0 0
      %4179 = vmatpush1.bf16.msra.mxu0 %v4160
      %4180 = vmatprep.subr.bf16.mxu0 0
      %4181 = vmatpush1.bf16.msra.mxu0 %v4159
      %4182 = vmatprep.subr.bf16.mxu0 0
      %4183 = vmatpush1.bf16.msra.mxu0 %v4158
      %4184 = vmatprep.subr.bf16.mxu0 0
      %4185 = vmatpush1.bf16.msra.mxu0 %v4157
      %4186 = vmatprep.subr.bf16.mxu0 0
      %4187 = vmatpush1.bf16.msra.mxu0 %v4156
      %4188 = vmatprep.subr.bf16.mxu0 0
      %4189 = vmatpush2.bf16.msra.mxu0 0
      %4190 = vmatprep.subr.bf16.mxu0 0
      %4191 = vmatpush2.bf16.msra.mxu0 0
      %4192 = vmatprep.subr.bf16.mxu0 0
      %4193 = vmatpush2.bf16.msra.mxu0 0
      %4194 = vmatprep.subr.bf16.mxu0 0
      %4195 = vmatpush2.bf16.msra.mxu0 0
      %4196 = vmatprep.subr.bf16.mxu0 0
      %4197 = vmatpush2.bf16.msra.mxu0 0
      %4198 = vmatprep.subr.bf16.mxu0 0
      %4199 = vmatpush2.bf16.msra.mxu0 0
      %4200 = vmatprep.subr.bf16.mxu0 0
      %4201 = vmatpush2.bf16.msra.mxu0 0
      %4202 = vmatprep.subr.bf16.mxu0 0
      %4203 = vmatpush2.bf16.msra.mxu0 0
      %4204 = vmatprep.mubr.bf16.mxu0 0
      %4205 = vmatmul.mubr.bf16.gmra.mxu0 %v1613
      %v4206 = vpop.f32.mrf.mxu0
      %v4207 = vadd.f32 0.0, %v4206
      %v4208 = vpop.f32.mrf.mxu0
      %v4209 = vpop.f32.mrf.mxu0
      %v4210 = vadd.f32 0.0, %v4209
      %v4211 = vpop.f32.mrf.mxu0
      %4212 = vmatprep.mubr.bf16.mxu0 0
      %4213 = vmatmul.mubr.bf16.gmra.mxu0 %v1614
      %v4214 = vpop.f32.mrf.mxu0
      %v4215 = vadd.f32 0.0, %v4214
      %v4216 = vpop.f32.mrf.mxu0
      %v4217 = vpop.f32.mrf.mxu0
      %v4218 = vadd.f32 0.0, %v4217
      %v4219 = vpop.f32.mrf.mxu0
      %4220 = vmatprep.mubr.bf16.mxu0 0
      %4221 = vmatmul.mubr.bf16.gmra.mxu0 %v1615
      %v4222 = vpop.f32.mrf.mxu0
      %v4223 = vadd.f32 0.0, %v4222
      %v4224 = vpop.f32.mrf.mxu0
      %v4225 = vpop.f32.mrf.mxu0
      %v4226 = vadd.f32 0.0, %v4225
      %v4227 = vpop.f32.mrf.mxu0
      %4228 = vmatprep.mubr.bf16.mxu0 0
      %4229 = vmatmul.mubr.bf16.gmra.mxu0 %v1616
      %v4230 = vpop.f32.mrf.mxu0
      %v4231 = vadd.f32 0.0, %v4230
      %v4232 = vpop.f32.mrf.mxu0
      %v4233 = vpop.f32.mrf.mxu0
      %v4234 = vadd.f32 0.0, %v4233
      %v4235 = vpop.f32.mrf.mxu0
      %4236 = vmatprep.mubr.bf16.mxu0 0
      %4237 = vmatmul.mubr.bf16.gmra.mxu0 %v1617
      %v4238 = vpop.f32.mrf.mxu0
      %v4239 = vadd.f32 0.0, %v4238
      %v4240 = vpop.f32.mrf.mxu0
      %v4241 = vpop.f32.mrf.mxu0
      %v4242 = vadd.f32 0.0, %v4241
      %v4243 = vpop.f32.mrf.mxu0
      %4244 = vmatprep.mubr.bf16.mxu0 0
      %4245 = vmatmul.mubr.bf16.gmra.mxu0 %v1618
      %v4246 = vpop.f32.mrf.mxu0
      %v4247 = vadd.f32 0.0, %v4246
      %v4248 = vpop.f32.mrf.mxu0
      %v4249 = vpop.f32.mrf.mxu0
      %v4250 = vadd.f32 0.0, %v4249
      %v4251 = vpop.f32.mrf.mxu0
      %4252 = vmatprep.mubr.bf16.mxu0 0
      %4253 = vmatmul.mubr.bf16.gmra.mxu0 %v1619
      %v4254 = vpop.f32.mrf.mxu0
      %v4255 = vadd.f32 0.0, %v4254
      %v4256 = vpop.f32.mrf.mxu0
      %v4257 = vpop.f32.mrf.mxu0
      %v4258 = vadd.f32 0.0, %v4257
      %v4259 = vpop.f32.mrf.mxu0
      %4260 = vmatprep.mubr.bf16.mxu0 0
      %4261 = vmatmul.mubr.bf16.gmra.mxu0 %v1620
      %v4262 = vpop.f32.mrf.mxu0
      %v4263 = vadd.f32 0.0, %v4262
      %v4264 = vpop.f32.mrf.mxu0
      %v4265 = vpop.f32.mrf.mxu0
      %v4266 = vadd.f32 0.0, %v4265
      %v4267 = vpop.f32.mrf.mxu0
      %4268 = vmatprep.mubr.bf16.mxu0 0
      %4269 = vmatmul.mubr.bf16.gmra.mxu0 %v1621
      %v4270 = vpop.f32.mrf.mxu0
      %v4271 = vadd.f32 0.0, %v4270
      %v4272 = vpop.f32.mrf.mxu0
      %v4273 = vpop.f32.mrf.mxu0
      %v4274 = vadd.f32 0.0, %v4273
      %v4275 = vpop.f32.mrf.mxu0
      %4276 = vmatprep.mubr.bf16.mxu0 0
      %4277 = vmatmul.mubr.bf16.gmra.mxu0 %v1622
      %v4278 = vpop.f32.mrf.mxu0
      %v4279 = vadd.f32 0.0, %v4278
      %v4280 = vpop.f32.mrf.mxu0
      %v4281 = vpop.f32.mrf.mxu0
      %v4282 = vadd.f32 0.0, %v4281
      %v4283 = vpop.f32.mrf.mxu0
      %4284 = vmatprep.mubr.bf16.mxu0 0
      %4285 = vmatmul.mubr.bf16.gmra.mxu0 %v1623
      %v4286 = vpop.f32.mrf.mxu0
      %v4287 = vadd.f32 0.0, %v4286
      %v4288 = vpop.f32.mrf.mxu0
      %v4289 = vpop.f32.mrf.mxu0
      %v4290 = vadd.f32 0.0, %v4289
      %v4291 = vpop.f32.mrf.mxu0
      %4292 = vmatprep.mubr.bf16.mxu0 0
      %4293 = vmatmul.mubr.bf16.gmra.mxu0 %v1624
      %v4294 = vpop.f32.mrf.mxu0
      %v4295 = vadd.f32 0.0, %v4294
      %v4296 = vpop.f32.mrf.mxu0
      %v4297 = vpop.f32.mrf.mxu0
      %v4298 = vadd.f32 0.0, %v4297
      %v4299 = vpop.f32.mrf.mxu0
      %4300 = vmatprep.mubr.bf16.mxu0 0
      %4301 = vmatmul.mubr.bf16.gmra.mxu0 %v1625
      %v4302 = vpop.f32.mrf.mxu0
      %v4303 = vadd.f32 0.0, %v4302
      %v4304 = vpop.f32.mrf.mxu0
      %v4305 = vpop.f32.mrf.mxu0
      %v4306 = vadd.f32 0.0, %v4305
      %v4307 = vpop.f32.mrf.mxu0
      %4308 = vmatprep.mubr.bf16.mxu0 0
      %4309 = vmatmul.mubr.bf16.gmra.mxu0 %v1626
      %v4310 = vpop.f32.mrf.mxu0
      %v4311 = vadd.f32 0.0, %v4310
      %v4312 = vpop.f32.mrf.mxu0
      %v4313 = vpop.f32.mrf.mxu0
      %v4314 = vadd.f32 0.0, %v4313
      %v4315 = vpop.f32.mrf.mxu0
      %4316 = vmatprep.mubr.bf16.mxu0 0
      %4317 = vmatmul.mubr.bf16.gmra.mxu0 %v1627
      %v4318 = vpop.f32.mrf.mxu0
      %v4319 = vadd.f32 0.0, %v4318
      %v4320 = vpop.f32.mrf.mxu0
      %v4321 = vpop.f32.mrf.mxu0
      %v4322 = vadd.f32 0.0, %v4321
      %v4323 = vpop.f32.mrf.mxu0
      %4324 = vmatprep.mubr.bf16.mxu0 0
      %4325 = vmatmul.mubr.bf16.gmra.mxu0 %v1628
      %v4326 = vpop.f32.mrf.mxu0
      %v4327 = vadd.f32 0.0, %v4326
      %v4328 = vpop.f32.mrf.mxu0
      %v4329 = vpop.f32.mrf.mxu0
      %v4330 = vadd.f32 0.0, %v4329
      %v4331 = vpop.f32.mrf.mxu0
      %4332 = vmatprep.mubr.bf16.mxu0 0
      %4333 = vmatmul.mubr.bf16.gmra.mxu0 %v1629
      %v4334 = vpop.f32.mrf.mxu0
      %v4335 = vadd.f32 0.0, %v4334
      %v4336 = vpop.f32.mrf.mxu0
      %v4337 = vpop.f32.mrf.mxu0
      %v4338 = vadd.f32 0.0, %v4337
      %v4339 = vpop.f32.mrf.mxu0
      %4340 = vmatprep.mubr.bf16.mxu0 0
      %4341 = vmatmul.mubr.bf16.gmra.mxu0 %v1630
      %v4342 = vpop.f32.mrf.mxu0
      %v4343 = vadd.f32 0.0, %v4342
      %v4344 = vpop.f32.mrf.mxu0
      %v4345 = vpop.f32.mrf.mxu0
      %v4346 = vadd.f32 0.0, %v4345
      %v4347 = vpop.f32.mrf.mxu0
      %4348 = vmatprep.mubr.bf16.mxu0 0
      %4349 = vmatmul.mubr.bf16.gmra.mxu0 %v1631
      %v4350 = vpop.f32.mrf.mxu0
      %v4351 = vadd.f32 0.0, %v4350
      %v4352 = vpop.f32.mrf.mxu0
      %v4353 = vpop.f32.mrf.mxu0
      %v4354 = vadd.f32 0.0, %v4353
      %v4355 = vpop.f32.mrf.mxu0
      %4356 = vmatprep.mubr.bf16.mxu0 0
      %4357 = vmatmul.mubr.bf16.gmra.mxu0 %v1632
      %v4358 = vpop.f32.mrf.mxu0
      %v4359 = vadd.f32 0.0, %v4358
      %v4360 = vpop.f32.mrf.mxu0
      %v4361 = vpop.f32.mrf.mxu0
      %v4362 = vadd.f32 0.0, %v4361
      %v4363 = vpop.f32.mrf.mxu0
      %4364 = vmatprep.mubr.bf16.mxu0 0
      %4365 = vmatmul.mubr.bf16.gmra.mxu0 %v1633
      %v4366 = vpop.f32.mrf.mxu0
      %v4367 = vadd.f32 0.0, %v4366
      %v4368 = vpop.f32.mrf.mxu0
      %v4369 = vpop.f32.mrf.mxu0
      %v4370 = vadd.f32 0.0, %v4369
      %v4371 = vpop.f32.mrf.mxu0
      %4372 = vmatprep.mubr.bf16.mxu0 0
      %4373 = vmatmul.mubr.bf16.gmra.mxu0 %v1634
      %v4374 = vpop.f32.mrf.mxu0
      %v4375 = vadd.f32 0.0, %v4374
      %v4376 = vpop.f32.mrf.mxu0
      %v4377 = vpop.f32.mrf.mxu0
      %v4378 = vadd.f32 0.0, %v4377
      %v4379 = vpop.f32.mrf.mxu0
      %4380 = vmatprep.mubr.bf16.mxu0 0
      %4381 = vmatmul.mubr.bf16.gmra.mxu0 %v1635
      %v4382 = vpop.f32.mrf.mxu0
      %v4383 = vadd.f32 0.0, %v4382
      %v4384 = vpop.f32.mrf.mxu0
      %v4385 = vpop.f32.mrf.mxu0
      %v4386 = vadd.f32 0.0, %v4385
      %v4387 = vpop.f32.mrf.mxu0
      %4388 = vmatprep.mubr.bf16.mxu0 0
      %4389 = vmatmul.mubr.bf16.gmra.mxu0 %v1636
      %v4390 = vpop.f32.mrf.mxu0
      %v4391 = vadd.f32 0.0, %v4390
      %v4392 = vpop.f32.mrf.mxu0
      %v4393 = vpop.f32.mrf.mxu0
      %v4394 = vadd.f32 0.0, %v4393
      %v4395 = vpop.f32.mrf.mxu0
      %4396 = vmatprep.mubr.bf16.mxu0 0
      %4397 = vmatmul.mubr.bf16.gmra.mxu0 %v1637
      %v4398 = vpop.f32.mrf.mxu0
      %v4399 = vadd.f32 0.0, %v4398
      %v4400 = vpop.f32.mrf.mxu0
      %v4401 = vpop.f32.mrf.mxu0
      %v4402 = vadd.f32 0.0, %v4401
      %v4403 = vpop.f32.mrf.mxu0
      %4404 = vmatprep.mubr.bf16.mxu0 0
      %4405 = vmatmul.mubr.bf16.gmra.mxu0 %v1638
      %v4406 = vpop.f32.mrf.mxu0
      %v4407 = vadd.f32 0.0, %v4406
      %v4408 = vpop.f32.mrf.mxu0
      %v4409 = vpop.f32.mrf.mxu0
      %v4410 = vadd.f32 0.0, %v4409
      %v4411 = vpop.f32.mrf.mxu0
      %4412 = vmatprep.mubr.bf16.mxu0 0
      %4413 = vmatmul.mubr.bf16.gmra.mxu0 %v1639
      %v4414 = vpop.f32.mrf.mxu0
      %v4415 = vadd.f32 0.0, %v4414
      %v4416 = vpop.f32.mrf.mxu0
      %v4417 = vpop.f32.mrf.mxu0
      %v4418 = vadd.f32 0.0, %v4417
      %v4419 = vpop.f32.mrf.mxu0
      %4420 = vmatprep.mubr.bf16.mxu0 0
      %4421 = vmatmul.mubr.bf16.gmra.mxu0 %v1640
      %v4422 = vpop.f32.mrf.mxu0
      %v4423 = vadd.f32 0.0, %v4422
      %v4424 = vpop.f32.mrf.mxu0
      %v4425 = vpop.f32.mrf.mxu0
      %v4426 = vadd.f32 0.0, %v4425
      %v4427 = vpop.f32.mrf.mxu0
      %4428 = vmatprep.mubr.bf16.mxu0 0
      %4429 = vmatmul.mubr.bf16.gmra.mxu0 %v1641
      %v4430 = vpop.f32.mrf.mxu0
      %v4431 = vadd.f32 0.0, %v4430
      %v4432 = vpop.f32.mrf.mxu0
      %v4433 = vpop.f32.mrf.mxu0
      %v4434 = vadd.f32 0.0, %v4433
      %v4435 = vpop.f32.mrf.mxu0
      %4436 = vmatprep.mubr.bf16.mxu0 0
      %4437 = vmatmul.mubr.bf16.gmra.mxu0 %v1642
      %v4438 = vpop.f32.mrf.mxu0
      %v4439 = vadd.f32 0.0, %v4438
      %v4440 = vpop.f32.mrf.mxu0
      %v4441 = vpop.f32.mrf.mxu0
      %v4442 = vadd.f32 0.0, %v4441
      %v4443 = vpop.f32.mrf.mxu0
      %4444 = vmatprep.mubr.bf16.mxu0 0
      %4445 = vmatmul.mubr.bf16.gmra.mxu0 %v1643
      %v4446 = vpop.f32.mrf.mxu0
      %v4447 = vadd.f32 0.0, %v4446
      %v4448 = vpop.f32.mrf.mxu0
      %v4449 = vpop.f32.mrf.mxu0
      %v4450 = vadd.f32 0.0, %v4449
      %v4451 = vpop.f32.mrf.mxu0
      %4452 = vmatprep.mubr.bf16.mxu0 0
      %4453 = vmatmul.mubr.bf16.gmra.mxu0 %v1644
      %v4454 = vpop.f32.mrf.mxu0
      %v4455 = vadd.f32 0.0, %v4454
      %v4456 = vpop.f32.mrf.mxu0
      %v4457 = vpop.f32.mrf.mxu0
      %v4458 = vadd.f32 0.0, %v4457
      %v4459 = vpop.f32.mrf.mxu0
      %4460 = vdwg.mxu0
      %v4461 = vadd.f32 %v3853, %v4207
      %v4462 = vadd.f32 %v3856, %v4210
      %v4463 = vadd.f32 %v3861, %v4215
      %v4464 = vadd.f32 %v3864, %v4218
      %v4465 = vadd.f32 %v3869, %v4223
      %v4466 = vadd.f32 %v3872, %v4226
      %v4467 = vadd.f32 %v3877, %v4231
      %v4468 = vadd.f32 %v3880, %v4234
      %v4469 = vadd.f32 %v3885, %v4239
      %v4470 = vadd.f32 %v3888, %v4242
      %v4471 = vadd.f32 %v3893, %v4247
      %v4472 = vadd.f32 %v3896, %v4250
      %v4473 = vadd.f32 %v3901, %v4255
      %v4474 = vadd.f32 %v3904, %v4258
      %v4475 = vadd.f32 %v3909, %v4263
      %v4476 = vadd.f32 %v3912, %v4266
      %v4477 = vadd.f32 %v3917, %v4271
      %v4478 = vadd.f32 %v3920, %v4274
      %v4479 = vadd.f32 %v3925, %v4279
      %v4480 = vadd.f32 %v3928, %v4282
      %v4481 = vadd.f32 %v3933, %v4287
      %v4482 = vadd.f32 %v3936, %v4290
      %v4483 = vadd.f32 %v3941, %v4295
      %v4484 = vadd.f32 %v3944, %v4298
      %v4485 = vadd.f32 %v3949, %v4303
      %v4486 = vadd.f32 %v3952, %v4306
      %v4487 = vadd.f32 %v3957, %v4311
      %v4488 = vadd.f32 %v3960, %v4314
      %v4489 = vadd.f32 %v3965, %v4319
      %v4490 = vadd.f32 %v3968, %v4322
      %v4491 = vadd.f32 %v3973, %v4327
      %v4492 = vadd.f32 %v3976, %v4330
      %v4493 = vadd.f32 %v3981, %v4335
      %v4494 = vadd.f32 %v3984, %v4338
      %v4495 = vadd.f32 %v3989, %v4343
      %v4496 = vadd.f32 %v3992, %v4346
      %v4497 = vadd.f32 %v3997, %v4351
      %v4498 = vadd.f32 %v4000, %v4354
      %v4499 = vadd.f32 %v4005, %v4359
      %v4500 = vadd.f32 %v4008, %v4362
      %v4501 = vadd.f32 %v4013, %v4367
      %v4502 = vadd.f32 %v4016, %v4370
      %v4503 = vadd.f32 %v4021, %v4375
      %v4504 = vadd.f32 %v4024, %v4378
      %v4505 = vadd.f32 %v4029, %v4383
      %v4506 = vadd.f32 %v4032, %v4386
      %v4507 = vadd.f32 %v4037, %v4391
      %v4508 = vadd.f32 %v4040, %v4394
      %v4509 = vadd.f32 %v4045, %v4399
      %v4510 = vadd.f32 %v4048, %v4402
      %v4511 = vadd.f32 %v4053, %v4407
      %v4512 = vadd.f32 %v4056, %v4410
      %v4513 = vadd.f32 %v4061, %v4415
      %v4514 = vadd.f32 %v4064, %v4418
      %v4515 = vadd.f32 %v4069, %v4423
      %v4516 = vadd.f32 %v4072, %v4426
      %v4517 = vadd.f32 %v4077, %v4431
      %v4518 = vadd.f32 %v4080, %v4434
      %v4519 = vadd.f32 %v4085, %v4439
      %v4520 = vadd.f32 %v4088, %v4442
      %v4521 = vadd.f32 %v4093, %v4447
      %v4522 = vadd.f32 %v4096, %v4450
      %v4523 = vadd.f32 %v4101, %v4455
      %v4524 = vadd.f32 %v4104, %v4458
      %v4525 = vrot.slane %v4461, 2
      %v4526 = vrot.slane %v4462, 2
      %v4527 = vrot.slane %v4463, 2
      %v4528 = vrot.slane %v4464, 2
      %v4529 = vrot.slane %v4465, 2
      %v4530 = vrot.slane %v4466, 2
      %v4531 = vrot.slane %v4467, 2
      %v4532 = vrot.slane %v4468, 2
      %v4533 = vrot.slane %v4469, 2
      %v4534 = vrot.slane %v4470, 2
      %v4535 = vrot.slane %v4471, 2
      %v4536 = vrot.slane %v4472, 2
      %v4537 = vrot.slane %v4473, 2
      %v4538 = vrot.slane %v4474, 2
      %v4539 = vrot.slane %v4475, 2
      %v4540 = vrot.slane %v4476, 2
      %v4541 = vrot.slane %v4477, 2
      %v4542 = vrot.slane %v4478, 2
      %v4543 = vrot.slane %v4479, 2
      %v4544 = vrot.slane %v4480, 2
      %v4545 = vrot.slane %v4481, 2
      %v4546 = vrot.slane %v4482, 2
      %v4547 = vrot.slane %v4483, 2
      %v4548 = vrot.slane %v4484, 2
      %v4549 = vrot.slane %v4485, 2
      %v4550 = vrot.slane %v4486, 2
      %v4551 = vrot.slane %v4487, 2
      %v4552 = vrot.slane %v4488, 2
      %v4553 = vrot.slane %v4489, 2
      %v4554 = vrot.slane %v4490, 2
      %v4555 = vrot.slane %v4491, 2
      %v4556 = vrot.slane %v4492, 2
      %v4557 = vrot.slane %v4493, 2
      %v4558 = vrot.slane %v4494, 2
      %v4559 = vrot.slane %v4495, 2
      %v4560 = vrot.slane %v4496, 2
      %v4561 = vrot.slane %v4497, 2
      %v4562 = vrot.slane %v4498, 2
      %v4563 = vrot.slane %v4499, 2
      %v4564 = vrot.slane %v4500, 2
      %v4565 = vrot.slane %v4501, 2
      %v4566 = vrot.slane %v4502, 2
      %v4567 = vrot.slane %v4503, 2
      %v4568 = vrot.slane %v4504, 2
      %v4569 = vrot.slane %v4505, 2
      %v4570 = vrot.slane %v4506, 2
      %v4571 = vrot.slane %v4507, 2
      %v4572 = vrot.slane %v4508, 2
      %v4573 = vrot.slane %v4509, 2
      %v4574 = vrot.slane %v4510, 2
      %v4575 = vrot.slane %v4511, 2
      %v4576 = vrot.slane %v4512, 2
      %v4577 = vrot.slane %v4513, 2
      %v4578 = vrot.slane %v4514, 2
      %v4579 = vrot.slane %v4515, 2
      %v4580 = vrot.slane %v4516, 2
      %v4581 = vrot.slane %v4517, 2
      %v4582 = vrot.slane %v4518, 2
      %v4583 = vrot.slane %v4519, 2
      %v4584 = vrot.slane %v4520, 2
      %v4585 = vrot.slane %v4521, 2
      %v4586 = vrot.slane %v4522, 2
      %v4587 = vrot.slane %v4523, 2
      %v4588 = vrot.slane %v4524, 2
      %vm4589 = vcmp.lt.s32.totalorder %v3269, 6
      %v4590 = vsel %vm4589, %v4587, %v4588
      %v4591 = vsel %vm4589, %v4586, %v4587
      %v4592 = vsel %vm4589, %v4585, %v4586
      %v4593 = vsel %vm4589, %v4584, %v4585
      %v4594 = vsel %vm4589, %v4583, %v4584
      %v4595 = vsel %vm4589, %v4582, %v4583
      %v4596 = vsel %vm4589, %v4581, %v4582
      %v4597 = vsel %vm4589, %v4580, %v4581
      %v4598 = vsel %vm4589, %v4579, %v4580
      %v4599 = vsel %vm4589, %v4578, %v4579
      %v4600 = vsel %vm4589, %v4577, %v4578
      %v4601 = vsel %vm4589, %v4576, %v4577
      %v4602 = vsel %vm4589, %v4575, %v4576
      %v4603 = vsel %vm4589, %v4574, %v4575
      %v4604 = vsel %vm4589, %v4573, %v4574
      %v4605 = vsel %vm4589, %v4572, %v4573
      %v4606 = vsel %vm4589, %v4571, %v4572
      %v4607 = vsel %vm4589, %v4570, %v4571
      %v4608 = vsel %vm4589, %v4569, %v4570
      %v4609 = vsel %vm4589, %v4568, %v4569
      %v4610 = vsel %vm4589, %v4567, %v4568
      %v4611 = vsel %vm4589, %v4566, %v4567
      %v4612 = vsel %vm4589, %v4565, %v4566
      %v4613 = vsel %vm4589, %v4564, %v4565
      %v4614 = vsel %vm4589, %v4563, %v4564
      %v4615 = vsel %vm4589, %v4562, %v4563
      %v4616 = vsel %vm4589, %v4561, %v4562
      %v4617 = vsel %vm4589, %v4560, %v4561
      %v4618 = vsel %vm4589, %v4559, %v4560
      %v4619 = vsel %vm4589, %v4558, %v4559
      %v4620 = vsel %vm4589, %v4557, %v4558
      %v4621 = vsel %vm4589, %v4556, %v4557
      %v4622 = vsel %vm4589, %v4555, %v4556
      %v4623 = vsel %vm4589, %v4554, %v4555
      %v4624 = vsel %vm4589, %v4553, %v4554
      %v4625 = vsel %vm4589, %v4552, %v4553
      %v4626 = vsel %vm4589, %v4551, %v4552
      %v4627 = vsel %vm4589, %v4550, %v4551
      %v4628 = vsel %vm4589, %v4549, %v4550
      %v4629 = vsel %vm4589, %v4548, %v4549
      %v4630 = vsel %vm4589, %v4547, %v4548
      %v4631 = vsel %vm4589, %v4546, %v4547
      %v4632 = vsel %vm4589, %v4545, %v4546
      %v4633 = vsel %vm4589, %v4544, %v4545
      %v4634 = vsel %vm4589, %v4543, %v4544
      %v4635 = vsel %vm4589, %v4542, %v4543
      %v4636 = vsel %vm4589, %v4541, %v4542
      %v4637 = vsel %vm4589, %v4540, %v4541
      %v4638 = vsel %vm4589, %v4539, %v4540
      %v4639 = vsel %vm4589, %v4538, %v4539
      %v4640 = vsel %vm4589, %v4537, %v4538
      %v4641 = vsel %vm4589, %v4536, %v4537
      %v4642 = vsel %vm4589, %v4535, %v4536
      %v4643 = vsel %vm4589, %v4534, %v4535
      %v4644 = vsel %vm4589, %v4533, %v4534
      %v4645 = vsel %vm4589, %v4532, %v4533
      %v4646 = vsel %vm4589, %v4531, %v4532
      %v4647 = vsel %vm4589, %v4530, %v4531
      %v4648 = vsel %vm4589, %v4529, %v4530
      %v4649 = vsel %vm4589, %v4528, %v4529
      %v4650 = vsel %vm4589, %v4527, %v4528
      %v4651 = vsel %vm4589, %v4526, %v4527
      %v4652 = vsel %vm4589, %v4525, %v4526
      %v4653 = vsel %vm4589, %v4588, %v4525
      %v4654 = vadd.f32 %v3335, %v4652
      %v4655 = vadd.f32 %v3336, %v4651
      %v4656 = vadd.f32 %v3337, %v4650
      %v4657 = vadd.f32 %v3338, %v4649
      %v4658 = vadd.f32 %v3339, %v4648
      %v4659 = vadd.f32 %v3340, %v4647
      %v4660 = vadd.f32 %v3341, %v4646
      %v4661 = vadd.f32 %v3342, %v4645
      %v4662 = vadd.f32 %v3343, %v4644
      %v4663 = vadd.f32 %v3344, %v4643
      %v4664 = vadd.f32 %v3345, %v4642
      %v4665 = vadd.f32 %v3346, %v4641
      %v4666 = vadd.f32 %v3347, %v4640
      %v4667 = vadd.f32 %v3348, %v4639
      %v4668 = vadd.f32 %v3349, %v4638
      %v4669 = vadd.f32 %v3350, %v4637
      %v4670 = vadd.f32 %v3351, %v4636
      %v4671 = vadd.f32 %v3352, %v4635
      %v4672 = vadd.f32 %v3353, %v4634
      %v4673 = vadd.f32 %v3354, %v4633
      %v4674 = vadd.f32 %v3355, %v4632
      %v4675 = vadd.f32 %v3356, %v4631
      %v4676 = vadd.f32 %v3357, %v4630
      %v4677 = vadd.f32 %v3358, %v4629
      %v4678 = vadd.f32 %v3359, %v4628
      %v4679 = vadd.f32 %v3360, %v4627
      %v4680 = vadd.f32 %v3361, %v4626
      %v4681 = vadd.f32 %v3362, %v4625
      %v4682 = vadd.f32 %v3363, %v4624
      %v4683 = vadd.f32 %v3364, %v4623
      %v4684 = vadd.f32 %v3365, %v4622
      %v4685 = vadd.f32 %v3366, %v4621
      %v4686 = vadd.f32 %v3367, %v4620
      %v4687 = vadd.f32 %v3368, %v4619
      %v4688 = vadd.f32 %v3369, %v4618
      %v4689 = vadd.f32 %v3370, %v4617
      %v4690 = vadd.f32 %v3371, %v4616
      %v4691 = vadd.f32 %v3372, %v4615
      %v4692 = vadd.f32 %v3373, %v4614
      %v4693 = vadd.f32 %v3374, %v4613
      %v4694 = vadd.f32 %v3375, %v4612
      %v4695 = vadd.f32 %v3376, %v4611
      %v4696 = vadd.f32 %v3377, %v4610
      %v4697 = vadd.f32 %v3378, %v4609
      %v4698 = vadd.f32 %v3379, %v4608
      %v4699 = vadd.f32 %v3380, %v4607
      %v4700 = vadd.f32 %v3381, %v4606
      %v4701 = vadd.f32 %v3382, %v4605
      %v4702 = vadd.f32 %v3383, %v4604
      %v4703 = vadd.f32 %v3384, %v4603
      %v4704 = vadd.f32 %v3385, %v4602
      %v4705 = vadd.f32 %v3386, %v4601
      %v4706 = vadd.f32 %v3387, %v4600
      %v4707 = vadd.f32 %v3388, %v4599
      %v4708 = vadd.f32 %v3389, %v4598
      %v4709 = vadd.f32 %v3390, %v4597
      %v4710 = vadd.f32 %v3391, %v4596
      %v4711 = vadd.f32 %v3392, %v4595
      %v4712 = vadd.f32 %v3393, %v4594
      %v4713 = vadd.f32 %v3394, %v4593
      %v4714 = vadd.f32 %v3395, %v4592
      %v4715 = vadd.f32 %v3396, %v4591
      %v4716 = vadd.f32 %v3397, %v4590
      %v4717 = vadd.f32 %v3398, %v4653
      %v4718 = vadd.s32 %v3269, 8
      %v4719 = vadd.s32 %v3269, 16
      %v4720 = vadd.s32 %v3269, 24
      %vm4721 = vcmp.ge.s32.totalorder %v3269, 0
      %vm4722 = vcmp.ge.s32.totalorder %v4718, 0
      %vm4723 = vcmp.ge.s32.totalorder %v4719, 0
      %vm4724 = vcmp.ge.s32.totalorder %v4720, 0
      %vm4725 = vcmp.lt.s32.totalorder %v3269, 16
      %vm4726 = vcmp.lt.s32.totalorder %v4718, 16
      %vm4727 = vcmp.lt.s32.totalorder %v4719, 16
      %vm4728 = vcmp.lt.s32.totalorder %v4720, 16
      %vm4729 = vmand %vm4721, %vm4725
      %vm4730 = vmand %vm4722, %vm4726
      %vm4731 = vmand %vm4723, %vm4727
      %vm4732 = vmand %vm4724, %vm4728
      %v4733 = vsel %vm4729, %v4654, 0.0
      %v4734 = vsel %vm4730, %v4655, 0.0
      %v4735 = vsel %vm4731, %v4656, 0.0
      %v4736 = vsel %vm4732, %v4657, 0.0
      %v4737 = vsel %vm4729, %v4658, 0.0
      %v4738 = vsel %vm4730, %v4659, 0.0
      %v4739 = vsel %vm4731, %v4660, 0.0
      %v4740 = vsel %vm4732, %v4661, 0.0
      %v4741 = vsel %vm4729, %v4662, 0.0
      %v4742 = vsel %vm4730, %v4663, 0.0
      %v4743 = vsel %vm4731, %v4664, 0.0
      %v4744 = vsel %vm4732, %v4665, 0.0
      %v4745 = vsel %vm4729, %v4666, 0.0
      %v4746 = vsel %vm4730, %v4667, 0.0
      %v4747 = vsel %vm4731, %v4668, 0.0
      %v4748 = vsel %vm4732, %v4669, 0.0
      %v4749 = vsel %vm4729, %v4670, 0.0
      %v4750 = vsel %vm4730, %v4671, 0.0
      %v4751 = vsel %vm4731, %v4672, 0.0
      %v4752 = vsel %vm4732, %v4673, 0.0
      %v4753 = vsel %vm4729, %v4674, 0.0
      %v4754 = vsel %vm4730, %v4675, 0.0
      %v4755 = vsel %vm4731, %v4676, 0.0
      %v4756 = vsel %vm4732, %v4677, 0.0
      %v4757 = vsel %vm4729, %v4678, 0.0
      %v4758 = vsel %vm4730, %v4679, 0.0
      %v4759 = vsel %vm4731, %v4680, 0.0
      %v4760 = vsel %vm4732, %v4681, 0.0
      %v4761 = vsel %vm4729, %v4682, 0.0
      %v4762 = vsel %vm4730, %v4683, 0.0
      %v4763 = vsel %vm4731, %v4684, 0.0
      %v4764 = vsel %vm4732, %v4685, 0.0
      %v4765 = vsel %vm4729, %v4686, 0.0
      %v4766 = vsel %vm4730, %v4687, 0.0
      %v4767 = vsel %vm4731, %v4688, 0.0
      %v4768 = vsel %vm4732, %v4689, 0.0
      %v4769 = vsel %vm4729, %v4690, 0.0
      %v4770 = vsel %vm4730, %v4691, 0.0
      %v4771 = vsel %vm4731, %v4692, 0.0
      %v4772 = vsel %vm4732, %v4693, 0.0
      %v4773 = vsel %vm4729, %v4694, 0.0
      %v4774 = vsel %vm4730, %v4695, 0.0
      %v4775 = vsel %vm4731, %v4696, 0.0
      %v4776 = vsel %vm4732, %v4697, 0.0
      %v4777 = vsel %vm4729, %v4698, 0.0
      %v4778 = vsel %vm4730, %v4699, 0.0
      %v4779 = vsel %vm4731, %v4700, 0.0
      %v4780 = vsel %vm4732, %v4701, 0.0
      %v4781 = vsel %vm4729, %v4702, 0.0
      %v4782 = vsel %vm4730, %v4703, 0.0
      %v4783 = vsel %vm4731, %v4704, 0.0
      %v4784 = vsel %vm4732, %v4705, 0.0
      %v4785 = vsel %vm4729, %v4706, 0.0
      %v4786 = vsel %vm4730, %v4707, 0.0
      %v4787 = vsel %vm4731, %v4708, 0.0
      %v4788 = vsel %vm4732, %v4709, 0.0
      %v4789 = vsel %vm4729, %v4710, 0.0
      %v4790 = vsel %vm4730, %v4711, 0.0
      %v4791 = vsel %vm4731, %v4712, 0.0
      %v4792 = vsel %vm4732, %v4713, 0.0
      %v4793 = vsel %vm4729, %v4714, 0.0
      %v4794 = vsel %vm4730, %v4715, 0.0
      %v4795 = vsel %vm4731, %v4716, 0.0
      %v4796 = vsel %vm4732, %v4717, 0.0
      %v4797 = vadd.f32 %v4733, %v4734
      %v4798 = vadd.f32 %v4797, %v4735
      %v4799 = vadd.f32 %v4798, %v4736
      %v4800 = vadd.f32 %v4799, %v4737
      %v4801 = vadd.f32 %v4800, %v4738
      %v4802 = vadd.f32 %v4801, %v4739
      %v4803 = vadd.f32 %v4802, %v4740
      %v4804 = vadd.f32 %v4803, %v4741
      %v4805 = vadd.f32 %v4804, %v4742
      %v4806 = vadd.f32 %v4805, %v4743
      %v4807 = vadd.f32 %v4806, %v4744
      %v4808 = vadd.f32 %v4807, %v4745
      %v4809 = vadd.f32 %v4808, %v4746
      %v4810 = vadd.f32 %v4809, %v4747
      %v4811 = vadd.f32 %v4810, %v4748
      %v4812 = vadd.f32 %v4811, %v4749
      %v4813 = vadd.f32 %v4812, %v4750
      %v4814 = vadd.f32 %v4813, %v4751
      %v4815 = vadd.f32 %v4814, %v4752
      %v4816 = vadd.f32 %v4815, %v4753
      %v4817 = vadd.f32 %v4816, %v4754
      %v4818 = vadd.f32 %v4817, %v4755
      %v4819 = vadd.f32 %v4818, %v4756
      %v4820 = vadd.f32 %v4819, %v4757
      %v4821 = vadd.f32 %v4820, %v4758
      %v4822 = vadd.f32 %v4821, %v4759
      %v4823 = vadd.f32 %v4822, %v4760
      %v4824 = vadd.f32 %v4823, %v4761
      %v4825 = vadd.f32 %v4824, %v4762
      %v4826 = vadd.f32 %v4825, %v4763
      %v4827 = vadd.f32 %v4826, %v4764
      %v4828 = vadd.f32 %v4827, %v4765
      %v4829 = vadd.f32 %v4828, %v4766
      %v4830 = vadd.f32 %v4829, %v4767
      %v4831 = vadd.f32 %v4830, %v4768
      %v4832 = vadd.f32 %v4831, %v4769
      %v4833 = vadd.f32 %v4832, %v4770
      %v4834 = vadd.f32 %v4833, %v4771
      %v4835 = vadd.f32 %v4834, %v4772
      %v4836 = vadd.f32 %v4835, %v4773
      %v4837 = vadd.f32 %v4836, %v4774
      %v4838 = vadd.f32 %v4837, %v4775
      %v4839 = vadd.f32 %v4838, %v4776
      %v4840 = vadd.f32 %v4839, %v4777
      %v4841 = vadd.f32 %v4840, %v4778
      %v4842 = vadd.f32 %v4841, %v4779
      %v4843 = vadd.f32 %v4842, %v4780
      %v4844 = vadd.f32 %v4843, %v4781
      %v4845 = vadd.f32 %v4844, %v4782
      %v4846 = vadd.f32 %v4845, %v4783
      %v4847 = vadd.f32 %v4846, %v4784
      %v4848 = vadd.f32 %v4847, %v4785
      %v4849 = vadd.f32 %v4848, %v4786
      %v4850 = vadd.f32 %v4849, %v4787
      %v4851 = vadd.f32 %v4850, %v4788
      %v4852 = vadd.f32 %v4851, %v4789
      %v4853 = vadd.f32 %v4852, %v4790
      %v4854 = vadd.f32 %v4853, %v4791
      %v4855 = vadd.f32 %v4854, %v4792
      %v4856 = vadd.f32 %v4855, %v4793
      %v4857 = vadd.f32 %v4856, %v4794
      %v4858 = vadd.f32 %v4857, %v4795
      %v4859 = vadd.f32 %v4858, %v4796
      %v4860 = vrot.slane %v4859, 4
      %v4861 = vadd.f32 %v4859, %v4860
      %v4862 = vrot.slane %v4861, 2
      %v4863 = vadd.f32 %v4861, %v4862
      %v4864 = vrot.slane %v4863, 1
      %v4865 = vadd.f32 %v4863, %v4864
      %4866 = vst [vmem:[%s181] sm:$0x1] %v4865
      %v4867 = vmul.f32 %v4733, %v4733
      %v4868 = vmul.f32 %v4734, %v4734
      %v4869 = vmul.f32 %v4735, %v4735
      %v4870 = vmul.f32 %v4736, %v4736
      %v4871 = vmul.f32 %v4737, %v4737
      %v4872 = vmul.f32 %v4738, %v4738
      %v4873 = vmul.f32 %v4739, %v4739
      %v4874 = vmul.f32 %v4740, %v4740
      %v4875 = vmul.f32 %v4741, %v4741
      %v4876 = vmul.f32 %v4742, %v4742
      %v4877 = vmul.f32 %v4743, %v4743
      %v4878 = vmul.f32 %v4744, %v4744
      %v4879 = vmul.f32 %v4745, %v4745
      %v4880 = vmul.f32 %v4746, %v4746
      %v4881 = vmul.f32 %v4747, %v4747
      %v4882 = vmul.f32 %v4748, %v4748
      %v4883 = vmul.f32 %v4749, %v4749
      %v4884 = vmul.f32 %v4750, %v4750
      %v4885 = vmul.f32 %v4751, %v4751
      %v4886 = vmul.f32 %v4752, %v4752
      %v4887 = vmul.f32 %v4753, %v4753
      %v4888 = vmul.f32 %v4754, %v4754
      %v4889 = vmul.f32 %v4755, %v4755
      %v4890 = vmul.f32 %v4756, %v4756
      %v4891 = vmul.f32 %v4757, %v4757
      %v4892 = vmul.f32 %v4758, %v4758
      %v4893 = vmul.f32 %v4759, %v4759
      %v4894 = vmul.f32 %v4760, %v4760
      %v4895 = vmul.f32 %v4761, %v4761
      %v4896 = vmul.f32 %v4762, %v4762
      %v4897 = vmul.f32 %v4763, %v4763
      %v4898 = vmul.f32 %v4764, %v4764
      %v4899 = vmul.f32 %v4765, %v4765
      %v4900 = vmul.f32 %v4766, %v4766
      %v4901 = vmul.f32 %v4767, %v4767
      %v4902 = vmul.f32 %v4768, %v4768
      %v4903 = vmul.f32 %v4769, %v4769
      %v4904 = vmul.f32 %v4770, %v4770
      %v4905 = vmul.f32 %v4771, %v4771
      %v4906 = vmul.f32 %v4772, %v4772
      %v4907 = vmul.f32 %v4773, %v4773
      %v4908 = vmul.f32 %v4774, %v4774
      %v4909 = vmul.f32 %v4775, %v4775
      %v4910 = vmul.f32 %v4776, %v4776
      %v4911 = vmul.f32 %v4777, %v4777
      %v4912 = vmul.f32 %v4778, %v4778
      %v4913 = vmul.f32 %v4779, %v4779
      %v4914 = vmul.f32 %v4780, %v4780
      %v4915 = vmul.f32 %v4781, %v4781
      %v4916 = vmul.f32 %v4782, %v4782
      %v4917 = vmul.f32 %v4783, %v4783
      %v4918 = vmul.f32 %v4784, %v4784
      %v4919 = vmul.f32 %v4785, %v4785
      %v4920 = vmul.f32 %v4786, %v4786
      %v4921 = vmul.f32 %v4787, %v4787
      %v4922 = vmul.f32 %v4788, %v4788
      %v4923 = vmul.f32 %v4789, %v4789
      %v4924 = vmul.f32 %v4790, %v4790
      %v4925 = vmul.f32 %v4791, %v4791
      %v4926 = vmul.f32 %v4792, %v4792
      %v4927 = vmul.f32 %v4793, %v4793
      %v4928 = vmul.f32 %v4794, %v4794
      %v4929 = vmul.f32 %v4795, %v4795
      %v4930 = vmul.f32 %v4796, %v4796
      %v4931 = vadd.f32 %v4867, %v4868
      %v4932 = vadd.f32 %v4931, %v4869
      %v4933 = vadd.f32 %v4932, %v4870
      %v4934 = vadd.f32 %v4933, %v4871
      %v4935 = vadd.f32 %v4934, %v4872
      %v4936 = vadd.f32 %v4935, %v4873
      %v4937 = vadd.f32 %v4936, %v4874
      %v4938 = vadd.f32 %v4937, %v4875
      %v4939 = vadd.f32 %v4938, %v4876
      %v4940 = vadd.f32 %v4939, %v4877
      %v4941 = vadd.f32 %v4940, %v4878
      %v4942 = vadd.f32 %v4941, %v4879
      %v4943 = vadd.f32 %v4942, %v4880
      %v4944 = vadd.f32 %v4943, %v4881
      %v4945 = vadd.f32 %v4944, %v4882
      %v4946 = vadd.f32 %v4945, %v4883
      %v4947 = vadd.f32 %v4946, %v4884
      %v4948 = vadd.f32 %v4947, %v4885
      %v4949 = vadd.f32 %v4948, %v4886
      %v4950 = vadd.f32 %v4949, %v4887
      %v4951 = vadd.f32 %v4950, %v4888
      %v4952 = vadd.f32 %v4951, %v4889
      %v4953 = vadd.f32 %v4952, %v4890
      %v4954 = vadd.f32 %v4953, %v4891
      %v4955 = vadd.f32 %v4954, %v4892
      %v4956 = vadd.f32 %v4955, %v4893
      %v4957 = vadd.f32 %v4956, %v4894
      %v4958 = vadd.f32 %v4957, %v4895
      %v4959 = vadd.f32 %v4958, %v4896
      %v4960 = vadd.f32 %v4959, %v4897
      %v4961 = vadd.f32 %v4960, %v4898
      %v4962 = vadd.f32 %v4961, %v4899
      %v4963 = vadd.f32 %v4962, %v4900
      %v4964 = vadd.f32 %v4963, %v4901
      %v4965 = vadd.f32 %v4964, %v4902
      %v4966 = vadd.f32 %v4965, %v4903
      %v4967 = vadd.f32 %v4966, %v4904
      %v4968 = vadd.f32 %v4967, %v4905
      %v4969 = vadd.f32 %v4968, %v4906
      %v4970 = vadd.f32 %v4969, %v4907
      %v4971 = vadd.f32 %v4970, %v4908
      %v4972 = vadd.f32 %v4971, %v4909
      %v4973 = vadd.f32 %v4972, %v4910
      %v4974 = vadd.f32 %v4973, %v4911
      %v4975 = vadd.f32 %v4974, %v4912
      %v4976 = vadd.f32 %v4975, %v4913
      %v4977 = vadd.f32 %v4976, %v4914
      %v4978 = vadd.f32 %v4977, %v4915
      %v4979 = vadd.f32 %v4978, %v4916
      %v4980 = vadd.f32 %v4979, %v4917
      %v4981 = vadd.f32 %v4980, %v4918
      %v4982 = vadd.f32 %v4981, %v4919
      %v4983 = vadd.f32 %v4982, %v4920
      %v4984 = vadd.f32 %v4983, %v4921
      %v4985 = vadd.f32 %v4984, %v4922
      %v4986 = vadd.f32 %v4985, %v4923
      %v4987 = vadd.f32 %v4986, %v4924
      %v4988 = vadd.f32 %v4987, %v4925
      %v4989 = vadd.f32 %v4988, %v4926
      %v4990 = vadd.f32 %v4989, %v4927
      %v4991 = vadd.f32 %v4990, %v4928
      %v4992 = vadd.f32 %v4991, %v4929
      %v4993 = vadd.f32 %v4992, %v4930
      %v4994 = vrot.slane %v4993, 4
      %v4995 = vadd.f32 %v4993, %v4994
      %v4996 = vrot.slane %v4995, 2
      %v4997 = vadd.f32 %v4995, %v4996
      %v4998 = vrot.slane %v4997, 1
      %v4999 = vadd.f32 %v4997, %v4998
      %5000 = vst [vmem:[%s181 + $0x1] sm:$0x1] %v4999
      %5001 = vst [vmem:[%s177] sm:$0xff] %v4733
      %5002 = vst [vmem:[%s177 + $0x8] sm:$0xff] %v4734
      %5003 = vst [vmem:[%s177 + $0x10] sm:$0xff] %v4735
      %5004 = vst [vmem:[%s177 + $0x18] sm:$0xff] %v4736
      %5005 = vst [vmem:[%s177 + $0x20] sm:$0xff] %v4737
      %5006 = vst [vmem:[%s177 + $0x28] sm:$0xff] %v4738
      %5007 = vst [vmem:[%s177 + $0x30] sm:$0xff] %v4739
      %5008 = vst [vmem:[%s177 + $0x38] sm:$0xff] %v4740
      %5009 = vst [vmem:[%s177 + $0x40] sm:$0xff] %v4741
      %5010 = vst [vmem:[%s177 + $0x48] sm:$0xff] %v4742
      %5011 = vst [vmem:[%s177 + $0x50] sm:$0xff] %v4743
      %5012 = vst [vmem:[%s177 + $0x58] sm:$0xff] %v4744
      %5013 = vst [vmem:[%s177 + $0x60] sm:$0xff] %v4745
      %5014 = vst [vmem:[%s177 + $0x68] sm:$0xff] %v4746
      %5015 = vst [vmem:[%s177 + $0x70] sm:$0xff] %v4747
      %5016 = vst [vmem:[%s177 + $0x78] sm:$0xff] %v4748
      %5017 = vst [vmem:[%s177 + $0x80] sm:$0xff] %v4749
      %5018 = vst [vmem:[%s177 + $0x88] sm:$0xff] %v4750
      %5019 = vst [vmem:[%s177 + $0x90] sm:$0xff] %v4751
      %5020 = vst [vmem:[%s177 + $0x98] sm:$0xff] %v4752
      %5021 = vst [vmem:[%s177 + $0xa0] sm:$0xff] %v4753
      %5022 = vst [vmem:[%s177 + $0xa8] sm:$0xff] %v4754
      %5023 = vst [vmem:[%s177 + $0xb0] sm:$0xff] %v4755
      %5024 = vst [vmem:[%s177 + $0xb8] sm:$0xff] %v4756
      %5025 = vst [vmem:[%s177 + $0xc0] sm:$0xff] %v4757
      %5026 = vst [vmem:[%s177 + $0xc8] sm:$0xff] %v4758
      %5027 = vst [vmem:[%s177 + $0xd0] sm:$0xff] %v4759
      %5028 = vst [vmem:[%s177 + $0xd8] sm:$0xff] %v4760
      %5029 = vst [vmem:[%s177 + $0xe0] sm:$0xff] %v4761
      %5030 = vst [vmem:[%s177 + $0xe8] sm:$0xff] %v4762
      %5031 = vst [vmem:[%s177 + $0xf0] sm:$0xff] %v4763
      %5032 = vst [vmem:[%s177 + $0xf8] sm:$0xff] %v4764
      %5033 = vst [vmem:[%s177 + $0x100] sm:$0xff] %v4765
      %5034 = vst [vmem:[%s177 + $0x108] sm:$0xff] %v4766
      %5035 = vst [vmem:[%s177 + $0x110] sm:$0xff] %v4767
      %5036 = vst [vmem:[%s177 + $0x118] sm:$0xff] %v4768
      %5037 = vst [vmem:[%s177 + $0x120] sm:$0xff] %v4769
      %5038 = vst [vmem:[%s177 + $0x128] sm:$0xff] %v4770
      %5039 = vst [vmem:[%s177 + $0x130] sm:$0xff] %v4771
      %5040 = vst [vmem:[%s177 + $0x138] sm:$0xff] %v4772
      %5041 = vst [vmem:[%s177 + $0x140] sm:$0xff] %v4773
      %5042 = vst [vmem:[%s177 + $0x148] sm:$0xff] %v4774
      %5043 = vst [vmem:[%s177 + $0x150] sm:$0xff] %v4775
      %5044 = vst [vmem:[%s177 + $0x158] sm:$0xff] %v4776
      %5045 = vst [vmem:[%s177 + $0x160] sm:$0xff] %v4777
      %5046 = vst [vmem:[%s177 + $0x168] sm:$0xff] %v4778
      %5047 = vst [vmem:[%s177 + $0x170] sm:$0xff] %v4779
      %5048 = vst [vmem:[%s177 + $0x178] sm:$0xff] %v4780
      %5049 = vst [vmem:[%s177 + $0x180] sm:$0xff] %v4781
      %5050 = vst [vmem:[%s177 + $0x188] sm:$0xff] %v4782
      %5051 = vst [vmem:[%s177 + $0x190] sm:$0xff] %v4783
      %5052 = vst [vmem:[%s177 + $0x198] sm:$0xff] %v4784
      %5053 = vst [vmem:[%s177 + $0x1a0] sm:$0xff] %v4785
      %5054 = vst [vmem:[%s177 + $0x1a8] sm:$0xff] %v4786
      %5055 = vst [vmem:[%s177 + $0x1b0] sm:$0xff] %v4787
      %5056 = vst [vmem:[%s177 + $0x1b8] sm:$0xff] %v4788
      %5057 = vst [vmem:[%s177 + $0x1c0] sm:$0xff] %v4789
      %5058 = vst [vmem:[%s177 + $0x1c8] sm:$0xff] %v4790
      %5059 = vst [vmem:[%s177 + $0x1d0] sm:$0xff] %v4791
      %5060 = vst [vmem:[%s177 + $0x1d8] sm:$0xff] %v4792
      %5061 = vst [vmem:[%s177 + $0x1e0] sm:$0xff] %v4793
      %5062 = vst [vmem:[%s177 + $0x1e8] sm:$0xff] %v4794
      %5063 = vst [vmem:[%s177 + $0x1f0] sm:$0xff] %v4795
      %5064 = vst [vmem:[%s177 + $0x1f8] sm:$0xff] %v4796
      %p5065 = scmp.lt.s32.totalorder %s15, 1
      %s5066 = scalar_select %p5065, %s15, 1
      %s5067 = smul.addr %s5066, 64
      %s5068 = smul.addr %s5067, 8
      %s5069 = scalar_lea.vmem %s2, %s5068
      %p5070 = scmp.lt.s32.totalorder %s15, 1
      %s5071 = scalar_select %p5070, %s15, 1
      %s5072 = smul.addr %s5071, 2
      %s5073 = scalar_lea.vmem %s3, %s5072
      // Predicated region
      $region29: #{vgg_block_forward.6} parent=27 // pred_check
        %p5074 = pneg %p80
      $region30: #{vgg_block_forward.6} parent=27 // pred_check_branch
        %5076 = sbr.rel (%p5074) target = $region32
      $region31: #{vgg_block_forward.6} parent=27 // pred_region
        _
      $region32: #{vgg_block_forward.6} parent=27 // pred_fallthru
        _
      // Predicated region
      $region33: #{vgg_block_forward.6} parent=27 // pred_check
        %p5077 = pneg %p106
      $region34: #{vgg_block_forward.6} parent=27 // pred_check_branch
        %5079 = sbr.rel (%p5077) target = $region36
      $region35: #{vgg_block_forward.6} parent=27 // pred_region
        _
      $region36: #{vgg_block_forward.6} parent=27 // pred_fallthru
        _
    $region28: #{vgg_block_forward.6} parent=5 // pred_fallthru
      _
    %p5080 = scmp.le.s32.totalorder 2, %s10
    // Predicated region
    $region37: #{vgg_block_forward.6} parent=5 // pred_check
      %p5081 = pneg %p5080
    $region38: #{vgg_block_forward.6} parent=5 // pred_check_branch
      %5083 = sbr.rel (%p5081) target = $region40
    $region39: #{vgg_block_forward.6} parent=5 // pred_region
      %s5084 = ssub.s32 %s10, 2
      // Predicated region
      $region41: #{vgg_block_forward.6} parent=39 // pred_check
        %p5085 = pneg %p86
      $region42: #{vgg_block_forward.6} parent=39 // pred_check_branch
        %5087 = sbr.rel (%p5085) target = $region44
      $region43: #{vgg_block_forward.6} parent=39 // pred_region
        %p5088 = scmp.lt.s32.totalorder %s16, 1
        %s5089 = scalar_select %p5088, %s16, 1
        %s5090 = smul.addr %s5089, 64
        %s5091 = smul.addr %s5090, 8
        %s5092 = scalar_lea.vmem %s2, %s5091
      $region44: #{vgg_block_forward.6} parent=39 // pred_fallthru
        _
      // Predicated region
      $region45: #{vgg_block_forward.6} parent=39 // pred_check
        %p5093 = pneg %p112
      $region46: #{vgg_block_forward.6} parent=39 // pred_check_branch
        %5095 = sbr.rel (%p5093) target = $region48
      $region47: #{vgg_block_forward.6} parent=39 // pred_region
        %p5096 = scmp.lt.s32.totalorder %s16, 1
        %s5097 = scalar_select %p5096, %s16, 1
        %s5098 = smul.addr %s5097, 2
        %s5099 = scalar_lea.vmem %s3, %s5098
      $region48: #{vgg_block_forward.6} parent=39 // pred_fallthru
        _
    $region40: #{vgg_block_forward.6} parent=5 // pred_fallthru
      _
  $region6: #{vgg_block_forward.6} parent=0 // loop_footer
    %s14 = sadd.s32 1, %s10
  $region7: #{vgg_block_forward.6} parent=0 // loop_footer_branch
    %9 = sbr.rel target = $region3
  $region8: #{vgg_block_forward.6} parent=0 // loop_exit
    _

// kernel: vgg_block_forward.4
$region0: #{vgg_block_forward.4}
  #allocation0 [shape = 'u32[]', space=smem, size = 0x4, offset = 0x4, fixed_abs, tag = 'smem constant byte address 0x4 - core index']
  #allocation1 [shape = 'u32[144,128]{1,0:T(1,128)}', space=vmem, size = 0x12000, scoped, tag = 'internal scratch']
  #allocation2 [shape = 'bf16[18,32,128]{2,1,0:T(8,128)(2,1)}', space=vmem, size = 0x24000, scoped, tag = 'scratch operand']
  %s0 = inlined_call_operand.vmem [shape: bf16[2,18,32,4], index: 0, kind: input, shape index: {}]
  %s1 = inlined_call_operand.vmem [shape: bf16[9,128,128], index: 1, kind: input, shape index: {}]
  %s2 = inlined_call_operand.vmem [shape: f32[2,18,32,128], index: 2, kind: output, shape index: {0}]
  %s3 = inlined_call_operand.vmem [shape: f32[2,2,128], index: 3, kind: output, shape index: {1}]
  %4 = xla_tuple %s2, %s3
  %s5 = sld [smem:[#allocation0]]
  $region49: #{vgg_block_forward.4} parent=0
    _
  %s7 = ssub.s32 1, %s5
  %s8 = scalar_select 0, %s7, %s5
  loop: start=0, step=1, limit=4
  $region2: #{vgg_block_forward.4} parent=0 // loop_pre_header
    _
  $region3: #{vgg_block_forward.4} parent=0 // loop_header
    %s10 = sphi 0, %s14
    %p11 = scmp.ge.s32.totalorder %s10, 4
    %s20 = sphi 0, %s22
    %s23 = sphi 0, %s20
    %s24 = sphi 0, %s23
    %s40 = sphi 0, %s24
    %s44 = sphi 0, %s44
    %s46 = sphi 0, %s44
    %s47 = sphi 0, %s46
    %s61 = sphi 0, %s47
    %s67 = sphi 0, %s69
    %s70 = sphi 0, %s67
    %s71 = sphi 0, %s70
    %s87 = sphi 0, %s71
    %s93 = sphi 0, %s95
    %s96 = sphi 0, %s93
    %s97 = sphi 0, %s96
    %s113 = sphi 0, %s97
  $region4: #{vgg_block_forward.4} parent=0 // loop_header_branch
    %13 = sbr.rel (%p11) target = $region8
  $region5: #{vgg_block_forward.4} parent=0 // loop_body
    %s15 = ssub.s32 %s10, 1
    %s16 = ssub.s32 %s10, 2
    %s17 = sadd.s32 %s10, 1
    %s18 = ssub.s32 %s10, %s17
    %p19 = scmp.eq.s32.totalorder %s18, 0
    %s21 = sadd.s32 %s20, 1
    %s22 = scalar_select %p19, %s20, %s21
    %p25 = pneg %p19
    %p26 = scmp.eq.s32.totalorder %s10, 1
    %p27 = por %p25, %p26
    %p28 = scmp.ne.s32.totalorder %s20, %s23
    %p29 = scmp.eq.s32.totalorder %s10, 0
    %p30 = por %p28, %p29
    %p31 = scmp.ne.s32.totalorder %s20, %s23
    %p32 = scmp.eq.s32.totalorder %s15, 1
    %p33 = por %p31, %p32
    %p34 = scmp.ne.s32.totalorder %s23, %s24
    %p35 = scmp.eq.s32.totalorder %s15, 0
    %p36 = por %p34, %p35
    %p37 = scmp.ne.s32.totalorder %s23, %s24
    %p38 = scmp.eq.s32.totalorder %s16, 1
    %p39 = por %p37, %p38
    %p41 = scmp.ne.s32.totalorder %s24, %s40
    %p42 = scmp.eq.s32.totalorder %s16, 0
    %p43 = por %p41, %p42
    %s45 = sadd.s32 %s44, 1
    %p48 = scmp.eq.s32.totalorder %s10, 1
    %p49 = scmp.ne.s32.totalorder %s44, %s46
    %p50 = scmp.eq.s32.totalorder %s10, 0
    %p51 = por %p49, %p50
    %p52 = scmp.ne.s32.totalorder %s44, %s46
    %p53 = scmp.eq.s32.totalorder %s15, 1
    %p54 = por %p52, %p53
    %p55 = scmp.ne.s32.totalorder %s46, %s47
    %p56 = scmp.eq.s32.totalorder %s15, 0
    %p57 = por %p55, %p56
    %p58 = scmp.ne.s32.totalorder %s46, %s47
    %p59 = scmp.eq.s32.totalorder %s16, 1
    %p60 = por %p58, %p59
    %p62 = scmp.ne.s32.totalorder %s47, %s61
    %p63 = scmp.eq.s32.totalorder %s16, 0
    %p64 = por %p62, %p63
    %s65 = ssub.s32 %s10, %s17
    %p66 = scmp.eq.s32.totalorder %s65, 0
    %s68 = sadd.s32 %s67, 1
    %s69 = scalar_select %p66, %s67, %s68
    %p72 = pneg %p66
    %p73 = scmp.eq.s32.totalorder %s10, 1
    %p74 = por %p72, %p73
    %p75 = scmp.ne.s32.totalorder %s67, %s70
    %p76 = scmp.eq.s32.totalorder %s10, 0
    %p77 = por %p75, %p76
    %p78 = scmp.ne.s32.totalorder %s67, %s70
    %p79 = scmp.eq.s32.totalorder %s15, 1
    %p80 = por %p78, %p79
    %p81 = scmp.ne.s32.totalorder %s70, %s71
    %p82 = scmp.eq.s32.totalorder %s15, 0
    %p83 = por %p81, %p82
    %p84 = scmp.ne.s32.totalorder %s70, %s71
    %p85 = scmp.eq.s32.totalorder %s16, 1
    %p86 = por %p84, %p85
    %p88 = scmp.ne.s32.totalorder %s71, %s87
    %p89 = scmp.eq.s32.totalorder %s16, 0
    %p90 = por %p88, %p89
    %s91 = ssub.s32 %s10, %s17
    %p92 = scmp.eq.s32.totalorder %s91, 0
    %s94 = sadd.s32 %s93, 1
    %s95 = scalar_select %p92, %s93, %s94
    %p98 = pneg %p92
    %p99 = scmp.eq.s32.totalorder %s10, 1
    %p100 = por %p98, %p99
    %p101 = scmp.ne.s32.totalorder %s93, %s96
    %p102 = scmp.eq.s32.totalorder %s10, 0
    %p103 = por %p101, %p102
    %p104 = scmp.ne.s32.totalorder %s93, %s96
    %p105 = scmp.eq.s32.totalorder %s15, 1
    %p106 = por %p104, %p105
    %p107 = scmp.ne.s32.totalorder %s96, %s97
    %p108 = scmp.eq.s32.totalorder %s15, 0
    %p109 = por %p107, %p108
    %p110 = scmp.ne.s32.totalorder %s96, %s97
    %p111 = scmp.eq.s32.totalorder %s16, 1
    %p112 = por %p110, %p111
    %p114 = scmp.ne.s32.totalorder %s97, %s113
    %p115 = scmp.eq.s32.totalorder %s16, 0
    %p116 = por %p114, %p115
    %p117 = scmp.le.s32.totalorder 1, %s10
    %p118 = scmp.lt.s32.totalorder %s10, 3
    %p119 = pnand %p117, %p118
    %p120 = pneg %p119
    // Predicated region
    $region9: #{vgg_block_forward.4} parent=5 // pred_check
      _
    $region10: #{vgg_block_forward.4} parent=5 // pred_check_branch
      %122 = sbr.rel (%p119) target = $region12
    $region11: #{vgg_block_forward.4} parent=5 // pred_region
      %s123 = ssub.s32 %s10, 1
      // Predicated region
      $region13: #{vgg_block_forward.4} parent=11 // pred_check
        %p124 = pneg %p57
      $region14: #{vgg_block_forward.4} parent=11 // pred_check_branch
        %126 = sbr.rel (%p124) target = $region16
      $region15: #{vgg_block_forward.4} parent=11 // pred_region
        _
      $region16: #{vgg_block_forward.4} parent=11 // pred_fallthru
        _
    $region12: #{vgg_block_forward.4} parent=5 // pred_fallthru
      _
    %p127 = scmp.lt.s32.totalorder %s10, 2
    // Predicated region
    $region17: #{vgg_block_forward.4} parent=5 // pred_check
      %p128 = pneg %p127
    $region18: #{vgg_block_forward.4} parent=5 // pred_check_branch
      %130 = sbr.rel (%p128) target = $region20
    $region19: #{vgg_block_forward.4} parent=5 // pred_region
      // Predicated region
      $region21: #{vgg_block_forward.4} parent=19 // pred_check
        %p131 = pneg %p30
      $region22: #{vgg_block_forward.4} parent=19 // pred_check_branch
        %133 = sbr.rel (%p131) target = $region24
      $region23: #{vgg_block_forward.4} parent=19 // pred_region
        %p134 = scmp.lt.s32.totalorder %s10, 1
        %s135 = scalar_select %p134, %s10, 1
        %s136 = smul.addr %s135, 72
        %s137 = smul.addr %s136, 4
        %s138 = scalar_lea.vmem %s0, %s137
      $region24: #{vgg_block_forward.4} parent=19 // pred_fallthru
        _
    $region20: #{vgg_block_forward.4} parent=5 // pred_fallthru
      _
    %p139 = scmp.le.s32.totalorder 1, %s10
    %p140 = scmp.lt.s32.totalorder %s10, 3
    %p141 = pnand %p139, %p140
    %p142 = pneg %p141
    // Predicated region
    $region25: #{vgg_block_forward.4} parent=5 // pred_check
      _
    $region26: #{vgg_block_forward.4} parent=5 // pred_check_branch
      %144 = sbr.rel (%p141) target = $region28
    $region27: #{vgg_block_forward.4} parent=5 // pred_region
      %s145 = ssub.s32 %s10, 1
      %p146 = scmp.lt.s32.totalorder %s15, 1
      %s147 = scalar_select %p146, %s15, 1
      %s148 = smul.addr %s147, 72
      %s149 = smul.addr %s148, 4
      %s150 = scalar_lea.vmem %s0, %s149
      %p151 = pneg %p36
      %p152 = pneg %p33
      %p153 = pneg %p57
      %p154 = pneg %p54
      %p155 = pneg %p83
      %p156 = pneg %p80
      %p157 = scmp.lt.s32.totalorder %s15, 1
      %s158 = scalar_select %p157, %s15, 1
      %s159 = smul.addr %s158, 72
      %s160 = smul.addr %s159, 8
      %s161 = scalar_lea.vmem %s2, %s160
      %p162 = pneg %p109
      %p163 = pneg %p106
      %p164 = scmp.lt.s32.totalorder %s15, 1
      %s165 = scalar_select %p164, %s15, 1
      %s166 = smul.addr %s165, 2
      %s167 = scalar_lea.vmem %s3, %s166
      %p168 = scmp.lt.s32.totalorder %s15, 1
      %s169 = scalar_select %p168, %s15, 1
      %s170 = smul.addr %s169, 72
      %s171 = smul.addr %s170, 4
      %s172 = scalar_lea.vmem %s0, %s171
      %p173 = scmp.lt.s32.totalorder %s15, 1
      %s174 = scalar_select %p173, %s15, 1
      %s175 = smul.addr %s174, 72
      %s176 = smul.addr %s175, 8
      %s177 = scalar_lea.vmem %s2, %s176
      %p178 = scmp.lt.s32.totalorder %s15, 1
      %s179 = scalar_select %p178, %s15, 1
      %s180 = smul.addr %s179, 2
      %s181 = scalar_lea.vmem %s3, %s180
      %183 = vst [vmem:[#allocation2] sm:$0xf] 0
      %184 = vst [vmem:[#allocation2 + $0x4] sm:$0xf] 0
      %185 = vst [vmem:[#allocation2 + $0x8] sm:$0xf] 0
      %186 = vst [vmem:[#allocation2 + $0xc] sm:$0xf] 0
      %187 = vst [vmem:[#allocation2 + $0x10] sm:$0xf] 0
      %188 = vst [vmem:[#allocation2 + $0x14] sm:$0xf] 0
      %189 = vst [vmem:[#allocation2 + $0x18] sm:$0xf] 0
      %190 = vst [vmem:[#allocation2 + $0x1c] sm:$0xf] 0
      %191 = vst [vmem:[#allocation2 + $0x20] sm:$0xf] 0
      %192 = vst [vmem:[#allocation2 + $0x24] sm:$0xf] 0
      %193 = vst [vmem:[#allocation2 + $0x28] sm:$0xf] 0
      %194 = vst [vmem:[#allocation2 + $0x2c] sm:$0xf] 0
      %195 = vst [vmem:[#allocation2 + $0x30] sm:$0xf] 0
      %196 = vst [vmem:[#allocation2 + $0x34] sm:$0xf] 0
      %197 = vst [vmem:[#allocation2 + $0x38] sm:$0xf] 0
      %198 = vst [vmem:[#allocation2 + $0x3c] sm:$0xf] 0
      %199 = vst [vmem:[#allocation2 + $0x40] sm:$0xf] 0
      %200 = vst [vmem:[#allocation2 + $0x44] sm:$0xf] 0
      %201 = vst [vmem:[#allocation2 + $0x48] sm:$0xf] 0
      %202 = vst [vmem:[#allocation2 + $0x4c] sm:$0xf] 0
      %203 = vst [vmem:[#allocation2 + $0x50] sm:$0xf] 0
      %204 = vst [vmem:[#allocation2 + $0x54] sm:$0xf] 0
      %205 = vst [vmem:[#allocation2 + $0x58] sm:$0xf] 0
      %206 = vst [vmem:[#allocation2 + $0x5c] sm:$0xf] 0
      %207 = vst [vmem:[#allocation2 + $0x60] sm:$0xf] 0
      %208 = vst [vmem:[#allocation2 + $0x64] sm:$0xf] 0
      %209 = vst [vmem:[#allocation2 + $0x68] sm:$0xf] 0
      %210 = vst [vmem:[#allocation2 + $0x6c] sm:$0xf] 0
      %211 = vst [vmem:[#allocation2 + $0x70] sm:$0xf] 0
      %212 = vst [vmem:[#allocation2 + $0x74] sm:$0xf] 0
      %213 = vst [vmem:[#allocation2 + $0x78] sm:$0xf] 0
      %214 = vst [vmem:[#allocation2 + $0x7c] sm:$0xf] 0
      %215 = vst [vmem:[#allocation2 + $0x80] sm:$0xf] 0
      %216 = vst [vmem:[#allocation2 + $0x84] sm:$0xf] 0
      %217 = vst [vmem:[#allocation2 + $0x88] sm:$0xf] 0
      %218 = vst [vmem:[#allocation2 + $0x8c] sm:$0xf] 0
      %219 = vst [vmem:[#allocation2 + $0x90] sm:$0xf] 0
      %220 = vst [vmem:[#allocation2 + $0x94] sm:$0xf] 0
      %221 = vst [vmem:[#allocation2 + $0x98] sm:$0xf] 0
      %222 = vst [vmem:[#allocation2 + $0x9c] sm:$0xf] 0
      %223 = vst [vmem:[#allocation2 + $0xa0] sm:$0xf] 0
      %224 = vst [vmem:[#allocation2 + $0xa4] sm:$0xf] 0
      %225 = vst [vmem:[#allocation2 + $0xa8] sm:$0xf] 0
      %226 = vst [vmem:[#allocation2 + $0xac] sm:$0xf] 0
      %227 = vst [vmem:[#allocation2 + $0xb0] sm:$0xf] 0
      %228 = vst [vmem:[#allocation2 + $0xb4] sm:$0xf] 0
      %229 = vst [vmem:[#allocation2 + $0xb8] sm:$0xf] 0
      %230 = vst [vmem:[#allocation2 + $0xbc] sm:$0xf] 0
      %231 = vst [vmem:[#allocation2 + $0xc0] sm:$0xf] 0
      %232 = vst [vmem:[#allocation2 + $0xc4] sm:$0xf] 0
      %233 = vst [vmem:[#allocation2 + $0xc8] sm:$0xf] 0
      %234 = vst [vmem:[#allocation2 + $0xcc] sm:$0xf] 0
      %235 = vst [vmem:[#allocation2 + $0xd0] sm:$0xf] 0
      %236 = vst [vmem:[#allocation2 + $0xd4] sm:$0xf] 0
      %237 = vst [vmem:[#allocation2 + $0xd8] sm:$0xf] 0
      %238 = vst [vmem:[#allocation2 + $0xdc] sm:$0xf] 0
      %239 = vst [vmem:[#allocation2 + $0xe0] sm:$0xf] 0
      %240 = vst [vmem:[#allocation2 + $0xe4] sm:$0xf] 0
      %241 = vst [vmem:[#allocation2 + $0xe8] sm:$0xf] 0
      %242 = vst [vmem:[#allocation2 + $0xec] sm:$0xf] 0
      %243 = vst [vmem:[#allocation2 + $0xf0] sm:$0xf] 0
      %244 = vst [vmem:[#allocation2 + $0xf4] sm:$0xf] 0
      %245 = vst [vmem:[#allocation2 + $0xf8] sm:$0xf] 0
      %246 = vst [vmem:[#allocation2 + $0xfc] sm:$0xf] 0
      %247 = vst [vmem:[#allocation2 + $0x100] sm:$0xf] 0
      %248 = vst [vmem:[#allocation2 + $0x104] sm:$0xf] 0
      %249 = vst [vmem:[#allocation2 + $0x108] sm:$0xf] 0
      %250 = vst [vmem:[#allocation2 + $0x10c] sm:$0xf] 0
      %251 = vst [vmem:[#allocation2 + $0x110] sm:$0xf] 0
      %252 = vst [vmem:[#allocation2 + $0x114] sm:$0xf] 0
      %253 = vst [vmem:[#allocation2 + $0x118] sm:$0xf] 0
      %254 = vst [vmem:[#allocation2 + $0x11c] sm:$0xf] 0
      %v255 = vld [vmem:[%s172] sm:$0xf]
      %v256 = vld [vmem:[%s172 + $0x4] sm:$0xf]
      %v257 = vld [vmem:[%s172 + $0x8] sm:$0xf]
      %v258 = vld [vmem:[%s172 + $0xc] sm:$0xf]
      %v259 = vld [vmem:[%s172 + $0x10] sm:$0xf]
      %v260 = vld [vmem:[%s172 + $0x14] sm:$0xf]
      %v261 = vld [vmem:[%s172 + $0x18] sm:$0xf]
      %v262 = vld [vmem:[%s172 + $0x1c] sm:$0xf]
      %v263 = vld [vmem:[%s172 + $0x20] sm:$0xf]
      %v264 = vld [vmem:[%s172 + $0x24] sm:$0xf]
      %v265 = vld [vmem:[%s172 + $0x28] sm:$0xf]
      %v266 = vld [vmem:[%s172 + $0x2c] sm:$0xf]
      %v267 = vld [vmem:[%s172 + $0x30] sm:$0xf]
      %v268 = vld [vmem:[%s172 + $0x34] sm:$0xf]
      %v269 = vld [vmem:[%s172 + $0x38] sm:$0xf]
      %v270 = vld [vmem:[%s172 + $0x3c] sm:$0xf]
      %v271 = vld [vmem:[%s172 + $0x40] sm:$0xf]
      %v272 = vld [vmem:[%s172 + $0x44] sm:$0xf]
      %v273 = vld [vmem:[%s172 + $0x48] sm:$0xf]
      %v274 = vld [vmem:[%s172 + $0x4c] sm:$0xf]
      %v275 = vld [vmem:[%s172 + $0x50] sm:$0xf]
      %v276 = vld [vmem:[%s172 + $0x54] sm:$0xf]
      %v277 = vld [vmem:[%s172 + $0x58] sm:$0xf]
      %v278 = vld [vmem:[%s172 + $0x5c] sm:$0xf]
      %v279 = vld [vmem:[%s172 + $0x60] sm:$0xf]
      %v280 = vld [vmem:[%s172 + $0x64] sm:$0xf]
      %v281 = vld [vmem:[%s172 + $0x68] sm:$0xf]
      %v282 = vld [vmem:[%s172 + $0x6c] sm:$0xf]
      %v283 = vld [vmem:[%s172 + $0x70] sm:$0xf]
      %v284 = vld [vmem:[%s172 + $0x74] sm:$0xf]
      %v285 = vld [vmem:[%s172 + $0x78] sm:$0xf]
      %v286 = vld [vmem:[%s172 + $0x7c] sm:$0xf]
      %v287 = vld [vmem:[%s172 + $0x80] sm:$0xf]
      %v288 = vld [vmem:[%s172 + $0x84] sm:$0xf]
      %v289 = vld [vmem:[%s172 + $0x88] sm:$0xf]
      %v290 = vld [vmem:[%s172 + $0x8c] sm:$0xf]
      %v291 = vld [vmem:[%s172 + $0x90] sm:$0xf]
      %v292 = vld [vmem:[%s172 + $0x94] sm:$0xf]
      %v293 = vld [vmem:[%s172 + $0x98] sm:$0xf]
      %v294 = vld [vmem:[%s172 + $0x9c] sm:$0xf]
      %v295 = vld [vmem:[%s172 + $0xa0] sm:$0xf]
      %v296 = vld [vmem:[%s172 + $0xa4] sm:$0xf]
      %v297 = vld [vmem:[%s172 + $0xa8] sm:$0xf]
      %v298 = vld [vmem:[%s172 + $0xac] sm:$0xf]
      %v299 = vld [vmem:[%s172 + $0xb0] sm:$0xf]
      %v300 = vld [vmem:[%s172 + $0xb4] sm:$0xf]
      %v301 = vld [vmem:[%s172 + $0xb8] sm:$0xf]
      %v302 = vld [vmem:[%s172 + $0xbc] sm:$0xf]
      %v303 = vld [vmem:[%s172 + $0xc0] sm:$0xf]
      %v304 = vld [vmem:[%s172 + $0xc4] sm:$0xf]
      %v305 = vld [vmem:[%s172 + $0xc8] sm:$0xf]
      %v306 = vld [vmem:[%s172 + $0xcc] sm:$0xf]
      %v307 = vld [vmem:[%s172 + $0xd0] sm:$0xf]
      %v308 = vld [vmem:[%s172 + $0xd4] sm:$0xf]
      %v309 = vld [vmem:[%s172 + $0xd8] sm:$0xf]
      %v310 = vld [vmem:[%s172 + $0xdc] sm:$0xf]
      %v311 = vld [vmem:[%s172 + $0xe0] sm:$0xf]
      %v312 = vld [vmem:[%s172 + $0xe4] sm:$0xf]
      %v313 = vld [vmem:[%s172 + $0xe8] sm:$0xf]
      %v314 = vld [vmem:[%s172 + $0xec] sm:$0xf]
      %v315 = vld [vmem:[%s172 + $0xf0] sm:$0xf]
      %v316 = vld [vmem:[%s172 + $0xf4] sm:$0xf]
      %v317 = vld [vmem:[%s172 + $0xf8] sm:$0xf]
      %v318 = vld [vmem:[%s172 + $0xfc] sm:$0xf]
      %v319 = vld [vmem:[%s172 + $0x100] sm:$0xf]
      %v320 = vld [vmem:[%s172 + $0x104] sm:$0xf]
      %v321 = vld [vmem:[%s172 + $0x108] sm:$0xf]
      %v322 = vld [vmem:[%s172 + $0x10c] sm:$0xf]
      %v323 = vld [vmem:[%s172 + $0x110] sm:$0xf]
      %v324 = vld [vmem:[%s172 + $0x114] sm:$0xf]
      %v325 = vld [vmem:[%s172 + $0x118] sm:$0xf]
      %v326 = vld [vmem:[%s172 + $0x11c] sm:$0xf]
      %vm327 = vcmask 27648
      %328 = vst.msk [vmem:[#allocation2] sm:$0xf] %vm327, %v255
      %329 = vst.msk [vmem:[#allocation2 + $0x4] sm:$0xf] %vm327, %v256
      %330 = vst.msk [vmem:[#allocation2 + $0x8] sm:$0xf] %vm327, %v257
      %331 = vst.msk [vmem:[#allocation2 + $0xc] sm:$0xf] %vm327, %v258
      %332 = vst.msk [vmem:[#allocation2 + $0x10] sm:$0xf] %vm327, %v259
      %333 = vst.msk [vmem:[#allocation2 + $0x14] sm:$0xf] %vm327, %v260
      %334 = vst.msk [vmem:[#allocation2 + $0x18] sm:$0xf] %vm327, %v261
      %335 = vst.msk [vmem:[#allocation2 + $0x1c] sm:$0xf] %vm327, %v262
      %336 = vst.msk [vmem:[#allocation2 + $0x20] sm:$0xf] %vm327, %v263
      %337 = vst.msk [vmem:[#allocation2 + $0x24] sm:$0xf] %vm327, %v264
      %338 = vst.msk [vmem:[#allocation2 + $0x28] sm:$0xf] %vm327, %v265
      %339 = vst.msk [vmem:[#allocation2 + $0x2c] sm:$0xf] %vm327, %v266
      %340 = vst.msk [vmem:[#allocation2 + $0x30] sm:$0xf] %vm327, %v267
      %341 = vst.msk [vmem:[#allocation2 + $0x34] sm:$0xf] %vm327, %v268
      %342 = vst.msk [vmem:[#allocation2 + $0x38] sm:$0xf] %vm327, %v269
      %343 = vst.msk [vmem:[#allocation2 + $0x3c] sm:$0xf] %vm327, %v270
      %344 = vst.msk [vmem:[#allocation2 + $0x40] sm:$0xf] %vm327, %v271
      %345 = vst.msk [vmem:[#allocation2 + $0x44] sm:$0xf] %vm327, %v272
      %346 = vst.msk [vmem:[#allocation2 + $0x48] sm:$0xf] %vm327, %v273
      %347 = vst.msk [vmem:[#allocation2 + $0x4c] sm:$0xf] %vm327, %v274
      %348 = vst.msk [vmem:[#allocation2 + $0x50] sm:$0xf] %vm327, %v275
      %349 = vst.msk [vmem:[#allocation2 + $0x54] sm:$0xf] %vm327, %v276
      %350 = vst.msk [vmem:[#allocation2 + $0x58] sm:$0xf] %vm327, %v277
      %351 = vst.msk [vmem:[#allocation2 + $0x5c] sm:$0xf] %vm327, %v278
      %352 = vst.msk [vmem:[#allocation2 + $0x60] sm:$0xf] %vm327, %v279
      %353 = vst.msk [vmem:[#allocation2 + $0x64] sm:$0xf] %vm327, %v280
      %354 = vst.msk [vmem:[#allocation2 + $0x68] sm:$0xf] %vm327, %v281
      %355 = vst.msk [vmem:[#allocation2 + $0x6c] sm:$0xf] %vm327, %v282
      %356 = vst.msk [vmem:[#allocation2 + $0x70] sm:$0xf] %vm327, %v283
      %357 = vst.msk [vmem:[#allocation2 + $0x74] sm:$0xf] %vm327, %v284
      %358 = vst.msk [vmem:[#allocation2 + $0x78] sm:$0xf] %vm327, %v285
      %359 = vst.msk [vmem:[#allocation2 + $0x7c] sm:$0xf] %vm327, %v286
      %360 = vst.msk [vmem:[#allocation2 + $0x80] sm:$0xf] %vm327, %v287
      %361 = vst.msk [vmem:[#allocation2 + $0x84] sm:$0xf] %vm327, %v288
      %362 = vst.msk [vmem:[#allocation2 + $0x88] sm:$0xf] %vm327, %v289
      %363 = vst.msk [vmem:[#allocation2 + $0x8c] sm:$0xf] %vm327, %v290
      %364 = vst.msk [vmem:[#allocation2 + $0x90] sm:$0xf] %vm327, %v291
      %365 = vst.msk [vmem:[#allocation2 + $0x94] sm:$0xf] %vm327, %v292
      %366 = vst.msk [vmem:[#allocation2 + $0x98] sm:$0xf] %vm327, %v293
      %367 = vst.msk [vmem:[#allocation2 + $0x9c] sm:$0xf] %vm327, %v294
      %368 = vst.msk [vmem:[#allocation2 + $0xa0] sm:$0xf] %vm327, %v295
      %369 = vst.msk [vmem:[#allocation2 + $0xa4] sm:$0xf] %vm327, %v296
      %370 = vst.msk [vmem:[#allocation2 + $0xa8] sm:$0xf] %vm327, %v297
      %371 = vst.msk [vmem:[#allocation2 + $0xac] sm:$0xf] %vm327, %v298
      %372 = vst.msk [vmem:[#allocation2 + $0xb0] sm:$0xf] %vm327, %v299
      %373 = vst.msk [vmem:[#allocation2 + $0xb4] sm:$0xf] %vm327, %v300
      %374 = vst.msk [vmem:[#allocation2 + $0xb8] sm:$0xf] %vm327, %v301
      %375 = vst.msk [vmem:[#allocation2 + $0xbc] sm:$0xf] %vm327, %v302
      %376 = vst.msk [vmem:[#allocation2 + $0xc0] sm:$0xf] %vm327, %v303
      %377 = vst.msk [vmem:[#allocation2 + $0xc4] sm:$0xf] %vm327, %v304
      %378 = vst.msk [vmem:[#allocation2 + $0xc8] sm:$0xf] %vm327, %v305
      %379 = vst.msk [vmem:[#allocation2 + $0xcc] sm:$0xf] %vm327, %v306
      %380 = vst.msk [vmem:[#allocation2 + $0xd0] sm:$0xf] %vm327, %v307
      %381 = vst.msk [vmem:[#allocation2 + $0xd4] sm:$0xf] %vm327, %v308
      %382 = vst.msk [vmem:[#allocation2 + $0xd8] sm:$0xf] %vm327, %v309
      %383 = vst.msk [vmem:[#allocation2 + $0xdc] sm:$0xf] %vm327, %v310
      %384 = vst.msk [vmem:[#allocation2 + $0xe0] sm:$0xf] %vm327, %v311
      %385 = vst.msk [vmem:[#allocation2 + $0xe4] sm:$0xf] %vm327, %v312
      %386 = vst.msk [vmem:[#allocation2 + $0xe8] sm:$0xf] %vm327, %v313
      %387 = vst.msk [vmem:[#allocation2 + $0xec] sm:$0xf] %vm327, %v314
      %388 = vst.msk [vmem:[#allocation2 + $0xf0] sm:$0xf] %vm327, %v315
      %389 = vst.msk [vmem:[#allocation2 + $0xf4] sm:$0xf] %vm327, %v316
      %390 = vst.msk [vmem:[#allocation2 + $0xf8] sm:$0xf] %vm327, %v317
      %391 = vst.msk [vmem:[#allocation2 + $0xfc] sm:$0xf] %vm327, %v318
      %392 = vst.msk [vmem:[#allocation2 + $0x100] sm:$0xf] %vm327, %v319
      %393 = vst.msk [vmem:[#allocation2 + $0x104] sm:$0xf] %vm327, %v320
      %394 = vst.msk [vmem:[#allocation2 + $0x108] sm:$0xf] %vm327, %v321
      %395 = vst.msk [vmem:[#allocation2 + $0x10c] sm:$0xf] %vm327, %v322
      %396 = vst.msk [vmem:[#allocation2 + $0x110] sm:$0xf] %vm327, %v323
      %397 = vst.msk [vmem:[#allocation2 + $0x114] sm:$0xf] %vm327, %v324
      %398 = vst.msk [vmem:[#allocation2 + $0x118] sm:$0xf] %vm327, %v325
      %399 = vst.msk [vmem:[#allocation2 + $0x11c] sm:$0xf] %vm327, %v326
      %v400 = vld [vmem:[#allocation2] sm:$0xf]
      %v401 = vld [vmem:[#allocation2 + $0x4] sm:$0xf]
      %v402 = vld [vmem:[#allocation2 + $0x8] sm:$0xf]
      %v403 = vld [vmem:[#allocation2 + $0xc] sm:$0xf]
      %v404 = vld [vmem:[#allocation2 + $0x10] sm:$0xf]
      %v405 = vld [vmem:[#allocation2 + $0x14] sm:$0xf]
      %v406 = vld [vmem:[#allocation2 + $0x18] sm:$0xf]
      %v407 = vld [vmem:[#allocation2 + $0x1c] sm:$0xf]
      %v408 = vld [vmem:[#allocation2 + $0x20] sm:$0xf]
      %v409 = vld [vmem:[#allocation2 + $0x24] sm:$0xf]
      %v410 = vld [vmem:[#allocation2 + $0x28] sm:$0xf]
      %v411 = vld [vmem:[#allocation2 + $0x2c] sm:$0xf]
      %v412 = vld [vmem:[#allocation2 + $0x30] sm:$0xf]
      %v413 = vld [vmem:[#allocation2 + $0x34] sm:$0xf]
      %v414 = vld [vmem:[#allocation2 + $0x38] sm:$0xf]
      %v415 = vld [vmem:[#allocation2 + $0x3c] sm:$0xf]
      %v416 = vld [vmem:[#allocation2 + $0x40] sm:$0xf]
      %v417 = vld [vmem:[#allocation2 + $0x44] sm:$0xf]
      %v418 = vld [vmem:[#allocation2 + $0x48] sm:$0xf]
      %v419 = vld [vmem:[#allocation2 + $0x4c] sm:$0xf]
      %v420 = vld [vmem:[#allocation2 + $0x50] sm:$0xf]
      %v421 = vld [vmem:[#allocation2 + $0x54] sm:$0xf]
      %v422 = vld [vmem:[#allocation2 + $0x58] sm:$0xf]
      %v423 = vld [vmem:[#allocation2 + $0x5c] sm:$0xf]
      %v424 = vld [vmem:[#allocation2 + $0x60] sm:$0xf]
      %v425 = vld [vmem:[#allocation2 + $0x64] sm:$0xf]
      %v426 = vld [vmem:[#allocation2 + $0x68] sm:$0xf]
      %v427 = vld [vmem:[#allocation2 + $0x6c] sm:$0xf]
      %v428 = vld [vmem:[#allocation2 + $0x70] sm:$0xf]
      %v429 = vld [vmem:[#allocation2 + $0x74] sm:$0xf]
      %v430 = vld [vmem:[#allocation2 + $0x78] sm:$0xf]
      %v431 = vld [vmem:[#allocation2 + $0x7c] sm:$0xf]
      %v432 = vld [vmem:[#allocation2 + $0x80] sm:$0xf]
      %v433 = vld [vmem:[#allocation2 + $0x84] sm:$0xf]
      %v434 = vld [vmem:[#allocation2 + $0x88] sm:$0xf]
      %v435 = vld [vmem:[#allocation2 + $0x8c] sm:$0xf]
      %v436 = vld [vmem:[#allocation2 + $0x90] sm:$0xf]
      %v437 = vld [vmem:[#allocation2 + $0x94] sm:$0xf]
      %v438 = vld [vmem:[#allocation2 + $0x98] sm:$0xf]
      %v439 = vld [vmem:[#allocation2 + $0x9c] sm:$0xf]
      %v440 = vld [vmem:[#allocation2 + $0xa0] sm:$0xf]
      %v441 = vld [vmem:[#allocation2 + $0xa4] sm:$0xf]
      %v442 = vld [vmem:[#allocation2 + $0xa8] sm:$0xf]
      %v443 = vld [vmem:[#allocation2 + $0xac] sm:$0xf]
      %v444 = vld [vmem:[#allocation2 + $0xb0] sm:$0xf]
      %v445 = vld [vmem:[#allocation2 + $0xb4] sm:$0xf]
      %v446 = vld [vmem:[#allocation2 + $0xb8] sm:$0xf]
      %v447 = vld [vmem:[#allocation2 + $0xbc] sm:$0xf]
      %v448 = vld [vmem:[#allocation2 + $0xc0] sm:$0xf]
      %v449 = vld [vmem:[#allocation2 + $0xc4] sm:$0xf]
      %v450 = vld [vmem:[#allocation2 + $0xc8] sm:$0xf]
      %v451 = vld [vmem:[#allocation2 + $0xcc] sm:$0xf]
      %v452 = vld [vmem:[#allocation2 + $0xd0] sm:$0xf]
      %v453 = vld [vmem:[#allocation2 + $0xd4] sm:$0xf]
      %v454 = vld [vmem:[#allocation2 + $0xd8] sm:$0xf]
      %v455 = vld [vmem:[#allocation2 + $0xdc] sm:$0xf]
      %v456 = vld [vmem:[#allocation2 + $0xe0] sm:$0xf]
      %v457 = vld [vmem:[#allocation2 + $0xe4] sm:$0xf]
      %v458 = vld [vmem:[#allocation2 + $0xe8] sm:$0xf]
      %v459 = vld [vmem:[#allocation2 + $0xec] sm:$0xf]
      %v460 = vld [vmem:[#allocation2 + $0xf0] sm:$0xf]
      %v461 = vld [vmem:[#allocation2 + $0xf4] sm:$0xf]
      %v462 = vld [vmem:[#allocation2 + $0xf8] sm:$0xf]
      %v463 = vld [vmem:[#allocation2 + $0xfc] sm:$0xf]
      %v464 = vld [vmem:[%s1] sm:$0xf]
      %v465 = vld [vmem:[%s1 + $0x4] sm:$0xf]
      %v466 = vld [vmem:[%s1 + $0x8] sm:$0xf]
      %v467 = vld [vmem:[%s1 + $0xc] sm:$0xf]
      %v468 = vld [vmem:[%s1 + $0x10] sm:$0xf]
      %v469 = vld [vmem:[%s1 + $0x14] sm:$0xf]
      %v470 = vld [vmem:[%s1 + $0x18] sm:$0xf]
      %v471 = vld [vmem:[%s1 + $0x1c] sm:$0xf]
      %v472 = vld [vmem:[%s1 + $0x20] sm:$0xf]
      %v473 = vld [vmem:[%s1 + $0x24] sm:$0xf]
      %v474 = vld [vmem:[%s1 + $0x28] sm:$0xf]
      %v475 = vld [vmem:[%s1 + $0x2c] sm:$0xf]
      %v476 = vld [vmem:[%s1 + $0x30] sm:$0xf]
      %v477 = vld [vmem:[%s1 + $0x34] sm:$0xf]
      %v478 = vld [vmem:[%s1 + $0x38] sm:$0xf]
      %v479 = vld [vmem:[%s1 + $0x3c] sm:$0xf]
      %s480 = scalar_lea.vmem [#allocation2], 16
      %v481 = vld [vmem:[%s480] sm:$0xf]
      %v482 = vld [vmem:[%s480 + $0x4] sm:$0xf]
      %v483 = vld [vmem:[%s480 + $0x8] sm:$0xf]
      %v484 = vld [vmem:[%s480 + $0xc] sm:$0xf]
      %v485 = vld [vmem:[%s480 + $0x10] sm:$0xf]
      %v486 = vld [vmem:[%s480 + $0x14] sm:$0xf]
      %v487 = vld [vmem:[%s480 + $0x18] sm:$0xf]
      %v488 = vld [vmem:[%s480 + $0x1c] sm:$0xf]
      %v489 = vld [vmem:[%s480 + $0x20] sm:$0xf]
      %v490 = vld [vmem:[%s480 + $0x24] sm:$0xf]
      %v491 = vld [vmem:[%s480 + $0x28] sm:$0xf]
      %v492 = vld [vmem:[%s480 + $0x2c] sm:$0xf]
      %v493 = vld [vmem:[%s480 + $0x30] sm:$0xf]
      %v494 = vld [vmem:[%s480 + $0x34] sm:$0xf]
      %v495 = vld [vmem:[%s480 + $0x38] sm:$0xf]
      %v496 = vld [vmem:[%s480 + $0x3c] sm:$0xf]
      %v497 = vld [vmem:[%s480 + $0x40] sm:$0xf]
      %v498 = vld [vmem:[%s480 + $0x44] sm:$0xf]
      %v499 = vld [vmem:[%s480 + $0x48] sm:$0xf]
      %v500 = vld [vmem:[%s480 + $0x4c] sm:$0xf]
      %v501 = vld [vmem:[%s480 + $0x50] sm:$0xf]
      %v502 = vld [vmem:[%s480 + $0x54] sm:$0xf]
      %v503 = vld [vmem:[%s480 + $0x58] sm:$0xf]
      %v504 = vld [vmem:[%s480 + $0x5c] sm:$0xf]
      %v505 = vld [vmem:[%s480 + $0x60] sm:$0xf]
      %v506 = vld [vmem:[%s480 + $0x64] sm:$0xf]
      %v507 = vld [vmem:[%s480 + $0x68] sm:$0xf]
      %v508 = vld [vmem:[%s480 + $0x6c] sm:$0xf]
      %v509 = vld [vmem:[%s480 + $0x70] sm:$0xf]
      %v510 = vld [vmem:[%s480 + $0x74] sm:$0xf]
      %v511 = vld [vmem:[%s480 + $0x78] sm:$0xf]
      %v512 = vld [vmem:[%s480 + $0x7c] sm:$0xf]
      %v513 = vld [vmem:[%s480 + $0x80] sm:$0xf]
      %v514 = vld [vmem:[%s480 + $0x84] sm:$0xf]
      %v515 = vld [vmem:[%s480 + $0x88] sm:$0xf]
      %v516 = vld [vmem:[%s480 + $0x8c] sm:$0xf]
      %v517 = vld [vmem:[%s480 + $0x90] sm:$0xf]
      %v518 = vld [vmem:[%s480 + $0x94] sm:$0xf]
      %v519 = vld [vmem:[%s480 + $0x98] sm:$0xf]
      %v520 = vld [vmem:[%s480 + $0x9c] sm:$0xf]
      %v521 = vld [vmem:[%s480 + $0xa0] sm:$0xf]
      %v522 = vld [vmem:[%s480 + $0xa4] sm:$0xf]
      %v523 = vld [vmem:[%s480 + $0xa8] sm:$0xf]
      %v524 = vld [vmem:[%s480 + $0xac] sm:$0xf]
      %v525 = vld [vmem:[%s480 + $0xb0] sm:$0xf]
      %v526 = vld [vmem:[%s480 + $0xb4] sm:$0xf]
      %v527 = vld [vmem:[%s480 + $0xb8] sm:$0xf]
      %v528 = vld [vmem:[%s480 + $0xbc] sm:$0xf]
      %v529 = vld [vmem:[%s480 + $0xc0] sm:$0xf]
      %v530 = vld [vmem:[%s480 + $0xc4] sm:$0xf]
      %v531 = vld [vmem:[%s480 + $0xc8] sm:$0xf]
      %v532 = vld [vmem:[%s480 + $0xcc] sm:$0xf]
      %v533 = vld [vmem:[%s480 + $0xd0] sm:$0xf]
      %v534 = vld [vmem:[%s480 + $0xd4] sm:$0xf]
      %v535 = vld [vmem:[%s480 + $0xd8] sm:$0xf]
      %v536 = vld [vmem:[%s480 + $0xdc] sm:$0xf]
      %v537 = vld [vmem:[%s480 + $0xe0] sm:$0xf]
      %v538 = vld [vmem:[%s480 + $0xe4] sm:$0xf]
      %v539 = vld [vmem:[%s480 + $0xe8] sm:$0xf]
      %v540 = vld [vmem:[%s480 + $0xec] sm:$0xf]
      %v541 = vld [vmem:[%s480 + $0xf0] sm:$0xf]
      %v542 = vld [vmem:[%s480 + $0xf4] sm:$0xf]
      %v543 = vld [vmem:[%s480 + $0xf8] sm:$0xf]
      %v544 = vld [vmem:[%s480 + $0xfc] sm:$0xf]
      %s545 = scalar_lea.vmem %s1, 192
      %v546 = vld [vmem:[%s545] sm:$0xf]
      %v547 = vld [vmem:[%s545 + $0x4] sm:$0xf]
      %v548 = vld [vmem:[%s545 + $0x8] sm:$0xf]
      %v549 = vld [vmem:[%s545 + $0xc] sm:$0xf]
      %v550 = vld [vmem:[%s545 + $0x10] sm:$0xf]
      %v551 = vld [vmem:[%s545 + $0x14] sm:$0xf]
      %v552 = vld [vmem:[%s545 + $0x18] sm:$0xf]
      %v553 = vld [vmem:[%s545 + $0x1c] sm:$0xf]
      %v554 = vld [vmem:[%s545 + $0x20] sm:$0xf]
      %v555 = vld [vmem:[%s545 + $0x24] sm:$0xf]
      %v556 = vld [vmem:[%s545 + $0x28] sm:$0xf]
      %v557 = vld [vmem:[%s545 + $0x2c] sm:$0xf]
      %v558 = vld [vmem:[%s545 + $0x30] sm:$0xf]
      %v559 = vld [vmem:[%s545 + $0x34] sm:$0xf]
      %v560 = vld [vmem:[%s545 + $0x38] sm:$0xf]
      %v561 = vld [vmem:[%s545 + $0x3c] sm:$0xf]
      %v626 = vunpack.c.l.b16 %v481
      %v627 = vunpack.c.l.b16 %v482
      %v628 = vunpack.c.l.b16 %v483
      %v629 = vunpack.c.l.b16 %v484
      %v630 = vunpack.c.l.b16 %v485
      %v631 = vunpack.c.l.b16 %v486
      %v632 = vunpack.c.l.b16 %v487
      %v633 = vunpack.c.l.b16 %v488
      %v634 = vunpack.c.l.b16 %v489
      %v635 = vunpack.c.l.b16 %v490
      %v636 = vunpack.c.l.b16 %v491
      %v637 = vunpack.c.l.b16 %v492
      %v638 = vunpack.c.l.b16 %v493
      %v639 = vunpack.c.l.b16 %v494
      %v640 = vunpack.c.l.b16 %v495
      %v641 = vunpack.c.l.b16 %v496
      %v642 = vunpack.c.l.b16 %v497
      %v643 = vunpack.c.l.b16 %v498
      %v644 = vunpack.c.l.b16 %v499
      %v645 = vunpack.c.l.b16 %v500
      %v646 = vunpack.c.l.b16 %v501
      %v647 = vunpack.c.l.b16 %v502
      %v648 = vunpack.c.l.b16 %v503
      %v649 = vunpack.c.l.b16 %v504
      %v650 = vunpack.c.l.b16 %v505
      %v651 = vunpack.c.l.b16 %v506
      %v652 = vunpack.c.l.b16 %v507
      %v653 = vunpack.c.l.b16 %v508
      %v654 = vunpack.c.l.b16 %v509
      %v655 = vunpack.c.l.b16 %v510
      %v656 = vunpack.c.l.b16 %v511
      %v657 = vunpack.c.l.b16 %v512
      %v658 = vunpack.c.l.b16 %v513
      %v659 = vunpack.c.l.b16 %v514
      %v660 = vunpack.c.l.b16 %v515
      %v661 = vunpack.c.l.b16 %v516
      %v662 = vunpack.c.l.b16 %v517
      %v663 = vunpack.c.l.b16 %v518
      %v664 = vunpack.c.l.b16 %v519
      %v665 = vunpack.c.l.b16 %v520
      %v666 = vunpack.c.l.b16 %v521
      %v667 = vunpack.c.l.b16 %v522
      %v668 = vunpack.c.l.b16 %v523
      %v669 = vunpack.c.l.b16 %v524
      %v670 = vunpack.c.l.b16 %v525
      %v671 = vunpack.c.l.b16 %v526
      %v672 = vunpack.c.l.b16 %v527
      %v673 = vunpack.c.l.b16 %v528
      %v674 = vunpack.c.l.b16 %v529
      %v675 = vunpack.c.l.b16 %v530
      %v676 = vunpack.c.l.b16 %v531
      %v677 = vunpack.c.l.b16 %v532
      %v678 = vunpack.c.l.b16 %v533
      %v679 = vunpack.c.l.b16 %v534
      %v680 = vunpack.c.l.b16 %v535
      %v681 = vunpack.c.l.b16 %v536
      %v682 = vunpack.c.l.b16 %v537
      %v683 = vunpack.c.l.b16 %v538
      %v684 = vunpack.c.l.b16 %v539
      %v685 = vunpack.c.l.b16 %v540
      %v686 = vunpack.c.l.b16 %v541
      %v687 = vunpack.c.l.b16 %v542
      %v688 = vunpack.c.l.b16 %v543
      %v689 = vunpack.c.l.b16 %v544
      %v690 = vpack.c.b16 %v627, %v626
      %v691 = vpack.c.b16 %v629, %v628
      %v692 = vpack.c.b16 %v631, %v630
      %v693 = vpack.c.b16 %v633, %v632
      %v694 = vpack.c.b16 %v635, %v634
      %v695 = vpack.c.b16 %v637, %v636
      %v696 = vpack.c.b16 %v639, %v638
      %v697 = vpack.c.b16 %v641, %v640
      %v698 = vpack.c.b16 %v643, %v642
      %v699 = vpack.c.b16 %v645, %v644
      %v700 = vpack.c.b16 %v647, %v646
      %v701 = vpack.c.b16 %v649, %v648
      %v702 = vpack.c.b16 %v651, %v650
      %v703 = vpack.c.b16 %v653, %v652
      %v704 = vpack.c.b16 %v655, %v654
      %v705 = vpack.c.b16 %v657, %v656
      %v706 = vpack.c.b16 %v659, %v658
      %v707 = vpack.c.b16 %v661, %v660
      %v708 = vpack.c.b16 %v663, %v662
      %v709 = vpack.c.b16 %v665, %v664
      %v710 = vpack.c.b16 %v667, %v666
      %v711 = vpack.c.b16 %v669, %v668
      %v712 = vpack.c.b16 %v671, %v670
      %v713 = vpack.c.b16 %v673, %v672
      %v714 = vpack.c.b16 %v675, %v674
      %v715 = vpack.c.b16 %v677, %v676
      %v716 = vpack.c.b16 %v679, %v678
      %v717 = vpack.c.b16 %v681, %v680
      %v718 = vpack.c.b16 %v683, %v682
      %v719 = vpack.c.b16 %v685, %v684
      %v720 = vpack.c.b16 %v687, %v686
      %v721 = vpack.c.b16 %v689, %v688
      %v770 = vunpack.c.l.b16 %v546
      %v771 = vunpack.c.l.b16 %v547
      %v772 = vunpack.c.l.b16 %v548
      %v773 = vunpack.c.l.b16 %v549
      %v774 = vunpack.c.l.b16 %v550
      %v775 = vunpack.c.l.b16 %v551
      %v776 = vunpack.c.l.b16 %v552
      %v777 = vunpack.c.l.b16 %v553
      %v778 = vunpack.c.l.b16 %v554
      %v779 = vunpack.c.l.b16 %v555
      %v780 = vunpack.c.l.b16 %v556
      %v781 = vunpack.c.l.b16 %v557
      %v782 = vunpack.c.l.b16 %v558
      %v783 = vunpack.c.l.b16 %v559
      %v784 = vunpack.c.l.b16 %v560
      %v785 = vunpack.c.l.b16 %v561
      %v786 = vpack.c.b16 %v771, %v770
      %v787 = vpack.c.b16 %v773, %v772
      %v788 = vpack.c.b16 %v775, %v774
      %v789 = vpack.c.b16 %v777, %v776
      %v790 = vpack.c.b16 %v779, %v778
      %v791 = vpack.c.b16 %v781, %v780
      %v792 = vpack.c.b16 %v783, %v782
      %v793 = vpack.c.b16 %v785, %v784
      %802 = vmatprep.subr.bf16.mxu0 0
      %803 = vmatpush1.bf16.msra.mxu0 %v793
      %804 = vmatprep.subr.bf16.mxu0 0
      %805 = vmatpush1.bf16.msra.mxu0 %v792
      %806 = vmatprep.subr.bf16.mxu0 0
      %807 = vmatpush1.bf16.msra.mxu0 %v791
      %808 = vmatprep.subr.bf16.mxu0 0
      %809 = vmatpush1.bf16.msra.mxu0 %v790
      %810 = vmatprep.subr.bf16.mxu0 0
      %811 = vmatpush1.bf16.msra.mxu0 %v789
      %812 = vmatprep.subr.bf16.mxu0 0
      %813 = vmatpush1.bf16.msra.mxu0 %v788
      %814 = vmatprep.subr.bf16.mxu0 0
      %815 = vmatpush1.bf16.msra.mxu0 %v787
      %816 = vmatprep.subr.bf16.mxu0 0
      %817 = vmatpush1.bf16.msra.mxu0 %v786
      %818 = vmatprep.subr.bf16.mxu0 0
      %819 = vmatpush2.bf16.msra.mxu0 0
      %820 = vmatprep.subr.bf16.mxu0 0
      %821 = vmatpush2.bf16.msra.mxu0 0
      %822 = vmatprep.subr.bf16.mxu0 0
      %823 = vmatpush2.bf16.msra.mxu0 0
      %824 = vmatprep.subr.bf16.mxu0 0
      %825 = vmatpush2.bf16.msra.mxu0 0
      %826 = vmatprep.subr.bf16.mxu0 0
      %827 = vmatpush2.bf16.msra.mxu0 0
      %828 = vmatprep.subr.bf16.mxu0 0
      %829 = vmatpush2.bf16.msra.mxu0 0
      %830 = vmatprep.subr.bf16.mxu0 0
      %831 = vmatpush2.bf16.msra.mxu0 0
      %832 = vmatprep.subr.bf16.mxu0 0
      %833 = vmatpush2.bf16.msra.mxu0 0
      %834 = vmatprep.mubr.bf16.mxu0 0
      %835 = vmatmul.mubr.bf16.gmra.mxu0 %v690
      %v836 = vpop.f32.mrf.mxu0
      %v837 = vadd.f32 0.0, %v836
      %v838 = vpop.f32.mrf.mxu0
      %v839 = vpop.f32.mrf.mxu0
      %v840 = vadd.f32 0.0, %v839
      %v841 = vpop.f32.mrf.mxu0
      %842 = vmatprep.mubr.bf16.mxu0 0
      %843 = vmatmul.mubr.bf16.gmra.mxu0 %v691
      %v844 = vpop.f32.mrf.mxu0
      %v845 = vadd.f32 0.0, %v844
      %v846 = vpop.f32.mrf.mxu0
      %v847 = vpop.f32.mrf.mxu0
      %v848 = vadd.f32 0.0, %v847
      %v849 = vpop.f32.mrf.mxu0
      %850 = vmatprep.mubr.bf16.mxu0 0
      %851 = vmatmul.mubr.bf16.gmra.mxu0 %v692
      %v852 = vpop.f32.mrf.mxu0
      %v853 = vadd.f32 0.0, %v852
      %v854 = vpop.f32.mrf.mxu0
      %v855 = vpop.f32.mrf.mxu0
      %v856 = vadd.f32 0.0, %v855
      %v857 = vpop.f32.mrf.mxu0
      %858 = vmatprep.mubr.bf16.mxu0 0
      %859 = vmatmul.mubr.bf16.gmra.mxu0 %v693
      %v860 = vpop.f32.mrf.mxu0
      %v861 = vadd.f32 0.0, %v860
      %v862 = vpop.f32.mrf.mxu0
      %v863 = vpop.f32.mrf.mxu0
      %v864 = vadd.f32 0.0, %v863
      %v865 = vpop.f32.mrf.mxu0
      %866 = vmatprep.mubr.bf16.mxu0 0
      %867 = vmatmul.mubr.bf16.gmra.mxu0 %v694
      %v868 = vpop.f32.mrf.mxu0
      %v869 = vadd.f32 0.0, %v868
      %v870 = vpop.f32.mrf.mxu0
      %v871 = vpop.f32.mrf.mxu0
      %v872 = vadd.f32 0.0, %v871
      %v873 = vpop.f32.mrf.mxu0
      %874 = vmatprep.mubr.bf16.mxu0 0
      %875 = vmatmul.mubr.bf16.gmra.mxu0 %v695
      %v876 = vpop.f32.mrf.mxu0
      %v877 = vadd.f32 0.0, %v876
      %v878 = vpop.f32.mrf.mxu0
      %v879 = vpop.f32.mrf.mxu0
      %v880 = vadd.f32 0.0, %v879
      %v881 = vpop.f32.mrf.mxu0
      %882 = vmatprep.mubr.bf16.mxu0 0
      %883 = vmatmul.mubr.bf16.gmra.mxu0 %v696
      %v884 = vpop.f32.mrf.mxu0
      %v885 = vadd.f32 0.0, %v884
      %v886 = vpop.f32.mrf.mxu0
      %v887 = vpop.f32.mrf.mxu0
      %v888 = vadd.f32 0.0, %v887
      %v889 = vpop.f32.mrf.mxu0
      %890 = vmatprep.mubr.bf16.mxu0 0
      %891 = vmatmul.mubr.bf16.gmra.mxu0 %v697
      %v892 = vpop.f32.mrf.mxu0
      %v893 = vadd.f32 0.0, %v892
      %v894 = vpop.f32.mrf.mxu0
      %v895 = vpop.f32.mrf.mxu0
      %v896 = vadd.f32 0.0, %v895
      %v897 = vpop.f32.mrf.mxu0
      %898 = vmatprep.mubr.bf16.mxu0 0
      %899 = vmatmul.mubr.bf16.gmra.mxu0 %v698
      %v900 = vpop.f32.mrf.mxu0
      %v901 = vadd.f32 0.0, %v900
      %v902 = vpop.f32.mrf.mxu0
      %v903 = vpop.f32.mrf.mxu0
      %v904 = vadd.f32 0.0, %v903
      %v905 = vpop.f32.mrf.mxu0
      %906 = vmatprep.mubr.bf16.mxu0 0
      %907 = vmatmul.mubr.bf16.gmra.mxu0 %v699
      %v908 = vpop.f32.mrf.mxu0
      %v909 = vadd.f32 0.0, %v908
      %v910 = vpop.f32.mrf.mxu0
      %v911 = vpop.f32.mrf.mxu0
      %v912 = vadd.f32 0.0, %v911
      %v913 = vpop.f32.mrf.mxu0
      %914 = vmatprep.mubr.bf16.mxu0 0
      %915 = vmatmul.mubr.bf16.gmra.mxu0 %v700
      %v916 = vpop.f32.mrf.mxu0
      %v917 = vadd.f32 0.0, %v916
      %v918 = vpop.f32.mrf.mxu0
      %v919 = vpop.f32.mrf.mxu0
      %v920 = vadd.f32 0.0, %v919
      %v921 = vpop.f32.mrf.mxu0
      %922 = vmatprep.mubr.bf16.mxu0 0
      %923 = vmatmul.mubr.bf16.gmra.mxu0 %v701
      %v924 = vpop.f32.mrf.mxu0
      %v925 = vadd.f32 0.0, %v924
      %v926 = vpop.f32.mrf.mxu0
      %v927 = vpop.f32.mrf.mxu0
      %v928 = vadd.f32 0.0, %v927
      %v929 = vpop.f32.mrf.mxu0
      %930 = vmatprep.mubr.bf16.mxu0 0
      %931 = vmatmul.mubr.bf16.gmra.mxu0 %v702
      %v932 = vpop.f32.mrf.mxu0
      %v933 = vadd.f32 0.0, %v932
      %v934 = vpop.f32.mrf.mxu0
      %v935 = vpop.f32.mrf.mxu0
      %v936 = vadd.f32 0.0, %v935
      %v937 = vpop.f32.mrf.mxu0
      %938 = vmatprep.mubr.bf16.mxu0 0
      %939 = vmatmul.mubr.bf16.gmra.mxu0 %v703
      %v940 = vpop.f32.mrf.mxu0
      %v941 = vadd.f32 0.0, %v940
      %v942 = vpop.f32.mrf.mxu0
      %v943 = vpop.f32.mrf.mxu0
      %v944 = vadd.f32 0.0, %v943
      %v945 = vpop.f32.mrf.mxu0
      %946 = vmatprep.mubr.bf16.mxu0 0
      %947 = vmatmul.mubr.bf16.gmra.mxu0 %v704
      %v948 = vpop.f32.mrf.mxu0
      %v949 = vadd.f32 0.0, %v948
      %v950 = vpop.f32.mrf.mxu0
      %v951 = vpop.f32.mrf.mxu0
      %v952 = vadd.f32 0.0, %v951
      %v953 = vpop.f32.mrf.mxu0
      %954 = vmatprep.mubr.bf16.mxu0 0
      %955 = vmatmul.mubr.bf16.gmra.mxu0 %v705
      %v956 = vpop.f32.mrf.mxu0
      %v957 = vadd.f32 0.0, %v956
      %v958 = vpop.f32.mrf.mxu0
      %v959 = vpop.f32.mrf.mxu0
      %v960 = vadd.f32 0.0, %v959
      %v961 = vpop.f32.mrf.mxu0
      %962 = vmatprep.mubr.bf16.mxu0 0
      %963 = vmatmul.mubr.bf16.gmra.mxu0 %v706
      %v964 = vpop.f32.mrf.mxu0
      %v965 = vadd.f32 0.0, %v964
      %v966 = vpop.f32.mrf.mxu0
      %v967 = vpop.f32.mrf.mxu0
      %v968 = vadd.f32 0.0, %v967
      %v969 = vpop.f32.mrf.mxu0
      %970 = vmatprep.mubr.bf16.mxu0 0
      %971 = vmatmul.mubr.bf16.gmra.mxu0 %v707
      %v972 = vpop.f32.mrf.mxu0
      %v973 = vadd.f32 0.0, %v972
      %v974 = vpop.f32.mrf.mxu0
      %v975 = vpop.f32.mrf.mxu0
      %v976 = vadd.f32 0.0, %v975
      %v977 = vpop.f32.mrf.mxu0
      %978 = vmatprep.mubr.bf16.mxu0 0
      %979 = vmatmul.mubr.bf16.gmra.mxu0 %v708
      %v980 = vpop.f32.mrf.mxu0
      %v981 = vadd.f32 0.0, %v980
      %v982 = vpop.f32.mrf.mxu0
      %v983 = vpop.f32.mrf.mxu0
      %v984 = vadd.f32 0.0, %v983
      %v985 = vpop.f32.mrf.mxu0
      %986 = vmatprep.mubr.bf16.mxu0 0
      %987 = vmatmul.mubr.bf16.gmra.mxu0 %v709
      %v988 = vpop.f32.mrf.mxu0
      %v989 = vadd.f32 0.0, %v988
      %v990 = vpop.f32.mrf.mxu0
      %v991 = vpop.f32.mrf.mxu0
      %v992 = vadd.f32 0.0, %v991
      %v993 = vpop.f32.mrf.mxu0
      %994 = vmatprep.mubr.bf16.mxu0 0
      %995 = vmatmul.mubr.bf16.gmra.mxu0 %v710
      %v996 = vpop.f32.mrf.mxu0
      %v997 = vadd.f32 0.0, %v996
      %v998 = vpop.f32.mrf.mxu0
      %v999 = vpop.f32.mrf.mxu0
      %v1000 = vadd.f32 0.0, %v999
      %v1001 = vpop.f32.mrf.mxu0
      %1002 = vmatprep.mubr.bf16.mxu0 0
      %1003 = vmatmul.mubr.bf16.gmra.mxu0 %v711
      %v1004 = vpop.f32.mrf.mxu0
      %v1005 = vadd.f32 0.0, %v1004
      %v1006 = vpop.f32.mrf.mxu0
      %v1007 = vpop.f32.mrf.mxu0
      %v1008 = vadd.f32 0.0, %v1007
      %v1009 = vpop.f32.mrf.mxu0
      %1010 = vmatprep.mubr.bf16.mxu0 0
      %1011 = vmatmul.mubr.bf16.gmra.mxu0 %v712
      %v1012 = vpop.f32.mrf.mxu0
      %v1013 = vadd.f32 0.0, %v1012
      %v1014 = vpop.f32.mrf.mxu0
      %v1015 = vpop.f32.mrf.mxu0
      %v1016 = vadd.f32 0.0, %v1015
      %v1017 = vpop.f32.mrf.mxu0
      %1018 = vmatprep.mubr.bf16.mxu0 0
      %1019 = vmatmul.mubr.bf16.gmra.mxu0 %v713
      %v1020 = vpop.f32.mrf.mxu0
      %v1021 = vadd.f32 0.0, %v1020
      %v1022 = vpop.f32.mrf.mxu0
      %v1023 = vpop.f32.mrf.mxu0
      %v1024 = vadd.f32 0.0, %v1023
      %v1025 = vpop.f32.mrf.mxu0
      %1026 = vmatprep.mubr.bf16.mxu0 0
      %1027 = vmatmul.mubr.bf16.gmra.mxu0 %v714
      %v1028 = vpop.f32.mrf.mxu0
      %v1029 = vadd.f32 0.0, %v1028
      %v1030 = vpop.f32.mrf.mxu0
      %v1031 = vpop.f32.mrf.mxu0
      %v1032 = vadd.f32 0.0, %v1031
      %v1033 = vpop.f32.mrf.mxu0
      %1034 = vmatprep.mubr.bf16.mxu0 0
      %1035 = vmatmul.mubr.bf16.gmra.mxu0 %v715
      %v1036 = vpop.f32.mrf.mxu0
      %v1037 = vadd.f32 0.0, %v1036
      %v1038 = vpop.f32.mrf.mxu0
      %v1039 = vpop.f32.mrf.mxu0
      %v1040 = vadd.f32 0.0, %v1039
      %v1041 = vpop.f32.mrf.mxu0
      %1042 = vmatprep.mubr.bf16.mxu0 0
      %1043 = vmatmul.mubr.bf16.gmra.mxu0 %v716
      %v1044 = vpop.f32.mrf.mxu0
      %v1045 = vadd.f32 0.0, %v1044
      %v1046 = vpop.f32.mrf.mxu0
      %v1047 = vpop.f32.mrf.mxu0
      %v1048 = vadd.f32 0.0, %v1047
      %v1049 = vpop.f32.mrf.mxu0
      %1050 = vmatprep.mubr.bf16.mxu0 0
      %1051 = vmatmul.mubr.bf16.gmra.mxu0 %v717
      %v1052 = vpop.f32.mrf.mxu0
      %v1053 = vadd.f32 0.0, %v1052
      %v1054 = vpop.f32.mrf.mxu0
      %v1055 = vpop.f32.mrf.mxu0
      %v1056 = vadd.f32 0.0, %v1055
      %v1057 = vpop.f32.mrf.mxu0
      %1058 = vmatprep.mubr.bf16.mxu0 0
      %1059 = vmatmul.mubr.bf16.gmra.mxu0 %v718
      %v1060 = vpop.f32.mrf.mxu0
      %v1061 = vadd.f32 0.0, %v1060
      %v1062 = vpop.f32.mrf.mxu0
      %v1063 = vpop.f32.mrf.mxu0
      %v1064 = vadd.f32 0.0, %v1063
      %v1065 = vpop.f32.mrf.mxu0
      %1066 = vmatprep.mubr.bf16.mxu0 0
      %1067 = vmatmul.mubr.bf16.gmra.mxu0 %v719
      %v1068 = vpop.f32.mrf.mxu0
      %v1069 = vadd.f32 0.0, %v1068
      %v1070 = vpop.f32.mrf.mxu0
      %v1071 = vpop.f32.mrf.mxu0
      %v1072 = vadd.f32 0.0, %v1071
      %v1073 = vpop.f32.mrf.mxu0
      %1074 = vmatprep.mubr.bf16.mxu0 0
      %1075 = vmatmul.mubr.bf16.gmra.mxu0 %v720
      %v1076 = vpop.f32.mrf.mxu0
      %v1077 = vadd.f32 0.0, %v1076
      %v1078 = vpop.f32.mrf.mxu0
      %v1079 = vpop.f32.mrf.mxu0
      %v1080 = vadd.f32 0.0, %v1079
      %v1081 = vpop.f32.mrf.mxu0
      %1082 = vmatprep.mubr.bf16.mxu0 0
      %1083 = vmatmul.mubr.bf16.gmra.mxu0 %v721
      %v1084 = vpop.f32.mrf.mxu0
      %v1085 = vadd.f32 0.0, %v1084
      %v1086 = vpop.f32.mrf.mxu0
      %v1087 = vpop.f32.mrf.mxu0
      %v1088 = vadd.f32 0.0, %v1087
      %v1089 = vpop.f32.mrf.mxu0
      %1090 = vdwg.mxu0
      %v1155 = vunpack.c.l.b16 %v400
      %v1156 = vunpack.c.l.b16 %v401
      %v1157 = vunpack.c.l.b16 %v402
      %v1158 = vunpack.c.l.b16 %v403
      %v1159 = vunpack.c.l.b16 %v404
      %v1160 = vunpack.c.l.b16 %v405
      %v1161 = vunpack.c.l.b16 %v406
      %v1162 = vunpack.c.l.b16 %v407
      %v1163 = vunpack.c.l.b16 %v408
      %v1164 = vunpack.c.l.b16 %v409
      %v1165 = vunpack.c.l.b16 %v410
      %v1166 = vunpack.c.l.b16 %v411
      %v1167 = vunpack.c.l.b16 %v412
      %v1168 = vunpack.c.l.b16 %v413
      %v1169 = vunpack.c.l.b16 %v414
      %v1170 = vunpack.c.l.b16 %v415
      %v1171 = vunpack.c.l.b16 %v416
      %v1172 = vunpack.c.l.b16 %v417
      %v1173 = vunpack.c.l.b16 %v418
      %v1174 = vunpack.c.l.b16 %v419
      %v1175 = vunpack.c.l.b16 %v420
      %v1176 = vunpack.c.l.b16 %v421
      %v1177 = vunpack.c.l.b16 %v422
      %v1178 = vunpack.c.l.b16 %v423
      %v1179 = vunpack.c.l.b16 %v424
      %v1180 = vunpack.c.l.b16 %v425
      %v1181 = vunpack.c.l.b16 %v426
      %v1182 = vunpack.c.l.b16 %v427
      %v1183 = vunpack.c.l.b16 %v428
      %v1184 = vunpack.c.l.b16 %v429
      %v1185 = vunpack.c.l.b16 %v430
      %v1186 = vunpack.c.l.b16 %v431
      %v1187 = vunpack.c.l.b16 %v432
      %v1188 = vunpack.c.l.b16 %v433
      %v1189 = vunpack.c.l.b16 %v434
      %v1190 = vunpack.c.l.b16 %v435
      %v1191 = vunpack.c.l.b16 %v436
      %v1192 = vunpack.c.l.b16 %v437
      %v1193 = vunpack.c.l.b16 %v438
      %v1194 = vunpack.c.l.b16 %v439
      %v1195 = vunpack.c.l.b16 %v440
      %v1196 = vunpack.c.l.b16 %v441
      %v1197 = vunpack.c.l.b16 %v442
      %v1198 = vunpack.c.l.b16 %v443
      %v1199 = vunpack.c.l.b16 %v444
      %v1200 = vunpack.c.l.b16 %v445
      %v1201 = vunpack.c.l.b16 %v446
      %v1202 = vunpack.c.l.b16 %v447
      %v1203 = vunpack.c.l.b16 %v448
      %v1204 = vunpack.c.l.b16 %v449
      %v1205 = vunpack.c.l.b16 %v450
      %v1206 = vunpack.c.l.b16 %v451
      %v1207 = vunpack.c.l.b16 %v452
      %v1208 = vunpack.c.l.b16 %v453
      %v1209 = vunpack.c.l.b16 %v454
      %v1210 = vunpack.c.l.b16 %v455
      %v1211 = vunpack.c.l.b16 %v456
      %v1212 = vunpack.c.l.b16 %v457
      %v1213 = vunpack.c.l.b16 %v458
      %v1214 = vunpack.c.l.b16 %v459
      %v1215 = vunpack.c.l.b16 %v460
      %v1216 = vunpack.c.l.b16 %v461
      %v1217 = vunpack.c.l.b16 %v462
      %v1218 = vunpack.c.l.b16 %v463
      %v1219 = vpack.c.b16 %v1156, %v1155
      %v1220 = vpack.c.b16 %v1158, %v1157
      %v1221 = vpack.c.b16 %v1160, %v1159
      %v1222 = vpack.c.b16 %v1162, %v1161
      %v1223 = vpack.c.b16 %v1164, %v1163
      %v1224 = vpack.c.b16 %v1166, %v1165
      %v1225 = vpack.c.b16 %v1168, %v1167
      %v1226 = vpack.c.b16 %v1170, %v1169
      %v1227 = vpack.c.b16 %v1172, %v1171
      %v1228 = vpack.c.b16 %v1174, %v1173
      %v1229 = vpack.c.b16 %v1176, %v1175
      %v1230 = vpack.c.b16 %v1178, %v1177
      %v1231 = vpack.c.b16 %v1180, %v1179
      %v1232 = vpack.c.b16 %v1182, %v1181
      %v1233 = vpack.c.b16 %v1184, %v1183
      %v1234 = vpack.c.b16 %v1186, %v1185
      %v1235 = vpack.c.b16 %v1188, %v1187
      %v1236 = vpack.c.b16 %v1190, %v1189
      %v1237 = vpack.c.b16 %v1192, %v1191
      %v1238 = vpack.c.b16 %v1194, %v1193
      %v1239 = vpack.c.b16 %v1196, %v1195
      %v1240 = vpack.c.b16 %v1198, %v1197
      %v1241 = vpack.c.b16 %v1200, %v1199
      %v1242 = vpack.c.b16 %v1202, %v1201
      %v1243 = vpack.c.b16 %v1204, %v1203
      %v1244 = vpack.c.b16 %v1206, %v1205
      %v1245 = vpack.c.b16 %v1208, %v1207
      %v1246 = vpack.c.b16 %v1210, %v1209
      %v1247 = vpack.c.b16 %v1212, %v1211
      %v1248 = vpack.c.b16 %v1214, %v1213
      %v1249 = vpack.c.b16 %v1216, %v1215
      %v1250 = vpack.c.b16 %v1218, %v1217
      %v1299 = vunpack.c.l.b16 %v464
      %v1300 = vunpack.c.l.b16 %v465
      %v1301 = vunpack.c.l.b16 %v466
      %v1302 = vunpack.c.l.b16 %v467
      %v1303 = vunpack.c.l.b16 %v468
      %v1304 = vunpack.c.l.b16 %v469
      %v1305 = vunpack.c.l.b16 %v470
      %v1306 = vunpack.c.l.b16 %v471
      %v1307 = vunpack.c.l.b16 %v472
      %v1308 = vunpack.c.l.b16 %v473
      %v1309 = vunpack.c.l.b16 %v474
      %v1310 = vunpack.c.l.b16 %v475
      %v1311 = vunpack.c.l.b16 %v476
      %v1312 = vunpack.c.l.b16 %v477
      %v1313 = vunpack.c.l.b16 %v478
      %v1314 = vunpack.c.l.b16 %v479
      %v1315 = vpack.c.b16 %v1300, %v1299
      %v1316 = vpack.c.b16 %v1302, %v1301
      %v1317 = vpack.c.b16 %v1304, %v1303
      %v1318 = vpack.c.b16 %v1306, %v1305
      %v1319 = vpack.c.b16 %v1308, %v1307
      %v1320 = vpack.c.b16 %v1310, %v1309
      %v1321 = vpack.c.b16 %v1312, %v1311
      %v1322 = vpack.c.b16 %v1314, %v1313
      %1331 = vmatprep.subr.bf16.mxu0 0
      %1332 = vmatpush1.bf16.msra.mxu0 %v1322
      %1333 = vmatprep.subr.bf16.mxu0 0
      %1334 = vmatpush1.bf16.msra.mxu0 %v1321
      %1335 = vmatprep.subr.bf16.mxu0 0
      %1336 = vmatpush1.bf16.msra.mxu0 %v1320
      %1337 = vmatprep.subr.bf16.mxu0 0
      %1338 = vmatpush1.bf16.msra.mxu0 %v1319
      %1339 = vmatprep.subr.bf16.mxu0 0
      %1340 = vmatpush1.bf16.msra.mxu0 %v1318
      %1341 = vmatprep.subr.bf16.mxu0 0
      %1342 = vmatpush1.bf16.msra.mxu0 %v1317
      %1343 = vmatprep.subr.bf16.mxu0 0
      %1344 = vmatpush1.bf16.msra.mxu0 %v1316
      %1345 = vmatprep.subr.bf16.mxu0 0
      %1346 = vmatpush1.bf16.msra.mxu0 %v1315
      %1347 = vmatprep.subr.bf16.mxu0 0
      %1348 = vmatpush2.bf16.msra.mxu0 0
      %1349 = vmatprep.subr.bf16.mxu0 0
      %1350 = vmatpush2.bf16.msra.mxu0 0
      %1351 = vmatprep.subr.bf16.mxu0 0
      %1352 = vmatpush2.bf16.msra.mxu0 0
      %1353 = vmatprep.subr.bf16.mxu0 0
      %1354 = vmatpush2.bf16.msra.mxu0 0
      %1355 = vmatprep.subr.bf16.mxu0 0
      %1356 = vmatpush2.bf16.msra.mxu0 0
      %1357 = vmatprep.subr.bf16.mxu0 0
      %1358 = vmatpush2.bf16.msra.mxu0 0
      %1359 = vmatprep.subr.bf16.mxu0 0
      %1360 = vmatpush2.bf16.msra.mxu0 0
      %1361 = vmatprep.subr.bf16.mxu0 0
      %1362 = vmatpush2.bf16.msra.mxu0 0
      %1363 = vmatprep.mubr.bf16.mxu0 0
      %1364 = vmatmul.mubr.bf16.gmra.mxu0 %v1219
      %v1365 = vpop.f32.mrf.mxu0
      %v1366 = vadd.f32 %v837, %v1365
      %v1367 = vpop.f32.mrf.mxu0
      %v1368 = vpop.f32.mrf.mxu0
      %v1369 = vadd.f32 %v840, %v1368
      %v1370 = vpop.f32.mrf.mxu0
      %1371 = vmatprep.mubr.bf16.mxu0 0
      %1372 = vmatmul.mubr.bf16.gmra.mxu0 %v1220
      %v1373 = vpop.f32.mrf.mxu0
      %v1374 = vadd.f32 %v845, %v1373
      %v1375 = vpop.f32.mrf.mxu0
      %v1376 = vpop.f32.mrf.mxu0
      %v1377 = vadd.f32 %v848, %v1376
      %v1378 = vpop.f32.mrf.mxu0
      %1379 = vmatprep.mubr.bf16.mxu0 0
      %1380 = vmatmul.mubr.bf16.gmra.mxu0 %v1221
      %v1381 = vpop.f32.mrf.mxu0
      %v1382 = vadd.f32 %v853, %v1381
      %v1383 = vpop.f32.mrf.mxu0
      %v1384 = vpop.f32.mrf.mxu0
      %v1385 = vadd.f32 %v856, %v1384
      %v1386 = vpop.f32.mrf.mxu0
      %1387 = vmatprep.mubr.bf16.mxu0 0
      %1388 = vmatmul.mubr.bf16.gmra.mxu0 %v1222
      %v1389 = vpop.f32.mrf.mxu0
      %v1390 = vadd.f32 %v861, %v1389
      %v1391 = vpop.f32.mrf.mxu0
      %v1392 = vpop.f32.mrf.mxu0
      %v1393 = vadd.f32 %v864, %v1392
      %v1394 = vpop.f32.mrf.mxu0
      %1395 = vmatprep.mubr.bf16.mxu0 0
      %1396 = vmatmul.mubr.bf16.gmra.mxu0 %v1223
      %v1397 = vpop.f32.mrf.mxu0
      %v1398 = vadd.f32 %v869, %v1397
      %v1399 = vpop.f32.mrf.mxu0
      %v1400 = vpop.f32.mrf.mxu0
      %v1401 = vadd.f32 %v872, %v1400
      %v1402 = vpop.f32.mrf.mxu0
      %1403 = vmatprep.mubr.bf16.mxu0 0
      %1404 = vmatmul.mubr.bf16.gmra.mxu0 %v1224
      %v1405 = vpop.f32.mrf.mxu0
      %v1406 = vadd.f32 %v877, %v1405
      %v1407 = vpop.f32.mrf.mxu0
      %v1408 = vpop.f32.mrf.mxu0
      %v1409 = vadd.f32 %v880, %v1408
      %v1410 = vpop.f32.mrf.mxu0
      %1411 = vmatprep.mubr.bf16.mxu0 0
      %1412 = vmatmul.mubr.bf16.gmra.mxu0 %v1225
      %v1413 = vpop.f32.mrf.mxu0
      %v1414 = vadd.f32 %v885, %v1413
      %v1415 = vpop.f32.mrf.mxu0
      %v1416 = vpop.f32.mrf.mxu0
      %v1417 = vadd.f32 %v888, %v1416
      %v1418 = vpop.f32.mrf.mxu0
      %1419 = vmatprep.mubr.bf16.mxu0 0
      %1420 = vmatmul.mubr.bf16.gmra.mxu0 %v1226
      %v1421 = vpop.f32.mrf.mxu0
      %v1422 = vadd.f32 %v893, %v1421
      %v1423 = vpop.f32.mrf.mxu0
      %v1424 = vpop.f32.mrf.mxu0
      %v1425 = vadd.f32 %v896, %v1424
      %v1426 = vpop.f32.mrf.mxu0
      %1427 = vmatprep.mubr.bf16.mxu0 0
      %1428 = vmatmul.mubr.bf16.gmra.mxu0 %v1227
      %v1429 = vpop.f32.mrf.mxu0
      %v1430 = vadd.f32 %v901, %v1429
      %v1431 = vpop.f32.mrf.mxu0
      %v1432 = vpop.f32.mrf.mxu0
      %v1433 = vadd.f32 %v904, %v1432
      %v1434 = vpop.f32.mrf.mxu0
      %1435 = vmatprep.mubr.bf16.mxu0 0
      %1436 = vmatmul.mubr.bf16.gmra.mxu0 %v1228
      %v1437 = vpop.f32.mrf.mxu0
      %v1438 = vadd.f32 %v909, %v1437
      %v1439 = vpop.f32.mrf.mxu0
      %v1440 = vpop.f32.mrf.mxu0
      %v1441 = vadd.f32 %v912, %v1440
      %v1442 = vpop.f32.mrf.mxu0
      %1443 = vmatprep.mubr.bf16.mxu0 0
      %1444 = vmatmul.mubr.bf16.gmra.mxu0 %v1229
      %v1445 = vpop.f32.mrf.mxu0
      %v1446 = vadd.f32 %v917, %v1445
      %v1447 = vpop.f32.mrf.mxu0
      %v1448 = vpop.f32.mrf.mxu0
      %v1449 = vadd.f32 %v920, %v1448
      %v1450 = vpop.f32.mrf.mxu0
      %1451 = vmatprep.mubr.bf16.mxu0 0
      %1452 = vmatmul.mubr.bf16.gmra.mxu0 %v1230
      %v1453 = vpop.f32.mrf.mxu0
      %v1454 = vadd.f32 %v925, %v1453
      %v1455 = vpop.f32.mrf.mxu0
      %v1456 = vpop.f32.mrf.mxu0
      %v1457 = vadd.f32 %v928, %v1456
      %v1458 = vpop.f32.mrf.mxu0
      %1459 = vmatprep.mubr.bf16.mxu0 0
      %1460 = vmatmul.mubr.bf16.gmra.mxu0 %v1231
      %v1461 = vpop.f32.mrf.mxu0
      %v1462 = vadd.f32 %v933, %v1461
      %v1463 = vpop.f32.mrf.mxu0
      %v1464 = vpop.f32.mrf.mxu0
      %v1465 = vadd.f32 %v936, %v1464
      %v1466 = vpop.f32.mrf.mxu0
      %1467 = vmatprep.mubr.bf16.mxu0 0
      %1468 = vmatmul.mubr.bf16.gmra.mxu0 %v1232
      %v1469 = vpop.f32.mrf.mxu0
      %v1470 = vadd.f32 %v941, %v1469
      %v1471 = vpop.f32.mrf.mxu0
      %v1472 = vpop.f32.mrf.mxu0
      %v1473 = vadd.f32 %v944, %v1472
      %v1474 = vpop.f32.mrf.mxu0
      %1475 = vmatprep.mubr.bf16.mxu0 0
      %1476 = vmatmul.mubr.bf16.gmra.mxu0 %v1233
      %v1477 = vpop.f32.mrf.mxu0
      %v1478 = vadd.f32 %v949, %v1477
      %v1479 = vpop.f32.mrf.mxu0
      %v1480 = vpop.f32.mrf.mxu0
      %v1481 = vadd.f32 %v952, %v1480
      %v1482 = vpop.f32.mrf.mxu0
      %1483 = vmatprep.mubr.bf16.mxu0 0
      %1484 = vmatmul.mubr.bf16.gmra.mxu0 %v1234
      %v1485 = vpop.f32.mrf.mxu0
      %v1486 = vadd.f32 %v957, %v1485
      %v1487 = vpop.f32.mrf.mxu0
      %v1488 = vpop.f32.mrf.mxu0
      %v1489 = vadd.f32 %v960, %v1488
      %v1490 = vpop.f32.mrf.mxu0
      %1491 = vmatprep.mubr.bf16.mxu0 0
      %1492 = vmatmul.mubr.bf16.gmra.mxu0 %v1235
      %v1493 = vpop.f32.mrf.mxu0
      %v1494 = vadd.f32 %v965, %v1493
      %v1495 = vpop.f32.mrf.mxu0
      %v1496 = vpop.f32.mrf.mxu0
      %v1497 = vadd.f32 %v968, %v1496
      %v1498 = vpop.f32.mrf.mxu0
      %1499 = vmatprep.mubr.bf16.mxu0 0
      %1500 = vmatmul.mubr.bf16.gmra.mxu0 %v1236
      %v1501 = vpop.f32.mrf.mxu0
      %v1502 = vadd.f32 %v973, %v1501
      %v1503 = vpop.f32.mrf.mxu0
      %v1504 = vpop.f32.mrf.mxu0
      %v1505 = vadd.f32 %v976, %v1504
      %v1506 = vpop.f32.mrf.mxu0
      %1507 = vmatprep.mubr.bf16.mxu0 0
      %1508 = vmatmul.mubr.bf16.gmra.mxu0 %v1237
      %v1509 = vpop.f32.mrf.mxu0
      %v1510 = vadd.f32 %v981, %v1509
      %v1511 = vpop.f32.mrf.mxu0
      %v1512 = vpop.f32.mrf.mxu0
      %v1513 = vadd.f32 %v984, %v1512
      %v1514 = vpop.f32.mrf.mxu0
      %1515 = vmatprep.mubr.bf16.mxu0 0
      %1516 = vmatmul.mubr.bf16.gmra.mxu0 %v1238
      %v1517 = vpop.f32.mrf.mxu0
      %v1518 = vadd.f32 %v989, %v1517
      %v1519 = vpop.f32.mrf.mxu0
      %v1520 = vpop.f32.mrf.mxu0
      %v1521 = vadd.f32 %v992, %v1520
      %v1522 = vpop.f32.mrf.mxu0
      %1523 = vmatprep.mubr.bf16.mxu0 0
      %1524 = vmatmul.mubr.bf16.gmra.mxu0 %v1239
      %v1525 = vpop.f32.mrf.mxu0
      %v1526 = vadd.f32 %v997, %v1525
      %v1527 = vpop.f32.mrf.mxu0
      %v1528 = vpop.f32.mrf.mxu0
      %v1529 = vadd.f32 %v1000, %v1528
      %v1530 = vpop.f32.mrf.mxu0
      %1531 = vmatprep.mubr.bf16.mxu0 0
      %1532 = vmatmul.mubr.bf16.gmra.mxu0 %v1240
      %v1533 = vpop.f32.mrf.mxu0
      %v1534 = vadd.f32 %v1005, %v1533
      %v1535 = vpop.f32.mrf.mxu0
      %v1536 = vpop.f32.mrf.mxu0
      %v1537 = vadd.f32 %v1008, %v1536
      %v1538 = vpop.f32.mrf.mxu0
      %1539 = vmatprep.mubr.bf16.mxu0 0
      %1540 = vmatmul.mubr.bf16.gmra.mxu0 %v1241
      %v1541 = vpop.f32.mrf.mxu0
      %v1542 = vadd.f32 %v1013, %v1541
      %v1543 = vpop.f32.mrf.mxu0
      %v1544 = vpop.f32.mrf.mxu0
      %v1545 = vadd.f32 %v1016, %v1544
      %v1546 = vpop.f32.mrf.mxu0
      %1547 = vmatprep.mubr.bf16.mxu0 0
      %1548 = vmatmul.mubr.bf16.gmra.mxu0 %v1242
      %v1549 = vpop.f32.mrf.mxu0
      %v1550 = vadd.f32 %v1021, %v1549
      %v1551 = vpop.f32.mrf.mxu0
      %v1552 = vpop.f32.mrf.mxu0
      %v1553 = vadd.f32 %v1024, %v1552
      %v1554 = vpop.f32.mrf.mxu0
      %1555 = vmatprep.mubr.bf16.mxu0 0
      %1556 = vmatmul.mubr.bf16.gmra.mxu0 %v1243
      %v1557 = vpop.f32.mrf.mxu0
      %v1558 = vadd.f32 %v1029, %v1557
      %v1559 = vpop.f32.mrf.mxu0
      %v1560 = vpop.f32.mrf.mxu0
      %v1561 = vadd.f32 %v1032, %v1560
      %v1562 = vpop.f32.mrf.mxu0
      %1563 = vmatprep.mubr.bf16.mxu0 0
      %1564 = vmatmul.mubr.bf16.gmra.mxu0 %v1244
      %v1565 = vpop.f32.mrf.mxu0
      %v1566 = vadd.f32 %v1037, %v1565
      %v1567 = vpop.f32.mrf.mxu0
      %v1568 = vpop.f32.mrf.mxu0
      %v1569 = vadd.f32 %v1040, %v1568
      %v1570 = vpop.f32.mrf.mxu0
      %1571 = vmatprep.mubr.bf16.mxu0 0
      %1572 = vmatmul.mubr.bf16.gmra.mxu0 %v1245
      %v1573 = vpop.f32.mrf.mxu0
      %v1574 = vadd.f32 %v1045, %v1573
      %v1575 = vpop.f32.mrf.mxu0
      %v1576 = vpop.f32.mrf.mxu0
      %v1577 = vadd.f32 %v1048, %v1576
      %v1578 = vpop.f32.mrf.mxu0
      %1579 = vmatprep.mubr.bf16.mxu0 0
      %1580 = vmatmul.mubr.bf16.gmra.mxu0 %v1246
      %v1581 = vpop.f32.mrf.mxu0
      %v1582 = vadd.f32 %v1053, %v1581
      %v1583 = vpop.f32.mrf.mxu0
      %v1584 = vpop.f32.mrf.mxu0
      %v1585 = vadd.f32 %v1056, %v1584
      %v1586 = vpop.f32.mrf.mxu0
      %1587 = vmatprep.mubr.bf16.mxu0 0
      %1588 = vmatmul.mubr.bf16.gmra.mxu0 %v1247
      %v1589 = vpop.f32.mrf.mxu0
      %v1590 = vadd.f32 %v1061, %v1589
      %v1591 = vpop.f32.mrf.mxu0
      %v1592 = vpop.f32.mrf.mxu0
      %v1593 = vadd.f32 %v1064, %v1592
      %v1594 = vpop.f32.mrf.mxu0
      %1595 = vmatprep.mubr.bf16.mxu0 0
      %1596 = vmatmul.mubr.bf16.gmra.mxu0 %v1248
      %v1597 = vpop.f32.mrf.mxu0
      %v1598 = vadd.f32 %v1069, %v1597
      %v1599 = vpop.f32.mrf.mxu0
      %v1600 = vpop.f32.mrf.mxu0
      %v1601 = vadd.f32 %v1072, %v1600
      %v1602 = vpop.f32.mrf.mxu0
      %1603 = vmatprep.mubr.bf16.mxu0 0
      %1604 = vmatmul.mubr.bf16.gmra.mxu0 %v1249
      %v1605 = vpop.f32.mrf.mxu0
      %v1606 = vadd.f32 %v1077, %v1605
      %v1607 = vpop.f32.mrf.mxu0
      %v1608 = vpop.f32.mrf.mxu0
      %v1609 = vadd.f32 %v1080, %v1608
      %v1610 = vpop.f32.mrf.mxu0
      %1611 = vmatprep.mubr.bf16.mxu0 0
      %1612 = vmatmul.mubr.bf16.gmra.mxu0 %v1250
      %v1613 = vpop.f32.mrf.mxu0
      %v1614 = vadd.f32 %v1085, %v1613
      %v1615 = vpop.f32.mrf.mxu0
      %v1616 = vpop.f32.mrf.mxu0
      %v1617 = vadd.f32 %v1088, %v1616
      %v1618 = vpop.f32.mrf.mxu0
      %1619 = vdwg.mxu0
      %s1620 = scalar_lea.vmem [#allocation2], 32
      %v1621 = vld [vmem:[%s1620] sm:$0xf]
      %v1622 = vld [vmem:[%s1620 + $0x4] sm:$0xf]
      %v1623 = vld [vmem:[%s1620 + $0x8] sm:$0xf]
      %v1624 = vld [vmem:[%s1620 + $0xc] sm:$0xf]
      %v1625 = vld [vmem:[%s1620 + $0x10] sm:$0xf]
      %v1626 = vld [vmem:[%s1620 + $0x14] sm:$0xf]
      %v1627 = vld [vmem:[%s1620 + $0x18] sm:$0xf]
      %v1628 = vld [vmem:[%s1620 + $0x1c] sm:$0xf]
      %v1629 = vld [vmem:[%s1620 + $0x20] sm:$0xf]
      %v1630 = vld [vmem:[%s1620 + $0x24] sm:$0xf]
      %v1631 = vld [vmem:[%s1620 + $0x28] sm:$0xf]
      %v1632 = vld [vmem:[%s1620 + $0x2c] sm:$0xf]
      %v1633 = vld [vmem:[%s1620 + $0x30] sm:$0xf]
      %v1634 = vld [vmem:[%s1620 + $0x34] sm:$0xf]
      %v1635 = vld [vmem:[%s1620 + $0x38] sm:$0xf]
      %v1636 = vld [vmem:[%s1620 + $0x3c] sm:$0xf]
      %v1637 = vld [vmem:[%s1620 + $0x40] sm:$0xf]
      %v1638 = vld [vmem:[%s1620 + $0x44] sm:$0xf]
      %v1639 = vld [vmem:[%s1620 + $0x48] sm:$0xf]
      %v1640 = vld [vmem:[%s1620 + $0x4c] sm:$0xf]
      %v1641 = vld [vmem:[%s1620 + $0x50] sm:$0xf]
      %v1642 = vld [vmem:[%s1620 + $0x54] sm:$0xf]
      %v1643 = vld [vmem:[%s1620 + $0x58] sm:$0xf]
      %v1644 = vld [vmem:[%s1620 + $0x5c] sm:$0xf]
      %v1645 = vld [vmem:[%s1620 + $0x60] sm:$0xf]
      %v1646 = vld [vmem:[%s1620 + $0x64] sm:$0xf]
      %v1647 = vld [vmem:[%s1620 + $0x68] sm:$0xf]
      %v1648 = vld [vmem:[%s1620 + $0x6c] sm:$0xf]
      %v1649 = vld [vmem:[%s1620 + $0x70] sm:$0xf]
      %v1650 = vld [vmem:[%s1620 + $0x74] sm:$0xf]
      %v1651 = vld [vmem:[%s1620 + $0x78] sm:$0xf]
      %v1652 = vld [vmem:[%s1620 + $0x7c] sm:$0xf]
      %v1653 = vld [vmem:[%s1620 + $0x80] sm:$0xf]
      %v1654 = vld [vmem:[%s1620 + $0x84] sm:$0xf]
      %v1655 = vld [vmem:[%s1620 + $0x88] sm:$0xf]
      %v1656 = vld [vmem:[%s1620 + $0x8c] sm:$0xf]
      %v1657 = vld [vmem:[%s1620 + $0x90] sm:$0xf]
      %v1658 = vld [vmem:[%s1620 + $0x94] sm:$0xf]
      %v1659 = vld [vmem:[%s1620 + $0x98] sm:$0xf]
      %v1660 = vld [vmem:[%s1620 + $0x9c] sm:$0xf]
      %v1661 = vld [vmem:[%s1620 + $0xa0] sm:$0xf]
      %v1662 = vld [vmem:[%s1620 + $0xa4] sm:$0xf]
      %v1663 = vld [vmem:[%s1620 + $0xa8] sm:$0xf]
      %v1664 = vld [vmem:[%s1620 + $0xac] sm:$0xf]
      %v1665 = vld [vmem:[%s1620 + $0xb0] sm:$0xf]
      %v1666 = vld [vmem:[%s1620 + $0xb4] sm:$0xf]
      %v1667 = vld [vmem:[%s1620 + $0xb8] sm:$0xf]
      %v1668 = vld [vmem:[%s1620 + $0xbc] sm:$0xf]
      %v1669 = vld [vmem:[%s1620 + $0xc0] sm:$0xf]
      %v1670 = vld [vmem:[%s1620 + $0xc4] sm:$0xf]
      %v1671 = vld [vmem:[%s1620 + $0xc8] sm:$0xf]
      %v1672 = vld [vmem:[%s1620 + $0xcc] sm:$0xf]
      %v1673 = vld [vmem:[%s1620 + $0xd0] sm:$0xf]
      %v1674 = vld [vmem:[%s1620 + $0xd4] sm:$0xf]
      %v1675 = vld [vmem:[%s1620 + $0xd8] sm:$0xf]
      %v1676 = vld [vmem:[%s1620 + $0xdc] sm:$0xf]
      %v1677 = vld [vmem:[%s1620 + $0xe0] sm:$0xf]
      %v1678 = vld [vmem:[%s1620 + $0xe4] sm:$0xf]
      %v1679 = vld [vmem:[%s1620 + $0xe8] sm:$0xf]
      %v1680 = vld [vmem:[%s1620 + $0xec] sm:$0xf]
      %v1681 = vld [vmem:[%s1620 + $0xf0] sm:$0xf]
      %v1682 = vld [vmem:[%s1620 + $0xf4] sm:$0xf]
      %v1683 = vld [vmem:[%s1620 + $0xf8] sm:$0xf]
      %v1684 = vld [vmem:[%s1620 + $0xfc] sm:$0xf]
      %s1685 = scalar_lea.vmem %s1, 384
      %v1686 = vld [vmem:[%s1685] sm:$0xf]
      %v1687 = vld [vmem:[%s1685 + $0x4] sm:$0xf]
      %v1688 = vld [vmem:[%s1685 + $0x8] sm:$0xf]
      %v1689 = vld [vmem:[%s1685 + $0xc] sm:$0xf]
      %v1690 = vld [vmem:[%s1685 + $0x10] sm:$0xf]
      %v1691 = vld [vmem:[%s1685 + $0x14] sm:$0xf]
      %v1692 = vld [vmem:[%s1685 + $0x18] sm:$0xf]
      %v1693 = vld [vmem:[%s1685 + $0x1c] sm:$0xf]
      %v1694 = vld [vmem:[%s1685 + $0x20] sm:$0xf]
      %v1695 = vld [vmem:[%s1685 + $0x24] sm:$0xf]
      %v1696 = vld [vmem:[%s1685 + $0x28] sm:$0xf]
      %v1697 = vld [vmem:[%s1685 + $0x2c] sm:$0xf]
      %v1698 = vld [vmem:[%s1685 + $0x30] sm:$0xf]
      %v1699 = vld [vmem:[%s1685 + $0x34] sm:$0xf]
      %v1700 = vld [vmem:[%s1685 + $0x38] sm:$0xf]
      %v1701 = vld [vmem:[%s1685 + $0x3c] sm:$0xf]
      %v1766 = vunpack.c.l.b16 %v1621
      %v1767 = vunpack.c.l.b16 %v1622
      %v1768 = vunpack.c.l.b16 %v1623
      %v1769 = vunpack.c.l.b16 %v1624
      %v1770 = vunpack.c.l.b16 %v1625
      %v1771 = vunpack.c.l.b16 %v1626
      %v1772 = vunpack.c.l.b16 %v1627
      %v1773 = vunpack.c.l.b16 %v1628
      %v1774 = vunpack.c.l.b16 %v1629
      %v1775 = vunpack.c.l.b16 %v1630
      %v1776 = vunpack.c.l.b16 %v1631
      %v1777 = vunpack.c.l.b16 %v1632
      %v1778 = vunpack.c.l.b16 %v1633
      %v1779 = vunpack.c.l.b16 %v1634
      %v1780 = vunpack.c.l.b16 %v1635
      %v1781 = vunpack.c.l.b16 %v1636
      %v1782 = vunpack.c.l.b16 %v1637
      %v1783 = vunpack.c.l.b16 %v1638
      %v1784 = vunpack.c.l.b16 %v1639
      %v1785 = vunpack.c.l.b16 %v1640
      %v1786 = vunpack.c.l.b16 %v1641
      %v1787 = vunpack.c.l.b16 %v1642
      %v1788 = vunpack.c.l.b16 %v1643
      %v1789 = vunpack.c.l.b16 %v1644
      %v1790 = vunpack.c.l.b16 %v1645
      %v1791 = vunpack.c.l.b16 %v1646
      %v1792 = vunpack.c.l.b16 %v1647
      %v1793 = vunpack.c.l.b16 %v1648
      %v1794 = vunpack.c.l.b16 %v1649
      %v1795 = vunpack.c.l.b16 %v1650
      %v1796 = vunpack.c.l.b16 %v1651
      %v1797 = vunpack.c.l.b16 %v1652
      %v1798 = vunpack.c.l.b16 %v1653
      %v1799 = vunpack.c.l.b16 %v1654
      %v1800 = vunpack.c.l.b16 %v1655
      %v1801 = vunpack.c.l.b16 %v1656
      %v1802 = vunpack.c.l.b16 %v1657
      %v1803 = vunpack.c.l.b16 %v1658
      %v1804 = vunpack.c.l.b16 %v1659
      %v1805 = vunpack.c.l.b16 %v1660
      %v1806 = vunpack.c.l.b16 %v1661
      %v1807 = vunpack.c.l.b16 %v1662
      %v1808 = vunpack.c.l.b16 %v1663
      %v1809 = vunpack.c.l.b16 %v1664
      %v1810 = vunpack.c.l.b16 %v1665
      %v1811 = vunpack.c.l.b16 %v1666
      %v1812 = vunpack.c.l.b16 %v1667
      %v1813 = vunpack.c.l.b16 %v1668
      %v1814 = vunpack.c.l.b16 %v1669
      %v1815 = vunpack.c.l.b16 %v1670
      %v1816 = vunpack.c.l.b16 %v1671
      %v1817 = vunpack.c.l.b16 %v1672
      %v1818 = vunpack.c.l.b16 %v1673
      %v1819 = vunpack.c.l.b16 %v1674
      %v1820 = vunpack.c.l.b16 %v1675
      %v1821 = vunpack.c.l.b16 %v1676
      %v1822 = vunpack.c.l.b16 %v1677
      %v1823 = vunpack.c.l.b16 %v1678
      %v1824 = vunpack.c.l.b16 %v1679
      %v1825 = vunpack.c.l.b16 %v1680
      %v1826 = vunpack.c.l.b16 %v1681
      %v1827 = vunpack.c.l.b16 %v1682
      %v1828 = vunpack.c.l.b16 %v1683
      %v1829 = vunpack.c.l.b16 %v1684
      %v1830 = vpack.c.b16 %v1767, %v1766
      %v1831 = vpack.c.b16 %v1769, %v1768
      %v1832 = vpack.c.b16 %v1771, %v1770
      %v1833 = vpack.c.b16 %v1773, %v1772
      %v1834 = vpack.c.b16 %v1775, %v1774
      %v1835 = vpack.c.b16 %v1777, %v1776
      %v1836 = vpack.c.b16 %v1779, %v1778
      %v1837 = vpack.c.b16 %v1781, %v1780
      %v1838 = vpack.c.b16 %v1783, %v1782
      %v1839 = vpack.c.b16 %v1785, %v1784
      %v1840 = vpack.c.b16 %v1787, %v1786
      %v1841 = vpack.c.b16 %v1789, %v1788
      %v1842 = vpack.c.b16 %v1791, %v1790
      %v1843 = vpack.c.b16 %v1793, %v1792
      %v1844 = vpack.c.b16 %v1795, %v1794
      %v1845 = vpack.c.b16 %v1797, %v1796
      %v1846 = vpack.c.b16 %v1799, %v1798
      %v1847 = vpack.c.b16 %v1801, %v1800
      %v1848 = vpack.c.b16 %v1803, %v1802
      %v1849 = vpack.c.b16 %v1805, %v1804
      %v1850 = vpack.c.b16 %v1807, %v1806
      %v1851 = vpack.c.b16 %v1809, %v1808
      %v1852 = vpack.c.b16 %v1811, %v1810
      %v1853 = vpack.c.b16 %v1813, %v1812
      %v1854 = vpack.c.b16 %v1815, %v1814
      %v1855 = vpack.c.b16 %v1817, %v1816
      %v1856 = vpack.c.b16 %v1819, %v1818
      %v1857 = vpack.c.b16 %v1821, %v1820
      %v1858 = vpack.c.b16 %v1823, %v1822
      %v1859 = vpack.c.b16 %v1825, %v1824
      %v1860 = vpack.c.b16 %v1827, %v1826
      %v1861 = vpack.c.b16 %v1829, %v1828
      %v1910 = vunpack.c.l.b16 %v1686
      %v1911 = vunpack.c.l.b16 %v1687
      %v1912 = vunpack.c.l.b16 %v1688
      %v1913 = vunpack.c.l.b16 %v1689
      %v1914 = vunpack.c.l.b16 %v1690
      %v1915 = vunpack.c.l.b16 %v1691
      %v1916 = vunpack.c.l.b16 %v1692
      %v1917 = vunpack.c.l.b16 %v1693
      %v1918 = vunpack.c.l.b16 %v1694
      %v1919 = vunpack.c.l.b16 %v1695
      %v1920 = vunpack.c.l.b16 %v1696
      %v1921 = vunpack.c.l.b16 %v1697
      %v1922 = vunpack.c.l.b16 %v1698
      %v1923 = vunpack.c.l.b16 %v1699
      %v1924 = vunpack.c.l.b16 %v1700
      %v1925 = vunpack.c.l.b16 %v1701
      %v1926 = vpack.c.b16 %v1911, %v1910
      %v1927 = vpack.c.b16 %v1913, %v1912
      %v1928 = vpack.c.b16 %v1915, %v1914
      %v1929 = vpack.c.b16 %v1917, %v1916
      %v1930 = vpack.c.b16 %v1919, %v1918
      %v1931 = vpack.c.b16 %v1921, %v1920
      %v1932 = vpack.c.b16 %v1923, %v1922
      %v1933 = vpack.c.b16 %v1925, %v1924
      %1942 = vmatprep.subr.bf16.mxu0 0
      %1943 = vmatpush1.bf16.msra.mxu0 %v1933
      %1944 = vmatprep.subr.bf16.mxu0 0
      %1945 = vmatpush1.bf16.msra.mxu0 %v1932
      %1946 = vmatprep.subr.bf16.mxu0 0
      %1947 = vmatpush1.bf16.msra.mxu0 %v1931
      %1948 = vmatprep.subr.bf16.mxu0 0
      %1949 = vmatpush1.bf16.msra.mxu0 %v1930
      %1950 = vmatprep.subr.bf16.mxu0 0
      %1951 = vmatpush1.bf16.msra.mxu0 %v1929
      %1952 = vmatprep.subr.bf16.mxu0 0
      %1953 = vmatpush1.bf16.msra.mxu0 %v1928
      %1954 = vmatprep.subr.bf16.mxu0 0
      %1955 = vmatpush1.bf16.msra.mxu0 %v1927
      %1956 = vmatprep.subr.bf16.mxu0 0
      %1957 = vmatpush1.bf16.msra.mxu0 %v1926
      %1958 = vmatprep.subr.bf16.mxu0 0
      %1959 = vmatpush2.bf16.msra.mxu0 0
      %1960 = vmatprep.subr.bf16.mxu0 0
      %1961 = vmatpush2.bf16.msra.mxu0 0
      %1962 = vmatprep.subr.bf16.mxu0 0
      %1963 = vmatpush2.bf16.msra.mxu0 0
      %1964 = vmatprep.subr.bf16.mxu0 0
      %1965 = vmatpush2.bf16.msra.mxu0 0
      %1966 = vmatprep.subr.bf16.mxu0 0
      %1967 = vmatpush2.bf16.msra.mxu0 0
      %1968 = vmatprep.subr.bf16.mxu0 0
      %1969 = vmatpush2.bf16.msra.mxu0 0
      %1970 = vmatprep.subr.bf16.mxu0 0
      %1971 = vmatpush2.bf16.msra.mxu0 0
      %1972 = vmatprep.subr.bf16.mxu0 0
      %1973 = vmatpush2.bf16.msra.mxu0 0
      %1974 = vmatprep.mubr.bf16.mxu0 0
      %1975 = vmatmul.mubr.bf16.gmra.mxu0 %v1830
      %v1976 = vpop.f32.mrf.mxu0
      %v1977 = vadd.f32 0.0, %v1976
      %v1978 = vpop.f32.mrf.mxu0
      %v1979 = vpop.f32.mrf.mxu0
      %v1980 = vadd.f32 0.0, %v1979
      %v1981 = vpop.f32.mrf.mxu0
      %1982 = vmatprep.mubr.bf16.mxu0 0
      %1983 = vmatmul.mubr.bf16.gmra.mxu0 %v1831
      %v1984 = vpop.f32.mrf.mxu0
      %v1985 = vadd.f32 0.0, %v1984
      %v1986 = vpop.f32.mrf.mxu0
      %v1987 = vpop.f32.mrf.mxu0
      %v1988 = vadd.f32 0.0, %v1987
      %v1989 = vpop.f32.mrf.mxu0
      %1990 = vmatprep.mubr.bf16.mxu0 0
      %1991 = vmatmul.mubr.bf16.gmra.mxu0 %v1832
      %v1992 = vpop.f32.mrf.mxu0
      %v1993 = vadd.f32 0.0, %v1992
      %v1994 = vpop.f32.mrf.mxu0
      %v1995 = vpop.f32.mrf.mxu0
      %v1996 = vadd.f32 0.0, %v1995
      %v1997 = vpop.f32.mrf.mxu0
      %1998 = vmatprep.mubr.bf16.mxu0 0
      %1999 = vmatmul.mubr.bf16.gmra.mxu0 %v1833
      %v2000 = vpop.f32.mrf.mxu0
      %v2001 = vadd.f32 0.0, %v2000
      %v2002 = vpop.f32.mrf.mxu0
      %v2003 = vpop.f32.mrf.mxu0
      %v2004 = vadd.f32 0.0, %v2003
      %v2005 = vpop.f32.mrf.mxu0
      %2006 = vmatprep.mubr.bf16.mxu0 0
      %2007 = vmatmul.mubr.bf16.gmra.mxu0 %v1834
      %v2008 = vpop.f32.mrf.mxu0
      %v2009 = vadd.f32 0.0, %v2008
      %v2010 = vpop.f32.mrf.mxu0
      %v2011 = vpop.f32.mrf.mxu0
      %v2012 = vadd.f32 0.0, %v2011
      %v2013 = vpop.f32.mrf.mxu0
      %2014 = vmatprep.mubr.bf16.mxu0 0
      %2015 = vmatmul.mubr.bf16.gmra.mxu0 %v1835
      %v2016 = vpop.f32.mrf.mxu0
      %v2017 = vadd.f32 0.0, %v2016
      %v2018 = vpop.f32.mrf.mxu0
      %v2019 = vpop.f32.mrf.mxu0
      %v2020 = vadd.f32 0.0, %v2019
      %v2021 = vpop.f32.mrf.mxu0
      %2022 = vmatprep.mubr.bf16.mxu0 0
      %2023 = vmatmul.mubr.bf16.gmra.mxu0 %v1836
      %v2024 = vpop.f32.mrf.mxu0
      %v2025 = vadd.f32 0.0, %v2024
      %v2026 = vpop.f32.mrf.mxu0
      %v2027 = vpop.f32.mrf.mxu0
      %v2028 = vadd.f32 0.0, %v2027
      %v2029 = vpop.f32.mrf.mxu0
      %2030 = vmatprep.mubr.bf16.mxu0 0
      %2031 = vmatmul.mubr.bf16.gmra.mxu0 %v1837
      %v2032 = vpop.f32.mrf.mxu0
      %v2033 = vadd.f32 0.0, %v2032
      %v2034 = vpop.f32.mrf.mxu0
      %v2035 = vpop.f32.mrf.mxu0
      %v2036 = vadd.f32 0.0, %v2035
      %v2037 = vpop.f32.mrf.mxu0
      %2038 = vmatprep.mubr.bf16.mxu0 0
      %2039 = vmatmul.mubr.bf16.gmra.mxu0 %v1838
      %v2040 = vpop.f32.mrf.mxu0
      %v2041 = vadd.f32 0.0, %v2040
      %v2042 = vpop.f32.mrf.mxu0
      %v2043 = vpop.f32.mrf.mxu0
      %v2044 = vadd.f32 0.0, %v2043
      %v2045 = vpop.f32.mrf.mxu0
      %2046 = vmatprep.mubr.bf16.mxu0 0
      %2047 = vmatmul.mubr.bf16.gmra.mxu0 %v1839
      %v2048 = vpop.f32.mrf.mxu0
      %v2049 = vadd.f32 0.0, %v2048
      %v2050 = vpop.f32.mrf.mxu0
      %v2051 = vpop.f32.mrf.mxu0
      %v2052 = vadd.f32 0.0, %v2051
      %v2053 = vpop.f32.mrf.mxu0
      %2054 = vmatprep.mubr.bf16.mxu0 0
      %2055 = vmatmul.mubr.bf16.gmra.mxu0 %v1840
      %v2056 = vpop.f32.mrf.mxu0
      %v2057 = vadd.f32 0.0, %v2056
      %v2058 = vpop.f32.mrf.mxu0
      %v2059 = vpop.f32.mrf.mxu0
      %v2060 = vadd.f32 0.0, %v2059
      %v2061 = vpop.f32.mrf.mxu0
      %2062 = vmatprep.mubr.bf16.mxu0 0
      %2063 = vmatmul.mubr.bf16.gmra.mxu0 %v1841
      %v2064 = vpop.f32.mrf.mxu0
      %v2065 = vadd.f32 0.0, %v2064
      %v2066 = vpop.f32.mrf.mxu0
      %v2067 = vpop.f32.mrf.mxu0
      %v2068 = vadd.f32 0.0, %v2067
      %v2069 = vpop.f32.mrf.mxu0
      %2070 = vmatprep.mubr.bf16.mxu0 0
      %2071 = vmatmul.mubr.bf16.gmra.mxu0 %v1842
      %v2072 = vpop.f32.mrf.mxu0
      %v2073 = vadd.f32 0.0, %v2072
      %v2074 = vpop.f32.mrf.mxu0
      %v2075 = vpop.f32.mrf.mxu0
      %v2076 = vadd.f32 0.0, %v2075
      %v2077 = vpop.f32.mrf.mxu0
      %2078 = vmatprep.mubr.bf16.mxu0 0
      %2079 = vmatmul.mubr.bf16.gmra.mxu0 %v1843
      %v2080 = vpop.f32.mrf.mxu0
      %v2081 = vadd.f32 0.0, %v2080
      %v2082 = vpop.f32.mrf.mxu0
      %v2083 = vpop.f32.mrf.mxu0
      %v2084 = vadd.f32 0.0, %v2083
      %v2085 = vpop.f32.mrf.mxu0
      %2086 = vmatprep.mubr.bf16.mxu0 0
      %2087 = vmatmul.mubr.bf16.gmra.mxu0 %v1844
      %v2088 = vpop.f32.mrf.mxu0
      %v2089 = vadd.f32 0.0, %v2088
      %v2090 = vpop.f32.mrf.mxu0
      %v2091 = vpop.f32.mrf.mxu0
      %v2092 = vadd.f32 0.0, %v2091
      %v2093 = vpop.f32.mrf.mxu0
      %2094 = vmatprep.mubr.bf16.mxu0 0
      %2095 = vmatmul.mubr.bf16.gmra.mxu0 %v1845
      %v2096 = vpop.f32.mrf.mxu0
      %v2097 = vadd.f32 0.0, %v2096
      %v2098 = vpop.f32.mrf.mxu0
      %v2099 = vpop.f32.mrf.mxu0
      %v2100 = vadd.f32 0.0, %v2099
      %v2101 = vpop.f32.mrf.mxu0
      %2102 = vmatprep.mubr.bf16.mxu0 0
      %2103 = vmatmul.mubr.bf16.gmra.mxu0 %v1846
      %v2104 = vpop.f32.mrf.mxu0
      %v2105 = vadd.f32 0.0, %v2104
      %v2106 = vpop.f32.mrf.mxu0
      %v2107 = vpop.f32.mrf.mxu0
      %v2108 = vadd.f32 0.0, %v2107
      %v2109 = vpop.f32.mrf.mxu0
      %2110 = vmatprep.mubr.bf16.mxu0 0
      %2111 = vmatmul.mubr.bf16.gmra.mxu0 %v1847
      %v2112 = vpop.f32.mrf.mxu0
      %v2113 = vadd.f32 0.0, %v2112
      %v2114 = vpop.f32.mrf.mxu0
      %v2115 = vpop.f32.mrf.mxu0
      %v2116 = vadd.f32 0.0, %v2115
      %v2117 = vpop.f32.mrf.mxu0
      %2118 = vmatprep.mubr.bf16.mxu0 0
      %2119 = vmatmul.mubr.bf16.gmra.mxu0 %v1848
      %v2120 = vpop.f32.mrf.mxu0
      %v2121 = vadd.f32 0.0, %v2120
      %v2122 = vpop.f32.mrf.mxu0
      %v2123 = vpop.f32.mrf.mxu0
      %v2124 = vadd.f32 0.0, %v2123
      %v2125 = vpop.f32.mrf.mxu0
      %2126 = vmatprep.mubr.bf16.mxu0 0
      %2127 = vmatmul.mubr.bf16.gmra.mxu0 %v1849
      %v2128 = vpop.f32.mrf.mxu0
      %v2129 = vadd.f32 0.0, %v2128
      %v2130 = vpop.f32.mrf.mxu0
      %v2131 = vpop.f32.mrf.mxu0
      %v2132 = vadd.f32 0.0, %v2131
      %v2133 = vpop.f32.mrf.mxu0
      %2134 = vmatprep.mubr.bf16.mxu0 0
      %2135 = vmatmul.mubr.bf16.gmra.mxu0 %v1850
      %v2136 = vpop.f32.mrf.mxu0
      %v2137 = vadd.f32 0.0, %v2136
      %v2138 = vpop.f32.mrf.mxu0
      %v2139 = vpop.f32.mrf.mxu0
      %v2140 = vadd.f32 0.0, %v2139
      %v2141 = vpop.f32.mrf.mxu0
      %2142 = vmatprep.mubr.bf16.mxu0 0
      %2143 = vmatmul.mubr.bf16.gmra.mxu0 %v1851
      %v2144 = vpop.f32.mrf.mxu0
      %v2145 = vadd.f32 0.0, %v2144
      %v2146 = vpop.f32.mrf.mxu0
      %v2147 = vpop.f32.mrf.mxu0
      %v2148 = vadd.f32 0.0, %v2147
      %v2149 = vpop.f32.mrf.mxu0
      %2150 = vmatprep.mubr.bf16.mxu0 0
      %2151 = vmatmul.mubr.bf16.gmra.mxu0 %v1852
      %v2152 = vpop.f32.mrf.mxu0
      %v2153 = vadd.f32 0.0, %v2152
      %v2154 = vpop.f32.mrf.mxu0
      %v2155 = vpop.f32.mrf.mxu0
      %v2156 = vadd.f32 0.0, %v2155
      %v2157 = vpop.f32.mrf.mxu0
      %2158 = vmatprep.mubr.bf16.mxu0 0
      %2159 = vmatmul.mubr.bf16.gmra.mxu0 %v1853
      %v2160 = vpop.f32.mrf.mxu0
      %v2161 = vadd.f32 0.0, %v2160
      %v2162 = vpop.f32.mrf.mxu0
      %v2163 = vpop.f32.mrf.mxu0
      %v2164 = vadd.f32 0.0, %v2163
      %v2165 = vpop.f32.mrf.mxu0
      %2166 = vmatprep.mubr.bf16.mxu0 0
      %2167 = vmatmul.mubr.bf16.gmra.mxu0 %v1854
      %v2168 = vpop.f32.mrf.mxu0
      %v2169 = vadd.f32 0.0, %v2168
      %v2170 = vpop.f32.mrf.mxu0
      %v2171 = vpop.f32.mrf.mxu0
      %v2172 = vadd.f32 0.0, %v2171
      %v2173 = vpop.f32.mrf.mxu0
      %2174 = vmatprep.mubr.bf16.mxu0 0
      %2175 = vmatmul.mubr.bf16.gmra.mxu0 %v1855
      %v2176 = vpop.f32.mrf.mxu0
      %v2177 = vadd.f32 0.0, %v2176
      %v2178 = vpop.f32.mrf.mxu0
      %v2179 = vpop.f32.mrf.mxu0
      %v2180 = vadd.f32 0.0, %v2179
      %v2181 = vpop.f32.mrf.mxu0
      %2182 = vmatprep.mubr.bf16.mxu0 0
      %2183 = vmatmul.mubr.bf16.gmra.mxu0 %v1856
      %v2184 = vpop.f32.mrf.mxu0
      %v2185 = vadd.f32 0.0, %v2184
      %v2186 = vpop.f32.mrf.mxu0
      %v2187 = vpop.f32.mrf.mxu0
      %v2188 = vadd.f32 0.0, %v2187
      %v2189 = vpop.f32.mrf.mxu0
      %2190 = vmatprep.mubr.bf16.mxu0 0
      %2191 = vmatmul.mubr.bf16.gmra.mxu0 %v1857
      %v2192 = vpop.f32.mrf.mxu0
      %v2193 = vadd.f32 0.0, %v2192
      %v2194 = vpop.f32.mrf.mxu0
      %v2195 = vpop.f32.mrf.mxu0
      %v2196 = vadd.f32 0.0, %v2195
      %v2197 = vpop.f32.mrf.mxu0
      %2198 = vmatprep.mubr.bf16.mxu0 0
      %2199 = vmatmul.mubr.bf16.gmra.mxu0 %v1858
      %v2200 = vpop.f32.mrf.mxu0
      %v2201 = vadd.f32 0.0, %v2200
      %v2202 = vpop.f32.mrf.mxu0
      %v2203 = vpop.f32.mrf.mxu0
      %v2204 = vadd.f32 0.0, %v2203
      %v2205 = vpop.f32.mrf.mxu0
      %2206 = vmatprep.mubr.bf16.mxu0 0
      %2207 = vmatmul.mubr.bf16.gmra.mxu0 %v1859
      %v2208 = vpop.f32.mrf.mxu0
      %v2209 = vadd.f32 0.0, %v2208
      %v2210 = vpop.f32.mrf.mxu0
      %v2211 = vpop.f32.mrf.mxu0
      %v2212 = vadd.f32 0.0, %v2211
      %v2213 = vpop.f32.mrf.mxu0
      %2214 = vmatprep.mubr.bf16.mxu0 0
      %2215 = vmatmul.mubr.bf16.gmra.mxu0 %v1860
      %v2216 = vpop.f32.mrf.mxu0
      %v2217 = vadd.f32 0.0, %v2216
      %v2218 = vpop.f32.mrf.mxu0
      %v2219 = vpop.f32.mrf.mxu0
      %v2220 = vadd.f32 0.0, %v2219
      %v2221 = vpop.f32.mrf.mxu0
      %2222 = vmatprep.mubr.bf16.mxu0 0
      %2223 = vmatmul.mubr.bf16.gmra.mxu0 %v1861
      %v2224 = vpop.f32.mrf.mxu0
      %v2225 = vadd.f32 0.0, %v2224
      %v2226 = vpop.f32.mrf.mxu0
      %v2227 = vpop.f32.mrf.mxu0
      %v2228 = vadd.f32 0.0, %v2227
      %v2229 = vpop.f32.mrf.mxu0
      %2230 = vdwg.mxu0
      %v2231 = vadd.f32 %v1366, %v1977
      %v2232 = vadd.f32 %v1369, %v1980
      %v2233 = vadd.f32 %v1374, %v1985
      %v2234 = vadd.f32 %v1377, %v1988
      %v2235 = vadd.f32 %v1382, %v1993
      %v2236 = vadd.f32 %v1385, %v1996
      %v2237 = vadd.f32 %v1390, %v2001
      %v2238 = vadd.f32 %v1393, %v2004
      %v2239 = vadd.f32 %v1398, %v2009
      %v2240 = vadd.f32 %v1401, %v2012
      %v2241 = vadd.f32 %v1406, %v2017
      %v2242 = vadd.f32 %v1409, %v2020
      %v2243 = vadd.f32 %v1414, %v2025
      %v2244 = vadd.f32 %v1417, %v2028
      %v2245 = vadd.f32 %v1422, %v2033
      %v2246 = vadd.f32 %v1425, %v2036
      %v2247 = vadd.f32 %v1430, %v2041
      %v2248 = vadd.f32 %v1433, %v2044
      %v2249 = vadd.f32 %v1438, %v2049
      %v2250 = vadd.f32 %v1441, %v2052
      %v2251 = vadd.f32 %v1446, %v2057
      %v2252 = vadd.f32 %v1449, %v2060
      %v2253 = vadd.f32 %v1454, %v2065
      %v2254 = vadd.f32 %v1457, %v2068
      %v2255 = vadd.f32 %v1462, %v2073
      %v2256 = vadd.f32 %v1465, %v2076
      %v2257 = vadd.f32 %v1470, %v2081
      %v2258 = vadd.f32 %v1473, %v2084
      %v2259 = vadd.f32 %v1478, %v2089
      %v2260 = vadd.f32 %v1481, %v2092
      %v2261 = vadd.f32 %v1486, %v2097
      %v2262 = vadd.f32 %v1489, %v2100
      %v2263 = vadd.f32 %v1494, %v2105
      %v2264 = vadd.f32 %v1497, %v2108
      %v2265 = vadd.f32 %v1502, %v2113
      %v2266 = vadd.f32 %v1505, %v2116
      %v2267 = vadd.f32 %v1510, %v2121
      %v2268 = vadd.f32 %v1513, %v2124
      %v2269 = vadd.f32 %v1518, %v2129
      %v2270 = vadd.f32 %v1521, %v2132
      %v2271 = vadd.f32 %v1526, %v2137
      %v2272 = vadd.f32 %v1529, %v2140
      %v2273 = vadd.f32 %v1534, %v2145
      %v2274 = vadd.f32 %v1537, %v2148
      %v2275 = vadd.f32 %v1542, %v2153
      %v2276 = vadd.f32 %v1545, %v2156
      %v2277 = vadd.f32 %v1550, %v2161
      %v2278 = vadd.f32 %v1553, %v2164
      %v2279 = vadd.f32 %v1558, %v2169
      %v2280 = vadd.f32 %v1561, %v2172
      %v2281 = vadd.f32 %v1566, %v2177
      %v2282 = vadd.f32 %v1569, %v2180
      %v2283 = vadd.f32 %v1574, %v2185
      %v2284 = vadd.f32 %v1577, %v2188
      %v2285 = vadd.f32 %v1582, %v2193
      %v2286 = vadd.f32 %v1585, %v2196
      %v2287 = vadd.f32 %v1590, %v2201
      %v2288 = vadd.f32 %v1593, %v2204
      %v2289 = vadd.f32 %v1598, %v2209
      %v2290 = vadd.f32 %v1601, %v2212
      %v2291 = vadd.f32 %v1606, %v2217
      %v2292 = vadd.f32 %v1609, %v2220
      %v2293 = vadd.f32 %v1614, %v2225
      %v2294 = vadd.f32 %v1617, %v2228
      %v2295 = vrot.slane %v2231, 7
      %v2296 = vrot.slane %v2232, 7
      %v2297 = vrot.slane %v2233, 7
      %v2298 = vrot.slane %v2234, 7
      %v2299 = vrot.slane %v2235, 7
      %v2300 = vrot.slane %v2236, 7
      %v2301 = vrot.slane %v2237, 7
      %v2302 = vrot.slane %v2238, 7
      %v2303 = vrot.slane %v2239, 7
      %v2304 = vrot.slane %v2240, 7
      %v2305 = vrot.slane %v2241, 7
      %v2306 = vrot.slane %v2242, 7
      %v2307 = vrot.slane %v2243, 7
      %v2308 = vrot.slane %v2244, 7
      %v2309 = vrot.slane %v2245, 7
      %v2310 = vrot.slane %v2246, 7
      %v2311 = vrot.slane %v2247, 7
      %v2312 = vrot.slane %v2248, 7
      %v2313 = vrot.slane %v2249, 7
      %v2314 = vrot.slane %v2250, 7
      %v2315 = vrot.slane %v2251, 7
      %v2316 = vrot.slane %v2252, 7
      %v2317 = vrot.slane %v2253, 7
      %v2318 = vrot.slane %v2254, 7
      %v2319 = vrot.slane %v2255, 7
      %v2320 = vrot.slane %v2256, 7
      %v2321 = vrot.slane %v2257, 7
      %v2322 = vrot.slane %v2258, 7
      %v2323 = vrot.slane %v2259, 7
      %v2324 = vrot.slane %v2260, 7
      %v2325 = vrot.slane %v2261, 7
      %v2326 = vrot.slane %v2262, 7
      %v2327 = vrot.slane %v2263, 7
      %v2328 = vrot.slane %v2264, 7
      %v2329 = vrot.slane %v2265, 7
      %v2330 = vrot.slane %v2266, 7
      %v2331 = vrot.slane %v2267, 7
      %v2332 = vrot.slane %v2268, 7
      %v2333 = vrot.slane %v2269, 7
      %v2334 = vrot.slane %v2270, 7
      %v2335 = vrot.slane %v2271, 7
      %v2336 = vrot.slane %v2272, 7
      %v2337 = vrot.slane %v2273, 7
      %v2338 = vrot.slane %v2274, 7
      %v2339 = vrot.slane %v2275, 7
      %v2340 = vrot.slane %v2276, 7
      %v2341 = vrot.slane %v2277, 7
      %v2342 = vrot.slane %v2278, 7
      %v2343 = vrot.slane %v2279, 7
      %v2344 = vrot.slane %v2280, 7
      %v2345 = vrot.slane %v2281, 7
      %v2346 = vrot.slane %v2282, 7
      %v2347 = vrot.slane %v2283, 7
      %v2348 = vrot.slane %v2284, 7
      %v2349 = vrot.slane %v2285, 7
      %v2350 = vrot.slane %v2286, 7
      %v2351 = vrot.slane %v2287, 7
      %v2352 = vrot.slane %v2288, 7
      %v2353 = vrot.slane %v2289, 7
      %v2354 = vrot.slane %v2290, 7
      %v2355 = vrot.slane %v2291, 7
      %v2356 = vrot.slane %v2292, 7
      %v2357 = vrot.slane %v2293, 7
      %v2358 = vrot.slane %v2294, 7
      %v2359 = vlaneseq
      %v2360 = vshrl.u32 %v2359, 7
      %vm2361 = vcmp.lt.s32.totalorder %v2360, 1
      %v2362 = vsel %vm2361, %v2357, %v2358
      %v2363 = vsel %vm2361, %v2356, %v2357
      %v2364 = vsel %vm2361, %v2355, %v2356
      %v2365 = vsel %vm2361, %v2354, %v2355
      %v2366 = vsel %vm2361, %v2353, %v2354
      %v2367 = vsel %vm2361, %v2352, %v2353
      %v2368 = vsel %vm2361, %v2351, %v2352
      %v2369 = vsel %vm2361, %v2350, %v2351
      %v2370 = vsel %vm2361, %v2349, %v2350
      %v2371 = vsel %vm2361, %v2348, %v2349
      %v2372 = vsel %vm2361, %v2347, %v2348
      %v2373 = vsel %vm2361, %v2346, %v2347
      %v2374 = vsel %vm2361, %v2345, %v2346
      %v2375 = vsel %vm2361, %v2344, %v2345
      %v2376 = vsel %vm2361, %v2343, %v2344
      %v2377 = vsel %vm2361, %v2342, %v2343
      %v2378 = vsel %vm2361, %v2341, %v2342
      %v2379 = vsel %vm2361, %v2340, %v2341
      %v2380 = vsel %vm2361, %v2339, %v2340
      %v2381 = vsel %vm2361, %v2338, %v2339
      %v2382 = vsel %vm2361, %v2337, %v2338
      %v2383 = vsel %vm2361, %v2336, %v2337
      %v2384 = vsel %vm2361, %v2335, %v2336
      %v2385 = vsel %vm2361, %v2334, %v2335
      %v2386 = vsel %vm2361, %v2333, %v2334
      %v2387 = vsel %vm2361, %v2332, %v2333
      %v2388 = vsel %vm2361, %v2331, %v2332
      %v2389 = vsel %vm2361, %v2330, %v2331
      %v2390 = vsel %vm2361, %v2329, %v2330
      %v2391 = vsel %vm2361, %v2328, %v2329
      %v2392 = vsel %vm2361, %v2327, %v2328
      %v2393 = vsel %vm2361, %v2326, %v2327
      %v2394 = vsel %vm2361, %v2325, %v2326
      %v2395 = vsel %vm2361, %v2324, %v2325
      %v2396 = vsel %vm2361, %v2323, %v2324
      %v2397 = vsel %vm2361, %v2322, %v2323
      %v2398 = vsel %vm2361, %v2321, %v2322
      %v2399 = vsel %vm2361, %v2320, %v2321
      %v2400 = vsel %vm2361, %v2319, %v2320
      %v2401 = vsel %vm2361, %v2318, %v2319
      %v2402 = vsel %vm2361, %v2317, %v2318
      %v2403 = vsel %vm2361, %v2316, %v2317
      %v2404 = vsel %vm2361, %v2315, %v2316
      %v2405 = vsel %vm2361, %v2314, %v2315
      %v2406 = vsel %vm2361, %v2313, %v2314
      %v2407 = vsel %vm2361, %v2312, %v2313
      %v2408 = vsel %vm2361, %v2311, %v2312
      %v2409 = vsel %vm2361, %v2310, %v2311
      %v2410 = vsel %vm2361, %v2309, %v2310
      %v2411 = vsel %vm2361, %v2308, %v2309
      %v2412 = vsel %vm2361, %v2307, %v2308
      %v2413 = vsel %vm2361, %v2306, %v2307
      %v2414 = vsel %vm2361, %v2305, %v2306
      %v2415 = vsel %vm2361, %v2304, %v2305
      %v2416 = vsel %vm2361, %v2303, %v2304
      %v2417 = vsel %vm2361, %v2302, %v2303
      %v2418 = vsel %vm2361, %v2301, %v2302
      %v2419 = vsel %vm2361, %v2300, %v2301
      %v2420 = vsel %vm2361, %v2299, %v2300
      %v2421 = vsel %vm2361, %v2298, %v2299
      %v2422 = vsel %vm2361, %v2297, %v2298
      %v2423 = vsel %vm2361, %v2296, %v2297
      %v2424 = vsel %vm2361, %v2295, %v2296
      %v2425 = vsel %vm2361, %v2358, %v2295
      %s2426 = scalar_lea.vmem %s1, 64
      %v2427 = vld [vmem:[%s2426] sm:$0xf]
      %v2428 = vld [vmem:[%s2426 + $0x4] sm:$0xf]
      %v2429 = vld [vmem:[%s2426 + $0x8] sm:$0xf]
      %v2430 = vld [vmem:[%s2426 + $0xc] sm:$0xf]
      %v2431 = vld [vmem:[%s2426 + $0x10] sm:$0xf]
      %v2432 = vld [vmem:[%s2426 + $0x14] sm:$0xf]
      %v2433 = vld [vmem:[%s2426 + $0x18] sm:$0xf]
      %v2434 = vld [vmem:[%s2426 + $0x1c] sm:$0xf]
      %v2435 = vld [vmem:[%s2426 + $0x20] sm:$0xf]
      %v2436 = vld [vmem:[%s2426 + $0x24] sm:$0xf]
      %v2437 = vld [vmem:[%s2426 + $0x28] sm:$0xf]
      %v2438 = vld [vmem:[%s2426 + $0x2c] sm:$0xf]
      %v2439 = vld [vmem:[%s2426 + $0x30] sm:$0xf]
      %v2440 = vld [vmem:[%s2426 + $0x34] sm:$0xf]
      %v2441 = vld [vmem:[%s2426 + $0x38] sm:$0xf]
      %v2442 = vld [vmem:[%s2426 + $0x3c] sm:$0xf]
      %s2443 = scalar_lea.vmem %s1, 256
      %v2444 = vld [vmem:[%s2443] sm:$0xf]
      %v2445 = vld [vmem:[%s2443 + $0x4] sm:$0xf]
      %v2446 = vld [vmem:[%s2443 + $0x8] sm:$0xf]
      %v2447 = vld [vmem:[%s2443 + $0xc] sm:$0xf]
      %v2448 = vld [vmem:[%s2443 + $0x10] sm:$0xf]
      %v2449 = vld [vmem:[%s2443 + $0x14] sm:$0xf]
      %v2450 = vld [vmem:[%s2443 + $0x18] sm:$0xf]
      %v2451 = vld [vmem:[%s2443 + $0x1c] sm:$0xf]
      %v2452 = vld [vmem:[%s2443 + $0x20] sm:$0xf]
      %v2453 = vld [vmem:[%s2443 + $0x24] sm:$0xf]
      %v2454 = vld [vmem:[%s2443 + $0x28] sm:$0xf]
      %v2455 = vld [vmem:[%s2443 + $0x2c] sm:$0xf]
      %v2456 = vld [vmem:[%s2443 + $0x30] sm:$0xf]
      %v2457 = vld [vmem:[%s2443 + $0x34] sm:$0xf]
      %v2458 = vld [vmem:[%s2443 + $0x38] sm:$0xf]
      %v2459 = vld [vmem:[%s2443 + $0x3c] sm:$0xf]
      %v2476 = vunpack.c.l.b16 %v2444
      %v2477 = vunpack.c.l.b16 %v2445
      %v2478 = vunpack.c.l.b16 %v2446
      %v2479 = vunpack.c.l.b16 %v2447
      %v2480 = vunpack.c.l.b16 %v2448
      %v2481 = vunpack.c.l.b16 %v2449
      %v2482 = vunpack.c.l.b16 %v2450
      %v2483 = vunpack.c.l.b16 %v2451
      %v2484 = vunpack.c.l.b16 %v2452
      %v2485 = vunpack.c.l.b16 %v2453
      %v2486 = vunpack.c.l.b16 %v2454
      %v2487 = vunpack.c.l.b16 %v2455
      %v2488 = vunpack.c.l.b16 %v2456
      %v2489 = vunpack.c.l.b16 %v2457
      %v2490 = vunpack.c.l.b16 %v2458
      %v2491 = vunpack.c.l.b16 %v2459
      %v2492 = vpack.c.b16 %v2477, %v2476
      %v2493 = vpack.c.b16 %v2479, %v2478
      %v2494 = vpack.c.b16 %v2481, %v2480
      %v2495 = vpack.c.b16 %v2483, %v2482
      %v2496 = vpack.c.b16 %v2485, %v2484
      %v2497 = vpack.c.b16 %v2487, %v2486
      %v2498 = vpack.c.b16 %v2489, %v2488
      %v2499 = vpack.c.b16 %v2491, %v2490
      %2508 = vmatprep.subr.bf16.mxu0 0
      %2509 = vmatpush1.bf16.msra.mxu0 %v2499
      %2510 = vmatprep.subr.bf16.mxu0 0
      %2511 = vmatpush1.bf16.msra.mxu0 %v2498
      %2512 = vmatprep.subr.bf16.mxu0 0
      %2513 = vmatpush1.bf16.msra.mxu0 %v2497
      %2514 = vmatprep.subr.bf16.mxu0 0
      %2515 = vmatpush1.bf16.msra.mxu0 %v2496
      %2516 = vmatprep.subr.bf16.mxu0 0
      %2517 = vmatpush1.bf16.msra.mxu0 %v2495
      %2518 = vmatprep.subr.bf16.mxu0 0
      %2519 = vmatpush1.bf16.msra.mxu0 %v2494
      %2520 = vmatprep.subr.bf16.mxu0 0
      %2521 = vmatpush1.bf16.msra.mxu0 %v2493
      %2522 = vmatprep.subr.bf16.mxu0 0
      %2523 = vmatpush1.bf16.msra.mxu0 %v2492
      %2524 = vmatprep.subr.bf16.mxu0 0
      %2525 = vmatpush2.bf16.msra.mxu0 0
      %2526 = vmatprep.subr.bf16.mxu0 0
      %2527 = vmatpush2.bf16.msra.mxu0 0
      %2528 = vmatprep.subr.bf16.mxu0 0
      %2529 = vmatpush2.bf16.msra.mxu0 0
      %2530 = vmatprep.subr.bf16.mxu0 0
      %2531 = vmatpush2.bf16.msra.mxu0 0
      %2532 = vmatprep.subr.bf16.mxu0 0
      %2533 = vmatpush2.bf16.msra.mxu0 0
      %2534 = vmatprep.subr.bf16.mxu0 0
      %2535 = vmatpush2.bf16.msra.mxu0 0
      %2536 = vmatprep.subr.bf16.mxu0 0
      %2537 = vmatpush2.bf16.msra.mxu0 0
      %2538 = vmatprep.subr.bf16.mxu0 0
      %2539 = vmatpush2.bf16.msra.mxu0 0
      %2540 = vmatprep.mubr.bf16.mxu0 0
      %2541 = vmatmul.mubr.bf16.gmra.mxu0 %v690
      %v2542 = vpop.f32.mrf.mxu0
      %v2543 = vadd.f32 0.0, %v2542
      %v2544 = vpop.f32.mrf.mxu0
      %v2545 = vpop.f32.mrf.mxu0
      %v2546 = vadd.f32 0.0, %v2545
      %v2547 = vpop.f32.mrf.mxu0
      %2548 = vmatprep.mubr.bf16.mxu0 0
      %2549 = vmatmul.mubr.bf16.gmra.mxu0 %v691
      %v2550 = vpop.f32.mrf.mxu0
      %v2551 = vadd.f32 0.0, %v2550
      %v2552 = vpop.f32.mrf.mxu0
      %v2553 = vpop.f32.mrf.mxu0
      %v2554 = vadd.f32 0.0, %v2553
      %v2555 = vpop.f32.mrf.mxu0
      %2556 = vmatprep.mubr.bf16.mxu0 0
      %2557 = vmatmul.mubr.bf16.gmra.mxu0 %v692
      %v2558 = vpop.f32.mrf.mxu0
      %v2559 = vadd.f32 0.0, %v2558
      %v2560 = vpop.f32.mrf.mxu0
      %v2561 = vpop.f32.mrf.mxu0
      %v2562 = vadd.f32 0.0, %v2561
      %v2563 = vpop.f32.mrf.mxu0
      %2564 = vmatprep.mubr.bf16.mxu0 0
      %2565 = vmatmul.mubr.bf16.gmra.mxu0 %v693
      %v2566 = vpop.f32.mrf.mxu0
      %v2567 = vadd.f32 0.0, %v2566
      %v2568 = vpop.f32.mrf.mxu0
      %v2569 = vpop.f32.mrf.mxu0
      %v2570 = vadd.f32 0.0, %v2569
      %v2571 = vpop.f32.mrf.mxu0
      %2572 = vmatprep.mubr.bf16.mxu0 0
      %2573 = vmatmul.mubr.bf16.gmra.mxu0 %v694
      %v2574 = vpop.f32.mrf.mxu0
      %v2575 = vadd.f32 0.0, %v2574
      %v2576 = vpop.f32.mrf.mxu0
      %v2577 = vpop.f32.mrf.mxu0
      %v2578 = vadd.f32 0.0, %v2577
      %v2579 = vpop.f32.mrf.mxu0
      %2580 = vmatprep.mubr.bf16.mxu0 0
      %2581 = vmatmul.mubr.bf16.gmra.mxu0 %v695
      %v2582 = vpop.f32.mrf.mxu0
      %v2583 = vadd.f32 0.0, %v2582
      %v2584 = vpop.f32.mrf.mxu0
      %v2585 = vpop.f32.mrf.mxu0
      %v2586 = vadd.f32 0.0, %v2585
      %v2587 = vpop.f32.mrf.mxu0
      %2588 = vmatprep.mubr.bf16.mxu0 0
      %2589 = vmatmul.mubr.bf16.gmra.mxu0 %v696
      %v2590 = vpop.f32.mrf.mxu0
      %v2591 = vadd.f32 0.0, %v2590
      %v2592 = vpop.f32.mrf.mxu0
      %v2593 = vpop.f32.mrf.mxu0
      %v2594 = vadd.f32 0.0, %v2593
      %v2595 = vpop.f32.mrf.mxu0
      %2596 = vmatprep.mubr.bf16.mxu0 0
      %2597 = vmatmul.mubr.bf16.gmra.mxu0 %v697
      %v2598 = vpop.f32.mrf.mxu0
      %v2599 = vadd.f32 0.0, %v2598
      %v2600 = vpop.f32.mrf.mxu0
      %v2601 = vpop.f32.mrf.mxu0
      %v2602 = vadd.f32 0.0, %v2601
      %v2603 = vpop.f32.mrf.mxu0
      %2604 = vmatprep.mubr.bf16.mxu0 0
      %2605 = vmatmul.mubr.bf16.gmra.mxu0 %v698
      %v2606 = vpop.f32.mrf.mxu0
      %v2607 = vadd.f32 0.0, %v2606
      %v2608 = vpop.f32.mrf.mxu0
      %v2609 = vpop.f32.mrf.mxu0
      %v2610 = vadd.f32 0.0, %v2609
      %v2611 = vpop.f32.mrf.mxu0
      %2612 = vmatprep.mubr.bf16.mxu0 0
      %2613 = vmatmul.mubr.bf16.gmra.mxu0 %v699
      %v2614 = vpop.f32.mrf.mxu0
      %v2615 = vadd.f32 0.0, %v2614
      %v2616 = vpop.f32.mrf.mxu0
      %v2617 = vpop.f32.mrf.mxu0
      %v2618 = vadd.f32 0.0, %v2617
      %v2619 = vpop.f32.mrf.mxu0
      %2620 = vmatprep.mubr.bf16.mxu0 0
      %2621 = vmatmul.mubr.bf16.gmra.mxu0 %v700
      %v2622 = vpop.f32.mrf.mxu0
      %v2623 = vadd.f32 0.0, %v2622
      %v2624 = vpop.f32.mrf.mxu0
      %v2625 = vpop.f32.mrf.mxu0
      %v2626 = vadd.f32 0.0, %v2625
      %v2627 = vpop.f32.mrf.mxu0
      %2628 = vmatprep.mubr.bf16.mxu0 0
      %2629 = vmatmul.mubr.bf16.gmra.mxu0 %v701
      %v2630 = vpop.f32.mrf.mxu0
      %v2631 = vadd.f32 0.0, %v2630
      %v2632 = vpop.f32.mrf.mxu0
      %v2633 = vpop.f32.mrf.mxu0
      %v2634 = vadd.f32 0.0, %v2633
      %v2635 = vpop.f32.mrf.mxu0
      %2636 = vmatprep.mubr.bf16.mxu0 0
      %2637 = vmatmul.mubr.bf16.gmra.mxu0 %v702
      %v2638 = vpop.f32.mrf.mxu0
      %v2639 = vadd.f32 0.0, %v2638
      %v2640 = vpop.f32.mrf.mxu0
      %v2641 = vpop.f32.mrf.mxu0
      %v2642 = vadd.f32 0.0, %v2641
      %v2643 = vpop.f32.mrf.mxu0
      %2644 = vmatprep.mubr.bf16.mxu0 0
      %2645 = vmatmul.mubr.bf16.gmra.mxu0 %v703
      %v2646 = vpop.f32.mrf.mxu0
      %v2647 = vadd.f32 0.0, %v2646
      %v2648 = vpop.f32.mrf.mxu0
      %v2649 = vpop.f32.mrf.mxu0
      %v2650 = vadd.f32 0.0, %v2649
      %v2651 = vpop.f32.mrf.mxu0
      %2652 = vmatprep.mubr.bf16.mxu0 0
      %2653 = vmatmul.mubr.bf16.gmra.mxu0 %v704
      %v2654 = vpop.f32.mrf.mxu0
      %v2655 = vadd.f32 0.0, %v2654
      %v2656 = vpop.f32.mrf.mxu0
      %v2657 = vpop.f32.mrf.mxu0
      %v2658 = vadd.f32 0.0, %v2657
      %v2659 = vpop.f32.mrf.mxu0
      %2660 = vmatprep.mubr.bf16.mxu0 0
      %2661 = vmatmul.mubr.bf16.gmra.mxu0 %v705
      %v2662 = vpop.f32.mrf.mxu0
      %v2663 = vadd.f32 0.0, %v2662
      %v2664 = vpop.f32.mrf.mxu0
      %v2665 = vpop.f32.mrf.mxu0
      %v2666 = vadd.f32 0.0, %v2665
      %v2667 = vpop.f32.mrf.mxu0
      %2668 = vmatprep.mubr.bf16.mxu0 0
      %2669 = vmatmul.mubr.bf16.gmra.mxu0 %v706
      %v2670 = vpop.f32.mrf.mxu0
      %v2671 = vadd.f32 0.0, %v2670
      %v2672 = vpop.f32.mrf.mxu0
      %v2673 = vpop.f32.mrf.mxu0
      %v2674 = vadd.f32 0.0, %v2673
      %v2675 = vpop.f32.mrf.mxu0
      %2676 = vmatprep.mubr.bf16.mxu0 0
      %2677 = vmatmul.mubr.bf16.gmra.mxu0 %v707
      %v2678 = vpop.f32.mrf.mxu0
      %v2679 = vadd.f32 0.0, %v2678
      %v2680 = vpop.f32.mrf.mxu0
      %v2681 = vpop.f32.mrf.mxu0
      %v2682 = vadd.f32 0.0, %v2681
      %v2683 = vpop.f32.mrf.mxu0
      %2684 = vmatprep.mubr.bf16.mxu0 0
      %2685 = vmatmul.mubr.bf16.gmra.mxu0 %v708
      %v2686 = vpop.f32.mrf.mxu0
      %v2687 = vadd.f32 0.0, %v2686
      %v2688 = vpop.f32.mrf.mxu0
      %v2689 = vpop.f32.mrf.mxu0
      %v2690 = vadd.f32 0.0, %v2689
      %v2691 = vpop.f32.mrf.mxu0
      %2692 = vmatprep.mubr.bf16.mxu0 0
      %2693 = vmatmul.mubr.bf16.gmra.mxu0 %v709
      %v2694 = vpop.f32.mrf.mxu0
      %v2695 = vadd.f32 0.0, %v2694
      %v2696 = vpop.f32.mrf.mxu0
      %v2697 = vpop.f32.mrf.mxu0
      %v2698 = vadd.f32 0.0, %v2697
      %v2699 = vpop.f32.mrf.mxu0
      %2700 = vmatprep.mubr.bf16.mxu0 0
      %2701 = vmatmul.mubr.bf16.gmra.mxu0 %v710
      %v2702 = vpop.f32.mrf.mxu0
      %v2703 = vadd.f32 0.0, %v2702
      %v2704 = vpop.f32.mrf.mxu0
      %v2705 = vpop.f32.mrf.mxu0
      %v2706 = vadd.f32 0.0, %v2705
      %v2707 = vpop.f32.mrf.mxu0
      %2708 = vmatprep.mubr.bf16.mxu0 0
      %2709 = vmatmul.mubr.bf16.gmra.mxu0 %v711
      %v2710 = vpop.f32.mrf.mxu0
      %v2711 = vadd.f32 0.0, %v2710
      %v2712 = vpop.f32.mrf.mxu0
      %v2713 = vpop.f32.mrf.mxu0
      %v2714 = vadd.f32 0.0, %v2713
      %v2715 = vpop.f32.mrf.mxu0
      %2716 = vmatprep.mubr.bf16.mxu0 0
      %2717 = vmatmul.mubr.bf16.gmra.mxu0 %v712
      %v2718 = vpop.f32.mrf.mxu0
      %v2719 = vadd.f32 0.0, %v2718
      %v2720 = vpop.f32.mrf.mxu0
      %v2721 = vpop.f32.mrf.mxu0
      %v2722 = vadd.f32 0.0, %v2721
      %v2723 = vpop.f32.mrf.mxu0
      %2724 = vmatprep.mubr.bf16.mxu0 0
      %2725 = vmatmul.mubr.bf16.gmra.mxu0 %v713
      %v2726 = vpop.f32.mrf.mxu0
      %v2727 = vadd.f32 0.0, %v2726
      %v2728 = vpop.f32.mrf.mxu0
      %v2729 = vpop.f32.mrf.mxu0
      %v2730 = vadd.f32 0.0, %v2729
      %v2731 = vpop.f32.mrf.mxu0
      %2732 = vmatprep.mubr.bf16.mxu0 0
      %2733 = vmatmul.mubr.bf16.gmra.mxu0 %v714
      %v2734 = vpop.f32.mrf.mxu0
      %v2735 = vadd.f32 0.0, %v2734
      %v2736 = vpop.f32.mrf.mxu0
      %v2737 = vpop.f32.mrf.mxu0
      %v2738 = vadd.f32 0.0, %v2737
      %v2739 = vpop.f32.mrf.mxu0
      %2740 = vmatprep.mubr.bf16.mxu0 0
      %2741 = vmatmul.mubr.bf16.gmra.mxu0 %v715
      %v2742 = vpop.f32.mrf.mxu0
      %v2743 = vadd.f32 0.0, %v2742
      %v2744 = vpop.f32.mrf.mxu0
      %v2745 = vpop.f32.mrf.mxu0
      %v2746 = vadd.f32 0.0, %v2745
      %v2747 = vpop.f32.mrf.mxu0
      %2748 = vmatprep.mubr.bf16.mxu0 0
      %2749 = vmatmul.mubr.bf16.gmra.mxu0 %v716
      %v2750 = vpop.f32.mrf.mxu0
      %v2751 = vadd.f32 0.0, %v2750
      %v2752 = vpop.f32.mrf.mxu0
      %v2753 = vpop.f32.mrf.mxu0
      %v2754 = vadd.f32 0.0, %v2753
      %v2755 = vpop.f32.mrf.mxu0
      %2756 = vmatprep.mubr.bf16.mxu0 0
      %2757 = vmatmul.mubr.bf16.gmra.mxu0 %v717
      %v2758 = vpop.f32.mrf.mxu0
      %v2759 = vadd.f32 0.0, %v2758
      %v2760 = vpop.f32.mrf.mxu0
      %v2761 = vpop.f32.mrf.mxu0
      %v2762 = vadd.f32 0.0, %v2761
      %v2763 = vpop.f32.mrf.mxu0
      %2764 = vmatprep.mubr.bf16.mxu0 0
      %2765 = vmatmul.mubr.bf16.gmra.mxu0 %v718
      %v2766 = vpop.f32.mrf.mxu0
      %v2767 = vadd.f32 0.0, %v2766
      %v2768 = vpop.f32.mrf.mxu0
      %v2769 = vpop.f32.mrf.mxu0
      %v2770 = vadd.f32 0.0, %v2769
      %v2771 = vpop.f32.mrf.mxu0
      %2772 = vmatprep.mubr.bf16.mxu0 0
      %2773 = vmatmul.mubr.bf16.gmra.mxu0 %v719
      %v2774 = vpop.f32.mrf.mxu0
      %v2775 = vadd.f32 0.0, %v2774
      %v2776 = vpop.f32.mrf.mxu0
      %v2777 = vpop.f32.mrf.mxu0
      %v2778 = vadd.f32 0.0, %v2777
      %v2779 = vpop.f32.mrf.mxu0
      %2780 = vmatprep.mubr.bf16.mxu0 0
      %2781 = vmatmul.mubr.bf16.gmra.mxu0 %v720
      %v2782 = vpop.f32.mrf.mxu0
      %v2783 = vadd.f32 0.0, %v2782
      %v2784 = vpop.f32.mrf.mxu0
      %v2785 = vpop.f32.mrf.mxu0
      %v2786 = vadd.f32 0.0, %v2785
      %v2787 = vpop.f32.mrf.mxu0
      %2788 = vmatprep.mubr.bf16.mxu0 0
      %2789 = vmatmul.mubr.bf16.gmra.mxu0 %v721
      %v2790 = vpop.f32.mrf.mxu0
      %v2791 = vadd.f32 0.0, %v2790
      %v2792 = vpop.f32.mrf.mxu0
      %v2793 = vpop.f32.mrf.mxu0
      %v2794 = vadd.f32 0.0, %v2793
      %v2795 = vpop.f32.mrf.mxu0
      %2796 = vdwg.mxu0
      %v2813 = vunpack.c.l.b16 %v2427
      %v2814 = vunpack.c.l.b16 %v2428
      %v2815 = vunpack.c.l.b16 %v2429
      %v2816 = vunpack.c.l.b16 %v2430
      %v2817 = vunpack.c.l.b16 %v2431
      %v2818 = vunpack.c.l.b16 %v2432
      %v2819 = vunpack.c.l.b16 %v2433
      %v2820 = vunpack.c.l.b16 %v2434
      %v2821 = vunpack.c.l.b16 %v2435
      %v2822 = vunpack.c.l.b16 %v2436
      %v2823 = vunpack.c.l.b16 %v2437
      %v2824 = vunpack.c.l.b16 %v2438
      %v2825 = vunpack.c.l.b16 %v2439
      %v2826 = vunpack.c.l.b16 %v2440
      %v2827 = vunpack.c.l.b16 %v2441
      %v2828 = vunpack.c.l.b16 %v2442
      %v2829 = vpack.c.b16 %v2814, %v2813
      %v2830 = vpack.c.b16 %v2816, %v2815
      %v2831 = vpack.c.b16 %v2818, %v2817
      %v2832 = vpack.c.b16 %v2820, %v2819
      %v2833 = vpack.c.b16 %v2822, %v2821
      %v2834 = vpack.c.b16 %v2824, %v2823
      %v2835 = vpack.c.b16 %v2826, %v2825
      %v2836 = vpack.c.b16 %v2828, %v2827
      %2845 = vmatprep.subr.bf16.mxu0 0
      %2846 = vmatpush1.bf16.msra.mxu0 %v2836
      %2847 = vmatprep.subr.bf16.mxu0 0
      %2848 = vmatpush1.bf16.msra.mxu0 %v2835
      %2849 = vmatprep.subr.bf16.mxu0 0
      %2850 = vmatpush1.bf16.msra.mxu0 %v2834
      %2851 = vmatprep.subr.bf16.mxu0 0
      %2852 = vmatpush1.bf16.msra.mxu0 %v2833
      %2853 = vmatprep.subr.bf16.mxu0 0
      %2854 = vmatpush1.bf16.msra.mxu0 %v2832
      %2855 = vmatprep.subr.bf16.mxu0 0
      %2856 = vmatpush1.bf16.msra.mxu0 %v2831
      %2857 = vmatprep.subr.bf16.mxu0 0
      %2858 = vmatpush1.bf16.msra.mxu0 %v2830
      %2859 = vmatprep.subr.bf16.mxu0 0
      %2860 = vmatpush1.bf16.msra.mxu0 %v2829
      %2861 = vmatprep.subr.bf16.mxu0 0
      %2862 = vmatpush2.bf16.msra.mxu0 0
      %2863 = vmatprep.subr.bf16.mxu0 0
      %2864 = vmatpush2.bf16.msra.mxu0 0
      %2865 = vmatprep.subr.bf16.mxu0 0
      %2866 = vmatpush2.bf16.msra.mxu0 0
      %2867 = vmatprep.subr.bf16.mxu0 0
      %2868 = vmatpush2.bf16.msra.mxu0 0
      %2869 = vmatprep.subr.bf16.mxu0 0
      %2870 = vmatpush2.bf16.msra.mxu0 0
      %2871 = vmatprep.subr.bf16.mxu0 0
      %2872 = vmatpush2.bf16.msra.mxu0 0
      %2873 = vmatprep.subr.bf16.mxu0 0
      %2874 = vmatpush2.bf16.msra.mxu0 0
      %2875 = vmatprep.subr.bf16.mxu0 0
      %2876 = vmatpush2.bf16.msra.mxu0 0
      %2877 = vmatprep.mubr.bf16.mxu0 0
      %2878 = vmatmul.mubr.bf16.gmra.mxu0 %v1219
      %v2879 = vpop.f32.mrf.mxu0
      %v2880 = vadd.f32 %v2543, %v2879
      %v2881 = vpop.f32.mrf.mxu0
      %v2882 = vpop.f32.mrf.mxu0
      %v2883 = vadd.f32 %v2546, %v2882
      %v2884 = vpop.f32.mrf.mxu0
      %2885 = vmatprep.mubr.bf16.mxu0 0
      %2886 = vmatmul.mubr.bf16.gmra.mxu0 %v1220
      %v2887 = vpop.f32.mrf.mxu0
      %v2888 = vadd.f32 %v2551, %v2887
      %v2889 = vpop.f32.mrf.mxu0
      %v2890 = vpop.f32.mrf.mxu0
      %v2891 = vadd.f32 %v2554, %v2890
      %v2892 = vpop.f32.mrf.mxu0
      %2893 = vmatprep.mubr.bf16.mxu0 0
      %2894 = vmatmul.mubr.bf16.gmra.mxu0 %v1221
      %v2895 = vpop.f32.mrf.mxu0
      %v2896 = vadd.f32 %v2559, %v2895
      %v2897 = vpop.f32.mrf.mxu0
      %v2898 = vpop.f32.mrf.mxu0
      %v2899 = vadd.f32 %v2562, %v2898
      %v2900 = vpop.f32.mrf.mxu0
      %2901 = vmatprep.mubr.bf16.mxu0 0
      %2902 = vmatmul.mubr.bf16.gmra.mxu0 %v1222
      %v2903 = vpop.f32.mrf.mxu0
      %v2904 = vadd.f32 %v2567, %v2903
      %v2905 = vpop.f32.mrf.mxu0
      %v2906 = vpop.f32.mrf.mxu0
      %v2907 = vadd.f32 %v2570, %v2906
      %v2908 = vpop.f32.mrf.mxu0
      %2909 = vmatprep.mubr.bf16.mxu0 0
      %2910 = vmatmul.mubr.bf16.gmra.mxu0 %v1223
      %v2911 = vpop.f32.mrf.mxu0
      %v2912 = vadd.f32 %v2575, %v2911
      %v2913 = vpop.f32.mrf.mxu0
      %v2914 = vpop.f32.mrf.mxu0
      %v2915 = vadd.f32 %v2578, %v2914
      %v2916 = vpop.f32.mrf.mxu0
      %2917 = vmatprep.mubr.bf16.mxu0 0
      %2918 = vmatmul.mubr.bf16.gmra.mxu0 %v1224
      %v2919 = vpop.f32.mrf.mxu0
      %v2920 = vadd.f32 %v2583, %v2919
      %v2921 = vpop.f32.mrf.mxu0
      %v2922 = vpop.f32.mrf.mxu0
      %v2923 = vadd.f32 %v2586, %v2922
      %v2924 = vpop.f32.mrf.mxu0
      %2925 = vmatprep.mubr.bf16.mxu0 0
      %2926 = vmatmul.mubr.bf16.gmra.mxu0 %v1225
      %v2927 = vpop.f32.mrf.mxu0
      %v2928 = vadd.f32 %v2591, %v2927
      %v2929 = vpop.f32.mrf.mxu0
      %v2930 = vpop.f32.mrf.mxu0
      %v2931 = vadd.f32 %v2594, %v2930
      %v2932 = vpop.f32.mrf.mxu0
      %2933 = vmatprep.mubr.bf16.mxu0 0
      %2934 = vmatmul.mubr.bf16.gmra.mxu0 %v1226
      %v2935 = vpop.f32.mrf.mxu0
      %v2936 = vadd.f32 %v2599, %v2935
      %v2937 = vpop.f32.mrf.mxu0
      %v2938 = vpop.f32.mrf.mxu0
      %v2939 = vadd.f32 %v2602, %v2938
      %v2940 = vpop.f32.mrf.mxu0
      %2941 = vmatprep.mubr.bf16.mxu0 0
      %2942 = vmatmul.mubr.bf16.gmra.mxu0 %v1227
      %v2943 = vpop.f32.mrf.mxu0
      %v2944 = vadd.f32 %v2607, %v2943
      %v2945 = vpop.f32.mrf.mxu0
      %v2946 = vpop.f32.mrf.mxu0
      %v2947 = vadd.f32 %v2610, %v2946
      %v2948 = vpop.f32.mrf.mxu0
      %2949 = vmatprep.mubr.bf16.mxu0 0
      %2950 = vmatmul.mubr.bf16.gmra.mxu0 %v1228
      %v2951 = vpop.f32.mrf.mxu0
      %v2952 = vadd.f32 %v2615, %v2951
      %v2953 = vpop.f32.mrf.mxu0
      %v2954 = vpop.f32.mrf.mxu0
      %v2955 = vadd.f32 %v2618, %v2954
      %v2956 = vpop.f32.mrf.mxu0
      %2957 = vmatprep.mubr.bf16.mxu0 0
      %2958 = vmatmul.mubr.bf16.gmra.mxu0 %v1229
      %v2959 = vpop.f32.mrf.mxu0
      %v2960 = vadd.f32 %v2623, %v2959
      %v2961 = vpop.f32.mrf.mxu0
      %v2962 = vpop.f32.mrf.mxu0
      %v2963 = vadd.f32 %v2626, %v2962
      %v2964 = vpop.f32.mrf.mxu0
      %2965 = vmatprep.mubr.bf16.mxu0 0
      %2966 = vmatmul.mubr.bf16.gmra.mxu0 %v1230
      %v2967 = vpop.f32.mrf.mxu0
      %v2968 = vadd.f32 %v2631, %v2967
      %v2969 = vpop.f32.mrf.mxu0
      %v2970 = vpop.f32.mrf.mxu0
      %v2971 = vadd.f32 %v2634, %v2970
      %v2972 = vpop.f32.mrf.mxu0
      %2973 = vmatprep.mubr.bf16.mxu0 0
      %2974 = vmatmul.mubr.bf16.gmra.mxu0 %v1231
      %v2975 = vpop.f32.mrf.mxu0
      %v2976 = vadd.f32 %v2639, %v2975
      %v2977 = vpop.f32.mrf.mxu0
      %v2978 = vpop.f32.mrf.mxu0
      %v2979 = vadd.f32 %v2642, %v2978
      %v2980 = vpop.f32.mrf.mxu0
      %2981 = vmatprep.mubr.bf16.mxu0 0
      %2982 = vmatmul.mubr.bf16.gmra.mxu0 %v1232
      %v2983 = vpop.f32.mrf.mxu0
      %v2984 = vadd.f32 %v2647, %v2983
      %v2985 = vpop.f32.mrf.mxu0
      %v2986 = vpop.f32.mrf.mxu0
      %v2987 = vadd.f32 %v2650, %v2986
      %v2988 = vpop.f32.mrf.mxu0
      %2989 = vmatprep.mubr.bf16.mxu0 0
      %2990 = vmatmul.mubr.bf16.gmra.mxu0 %v1233
      %v2991 = vpop.f32.mrf.mxu0
      %v2992 = vadd.f32 %v2655, %v2991
      %v2993 = vpop.f32.mrf.mxu0
      %v2994 = vpop.f32.mrf.mxu0
      %v2995 = vadd.f32 %v2658, %v2994
      %v2996 = vpop.f32.mrf.mxu0
      %2997 = vmatprep.mubr.bf16.mxu0 0
      %2998 = vmatmul.mubr.bf16.gmra.mxu0 %v1234
      %v2999 = vpop.f32.mrf.mxu0
      %v3000 = vadd.f32 %v2663, %v2999
      %v3001 = vpop.f32.mrf.mxu0
      %v3002 = vpop.f32.mrf.mxu0
      %v3003 = vadd.f32 %v2666, %v3002
      %v3004 = vpop.f32.mrf.mxu0
      %3005 = vmatprep.mubr.bf16.mxu0 0
      %3006 = vmatmul.mubr.bf16.gmra.mxu0 %v1235
      %v3007 = vpop.f32.mrf.mxu0
      %v3008 = vadd.f32 %v2671, %v3007
      %v3009 = vpop.f32.mrf.mxu0
      %v3010 = vpop.f32.mrf.mxu0
      %v3011 = vadd.f32 %v2674, %v3010
      %v3012 = vpop.f32.mrf.mxu0
      %3013 = vmatprep.mubr.bf16.mxu0 0
      %3014 = vmatmul.mubr.bf16.gmra.mxu0 %v1236
      %v3015 = vpop.f32.mrf.mxu0
      %v3016 = vadd.f32 %v2679, %v3015
      %v3017 = vpop.f32.mrf.mxu0
      %v3018 = vpop.f32.mrf.mxu0
      %v3019 = vadd.f32 %v2682, %v3018
      %v3020 = vpop.f32.mrf.mxu0
      %3021 = vmatprep.mubr.bf16.mxu0 0
      %3022 = vmatmul.mubr.bf16.gmra.mxu0 %v1237
      %v3023 = vpop.f32.mrf.mxu0
      %v3024 = vadd.f32 %v2687, %v3023
      %v3025 = vpop.f32.mrf.mxu0
      %v3026 = vpop.f32.mrf.mxu0
      %v3027 = vadd.f32 %v2690, %v3026
      %v3028 = vpop.f32.mrf.mxu0
      %3029 = vmatprep.mubr.bf16.mxu0 0
      %3030 = vmatmul.mubr.bf16.gmra.mxu0 %v1238
      %v3031 = vpop.f32.mrf.mxu0
      %v3032 = vadd.f32 %v2695, %v3031
      %v3033 = vpop.f32.mrf.mxu0
      %v3034 = vpop.f32.mrf.mxu0
      %v3035 = vadd.f32 %v2698, %v3034
      %v3036 = vpop.f32.mrf.mxu0
      %3037 = vmatprep.mubr.bf16.mxu0 0
      %3038 = vmatmul.mubr.bf16.gmra.mxu0 %v1239
      %v3039 = vpop.f32.mrf.mxu0
      %v3040 = vadd.f32 %v2703, %v3039
      %v3041 = vpop.f32.mrf.mxu0
      %v3042 = vpop.f32.mrf.mxu0
      %v3043 = vadd.f32 %v2706, %v3042
      %v3044 = vpop.f32.mrf.mxu0
      %3045 = vmatprep.mubr.bf16.mxu0 0
      %3046 = vmatmul.mubr.bf16.gmra.mxu0 %v1240
      %v3047 = vpop.f32.mrf.mxu0
      %v3048 = vadd.f32 %v2711, %v3047
      %v3049 = vpop.f32.mrf.mxu0
      %v3050 = vpop.f32.mrf.mxu0
      %v3051 = vadd.f32 %v2714, %v3050
      %v3052 = vpop.f32.mrf.mxu0
      %3053 = vmatprep.mubr.bf16.mxu0 0
      %3054 = vmatmul.mubr.bf16.gmra.mxu0 %v1241
      %v3055 = vpop.f32.mrf.mxu0
      %v3056 = vadd.f32 %v2719, %v3055
      %v3057 = vpop.f32.mrf.mxu0
      %v3058 = vpop.f32.mrf.mxu0
      %v3059 = vadd.f32 %v2722, %v3058
      %v3060 = vpop.f32.mrf.mxu0
      %3061 = vmatprep.mubr.bf16.mxu0 0
      %3062 = vmatmul.mubr.bf16.gmra.mxu0 %v1242
      %v3063 = vpop.f32.mrf.mxu0
      %v3064 = vadd.f32 %v2727, %v3063
      %v3065 = vpop.f32.mrf.mxu0
      %v3066 = vpop.f32.mrf.mxu0
      %v3067 = vadd.f32 %v2730, %v3066
      %v3068 = vpop.f32.mrf.mxu0
      %3069 = vmatprep.mubr.bf16.mxu0 0
      %3070 = vmatmul.mubr.bf16.gmra.mxu0 %v1243
      %v3071 = vpop.f32.mrf.mxu0
      %v3072 = vadd.f32 %v2735, %v3071
      %v3073 = vpop.f32.mrf.mxu0
      %v3074 = vpop.f32.mrf.mxu0
      %v3075 = vadd.f32 %v2738, %v3074
      %v3076 = vpop.f32.mrf.mxu0
      %3077 = vmatprep.mubr.bf16.mxu0 0
      %3078 = vmatmul.mubr.bf16.gmra.mxu0 %v1244
      %v3079 = vpop.f32.mrf.mxu0
      %v3080 = vadd.f32 %v2743, %v3079
      %v3081 = vpop.f32.mrf.mxu0
      %v3082 = vpop.f32.mrf.mxu0
      %v3083 = vadd.f32 %v2746, %v3082
      %v3084 = vpop.f32.mrf.mxu0
      %3085 = vmatprep.mubr.bf16.mxu0 0
      %3086 = vmatmul.mubr.bf16.gmra.mxu0 %v1245
      %v3087 = vpop.f32.mrf.mxu0
      %v3088 = vadd.f32 %v2751, %v3087
      %v3089 = vpop.f32.mrf.mxu0
      %v3090 = vpop.f32.mrf.mxu0
      %v3091 = vadd.f32 %v2754, %v3090
      %v3092 = vpop.f32.mrf.mxu0
      %3093 = vmatprep.mubr.bf16.mxu0 0
      %3094 = vmatmul.mubr.bf16.gmra.mxu0 %v1246
      %v3095 = vpop.f32.mrf.mxu0
      %v3096 = vadd.f32 %v2759, %v3095
      %v3097 = vpop.f32.mrf.mxu0
      %v3098 = vpop.f32.mrf.mxu0
      %v3099 = vadd.f32 %v2762, %v3098
      %v3100 = vpop.f32.mrf.mxu0
      %3101 = vmatprep.mubr.bf16.mxu0 0
      %3102 = vmatmul.mubr.bf16.gmra.mxu0 %v1247
      %v3103 = vpop.f32.mrf.mxu0
      %v3104 = vadd.f32 %v2767, %v3103
      %v3105 = vpop.f32.mrf.mxu0
      %v3106 = vpop.f32.mrf.mxu0
      %v3107 = vadd.f32 %v2770, %v3106
      %v3108 = vpop.f32.mrf.mxu0
      %3109 = vmatprep.mubr.bf16.mxu0 0
      %3110 = vmatmul.mubr.bf16.gmra.mxu0 %v1248
      %v3111 = vpop.f32.mrf.mxu0
      %v3112 = vadd.f32 %v2775, %v3111
      %v3113 = vpop.f32.mrf.mxu0
      %v3114 = vpop.f32.mrf.mxu0
      %v3115 = vadd.f32 %v2778, %v3114
      %v3116 = vpop.f32.mrf.mxu0
      %3117 = vmatprep.mubr.bf16.mxu0 0
      %3118 = vmatmul.mubr.bf16.gmra.mxu0 %v1249
      %v3119 = vpop.f32.mrf.mxu0
      %v3120 = vadd.f32 %v2783, %v3119
      %v3121 = vpop.f32.mrf.mxu0
      %v3122 = vpop.f32.mrf.mxu0
      %v3123 = vadd.f32 %v2786, %v3122
      %v3124 = vpop.f32.mrf.mxu0
      %3125 = vmatprep.mubr.bf16.mxu0 0
      %3126 = vmatmul.mubr.bf16.gmra.mxu0 %v1250
      %v3127 = vpop.f32.mrf.mxu0
      %v3128 = vadd.f32 %v2791, %v3127
      %v3129 = vpop.f32.mrf.mxu0
      %v3130 = vpop.f32.mrf.mxu0
      %v3131 = vadd.f32 %v2794, %v3130
      %v3132 = vpop.f32.mrf.mxu0
      %3133 = vdwg.mxu0
      %s3134 = scalar_lea.vmem %s1, 448
      %v3135 = vld [vmem:[%s3134] sm:$0xf]
      %v3136 = vld [vmem:[%s3134 + $0x4] sm:$0xf]
      %v3137 = vld [vmem:[%s3134 + $0x8] sm:$0xf]
      %v3138 = vld [vmem:[%s3134 + $0xc] sm:$0xf]
      %v3139 = vld [vmem:[%s3134 + $0x10] sm:$0xf]
      %v3140 = vld [vmem:[%s3134 + $0x14] sm:$0xf]
      %v3141 = vld [vmem:[%s3134 + $0x18] sm:$0xf]
      %v3142 = vld [vmem:[%s3134 + $0x1c] sm:$0xf]
      %v3143 = vld [vmem:[%s3134 + $0x20] sm:$0xf]
      %v3144 = vld [vmem:[%s3134 + $0x24] sm:$0xf]
      %v3145 = vld [vmem:[%s3134 + $0x28] sm:$0xf]
      %v3146 = vld [vmem:[%s3134 + $0x2c] sm:$0xf]
      %v3147 = vld [vmem:[%s3134 + $0x30] sm:$0xf]
      %v3148 = vld [vmem:[%s3134 + $0x34] sm:$0xf]
      %v3149 = vld [vmem:[%s3134 + $0x38] sm:$0xf]
      %v3150 = vld [vmem:[%s3134 + $0x3c] sm:$0xf]
      %v3167 = vunpack.c.l.b16 %v3135
      %v3168 = vunpack.c.l.b16 %v3136
      %v3169 = vunpack.c.l.b16 %v3137
      %v3170 = vunpack.c.l.b16 %v3138
      %v3171 = vunpack.c.l.b16 %v3139
      %v3172 = vunpack.c.l.b16 %v3140
      %v3173 = vunpack.c.l.b16 %v3141
      %v3174 = vunpack.c.l.b16 %v3142
      %v3175 = vunpack.c.l.b16 %v3143
      %v3176 = vunpack.c.l.b16 %v3144
      %v3177 = vunpack.c.l.b16 %v3145
      %v3178 = vunpack.c.l.b16 %v3146
      %v3179 = vunpack.c.l.b16 %v3147
      %v3180 = vunpack.c.l.b16 %v3148
      %v3181 = vunpack.c.l.b16 %v3149
      %v3182 = vunpack.c.l.b16 %v3150
      %v3183 = vpack.c.b16 %v3168, %v3167
      %v3184 = vpack.c.b16 %v3170, %v3169
      %v3185 = vpack.c.b16 %v3172, %v3171
      %v3186 = vpack.c.b16 %v3174, %v3173
      %v3187 = vpack.c.b16 %v3176, %v3175
      %v3188 = vpack.c.b16 %v3178, %v3177
      %v3189 = vpack.c.b16 %v3180, %v3179
      %v3190 = vpack.c.b16 %v3182, %v3181
      %3199 = vmatprep.subr.bf16.mxu0 0
      %3200 = vmatpush1.bf16.msra.mxu0 %v3190
      %3201 = vmatprep.subr.bf16.mxu0 0
      %3202 = vmatpush1.bf16.msra.mxu0 %v3189
      %3203 = vmatprep.subr.bf16.mxu0 0
      %3204 = vmatpush1.bf16.msra.mxu0 %v3188
      %3205 = vmatprep.subr.bf16.mxu0 0
      %3206 = vmatpush1.bf16.msra.mxu0 %v3187
      %3207 = vmatprep.subr.bf16.mxu0 0
      %3208 = vmatpush1.bf16.msra.mxu0 %v3186
      %3209 = vmatprep.subr.bf16.mxu0 0
      %3210 = vmatpush1.bf16.msra.mxu0 %v3185
      %3211 = vmatprep.subr.bf16.mxu0 0
      %3212 = vmatpush1.bf16.msra.mxu0 %v3184
      %3213 = vmatprep.subr.bf16.mxu0 0
      %3214 = vmatpush1.bf16.msra.mxu0 %v3183
      %3215 = vmatprep.subr.bf16.mxu0 0
      %3216 = vmatpush2.bf16.msra.mxu0 0
      %3217 = vmatprep.subr.bf16.mxu0 0
      %3218 = vmatpush2.bf16.msra.mxu0 0
      %3219 = vmatprep.subr.bf16.mxu0 0
      %3220 = vmatpush2.bf16.msra.mxu0 0
      %3221 = vmatprep.subr.bf16.mxu0 0
      %3222 = vmatpush2.bf16.msra.mxu0 0
      %3223 = vmatprep.subr.bf16.mxu0 0
      %3224 = vmatpush2.bf16.msra.mxu0 0
      %3225 = vmatprep.subr.bf16.mxu0 0
      %3226 = vmatpush2.bf16.msra.mxu0 0
      %3227 = vmatprep.subr.bf16.mxu0 0
      %3228 = vmatpush2.bf16.msra.mxu0 0
      %3229 = vmatprep.subr.bf16.mxu0 0
      %3230 = vmatpush2.bf16.msra.mxu0 0
      %3231 = vmatprep.mubr.bf16.mxu0 0
      %3232 = vmatmul.mubr.bf16.gmra.mxu0 %v1830
      %v3233 = vpop.f32.mrf.mxu0
      %v3234 = vadd.f32 0.0, %v3233
      %v3235 = vpop.f32.mrf.mxu0
      %v3236 = vpop.f32.mrf.mxu0
      %v3237 = vadd.f32 0.0, %v3236
      %v3238 = vpop.f32.mrf.mxu0
      %3239 = vmatprep.mubr.bf16.mxu0 0
      %3240 = vmatmul.mubr.bf16.gmra.mxu0 %v1831
      %v3241 = vpop.f32.mrf.mxu0
      %v3242 = vadd.f32 0.0, %v3241
      %v3243 = vpop.f32.mrf.mxu0
      %v3244 = vpop.f32.mrf.mxu0
      %v3245 = vadd.f32 0.0, %v3244
      %v3246 = vpop.f32.mrf.mxu0
      %3247 = vmatprep.mubr.bf16.mxu0 0
      %3248 = vmatmul.mubr.bf16.gmra.mxu0 %v1832
      %v3249 = vpop.f32.mrf.mxu0
      %v3250 = vadd.f32 0.0, %v3249
      %v3251 = vpop.f32.mrf.mxu0
      %v3252 = vpop.f32.mrf.mxu0
      %v3253 = vadd.f32 0.0, %v3252
      %v3254 = vpop.f32.mrf.mxu0
      %3255 = vmatprep.mubr.bf16.mxu0 0
      %3256 = vmatmul.mubr.bf16.gmra.mxu0 %v1833
      %v3257 = vpop.f32.mrf.mxu0
      %v3258 = vadd.f32 0.0, %v3257
      %v3259 = vpop.f32.mrf.mxu0
      %v3260 = vpop.f32.mrf.mxu0
      %v3261 = vadd.f32 0.0, %v3260
      %v3262 = vpop.f32.mrf.mxu0
      %3263 = vmatprep.mubr.bf16.mxu0 0
      %3264 = vmatmul.mubr.bf16.gmra.mxu0 %v1834
      %v3265 = vpop.f32.mrf.mxu0
      %v3266 = vadd.f32 0.0, %v3265
      %v3267 = vpop.f32.mrf.mxu0
      %v3268 = vpop.f32.mrf.mxu0
      %v3269 = vadd.f32 0.0, %v3268
      %v3270 = vpop.f32.mrf.mxu0
      %3271 = vmatprep.mubr.bf16.mxu0 0
      %3272 = vmatmul.mubr.bf16.gmra.mxu0 %v1835
      %v3273 = vpop.f32.mrf.mxu0
      %v3274 = vadd.f32 0.0, %v3273
      %v3275 = vpop.f32.mrf.mxu0
      %v3276 = vpop.f32.mrf.mxu0
      %v3277 = vadd.f32 0.0, %v3276
      %v3278 = vpop.f32.mrf.mxu0
      %3279 = vmatprep.mubr.bf16.mxu0 0
      %3280 = vmatmul.mubr.bf16.gmra.mxu0 %v1836
      %v3281 = vpop.f32.mrf.mxu0
      %v3282 = vadd.f32 0.0, %v3281
      %v3283 = vpop.f32.mrf.mxu0
      %v3284 = vpop.f32.mrf.mxu0
      %v3285 = vadd.f32 0.0, %v3284
      %v3286 = vpop.f32.mrf.mxu0
      %3287 = vmatprep.mubr.bf16.mxu0 0
      %3288 = vmatmul.mubr.bf16.gmra.mxu0 %v1837
      %v3289 = vpop.f32.mrf.mxu0
      %v3290 = vadd.f32 0.0, %v3289
      %v3291 = vpop.f32.mrf.mxu0
      %v3292 = vpop.f32.mrf.mxu0
      %v3293 = vadd.f32 0.0, %v3292
      %v3294 = vpop.f32.mrf.mxu0
      %3295 = vmatprep.mubr.bf16.mxu0 0
      %3296 = vmatmul.mubr.bf16.gmra.mxu0 %v1838
      %v3297 = vpop.f32.mrf.mxu0
      %v3298 = vadd.f32 0.0, %v3297
      %v3299 = vpop.f32.mrf.mxu0
      %v3300 = vpop.f32.mrf.mxu0
      %v3301 = vadd.f32 0.0, %v3300
      %v3302 = vpop.f32.mrf.mxu0
      %3303 = vmatprep.mubr.bf16.mxu0 0
      %3304 = vmatmul.mubr.bf16.gmra.mxu0 %v1839
      %v3305 = vpop.f32.mrf.mxu0
      %v3306 = vadd.f32 0.0, %v3305
      %v3307 = vpop.f32.mrf.mxu0
      %v3308 = vpop.f32.mrf.mxu0
      %v3309 = vadd.f32 0.0, %v3308
      %v3310 = vpop.f32.mrf.mxu0
      %3311 = vmatprep.mubr.bf16.mxu0 0
      %3312 = vmatmul.mubr.bf16.gmra.mxu0 %v1840
      %v3313 = vpop.f32.mrf.mxu0
      %v3314 = vadd.f32 0.0, %v3313
      %v3315 = vpop.f32.mrf.mxu0
      %v3316 = vpop.f32.mrf.mxu0
      %v3317 = vadd.f32 0.0, %v3316
      %v3318 = vpop.f32.mrf.mxu0
      %3319 = vmatprep.mubr.bf16.mxu0 0
      %3320 = vmatmul.mubr.bf16.gmra.mxu0 %v1841
      %v3321 = vpop.f32.mrf.mxu0
      %v3322 = vadd.f32 0.0, %v3321
      %v3323 = vpop.f32.mrf.mxu0
      %v3324 = vpop.f32.mrf.mxu0
      %v3325 = vadd.f32 0.0, %v3324
      %v3326 = vpop.f32.mrf.mxu0
      %3327 = vmatprep.mubr.bf16.mxu0 0
      %3328 = vmatmul.mubr.bf16.gmra.mxu0 %v1842
      %v3329 = vpop.f32.mrf.mxu0
      %v3330 = vadd.f32 0.0, %v3329
      %v3331 = vpop.f32.mrf.mxu0
      %v3332 = vpop.f32.mrf.mxu0
      %v3333 = vadd.f32 0.0, %v3332
      %v3334 = vpop.f32.mrf.mxu0
      %3335 = vmatprep.mubr.bf16.mxu0 0
      %3336 = vmatmul.mubr.bf16.gmra.mxu0 %v1843
      %v3337 = vpop.f32.mrf.mxu0
      %v3338 = vadd.f32 0.0, %v3337
      %v3339 = vpop.f32.mrf.mxu0
      %v3340 = vpop.f32.mrf.mxu0
      %v3341 = vadd.f32 0.0, %v3340
      %v3342 = vpop.f32.mrf.mxu0
      %3343 = vmatprep.mubr.bf16.mxu0 0
      %3344 = vmatmul.mubr.bf16.gmra.mxu0 %v1844
      %v3345 = vpop.f32.mrf.mxu0
      %v3346 = vadd.f32 0.0, %v3345
      %v3347 = vpop.f32.mrf.mxu0
      %v3348 = vpop.f32.mrf.mxu0
      %v3349 = vadd.f32 0.0, %v3348
      %v3350 = vpop.f32.mrf.mxu0
      %3351 = vmatprep.mubr.bf16.mxu0 0
      %3352 = vmatmul.mubr.bf16.gmra.mxu0 %v1845
      %v3353 = vpop.f32.mrf.mxu0
      %v3354 = vadd.f32 0.0, %v3353
      %v3355 = vpop.f32.mrf.mxu0
      %v3356 = vpop.f32.mrf.mxu0
      %v3357 = vadd.f32 0.0, %v3356
      %v3358 = vpop.f32.mrf.mxu0
      %3359 = vmatprep.mubr.bf16.mxu0 0
      %3360 = vmatmul.mubr.bf16.gmra.mxu0 %v1846
      %v3361 = vpop.f32.mrf.mxu0
      %v3362 = vadd.f32 0.0, %v3361
      %v3363 = vpop.f32.mrf.mxu0
      %v3364 = vpop.f32.mrf.mxu0
      %v3365 = vadd.f32 0.0, %v3364
      %v3366 = vpop.f32.mrf.mxu0
      %3367 = vmatprep.mubr.bf16.mxu0 0
      %3368 = vmatmul.mubr.bf16.gmra.mxu0 %v1847
      %v3369 = vpop.f32.mrf.mxu0
      %v3370 = vadd.f32 0.0, %v3369
      %v3371 = vpop.f32.mrf.mxu0
      %v3372 = vpop.f32.mrf.mxu0
      %v3373 = vadd.f32 0.0, %v3372
      %v3374 = vpop.f32.mrf.mxu0
      %3375 = vmatprep.mubr.bf16.mxu0 0
      %3376 = vmatmul.mubr.bf16.gmra.mxu0 %v1848
      %v3377 = vpop.f32.mrf.mxu0
      %v3378 = vadd.f32 0.0, %v3377
      %v3379 = vpop.f32.mrf.mxu0
      %v3380 = vpop.f32.mrf.mxu0
      %v3381 = vadd.f32 0.0, %v3380
      %v3382 = vpop.f32.mrf.mxu0
      %3383 = vmatprep.mubr.bf16.mxu0 0
      %3384 = vmatmul.mubr.bf16.gmra.mxu0 %v1849
      %v3385 = vpop.f32.mrf.mxu0
      %v3386 = vadd.f32 0.0, %v3385
      %v3387 = vpop.f32.mrf.mxu0
      %v3388 = vpop.f32.mrf.mxu0
      %v3389 = vadd.f32 0.0, %v3388
      %v3390 = vpop.f32.mrf.mxu0
      %3391 = vmatprep.mubr.bf16.mxu0 0
      %3392 = vmatmul.mubr.bf16.gmra.mxu0 %v1850
      %v3393 = vpop.f32.mrf.mxu0
      %v3394 = vadd.f32 0.0, %v3393
      %v3395 = vpop.f32.mrf.mxu0
      %v3396 = vpop.f32.mrf.mxu0
      %v3397 = vadd.f32 0.0, %v3396
      %v3398 = vpop.f32.mrf.mxu0
      %3399 = vmatprep.mubr.bf16.mxu0 0
      %3400 = vmatmul.mubr.bf16.gmra.mxu0 %v1851
      %v3401 = vpop.f32.mrf.mxu0
      %v3402 = vadd.f32 0.0, %v3401
      %v3403 = vpop.f32.mrf.mxu0
      %v3404 = vpop.f32.mrf.mxu0
      %v3405 = vadd.f32 0.0, %v3404
      %v3406 = vpop.f32.mrf.mxu0
      %3407 = vmatprep.mubr.bf16.mxu0 0
      %3408 = vmatmul.mubr.bf16.gmra.mxu0 %v1852
      %v3409 = vpop.f32.mrf.mxu0
      %v3410 = vadd.f32 0.0, %v3409
      %v3411 = vpop.f32.mrf.mxu0
      %v3412 = vpop.f32.mrf.mxu0
      %v3413 = vadd.f32 0.0, %v3412
      %v3414 = vpop.f32.mrf.mxu0
      %3415 = vmatprep.mubr.bf16.mxu0 0
      %3416 = vmatmul.mubr.bf16.gmra.mxu0 %v1853
      %v3417 = vpop.f32.mrf.mxu0
      %v3418 = vadd.f32 0.0, %v3417
      %v3419 = vpop.f32.mrf.mxu0
      %v3420 = vpop.f32.mrf.mxu0
      %v3421 = vadd.f32 0.0, %v3420
      %v3422 = vpop.f32.mrf.mxu0
      %3423 = vmatprep.mubr.bf16.mxu0 0
      %3424 = vmatmul.mubr.bf16.gmra.mxu0 %v1854
      %v3425 = vpop.f32.mrf.mxu0
      %v3426 = vadd.f32 0.0, %v3425
      %v3427 = vpop.f32.mrf.mxu0
      %v3428 = vpop.f32.mrf.mxu0
      %v3429 = vadd.f32 0.0, %v3428
      %v3430 = vpop.f32.mrf.mxu0
      %3431 = vmatprep.mubr.bf16.mxu0 0
      %3432 = vmatmul.mubr.bf16.gmra.mxu0 %v1855
      %v3433 = vpop.f32.mrf.mxu0
      %v3434 = vadd.f32 0.0, %v3433
      %v3435 = vpop.f32.mrf.mxu0
      %v3436 = vpop.f32.mrf.mxu0
      %v3437 = vadd.f32 0.0, %v3436
      %v3438 = vpop.f32.mrf.mxu0
      %3439 = vmatprep.mubr.bf16.mxu0 0
      %3440 = vmatmul.mubr.bf16.gmra.mxu0 %v1856
      %v3441 = vpop.f32.mrf.mxu0
      %v3442 = vadd.f32 0.0, %v3441
      %v3443 = vpop.f32.mrf.mxu0
      %v3444 = vpop.f32.mrf.mxu0
      %v3445 = vadd.f32 0.0, %v3444
      %v3446 = vpop.f32.mrf.mxu0
      %3447 = vmatprep.mubr.bf16.mxu0 0
      %3448 = vmatmul.mubr.bf16.gmra.mxu0 %v1857
      %v3449 = vpop.f32.mrf.mxu0
      %v3450 = vadd.f32 0.0, %v3449
      %v3451 = vpop.f32.mrf.mxu0
      %v3452 = vpop.f32.mrf.mxu0
      %v3453 = vadd.f32 0.0, %v3452
      %v3454 = vpop.f32.mrf.mxu0
      %3455 = vmatprep.mubr.bf16.mxu0 0
      %3456 = vmatmul.mubr.bf16.gmra.mxu0 %v1858
      %v3457 = vpop.f32.mrf.mxu0
      %v3458 = vadd.f32 0.0, %v3457
      %v3459 = vpop.f32.mrf.mxu0
      %v3460 = vpop.f32.mrf.mxu0
      %v3461 = vadd.f32 0.0, %v3460
      %v3462 = vpop.f32.mrf.mxu0
      %3463 = vmatprep.mubr.bf16.mxu0 0
      %3464 = vmatmul.mubr.bf16.gmra.mxu0 %v1859
      %v3465 = vpop.f32.mrf.mxu0
      %v3466 = vadd.f32 0.0, %v3465
      %v3467 = vpop.f32.mrf.mxu0
      %v3468 = vpop.f32.mrf.mxu0
      %v3469 = vadd.f32 0.0, %v3468
      %v3470 = vpop.f32.mrf.mxu0
      %3471 = vmatprep.mubr.bf16.mxu0 0
      %3472 = vmatmul.mubr.bf16.gmra.mxu0 %v1860
      %v3473 = vpop.f32.mrf.mxu0
      %v3474 = vadd.f32 0.0, %v3473
      %v3475 = vpop.f32.mrf.mxu0
      %v3476 = vpop.f32.mrf.mxu0
      %v3477 = vadd.f32 0.0, %v3476
      %v3478 = vpop.f32.mrf.mxu0
      %3479 = vmatprep.mubr.bf16.mxu0 0
      %3480 = vmatmul.mubr.bf16.gmra.mxu0 %v1861
      %v3481 = vpop.f32.mrf.mxu0
      %v3482 = vadd.f32 0.0, %v3481
      %v3483 = vpop.f32.mrf.mxu0
      %v3484 = vpop.f32.mrf.mxu0
      %v3485 = vadd.f32 0.0, %v3484
      %v3486 = vpop.f32.mrf.mxu0
      %3487 = vdwg.mxu0
      %v3488 = vadd.f32 %v2880, %v3234
      %v3489 = vadd.f32 %v2883, %v3237
      %v3490 = vadd.f32 %v2888, %v3242
      %v3491 = vadd.f32 %v2891, %v3245
      %v3492 = vadd.f32 %v2896, %v3250
      %v3493 = vadd.f32 %v2899, %v3253
      %v3494 = vadd.f32 %v2904, %v3258
      %v3495 = vadd.f32 %v2907, %v3261
      %v3496 = vadd.f32 %v2912, %v3266
      %v3497 = vadd.f32 %v2915, %v3269
      %v3498 = vadd.f32 %v2920, %v3274
      %v3499 = vadd.f32 %v2923, %v3277
      %v3500 = vadd.f32 %v2928, %v3282
      %v3501 = vadd.f32 %v2931, %v3285
      %v3502 = vadd.f32 %v2936, %v3290
      %v3503 = vadd.f32 %v2939, %v3293
      %v3504 = vadd.f32 %v2944, %v3298
      %v3505 = vadd.f32 %v2947, %v3301
      %v3506 = vadd.f32 %v2952, %v3306
      %v3507 = vadd.f32 %v2955, %v3309
      %v3508 = vadd.f32 %v2960, %v3314
      %v3509 = vadd.f32 %v2963, %v3317
      %v3510 = vadd.f32 %v2968, %v3322
      %v3511 = vadd.f32 %v2971, %v3325
      %v3512 = vadd.f32 %v2976, %v3330
      %v3513 = vadd.f32 %v2979, %v3333
      %v3514 = vadd.f32 %v2984, %v3338
      %v3515 = vadd.f32 %v2987, %v3341
      %v3516 = vadd.f32 %v2992, %v3346
      %v3517 = vadd.f32 %v2995, %v3349
      %v3518 = vadd.f32 %v3000, %v3354
      %v3519 = vadd.f32 %v3003, %v3357
      %v3520 = vadd.f32 %v3008, %v3362
      %v3521 = vadd.f32 %v3011, %v3365
      %v3522 = vadd.f32 %v3016, %v3370
      %v3523 = vadd.f32 %v3019, %v3373
      %v3524 = vadd.f32 %v3024, %v3378
      %v3525 = vadd.f32 %v3027, %v3381
      %v3526 = vadd.f32 %v3032, %v3386
      %v3527 = vadd.f32 %v3035, %v3389
      %v3528 = vadd.f32 %v3040, %v3394
      %v3529 = vadd.f32 %v3043, %v3397
      %v3530 = vadd.f32 %v3048, %v3402
      %v3531 = vadd.f32 %v3051, %v3405
      %v3532 = vadd.f32 %v3056, %v3410
      %v3533 = vadd.f32 %v3059, %v3413
      %v3534 = vadd.f32 %v3064, %v3418
      %v3535 = vadd.f32 %v3067, %v3421
      %v3536 = vadd.f32 %v3072, %v3426
      %v3537 = vadd.f32 %v3075, %v3429
      %v3538 = vadd.f32 %v3080, %v3434
      %v3539 = vadd.f32 %v3083, %v3437
      %v3540 = vadd.f32 %v3088, %v3442
      %v3541 = vadd.f32 %v3091, %v3445
      %v3542 = vadd.f32 %v3096, %v3450
      %v3543 = vadd.f32 %v3099, %v3453
      %v3544 = vadd.f32 %v3104, %v3458
      %v3545 = vadd.f32 %v3107, %v3461
      %v3546 = vadd.f32 %v3112, %v3466
      %v3547 = vadd.f32 %v3115, %v3469
      %v3548 = vadd.f32 %v3120, %v3474
      %v3549 = vadd.f32 %v3123, %v3477
      %v3550 = vadd.f32 %v3128, %v3482
      %v3551 = vadd.f32 %v3131, %v3485
      %v3552 = vadd.f32 %v2425, %v3488
      %v3553 = vadd.f32 %v2424, %v3489
      %v3554 = vadd.f32 %v2423, %v3490
      %v3555 = vadd.f32 %v2422, %v3491
      %v3556 = vadd.f32 %v2421, %v3492
      %v3557 = vadd.f32 %v2420, %v3493
      %v3558 = vadd.f32 %v2419, %v3494
      %v3559 = vadd.f32 %v2418, %v3495
      %v3560 = vadd.f32 %v2417, %v3496
      %v3561 = vadd.f32 %v2416, %v3497
      %v3562 = vadd.f32 %v2415, %v3498
      %v3563 = vadd.f32 %v2414, %v3499
      %v3564 = vadd.f32 %v2413, %v3500
      %v3565 = vadd.f32 %v2412, %v3501
      %v3566 = vadd.f32 %v2411, %v3502
      %v3567 = vadd.f32 %v2410, %v3503
      %v3568 = vadd.f32 %v2409, %v3504
      %v3569 = vadd.f32 %v2408, %v3505
      %v3570 = vadd.f32 %v2407, %v3506
      %v3571 = vadd.f32 %v2406, %v3507
      %v3572 = vadd.f32 %v2405, %v3508
      %v3573 = vadd.f32 %v2404, %v3509
      %v3574 = vadd.f32 %v2403, %v3510
      %v3575 = vadd.f32 %v2402, %v3511
      %v3576 = vadd.f32 %v2401, %v3512
      %v3577 = vadd.f32 %v2400, %v3513
      %v3578 = vadd.f32 %v2399, %v3514
      %v3579 = vadd.f32 %v2398, %v3515
      %v3580 = vadd.f32 %v2397, %v3516
      %v3581 = vadd.f32 %v2396, %v3517
      %v3582 = vadd.f32 %v2395, %v3518
      %v3583 = vadd.f32 %v2394, %v3519
      %v3584 = vadd.f32 %v2393, %v3520
      %v3585 = vadd.f32 %v2392, %v3521
      %v3586 = vadd.f32 %v2391, %v3522
      %v3587 = vadd.f32 %v2390, %v3523
      %v3588 = vadd.f32 %v2389, %v3524
      %v3589 = vadd.f32 %v2388, %v3525
      %v3590 = vadd.f32 %v2387, %v3526
      %v3591 = vadd.f32 %v2386, %v3527
      %v3592 = vadd.f32 %v2385, %v3528
      %v3593 = vadd.f32 %v2384, %v3529
      %v3594 = vadd.f32 %v2383, %v3530
      %v3595 = vadd.f32 %v2382, %v3531
      %v3596 = vadd.f32 %v2381, %v3532
      %v3597 = vadd.f32 %v2380, %v3533
      %v3598 = vadd.f32 %v2379, %v3534
      %v3599 = vadd.f32 %v2378, %v3535
      %v3600 = vadd.f32 %v2377, %v3536
      %v3601 = vadd.f32 %v2376, %v3537
      %v3602 = vadd.f32 %v2375, %v3538
      %v3603 = vadd.f32 %v2374, %v3539
      %v3604 = vadd.f32 %v2373, %v3540
      %v3605 = vadd.f32 %v2372, %v3541
      %v3606 = vadd.f32 %v2371, %v3542
      %v3607 = vadd.f32 %v2370, %v3543
      %v3608 = vadd.f32 %v2369, %v3544
      %v3609 = vadd.f32 %v2368, %v3545
      %v3610 = vadd.f32 %v2367, %v3546
      %v3611 = vadd.f32 %v2366, %v3547
      %v3612 = vadd.f32 %v2365, %v3548
      %v3613 = vadd.f32 %v2364, %v3549
      %v3614 = vadd.f32 %v2363, %v3550
      %v3615 = vadd.f32 %v2362, %v3551
      %s3616 = scalar_lea.vmem %s1, 128
      %v3617 = vld [vmem:[%s3616] sm:$0xf]
      %v3618 = vld [vmem:[%s3616 + $0x4] sm:$0xf]
      %v3619 = vld [vmem:[%s3616 + $0x8] sm:$0xf]
      %v3620 = vld [vmem:[%s3616 + $0xc] sm:$0xf]
      %v3621 = vld [vmem:[%s3616 + $0x10] sm:$0xf]
      %v3622 = vld [vmem:[%s3616 + $0x14] sm:$0xf]
      %v3623 = vld [vmem:[%s3616 + $0x18] sm:$0xf]
      %v3624 = vld [vmem:[%s3616 + $0x1c] sm:$0xf]
      %v3625 = vld [vmem:[%s3616 + $0x20] sm:$0xf]
      %v3626 = vld [vmem:[%s3616 + $0x24] sm:$0xf]
      %v3627 = vld [vmem:[%s3616 + $0x28] sm:$0xf]
      %v3628 = vld [vmem:[%s3616 + $0x2c] sm:$0xf]
      %v3629 = vld [vmem:[%s3616 + $0x30] sm:$0xf]
      %v3630 = vld [vmem:[%s3616 + $0x34] sm:$0xf]
      %v3631 = vld [vmem:[%s3616 + $0x38] sm:$0xf]
      %v3632 = vld [vmem:[%s3616 + $0x3c] sm:$0xf]
      %s3633 = scalar_lea.vmem %s1, 320
      %v3634 = vld [vmem:[%s3633] sm:$0xf]
      %v3635 = vld [vmem:[%s3633 + $0x4] sm:$0xf]
      %v3636 = vld [vmem:[%s3633 + $0x8] sm:$0xf]
      %v3637 = vld [vmem:[%s3633 + $0xc] sm:$0xf]
      %v3638 = vld [vmem:[%s3633 + $0x10] sm:$0xf]
      %v3639 = vld [vmem:[%s3633 + $0x14] sm:$0xf]
      %v3640 = vld [vmem:[%s3633 + $0x18] sm:$0xf]
      %v3641 = vld [vmem:[%s3633 + $0x1c] sm:$0xf]
      %v3642 = vld [vmem:[%s3633 + $0x20] sm:$0xf]
      %v3643 = vld [vmem:[%s3633 + $0x24] sm:$0xf]
      %v3644 = vld [vmem:[%s3633 + $0x28] sm:$0xf]
      %v3645 = vld [vmem:[%s3633 + $0x2c] sm:$0xf]
      %v3646 = vld [vmem:[%s3633 + $0x30] sm:$0xf]
      %v3647 = vld [vmem:[%s3633 + $0x34] sm:$0xf]
      %v3648 = vld [vmem:[%s3633 + $0x38] sm:$0xf]
      %v3649 = vld [vmem:[%s3633 + $0x3c] sm:$0xf]
      %v3666 = vunpack.c.l.b16 %v3634
      %v3667 = vunpack.c.l.b16 %v3635
      %v3668 = vunpack.c.l.b16 %v3636
      %v3669 = vunpack.c.l.b16 %v3637
      %v3670 = vunpack.c.l.b16 %v3638
      %v3671 = vunpack.c.l.b16 %v3639
      %v3672 = vunpack.c.l.b16 %v3640
      %v3673 = vunpack.c.l.b16 %v3641
      %v3674 = vunpack.c.l.b16 %v3642
      %v3675 = vunpack.c.l.b16 %v3643
      %v3676 = vunpack.c.l.b16 %v3644
      %v3677 = vunpack.c.l.b16 %v3645
      %v3678 = vunpack.c.l.b16 %v3646
      %v3679 = vunpack.c.l.b16 %v3647
      %v3680 = vunpack.c.l.b16 %v3648
      %v3681 = vunpack.c.l.b16 %v3649
      %v3682 = vpack.c.b16 %v3667, %v3666
      %v3683 = vpack.c.b16 %v3669, %v3668
      %v3684 = vpack.c.b16 %v3671, %v3670
      %v3685 = vpack.c.b16 %v3673, %v3672
      %v3686 = vpack.c.b16 %v3675, %v3674
      %v3687 = vpack.c.b16 %v3677, %v3676
      %v3688 = vpack.c.b16 %v3679, %v3678
      %v3689 = vpack.c.b16 %v3681, %v3680
      %3698 = vmatprep.subr.bf16.mxu0 0
      %3699 = vmatpush1.bf16.msra.mxu0 %v3689
      %3700 = vmatprep.subr.bf16.mxu0 0
      %3701 = vmatpush1.bf16.msra.mxu0 %v3688
      %3702 = vmatprep.subr.bf16.mxu0 0
      %3703 = vmatpush1.bf16.msra.mxu0 %v3687
      %3704 = vmatprep.subr.bf16.mxu0 0
      %3705 = vmatpush1.bf16.msra.mxu0 %v3686
      %3706 = vmatprep.subr.bf16.mxu0 0
      %3707 = vmatpush1.bf16.msra.mxu0 %v3685
      %3708 = vmatprep.subr.bf16.mxu0 0
      %3709 = vmatpush1.bf16.msra.mxu0 %v3684
      %3710 = vmatprep.subr.bf16.mxu0 0
      %3711 = vmatpush1.bf16.msra.mxu0 %v3683
      %3712 = vmatprep.subr.bf16.mxu0 0
      %3713 = vmatpush1.bf16.msra.mxu0 %v3682
      %3714 = vmatprep.subr.bf16.mxu0 0
      %3715 = vmatpush2.bf16.msra.mxu0 0
      %3716 = vmatprep.subr.bf16.mxu0 0
      %3717 = vmatpush2.bf16.msra.mxu0 0
      %3718 = vmatprep.subr.bf16.mxu0 0
      %3719 = vmatpush2.bf16.msra.mxu0 0
      %3720 = vmatprep.subr.bf16.mxu0 0
      %3721 = vmatpush2.bf16.msra.mxu0 0
      %3722 = vmatprep.subr.bf16.mxu0 0
      %3723 = vmatpush2.bf16.msra.mxu0 0
      %3724 = vmatprep.subr.bf16.mxu0 0
      %3725 = vmatpush2.bf16.msra.mxu0 0
      %3726 = vmatprep.subr.bf16.mxu0 0
      %3727 = vmatpush2.bf16.msra.mxu0 0
      %3728 = vmatprep.subr.bf16.mxu0 0
      %3729 = vmatpush2.bf16.msra.mxu0 0
      %3730 = vmatprep.mubr.bf16.mxu0 0
      %3731 = vmatmul.mubr.bf16.gmra.mxu0 %v690
      %v3732 = vpop.f32.mrf.mxu0
      %v3733 = vadd.f32 0.0, %v3732
      %v3734 = vpop.f32.mrf.mxu0
      %v3735 = vpop.f32.mrf.mxu0
      %v3736 = vadd.f32 0.0, %v3735
      %v3737 = vpop.f32.mrf.mxu0
      %3738 = vmatprep.mubr.bf16.mxu0 0
      %3739 = vmatmul.mubr.bf16.gmra.mxu0 %v691
      %v3740 = vpop.f32.mrf.mxu0
      %v3741 = vadd.f32 0.0, %v3740
      %v3742 = vpop.f32.mrf.mxu0
      %v3743 = vpop.f32.mrf.mxu0
      %v3744 = vadd.f32 0.0, %v3743
      %v3745 = vpop.f32.mrf.mxu0
      %3746 = vmatprep.mubr.bf16.mxu0 0
      %3747 = vmatmul.mubr.bf16.gmra.mxu0 %v692
      %v3748 = vpop.f32.mrf.mxu0
      %v3749 = vadd.f32 0.0, %v3748
      %v3750 = vpop.f32.mrf.mxu0
      %v3751 = vpop.f32.mrf.mxu0
      %v3752 = vadd.f32 0.0, %v3751
      %v3753 = vpop.f32.mrf.mxu0
      %3754 = vmatprep.mubr.bf16.mxu0 0
      %3755 = vmatmul.mubr.bf16.gmra.mxu0 %v693
      %v3756 = vpop.f32.mrf.mxu0
      %v3757 = vadd.f32 0.0, %v3756
      %v3758 = vpop.f32.mrf.mxu0
      %v3759 = vpop.f32.mrf.mxu0
      %v3760 = vadd.f32 0.0, %v3759
      %v3761 = vpop.f32.mrf.mxu0
      %3762 = vmatprep.mubr.bf16.mxu0 0
      %3763 = vmatmul.mubr.bf16.gmra.mxu0 %v694
      %v3764 = vpop.f32.mrf.mxu0
      %v3765 = vadd.f32 0.0, %v3764
      %v3766 = vpop.f32.mrf.mxu0
      %v3767 = vpop.f32.mrf.mxu0
      %v3768 = vadd.f32 0.0, %v3767
      %v3769 = vpop.f32.mrf.mxu0
      %3770 = vmatprep.mubr.bf16.mxu0 0
      %3771 = vmatmul.mubr.bf16.gmra.mxu0 %v695
      %v3772 = vpop.f32.mrf.mxu0
      %v3773 = vadd.f32 0.0, %v3772
      %v3774 = vpop.f32.mrf.mxu0
      %v3775 = vpop.f32.mrf.mxu0
      %v3776 = vadd.f32 0.0, %v3775
      %v3777 = vpop.f32.mrf.mxu0
      %3778 = vmatprep.mubr.bf16.mxu0 0
      %3779 = vmatmul.mubr.bf16.gmra.mxu0 %v696
      %v3780 = vpop.f32.mrf.mxu0
      %v3781 = vadd.f32 0.0, %v3780
      %v3782 = vpop.f32.mrf.mxu0
      %v3783 = vpop.f32.mrf.mxu0
      %v3784 = vadd.f32 0.0, %v3783
      %v3785 = vpop.f32.mrf.mxu0
      %3786 = vmatprep.mubr.bf16.mxu0 0
      %3787 = vmatmul.mubr.bf16.gmra.mxu0 %v697
      %v3788 = vpop.f32.mrf.mxu0
      %v3789 = vadd.f32 0.0, %v3788
      %v3790 = vpop.f32.mrf.mxu0
      %v3791 = vpop.f32.mrf.mxu0
      %v3792 = vadd.f32 0.0, %v3791
      %v3793 = vpop.f32.mrf.mxu0
      %3794 = vmatprep.mubr.bf16.mxu0 0
      %3795 = vmatmul.mubr.bf16.gmra.mxu0 %v698
      %v3796 = vpop.f32.mrf.mxu0
      %v3797 = vadd.f32 0.0, %v3796
      %v3798 = vpop.f32.mrf.mxu0
      %v3799 = vpop.f32.mrf.mxu0
      %v3800 = vadd.f32 0.0, %v3799
      %v3801 = vpop.f32.mrf.mxu0
      %3802 = vmatprep.mubr.bf16.mxu0 0
      %3803 = vmatmul.mubr.bf16.gmra.mxu0 %v699
      %v3804 = vpop.f32.mrf.mxu0
      %v3805 = vadd.f32 0.0, %v3804
      %v3806 = vpop.f32.mrf.mxu0
      %v3807 = vpop.f32.mrf.mxu0
      %v3808 = vadd.f32 0.0, %v3807
      %v3809 = vpop.f32.mrf.mxu0
      %3810 = vmatprep.mubr.bf16.mxu0 0
      %3811 = vmatmul.mubr.bf16.gmra.mxu0 %v700
      %v3812 = vpop.f32.mrf.mxu0
      %v3813 = vadd.f32 0.0, %v3812
      %v3814 = vpop.f32.mrf.mxu0
      %v3815 = vpop.f32.mrf.mxu0
      %v3816 = vadd.f32 0.0, %v3815
      %v3817 = vpop.f32.mrf.mxu0
      %3818 = vmatprep.mubr.bf16.mxu0 0
      %3819 = vmatmul.mubr.bf16.gmra.mxu0 %v701
      %v3820 = vpop.f32.mrf.mxu0
      %v3821 = vadd.f32 0.0, %v3820
      %v3822 = vpop.f32.mrf.mxu0
      %v3823 = vpop.f32.mrf.mxu0
      %v3824 = vadd.f32 0.0, %v3823
      %v3825 = vpop.f32.mrf.mxu0
      %3826 = vmatprep.mubr.bf16.mxu0 0
      %3827 = vmatmul.mubr.bf16.gmra.mxu0 %v702
      %v3828 = vpop.f32.mrf.mxu0
      %v3829 = vadd.f32 0.0, %v3828
      %v3830 = vpop.f32.mrf.mxu0
      %v3831 = vpop.f32.mrf.mxu0
      %v3832 = vadd.f32 0.0, %v3831
      %v3833 = vpop.f32.mrf.mxu0
      %3834 = vmatprep.mubr.bf16.mxu0 0
      %3835 = vmatmul.mubr.bf16.gmra.mxu0 %v703
      %v3836 = vpop.f32.mrf.mxu0
      %v3837 = vadd.f32 0.0, %v3836
      %v3838 = vpop.f32.mrf.mxu0
      %v3839 = vpop.f32.mrf.mxu0
      %v3840 = vadd.f32 0.0, %v3839
      %v3841 = vpop.f32.mrf.mxu0
      %3842 = vmatprep.mubr.bf16.mxu0 0
      %3843 = vmatmul.mubr.bf16.gmra.mxu0 %v704
      %v3844 = vpop.f32.mrf.mxu0
      %v3845 = vadd.f32 0.0, %v3844
      %v3846 = vpop.f32.mrf.mxu0
      %v3847 = vpop.f32.mrf.mxu0
      %v3848 = vadd.f32 0.0, %v3847
      %v3849 = vpop.f32.mrf.mxu0
      %3850 = vmatprep.mubr.bf16.mxu0 0
      %3851 = vmatmul.mubr.bf16.gmra.mxu0 %v705
      %v3852 = vpop.f32.mrf.mxu0
      %v3853 = vadd.f32 0.0, %v3852
      %v3854 = vpop.f32.mrf.mxu0
      %v3855 = vpop.f32.mrf.mxu0
      %v3856 = vadd.f32 0.0, %v3855
      %v3857 = vpop.f32.mrf.mxu0
      %3858 = vmatprep.mubr.bf16.mxu0 0
      %3859 = vmatmul.mubr.bf16.gmra.mxu0 %v706
      %v3860 = vpop.f32.mrf.mxu0
      %v3861 = vadd.f32 0.0, %v3860
      %v3862 = vpop.f32.mrf.mxu0
      %v3863 = vpop.f32.mrf.mxu0
      %v3864 = vadd.f32 0.0, %v3863
      %v3865 = vpop.f32.mrf.mxu0
      %3866 = vmatprep.mubr.bf16.mxu0 0
      %3867 = vmatmul.mubr.bf16.gmra.mxu0 %v707
      %v3868 = vpop.f32.mrf.mxu0
      %v3869 = vadd.f32 0.0, %v3868
      %v3870 = vpop.f32.mrf.mxu0
      %v3871 = vpop.f32.mrf.mxu0
      %v3872 = vadd.f32 0.0, %v3871
      %v3873 = vpop.f32.mrf.mxu0
      %3874 = vmatprep.mubr.bf16.mxu0 0
      %3875 = vmatmul.mubr.bf16.gmra.mxu0 %v708
      %v3876 = vpop.f32.mrf.mxu0
      %v3877 = vadd.f32 0.0, %v3876
      %v3878 = vpop.f32.mrf.mxu0
      %v3879 = vpop.f32.mrf.mxu0
      %v3880 = vadd.f32 0.0, %v3879
      %v3881 = vpop.f32.mrf.mxu0
      %3882 = vmatprep.mubr.bf16.mxu0 0
      %3883 = vmatmul.mubr.bf16.gmra.mxu0 %v709
      %v3884 = vpop.f32.mrf.mxu0
      %v3885 = vadd.f32 0.0, %v3884
      %v3886 = vpop.f32.mrf.mxu0
      %v3887 = vpop.f32.mrf.mxu0
      %v3888 = vadd.f32 0.0, %v3887
      %v3889 = vpop.f32.mrf.mxu0
      %3890 = vmatprep.mubr.bf16.mxu0 0
      %3891 = vmatmul.mubr.bf16.gmra.mxu0 %v710
      %v3892 = vpop.f32.mrf.mxu0
      %v3893 = vadd.f32 0.0, %v3892
      %v3894 = vpop.f32.mrf.mxu0
      %v3895 = vpop.f32.mrf.mxu0
      %v3896 = vadd.f32 0.0, %v3895
      %v3897 = vpop.f32.mrf.mxu0
      %3898 = vmatprep.mubr.bf16.mxu0 0
      %3899 = vmatmul.mubr.bf16.gmra.mxu0 %v711
      %v3900 = vpop.f32.mrf.mxu0
      %v3901 = vadd.f32 0.0, %v3900
      %v3902 = vpop.f32.mrf.mxu0
      %v3903 = vpop.f32.mrf.mxu0
      %v3904 = vadd.f32 0.0, %v3903
      %v3905 = vpop.f32.mrf.mxu0
      %3906 = vmatprep.mubr.bf16.mxu0 0
      %3907 = vmatmul.mubr.bf16.gmra.mxu0 %v712
      %v3908 = vpop.f32.mrf.mxu0
      %v3909 = vadd.f32 0.0, %v3908
      %v3910 = vpop.f32.mrf.mxu0
      %v3911 = vpop.f32.mrf.mxu0
      %v3912 = vadd.f32 0.0, %v3911
      %v3913 = vpop.f32.mrf.mxu0
      %3914 = vmatprep.mubr.bf16.mxu0 0
      %3915 = vmatmul.mubr.bf16.gmra.mxu0 %v713
      %v3916 = vpop.f32.mrf.mxu0
      %v3917 = vadd.f32 0.0, %v3916
      %v3918 = vpop.f32.mrf.mxu0
      %v3919 = vpop.f32.mrf.mxu0
      %v3920 = vadd.f32 0.0, %v3919
      %v3921 = vpop.f32.mrf.mxu0
      %3922 = vmatprep.mubr.bf16.mxu0 0
      %3923 = vmatmul.mubr.bf16.gmra.mxu0 %v714
      %v3924 = vpop.f32.mrf.mxu0
      %v3925 = vadd.f32 0.0, %v3924
      %v3926 = vpop.f32.mrf.mxu0
      %v3927 = vpop.f32.mrf.mxu0
      %v3928 = vadd.f32 0.0, %v3927
      %v3929 = vpop.f32.mrf.mxu0
      %3930 = vmatprep.mubr.bf16.mxu0 0
      %3931 = vmatmul.mubr.bf16.gmra.mxu0 %v715
      %v3932 = vpop.f32.mrf.mxu0
      %v3933 = vadd.f32 0.0, %v3932
      %v3934 = vpop.f32.mrf.mxu0
      %v3935 = vpop.f32.mrf.mxu0
      %v3936 = vadd.f32 0.0, %v3935
      %v3937 = vpop.f32.mrf.mxu0
      %3938 = vmatprep.mubr.bf16.mxu0 0
      %3939 = vmatmul.mubr.bf16.gmra.mxu0 %v716
      %v3940 = vpop.f32.mrf.mxu0
      %v3941 = vadd.f32 0.0, %v3940
      %v3942 = vpop.f32.mrf.mxu0
      %v3943 = vpop.f32.mrf.mxu0
      %v3944 = vadd.f32 0.0, %v3943
      %v3945 = vpop.f32.mrf.mxu0
      %3946 = vmatprep.mubr.bf16.mxu0 0
      %3947 = vmatmul.mubr.bf16.gmra.mxu0 %v717
      %v3948 = vpop.f32.mrf.mxu0
      %v3949 = vadd.f32 0.0, %v3948
      %v3950 = vpop.f32.mrf.mxu0
      %v3951 = vpop.f32.mrf.mxu0
      %v3952 = vadd.f32 0.0, %v3951
      %v3953 = vpop.f32.mrf.mxu0
      %3954 = vmatprep.mubr.bf16.mxu0 0
      %3955 = vmatmul.mubr.bf16.gmra.mxu0 %v718
      %v3956 = vpop.f32.mrf.mxu0
      %v3957 = vadd.f32 0.0, %v3956
      %v3958 = vpop.f32.mrf.mxu0
      %v3959 = vpop.f32.mrf.mxu0
      %v3960 = vadd.f32 0.0, %v3959
      %v3961 = vpop.f32.mrf.mxu0
      %3962 = vmatprep.mubr.bf16.mxu0 0
      %3963 = vmatmul.mubr.bf16.gmra.mxu0 %v719
      %v3964 = vpop.f32.mrf.mxu0
      %v3965 = vadd.f32 0.0, %v3964
      %v3966 = vpop.f32.mrf.mxu0
      %v3967 = vpop.f32.mrf.mxu0
      %v3968 = vadd.f32 0.0, %v3967
      %v3969 = vpop.f32.mrf.mxu0
      %3970 = vmatprep.mubr.bf16.mxu0 0
      %3971 = vmatmul.mubr.bf16.gmra.mxu0 %v720
      %v3972 = vpop.f32.mrf.mxu0
      %v3973 = vadd.f32 0.0, %v3972
      %v3974 = vpop.f32.mrf.mxu0
      %v3975 = vpop.f32.mrf.mxu0
      %v3976 = vadd.f32 0.0, %v3975
      %v3977 = vpop.f32.mrf.mxu0
      %3978 = vmatprep.mubr.bf16.mxu0 0
      %3979 = vmatmul.mubr.bf16.gmra.mxu0 %v721
      %v3980 = vpop.f32.mrf.mxu0
      %v3981 = vadd.f32 0.0, %v3980
      %v3982 = vpop.f32.mrf.mxu0
      %v3983 = vpop.f32.mrf.mxu0
      %v3984 = vadd.f32 0.0, %v3983
      %v3985 = vpop.f32.mrf.mxu0
      %3986 = vdwg.mxu0
      %v4003 = vunpack.c.l.b16 %v3617
      %v4004 = vunpack.c.l.b16 %v3618
      %v4005 = vunpack.c.l.b16 %v3619
      %v4006 = vunpack.c.l.b16 %v3620
      %v4007 = vunpack.c.l.b16 %v3621
      %v4008 = vunpack.c.l.b16 %v3622
      %v4009 = vunpack.c.l.b16 %v3623
      %v4010 = vunpack.c.l.b16 %v3624
      %v4011 = vunpack.c.l.b16 %v3625
      %v4012 = vunpack.c.l.b16 %v3626
      %v4013 = vunpack.c.l.b16 %v3627
      %v4014 = vunpack.c.l.b16 %v3628
      %v4015 = vunpack.c.l.b16 %v3629
      %v4016 = vunpack.c.l.b16 %v3630
      %v4017 = vunpack.c.l.b16 %v3631
      %v4018 = vunpack.c.l.b16 %v3632
      %v4019 = vpack.c.b16 %v4004, %v4003
      %v4020 = vpack.c.b16 %v4006, %v4005
      %v4021 = vpack.c.b16 %v4008, %v4007
      %v4022 = vpack.c.b16 %v4010, %v4009
      %v4023 = vpack.c.b16 %v4012, %v4011
      %v4024 = vpack.c.b16 %v4014, %v4013
      %v4025 = vpack.c.b16 %v4016, %v4015
      %v4026 = vpack.c.b16 %v4018, %v4017
      %4035 = vmatprep.subr.bf16.mxu0 0
      %4036 = vmatpush1.bf16.msra.mxu0 %v4026
      %4037 = vmatprep.subr.bf16.mxu0 0
      %4038 = vmatpush1.bf16.msra.mxu0 %v4025
      %4039 = vmatprep.subr.bf16.mxu0 0
      %4040 = vmatpush1.bf16.msra.mxu0 %v4024
      %4041 = vmatprep.subr.bf16.mxu0 0
      %4042 = vmatpush1.bf16.msra.mxu0 %v4023
      %4043 = vmatprep.subr.bf16.mxu0 0
      %4044 = vmatpush1.bf16.msra.mxu0 %v4022
      %4045 = vmatprep.subr.bf16.mxu0 0
      %4046 = vmatpush1.bf16.msra.mxu0 %v4021
      %4047 = vmatprep.subr.bf16.mxu0 0
      %4048 = vmatpush1.bf16.msra.mxu0 %v4020
      %4049 = vmatprep.subr.bf16.mxu0 0
      %4050 = vmatpush1.bf16.msra.mxu0 %v4019
      %4051 = vmatprep.subr.bf16.mxu0 0
      %4052 = vmatpush2.bf16.msra.mxu0 0
      %4053 = vmatprep.subr.bf16.mxu0 0
      %4054 = vmatpush2.bf16.msra.mxu0 0
      %4055 = vmatprep.subr.bf16.mxu0 0
      %4056 = vmatpush2.bf16.msra.mxu0 0
      %4057 = vmatprep.subr.bf16.mxu0 0
      %4058 = vmatpush2.bf16.msra.mxu0 0
      %4059 = vmatprep.subr.bf16.mxu0 0
      %4060 = vmatpush2.bf16.msra.mxu0 0
      %4061 = vmatprep.subr.bf16.mxu0 0
      %4062 = vmatpush2.bf16.msra.mxu0 0
      %4063 = vmatprep.subr.bf16.mxu0 0
      %4064 = vmatpush2.bf16.msra.mxu0 0
      %4065 = vmatprep.subr.bf16.mxu0 0
      %4066 = vmatpush2.bf16.msra.mxu0 0
      %4067 = vmatprep.mubr.bf16.mxu0 0
      %4068 = vmatmul.mubr.bf16.gmra.mxu0 %v1219
      %v4069 = vpop.f32.mrf.mxu0
      %v4070 = vadd.f32 %v3733, %v4069
      %v4071 = vpop.f32.mrf.mxu0
      %v4072 = vpop.f32.mrf.mxu0
      %v4073 = vadd.f32 %v3736, %v4072
      %v4074 = vpop.f32.mrf.mxu0
      %4075 = vmatprep.mubr.bf16.mxu0 0
      %4076 = vmatmul.mubr.bf16.gmra.mxu0 %v1220
      %v4077 = vpop.f32.mrf.mxu0
      %v4078 = vadd.f32 %v3741, %v4077
      %v4079 = vpop.f32.mrf.mxu0
      %v4080 = vpop.f32.mrf.mxu0
      %v4081 = vadd.f32 %v3744, %v4080
      %v4082 = vpop.f32.mrf.mxu0
      %4083 = vmatprep.mubr.bf16.mxu0 0
      %4084 = vmatmul.mubr.bf16.gmra.mxu0 %v1221
      %v4085 = vpop.f32.mrf.mxu0
      %v4086 = vadd.f32 %v3749, %v4085
      %v4087 = vpop.f32.mrf.mxu0
      %v4088 = vpop.f32.mrf.mxu0
      %v4089 = vadd.f32 %v3752, %v4088
      %v4090 = vpop.f32.mrf.mxu0
      %4091 = vmatprep.mubr.bf16.mxu0 0
      %4092 = vmatmul.mubr.bf16.gmra.mxu0 %v1222
      %v4093 = vpop.f32.mrf.mxu0
      %v4094 = vadd.f32 %v3757, %v4093
      %v4095 = vpop.f32.mrf.mxu0
      %v4096 = vpop.f32.mrf.mxu0
      %v4097 = vadd.f32 %v3760, %v4096
      %v4098 = vpop.f32.mrf.mxu0
      %4099 = vmatprep.mubr.bf16.mxu0 0
      %4100 = vmatmul.mubr.bf16.gmra.mxu0 %v1223
      %v4101 = vpop.f32.mrf.mxu0
      %v4102 = vadd.f32 %v3765, %v4101
      %v4103 = vpop.f32.mrf.mxu0
      %v4104 = vpop.f32.mrf.mxu0
      %v4105 = vadd.f32 %v3768, %v4104
      %v4106 = vpop.f32.mrf.mxu0
      %4107 = vmatprep.mubr.bf16.mxu0 0
      %4108 = vmatmul.mubr.bf16.gmra.mxu0 %v1224
      %v4109 = vpop.f32.mrf.mxu0
      %v4110 = vadd.f32 %v3773, %v4109
      %v4111 = vpop.f32.mrf.mxu0
      %v4112 = vpop.f32.mrf.mxu0
      %v4113 = vadd.f32 %v3776, %v4112
      %v4114 = vpop.f32.mrf.mxu0
      %4115 = vmatprep.mubr.bf16.mxu0 0
      %4116 = vmatmul.mubr.bf16.gmra.mxu0 %v1225
      %v4117 = vpop.f32.mrf.mxu0
      %v4118 = vadd.f32 %v3781, %v4117
      %v4119 = vpop.f32.mrf.mxu0
      %v4120 = vpop.f32.mrf.mxu0
      %v4121 = vadd.f32 %v3784, %v4120
      %v4122 = vpop.f32.mrf.mxu0
      %4123 = vmatprep.mubr.bf16.mxu0 0
      %4124 = vmatmul.mubr.bf16.gmra.mxu0 %v1226
      %v4125 = vpop.f32.mrf.mxu0
      %v4126 = vadd.f32 %v3789, %v4125
      %v4127 = vpop.f32.mrf.mxu0
      %v4128 = vpop.f32.mrf.mxu0
      %v4129 = vadd.f32 %v3792, %v4128
      %v4130 = vpop.f32.mrf.mxu0
      %4131 = vmatprep.mubr.bf16.mxu0 0
      %4132 = vmatmul.mubr.bf16.gmra.mxu0 %v1227
      %v4133 = vpop.f32.mrf.mxu0
      %v4134 = vadd.f32 %v3797, %v4133
      %v4135 = vpop.f32.mrf.mxu0
      %v4136 = vpop.f32.mrf.mxu0
      %v4137 = vadd.f32 %v3800, %v4136
      %v4138 = vpop.f32.mrf.mxu0
      %4139 = vmatprep.mubr.bf16.mxu0 0
      %4140 = vmatmul.mubr.bf16.gmra.mxu0 %v1228
      %v4141 = vpop.f32.mrf.mxu0
      %v4142 = vadd.f32 %v3805, %v4141
      %v4143 = vpop.f32.mrf.mxu0
      %v4144 = vpop.f32.mrf.mxu0
      %v4145 = vadd.f32 %v3808, %v4144
      %v4146 = vpop.f32.mrf.mxu0
      %4147 = vmatprep.mubr.bf16.mxu0 0
      %4148 = vmatmul.mubr.bf16.gmra.mxu0 %v1229
      %v4149 = vpop.f32.mrf.mxu0
      %v4150 = vadd.f32 %v3813, %v4149
      %v4151 = vpop.f32.mrf.mxu0
      %v4152 = vpop.f32.mrf.mxu0
      %v4153 = vadd.f32 %v3816, %v4152
      %v4154 = vpop.f32.mrf.mxu0
      %4155 = vmatprep.mubr.bf16.mxu0 0
      %4156 = vmatmul.mubr.bf16.gmra.mxu0 %v1230
      %v4157 = vpop.f32.mrf.mxu0
      %v4158 = vadd.f32 %v3821, %v4157
      %v4159 = vpop.f32.mrf.mxu0
      %v4160 = vpop.f32.mrf.mxu0
      %v4161 = vadd.f32 %v3824, %v4160
      %v4162 = vpop.f32.mrf.mxu0
      %4163 = vmatprep.mubr.bf16.mxu0 0
      %4164 = vmatmul.mubr.bf16.gmra.mxu0 %v1231
      %v4165 = vpop.f32.mrf.mxu0
      %v4166 = vadd.f32 %v3829, %v4165
      %v4167 = vpop.f32.mrf.mxu0
      %v4168 = vpop.f32.mrf.mxu0
      %v4169 = vadd.f32 %v3832, %v4168
      %v4170 = vpop.f32.mrf.mxu0
      %4171 = vmatprep.mubr.bf16.mxu0 0
      %4172 = vmatmul.mubr.bf16.gmra.mxu0 %v1232
      %v4173 = vpop.f32.mrf.mxu0
      %v4174 = vadd.f32 %v3837, %v4173
      %v4175 = vpop.f32.mrf.mxu0
      %v4176 = vpop.f32.mrf.mxu0
      %v4177 = vadd.f32 %v3840, %v4176
      %v4178 = vpop.f32.mrf.mxu0
      %4179 = vmatprep.mubr.bf16.mxu0 0
      %4180 = vmatmul.mubr.bf16.gmra.mxu0 %v1233
      %v4181 = vpop.f32.mrf.mxu0
      %v4182 = vadd.f32 %v3845, %v4181
      %v4183 = vpop.f32.mrf.mxu0
      %v4184 = vpop.f32.mrf.mxu0
      %v4185 = vadd.f32 %v3848, %v4184
      %v4186 = vpop.f32.mrf.mxu0
      %4187 = vmatprep.mubr.bf16.mxu0 0
      %4188 = vmatmul.mubr.bf16.gmra.mxu0 %v1234
      %v4189 = vpop.f32.mrf.mxu0
      %v4190 = vadd.f32 %v3853, %v4189
      %v4191 = vpop.f32.mrf.mxu0
      %v4192 = vpop.f32.mrf.mxu0
      %v4193 = vadd.f32 %v3856, %v4192
      %v4194 = vpop.f32.mrf.mxu0
      %4195 = vmatprep.mubr.bf16.mxu0 0
      %4196 = vmatmul.mubr.bf16.gmra.mxu0 %v1235
      %v4197 = vpop.f32.mrf.mxu0
      %v4198 = vadd.f32 %v3861, %v4197
      %v4199 = vpop.f32.mrf.mxu0
      %v4200 = vpop.f32.mrf.mxu0
      %v4201 = vadd.f32 %v3864, %v4200
      %v4202 = vpop.f32.mrf.mxu0
      %4203 = vmatprep.mubr.bf16.mxu0 0
      %4204 = vmatmul.mubr.bf16.gmra.mxu0 %v1236
      %v4205 = vpop.f32.mrf.mxu0
      %v4206 = vadd.f32 %v3869, %v4205
      %v4207 = vpop.f32.mrf.mxu0
      %v4208 = vpop.f32.mrf.mxu0
      %v4209 = vadd.f32 %v3872, %v4208
      %v4210 = vpop.f32.mrf.mxu0
      %4211 = vmatprep.mubr.bf16.mxu0 0
      %4212 = vmatmul.mubr.bf16.gmra.mxu0 %v1237
      %v4213 = vpop.f32.mrf.mxu0
      %v4214 = vadd.f32 %v3877, %v4213
      %v4215 = vpop.f32.mrf.mxu0
      %v4216 = vpop.f32.mrf.mxu0
      %v4217 = vadd.f32 %v3880, %v4216
      %v4218 = vpop.f32.mrf.mxu0
      %4219 = vmatprep.mubr.bf16.mxu0 0
      %4220 = vmatmul.mubr.bf16.gmra.mxu0 %v1238
      %v4221 = vpop.f32.mrf.mxu0
      %v4222 = vadd.f32 %v3885, %v4221
      %v4223 = vpop.f32.mrf.mxu0
      %v4224 = vpop.f32.mrf.mxu0
      %v4225 = vadd.f32 %v3888, %v4224
      %v4226 = vpop.f32.mrf.mxu0
      %4227 = vmatprep.mubr.bf16.mxu0 0
      %4228 = vmatmul.mubr.bf16.gmra.mxu0 %v1239
      %v4229 = vpop.f32.mrf.mxu0
      %v4230 = vadd.f32 %v3893, %v4229
      %v4231 = vpop.f32.mrf.mxu0
      %v4232 = vpop.f32.mrf.mxu0
      %v4233 = vadd.f32 %v3896, %v4232
      %v4234 = vpop.f32.mrf.mxu0
      %4235 = vmatprep.mubr.bf16.mxu0 0
      %4236 = vmatmul.mubr.bf16.gmra.mxu0 %v1240
      %v4237 = vpop.f32.mrf.mxu0
      %v4238 = vadd.f32 %v3901, %v4237
      %v4239 = vpop.f32.mrf.mxu0
      %v4240 = vpop.f32.mrf.mxu0
      %v4241 = vadd.f32 %v3904, %v4240
      %v4242 = vpop.f32.mrf.mxu0
      %4243 = vmatprep.mubr.bf16.mxu0 0
      %4244 = vmatmul.mubr.bf16.gmra.mxu0 %v1241
      %v4245 = vpop.f32.mrf.mxu0
      %v4246 = vadd.f32 %v3909, %v4245
      %v4247 = vpop.f32.mrf.mxu0
      %v4248 = vpop.f32.mrf.mxu0
      %v4249 = vadd.f32 %v3912, %v4248
      %v4250 = vpop.f32.mrf.mxu0
      %4251 = vmatprep.mubr.bf16.mxu0 0
      %4252 = vmatmul.mubr.bf16.gmra.mxu0 %v1242
      %v4253 = vpop.f32.mrf.mxu0
      %v4254 = vadd.f32 %v3917, %v4253
      %v4255 = vpop.f32.mrf.mxu0
      %v4256 = vpop.f32.mrf.mxu0
      %v4257 = vadd.f32 %v3920, %v4256
      %v4258 = vpop.f32.mrf.mxu0
      %4259 = vmatprep.mubr.bf16.mxu0 0
      %4260 = vmatmul.mubr.bf16.gmra.mxu0 %v1243
      %v4261 = vpop.f32.mrf.mxu0
      %v4262 = vadd.f32 %v3925, %v4261
      %v4263 = vpop.f32.mrf.mxu0
      %v4264 = vpop.f32.mrf.mxu0
      %v4265 = vadd.f32 %v3928, %v4264
      %v4266 = vpop.f32.mrf.mxu0
      %4267 = vmatprep.mubr.bf16.mxu0 0
      %4268 = vmatmul.mubr.bf16.gmra.mxu0 %v1244
      %v4269 = vpop.f32.mrf.mxu0
      %v4270 = vadd.f32 %v3933, %v4269
      %v4271 = vpop.f32.mrf.mxu0
      %v4272 = vpop.f32.mrf.mxu0
      %v4273 = vadd.f32 %v3936, %v4272
      %v4274 = vpop.f32.mrf.mxu0
      %4275 = vmatprep.mubr.bf16.mxu0 0
      %4276 = vmatmul.mubr.bf16.gmra.mxu0 %v1245
      %v4277 = vpop.f32.mrf.mxu0
      %v4278 = vadd.f32 %v3941, %v4277
      %v4279 = vpop.f32.mrf.mxu0
      %v4280 = vpop.f32.mrf.mxu0
      %v4281 = vadd.f32 %v3944, %v4280
      %v4282 = vpop.f32.mrf.mxu0
      %4283 = vmatprep.mubr.bf16.mxu0 0
      %4284 = vmatmul.mubr.bf16.gmra.mxu0 %v1246
      %v4285 = vpop.f32.mrf.mxu0
      %v4286 = vadd.f32 %v3949, %v4285
      %v4287 = vpop.f32.mrf.mxu0
      %v4288 = vpop.f32.mrf.mxu0
      %v4289 = vadd.f32 %v3952, %v4288
      %v4290 = vpop.f32.mrf.mxu0
      %4291 = vmatprep.mubr.bf16.mxu0 0
      %4292 = vmatmul.mubr.bf16.gmra.mxu0 %v1247
      %v4293 = vpop.f32.mrf.mxu0
      %v4294 = vadd.f32 %v3957, %v4293
      %v4295 = vpop.f32.mrf.mxu0
      %v4296 = vpop.f32.mrf.mxu0
      %v4297 = vadd.f32 %v3960, %v4296
      %v4298 = vpop.f32.mrf.mxu0
      %4299 = vmatprep.mubr.bf16.mxu0 0
      %4300 = vmatmul.mubr.bf16.gmra.mxu0 %v1248
      %v4301 = vpop.f32.mrf.mxu0
      %v4302 = vadd.f32 %v3965, %v4301
      %v4303 = vpop.f32.mrf.mxu0
      %v4304 = vpop.f32.mrf.mxu0
      %v4305 = vadd.f32 %v3968, %v4304
      %v4306 = vpop.f32.mrf.mxu0
      %4307 = vmatprep.mubr.bf16.mxu0 0
      %4308 = vmatmul.mubr.bf16.gmra.mxu0 %v1249
      %v4309 = vpop.f32.mrf.mxu0
      %v4310 = vadd.f32 %v3973, %v4309
      %v4311 = vpop.f32.mrf.mxu0
      %v4312 = vpop.f32.mrf.mxu0
      %v4313 = vadd.f32 %v3976, %v4312
      %v4314 = vpop.f32.mrf.mxu0
      %4315 = vmatprep.mubr.bf16.mxu0 0
      %4316 = vmatmul.mubr.bf16.gmra.mxu0 %v1250
      %v4317 = vpop.f32.mrf.mxu0
      %v4318 = vadd.f32 %v3981, %v4317
      %v4319 = vpop.f32.mrf.mxu0
      %v4320 = vpop.f32.mrf.mxu0
      %v4321 = vadd.f32 %v3984, %v4320
      %v4322 = vpop.f32.mrf.mxu0
      %4323 = vdwg.mxu0
      %s4324 = scalar_lea.vmem %s1, 512
      %v4325 = vld [vmem:[%s4324] sm:$0xf]
      %v4326 = vld [vmem:[%s4324 + $0x4] sm:$0xf]
      %v4327 = vld [vmem:[%s4324 + $0x8] sm:$0xf]
      %v4328 = vld [vmem:[%s4324 + $0xc] sm:$0xf]
      %v4329 = vld [vmem:[%s4324 + $0x10] sm:$0xf]
      %v4330 = vld [vmem:[%s4324 + $0x14] sm:$0xf]
      %v4331 = vld [vmem:[%s4324 + $0x18] sm:$0xf]
      %v4332 = vld [vmem:[%s4324 + $0x1c] sm:$0xf]
      %v4333 = vld [vmem:[%s4324 + $0x20] sm:$0xf]
      %v4334 = vld [vmem:[%s4324 + $0x24] sm:$0xf]
      %v4335 = vld [vmem:[%s4324 + $0x28] sm:$0xf]
      %v4336 = vld [vmem:[%s4324 + $0x2c] sm:$0xf]
      %v4337 = vld [vmem:[%s4324 + $0x30] sm:$0xf]
      %v4338 = vld [vmem:[%s4324 + $0x34] sm:$0xf]
      %v4339 = vld [vmem:[%s4324 + $0x38] sm:$0xf]
      %v4340 = vld [vmem:[%s4324 + $0x3c] sm:$0xf]
      %v4357 = vunpack.c.l.b16 %v4325
      %v4358 = vunpack.c.l.b16 %v4326
      %v4359 = vunpack.c.l.b16 %v4327
      %v4360 = vunpack.c.l.b16 %v4328
      %v4361 = vunpack.c.l.b16 %v4329
      %v4362 = vunpack.c.l.b16 %v4330
      %v4363 = vunpack.c.l.b16 %v4331
      %v4364 = vunpack.c.l.b16 %v4332
      %v4365 = vunpack.c.l.b16 %v4333
      %v4366 = vunpack.c.l.b16 %v4334
      %v4367 = vunpack.c.l.b16 %v4335
      %v4368 = vunpack.c.l.b16 %v4336
      %v4369 = vunpack.c.l.b16 %v4337
      %v4370 = vunpack.c.l.b16 %v4338
      %v4371 = vunpack.c.l.b16 %v4339
      %v4372 = vunpack.c.l.b16 %v4340
      %v4373 = vpack.c.b16 %v4358, %v4357
      %v4374 = vpack.c.b16 %v4360, %v4359
      %v4375 = vpack.c.b16 %v4362, %v4361
      %v4376 = vpack.c.b16 %v4364, %v4363
      %v4377 = vpack.c.b16 %v4366, %v4365
      %v4378 = vpack.c.b16 %v4368, %v4367
      %v4379 = vpack.c.b16 %v4370, %v4369
      %v4380 = vpack.c.b16 %v4372, %v4371
      %4389 = vmatprep.subr.bf16.mxu0 0
      %4390 = vmatpush1.bf16.msra.mxu0 %v4380
      %4391 = vmatprep.subr.bf16.mxu0 0
      %4392 = vmatpush1.bf16.msra.mxu0 %v4379
      %4393 = vmatprep.subr.bf16.mxu0 0
      %4394 = vmatpush1.bf16.msra.mxu0 %v4378
      %4395 = vmatprep.subr.bf16.mxu0 0
      %4396 = vmatpush1.bf16.msra.mxu0 %v4377
      %4397 = vmatprep.subr.bf16.mxu0 0
      %4398 = vmatpush1.bf16.msra.mxu0 %v4376
      %4399 = vmatprep.subr.bf16.mxu0 0
      %4400 = vmatpush1.bf16.msra.mxu0 %v4375
      %4401 = vmatprep.subr.bf16.mxu0 0
      %4402 = vmatpush1.bf16.msra.mxu0 %v4374
      %4403 = vmatprep.subr.bf16.mxu0 0
      %4404 = vmatpush1.bf16.msra.mxu0 %v4373
      %4405 = vmatprep.subr.bf16.mxu0 0
      %4406 = vmatpush2.bf16.msra.mxu0 0
      %4407 = vmatprep.subr.bf16.mxu0 0
      %4408 = vmatpush2.bf16.msra.mxu0 0
      %4409 = vmatprep.subr.bf16.mxu0 0
      %4410 = vmatpush2.bf16.msra.mxu0 0
      %4411 = vmatprep.subr.bf16.mxu0 0
      %4412 = vmatpush2.bf16.msra.mxu0 0
      %4413 = vmatprep.subr.bf16.mxu0 0
      %4414 = vmatpush2.bf16.msra.mxu0 0
      %4415 = vmatprep.subr.bf16.mxu0 0
      %4416 = vmatpush2.bf16.msra.mxu0 0
      %4417 = vmatprep.subr.bf16.mxu0 0
      %4418 = vmatpush2.bf16.msra.mxu0 0
      %4419 = vmatprep.subr.bf16.mxu0 0
      %4420 = vmatpush2.bf16.msra.mxu0 0
      %4421 = vmatprep.mubr.bf16.mxu0 0
      %4422 = vmatmul.mubr.bf16.gmra.mxu0 %v1830
      %v4423 = vpop.f32.mrf.mxu0
      %v4424 = vadd.f32 0.0, %v4423
      %v4425 = vpop.f32.mrf.mxu0
      %v4426 = vpop.f32.mrf.mxu0
      %v4427 = vadd.f32 0.0, %v4426
      %v4428 = vpop.f32.mrf.mxu0
      %4429 = vmatprep.mubr.bf16.mxu0 0
      %4430 = vmatmul.mubr.bf16.gmra.mxu0 %v1831
      %v4431 = vpop.f32.mrf.mxu0
      %v4432 = vadd.f32 0.0, %v4431
      %v4433 = vpop.f32.mrf.mxu0
      %v4434 = vpop.f32.mrf.mxu0
      %v4435 = vadd.f32 0.0, %v4434
      %v4436 = vpop.f32.mrf.mxu0
      %4437 = vmatprep.mubr.bf16.mxu0 0
      %4438 = vmatmul.mubr.bf16.gmra.mxu0 %v1832
      %v4439 = vpop.f32.mrf.mxu0
      %v4440 = vadd.f32 0.0, %v4439
      %v4441 = vpop.f32.mrf.mxu0
      %v4442 = vpop.f32.mrf.mxu0
      %v4443 = vadd.f32 0.0, %v4442
      %v4444 = vpop.f32.mrf.mxu0
      %4445 = vmatprep.mubr.bf16.mxu0 0
      %4446 = vmatmul.mubr.bf16.gmra.mxu0 %v1833
      %v4447 = vpop.f32.mrf.mxu0
      %v4448 = vadd.f32 0.0, %v4447
      %v4449 = vpop.f32.mrf.mxu0
      %v4450 = vpop.f32.mrf.mxu0
      %v4451 = vadd.f32 0.0, %v4450
      %v4452 = vpop.f32.mrf.mxu0
      %4453 = vmatprep.mubr.bf16.mxu0 0
      %4454 = vmatmul.mubr.bf16.gmra.mxu0 %v1834
      %v4455 = vpop.f32.mrf.mxu0
      %v4456 = vadd.f32 0.0, %v4455
      %v4457 = vpop.f32.mrf.mxu0
      %v4458 = vpop.f32.mrf.mxu0
      %v4459 = vadd.f32 0.0, %v4458
      %v4460 = vpop.f32.mrf.mxu0
      %4461 = vmatprep.mubr.bf16.mxu0 0
      %4462 = vmatmul.mubr.bf16.gmra.mxu0 %v1835
      %v4463 = vpop.f32.mrf.mxu0
      %v4464 = vadd.f32 0.0, %v4463
      %v4465 = vpop.f32.mrf.mxu0
      %v4466 = vpop.f32.mrf.mxu0
      %v4467 = vadd.f32 0.0, %v4466
      %v4468 = vpop.f32.mrf.mxu0
      %4469 = vmatprep.mubr.bf16.mxu0 0
      %4470 = vmatmul.mubr.bf16.gmra.mxu0 %v1836
      %v4471 = vpop.f32.mrf.mxu0
      %v4472 = vadd.f32 0.0, %v4471
      %v4473 = vpop.f32.mrf.mxu0
      %v4474 = vpop.f32.mrf.mxu0
      %v4475 = vadd.f32 0.0, %v4474
      %v4476 = vpop.f32.mrf.mxu0
      %4477 = vmatprep.mubr.bf16.mxu0 0
      %4478 = vmatmul.mubr.bf16.gmra.mxu0 %v1837
      %v4479 = vpop.f32.mrf.mxu0
      %v4480 = vadd.f32 0.0, %v4479
      %v4481 = vpop.f32.mrf.mxu0
      %v4482 = vpop.f32.mrf.mxu0
      %v4483 = vadd.f32 0.0, %v4482
      %v4484 = vpop.f32.mrf.mxu0
      %4485 = vmatprep.mubr.bf16.mxu0 0
      %4486 = vmatmul.mubr.bf16.gmra.mxu0 %v1838
      %v4487 = vpop.f32.mrf.mxu0
      %v4488 = vadd.f32 0.0, %v4487
      %v4489 = vpop.f32.mrf.mxu0
      %v4490 = vpop.f32.mrf.mxu0
      %v4491 = vadd.f32 0.0, %v4490
      %v4492 = vpop.f32.mrf.mxu0
      %4493 = vmatprep.mubr.bf16.mxu0 0
      %4494 = vmatmul.mubr.bf16.gmra.mxu0 %v1839
      %v4495 = vpop.f32.mrf.mxu0
      %v4496 = vadd.f32 0.0, %v4495
      %v4497 = vpop.f32.mrf.mxu0
      %v4498 = vpop.f32.mrf.mxu0
      %v4499 = vadd.f32 0.0, %v4498
      %v4500 = vpop.f32.mrf.mxu0
      %4501 = vmatprep.mubr.bf16.mxu0 0
      %4502 = vmatmul.mubr.bf16.gmra.mxu0 %v1840
      %v4503 = vpop.f32.mrf.mxu0
      %v4504 = vadd.f32 0.0, %v4503
      %v4505 = vpop.f32.mrf.mxu0
      %v4506 = vpop.f32.mrf.mxu0
      %v4507 = vadd.f32 0.0, %v4506
      %v4508 = vpop.f32.mrf.mxu0
      %4509 = vmatprep.mubr.bf16.mxu0 0
      %4510 = vmatmul.mubr.bf16.gmra.mxu0 %v1841
      %v4511 = vpop.f32.mrf.mxu0
      %v4512 = vadd.f32 0.0, %v4511
      %v4513 = vpop.f32.mrf.mxu0
      %v4514 = vpop.f32.mrf.mxu0
      %v4515 = vadd.f32 0.0, %v4514
      %v4516 = vpop.f32.mrf.mxu0
      %4517 = vmatprep.mubr.bf16.mxu0 0
      %4518 = vmatmul.mubr.bf16.gmra.mxu0 %v1842
      %v4519 = vpop.f32.mrf.mxu0
      %v4520 = vadd.f32 0.0, %v4519
      %v4521 = vpop.f32.mrf.mxu0
      %v4522 = vpop.f32.mrf.mxu0
      %v4523 = vadd.f32 0.0, %v4522
      %v4524 = vpop.f32.mrf.mxu0
      %4525 = vmatprep.mubr.bf16.mxu0 0
      %4526 = vmatmul.mubr.bf16.gmra.mxu0 %v1843
      %v4527 = vpop.f32.mrf.mxu0
      %v4528 = vadd.f32 0.0, %v4527
      %v4529 = vpop.f32.mrf.mxu0
      %v4530 = vpop.f32.mrf.mxu0
      %v4531 = vadd.f32 0.0, %v4530
      %v4532 = vpop.f32.mrf.mxu0
      %4533 = vmatprep.mubr.bf16.mxu0 0
      %4534 = vmatmul.mubr.bf16.gmra.mxu0 %v1844
      %v4535 = vpop.f32.mrf.mxu0
      %v4536 = vadd.f32 0.0, %v4535
      %v4537 = vpop.f32.mrf.mxu0
      %v4538 = vpop.f32.mrf.mxu0
      %v4539 = vadd.f32 0.0, %v4538
      %v4540 = vpop.f32.mrf.mxu0
      %4541 = vmatprep.mubr.bf16.mxu0 0
      %4542 = vmatmul.mubr.bf16.gmra.mxu0 %v1845
      %v4543 = vpop.f32.mrf.mxu0
      %v4544 = vadd.f32 0.0, %v4543
      %v4545 = vpop.f32.mrf.mxu0
      %v4546 = vpop.f32.mrf.mxu0
      %v4547 = vadd.f32 0.0, %v4546
      %v4548 = vpop.f32.mrf.mxu0
      %4549 = vmatprep.mubr.bf16.mxu0 0
      %4550 = vmatmul.mubr.bf16.gmra.mxu0 %v1846
      %v4551 = vpop.f32.mrf.mxu0
      %v4552 = vadd.f32 0.0, %v4551
      %v4553 = vpop.f32.mrf.mxu0
      %v4554 = vpop.f32.mrf.mxu0
      %v4555 = vadd.f32 0.0, %v4554
      %v4556 = vpop.f32.mrf.mxu0
      %4557 = vmatprep.mubr.bf16.mxu0 0
      %4558 = vmatmul.mubr.bf16.gmra.mxu0 %v1847
      %v4559 = vpop.f32.mrf.mxu0
      %v4560 = vadd.f32 0.0, %v4559
      %v4561 = vpop.f32.mrf.mxu0
      %v4562 = vpop.f32.mrf.mxu0
      %v4563 = vadd.f32 0.0, %v4562
      %v4564 = vpop.f32.mrf.mxu0
      %4565 = vmatprep.mubr.bf16.mxu0 0
      %4566 = vmatmul.mubr.bf16.gmra.mxu0 %v1848
      %v4567 = vpop.f32.mrf.mxu0
      %v4568 = vadd.f32 0.0, %v4567
      %v4569 = vpop.f32.mrf.mxu0
      %v4570 = vpop.f32.mrf.mxu0
      %v4571 = vadd.f32 0.0, %v4570
      %v4572 = vpop.f32.mrf.mxu0
      %4573 = vmatprep.mubr.bf16.mxu0 0
      %4574 = vmatmul.mubr.bf16.gmra.mxu0 %v1849
      %v4575 = vpop.f32.mrf.mxu0
      %v4576 = vadd.f32 0.0, %v4575
      %v4577 = vpop.f32.mrf.mxu0
      %v4578 = vpop.f32.mrf.mxu0
      %v4579 = vadd.f32 0.0, %v4578
      %v4580 = vpop.f32.mrf.mxu0
      %4581 = vmatprep.mubr.bf16.mxu0 0
      %4582 = vmatmul.mubr.bf16.gmra.mxu0 %v1850
      %v4583 = vpop.f32.mrf.mxu0
      %v4584 = vadd.f32 0.0, %v4583
      %v4585 = vpop.f32.mrf.mxu0
      %v4586 = vpop.f32.mrf.mxu0
      %v4587 = vadd.f32 0.0, %v4586
      %v4588 = vpop.f32.mrf.mxu0
      %4589 = vmatprep.mubr.bf16.mxu0 0
      %4590 = vmatmul.mubr.bf16.gmra.mxu0 %v1851
      %v4591 = vpop.f32.mrf.mxu0
      %v4592 = vadd.f32 0.0, %v4591
      %v4593 = vpop.f32.mrf.mxu0
      %v4594 = vpop.f32.mrf.mxu0
      %v4595 = vadd.f32 0.0, %v4594
      %v4596 = vpop.f32.mrf.mxu0
      %4597 = vmatprep.mubr.bf16.mxu0 0
      %4598 = vmatmul.mubr.bf16.gmra.mxu0 %v1852
      %v4599 = vpop.f32.mrf.mxu0
      %v4600 = vadd.f32 0.0, %v4599
      %v4601 = vpop.f32.mrf.mxu0
      %v4602 = vpop.f32.mrf.mxu0
      %v4603 = vadd.f32 0.0, %v4602
      %v4604 = vpop.f32.mrf.mxu0
      %4605 = vmatprep.mubr.bf16.mxu0 0
      %4606 = vmatmul.mubr.bf16.gmra.mxu0 %v1853
      %v4607 = vpop.f32.mrf.mxu0
      %v4608 = vadd.f32 0.0, %v4607
      %v4609 = vpop.f32.mrf.mxu0
      %v4610 = vpop.f32.mrf.mxu0
      %v4611 = vadd.f32 0.0, %v4610
      %v4612 = vpop.f32.mrf.mxu0
      %4613 = vmatprep.mubr.bf16.mxu0 0
      %4614 = vmatmul.mubr.bf16.gmra.mxu0 %v1854
      %v4615 = vpop.f32.mrf.mxu0
      %v4616 = vadd.f32 0.0, %v4615
      %v4617 = vpop.f32.mrf.mxu0
      %v4618 = vpop.f32.mrf.mxu0
      %v4619 = vadd.f32 0.0, %v4618
      %v4620 = vpop.f32.mrf.mxu0
      %4621 = vmatprep.mubr.bf16.mxu0 0
      %4622 = vmatmul.mubr.bf16.gmra.mxu0 %v1855
      %v4623 = vpop.f32.mrf.mxu0
      %v4624 = vadd.f32 0.0, %v4623
      %v4625 = vpop.f32.mrf.mxu0
      %v4626 = vpop.f32.mrf.mxu0
      %v4627 = vadd.f32 0.0, %v4626
      %v4628 = vpop.f32.mrf.mxu0
      %4629 = vmatprep.mubr.bf16.mxu0 0
      %4630 = vmatmul.mubr.bf16.gmra.mxu0 %v1856
      %v4631 = vpop.f32.mrf.mxu0
      %v4632 = vadd.f32 0.0, %v4631
      %v4633 = vpop.f32.mrf.mxu0
      %v4634 = vpop.f32.mrf.mxu0
      %v4635 = vadd.f32 0.0, %v4634
      %v4636 = vpop.f32.mrf.mxu0
      %4637 = vmatprep.mubr.bf16.mxu0 0
      %4638 = vmatmul.mubr.bf16.gmra.mxu0 %v1857
      %v4639 = vpop.f32.mrf.mxu0
      %v4640 = vadd.f32 0.0, %v4639
      %v4641 = vpop.f32.mrf.mxu0
      %v4642 = vpop.f32.mrf.mxu0
      %v4643 = vadd.f32 0.0, %v4642
      %v4644 = vpop.f32.mrf.mxu0
      %4645 = vmatprep.mubr.bf16.mxu0 0
      %4646 = vmatmul.mubr.bf16.gmra.mxu0 %v1858
      %v4647 = vpop.f32.mrf.mxu0
      %v4648 = vadd.f32 0.0, %v4647
      %v4649 = vpop.f32.mrf.mxu0
      %v4650 = vpop.f32.mrf.mxu0
      %v4651 = vadd.f32 0.0, %v4650
      %v4652 = vpop.f32.mrf.mxu0
      %4653 = vmatprep.mubr.bf16.mxu0 0
      %4654 = vmatmul.mubr.bf16.gmra.mxu0 %v1859
      %v4655 = vpop.f32.mrf.mxu0
      %v4656 = vadd.f32 0.0, %v4655
      %v4657 = vpop.f32.mrf.mxu0
      %v4658 = vpop.f32.mrf.mxu0
      %v4659 = vadd.f32 0.0, %v4658
      %v4660 = vpop.f32.mrf.mxu0
      %4661 = vmatprep.mubr.bf16.mxu0 0
      %4662 = vmatmul.mubr.bf16.gmra.mxu0 %v1860
      %v4663 = vpop.f32.mrf.mxu0
      %v4664 = vadd.f32 0.0, %v4663
      %v4665 = vpop.f32.mrf.mxu0
      %v4666 = vpop.f32.mrf.mxu0
      %v4667 = vadd.f32 0.0, %v4666
      %v4668 = vpop.f32.mrf.mxu0
      %4669 = vmatprep.mubr.bf16.mxu0 0
      %4670 = vmatmul.mubr.bf16.gmra.mxu0 %v1861
      %v4671 = vpop.f32.mrf.mxu0
      %v4672 = vadd.f32 0.0, %v4671
      %v4673 = vpop.f32.mrf.mxu0
      %v4674 = vpop.f32.mrf.mxu0
      %v4675 = vadd.f32 0.0, %v4674
      %v4676 = vpop.f32.mrf.mxu0
      %4677 = vdwg.mxu0
      %v4678 = vadd.f32 %v4070, %v4424
      %v4679 = vadd.f32 %v4073, %v4427
      %v4680 = vadd.f32 %v4078, %v4432
      %v4681 = vadd.f32 %v4081, %v4435
      %v4682 = vadd.f32 %v4086, %v4440
      %v4683 = vadd.f32 %v4089, %v4443
      %v4684 = vadd.f32 %v4094, %v4448
      %v4685 = vadd.f32 %v4097, %v4451
      %v4686 = vadd.f32 %v4102, %v4456
      %v4687 = vadd.f32 %v4105, %v4459
      %v4688 = vadd.f32 %v4110, %v4464
      %v4689 = vadd.f32 %v4113, %v4467
      %v4690 = vadd.f32 %v4118, %v4472
      %v4691 = vadd.f32 %v4121, %v4475
      %v4692 = vadd.f32 %v4126, %v4480
      %v4693 = vadd.f32 %v4129, %v4483
      %v4694 = vadd.f32 %v4134, %v4488
      %v4695 = vadd.f32 %v4137, %v4491
      %v4696 = vadd.f32 %v4142, %v4496
      %v4697 = vadd.f32 %v4145, %v4499
      %v4698 = vadd.f32 %v4150, %v4504
      %v4699 = vadd.f32 %v4153, %v4507
      %v4700 = vadd.f32 %v4158, %v4512
      %v4701 = vadd.f32 %v4161, %v4515
      %v4702 = vadd.f32 %v4166, %v4520
      %v4703 = vadd.f32 %v4169, %v4523
      %v4704 = vadd.f32 %v4174, %v4528
      %v4705 = vadd.f32 %v4177, %v4531
      %v4706 = vadd.f32 %v4182, %v4536
      %v4707 = vadd.f32 %v4185, %v4539
      %v4708 = vadd.f32 %v4190, %v4544
      %v4709 = vadd.f32 %v4193, %v4547
      %v4710 = vadd.f32 %v4198, %v4552
      %v4711 = vadd.f32 %v4201, %v4555
      %v4712 = vadd.f32 %v4206, %v4560
      %v4713 = vadd.f32 %v4209, %v4563
      %v4714 = vadd.f32 %v4214, %v4568
      %v4715 = vadd.f32 %v4217, %v4571
      %v4716 = vadd.f32 %v4222, %v4576
      %v4717 = vadd.f32 %v4225, %v4579
      %v4718 = vadd.f32 %v4230, %v4584
      %v4719 = vadd.f32 %v4233, %v4587
      %v4720 = vadd.f32 %v4238, %v4592
      %v4721 = vadd.f32 %v4241, %v4595
      %v4722 = vadd.f32 %v4246, %v4600
      %v4723 = vadd.f32 %v4249, %v4603
      %v4724 = vadd.f32 %v4254, %v4608
      %v4725 = vadd.f32 %v4257, %v4611
      %v4726 = vadd.f32 %v4262, %v4616
      %v4727 = vadd.f32 %v4265, %v4619
      %v4728 = vadd.f32 %v4270, %v4624
      %v4729 = vadd.f32 %v4273, %v4627
      %v4730 = vadd.f32 %v4278, %v4632
      %v4731 = vadd.f32 %v4281, %v4635
      %v4732 = vadd.f32 %v4286, %v4640
      %v4733 = vadd.f32 %v4289, %v4643
      %v4734 = vadd.f32 %v4294, %v4648
      %v4735 = vadd.f32 %v4297, %v4651
      %v4736 = vadd.f32 %v4302, %v4656
      %v4737 = vadd.f32 %v4305, %v4659
      %v4738 = vadd.f32 %v4310, %v4664
      %v4739 = vadd.f32 %v4313, %v4667
      %v4740 = vadd.f32 %v4318, %v4672
      %v4741 = vadd.f32 %v4321, %v4675
      %v4742 = vrot.slane %v4678, 1
      %v4743 = vrot.slane %v4679, 1
      %v4744 = vrot.slane %v4680, 1
      %v4745 = vrot.slane %v4681, 1
      %v4746 = vrot.slane %v4682, 1
      %v4747 = vrot.slane %v4683, 1
      %v4748 = vrot.slane %v4684, 1
      %v4749 = vrot.slane %v4685, 1
      %v4750 = vrot.slane %v4686, 1
      %v4751 = vrot.slane %v4687, 1
      %v4752 = vrot.slane %v4688, 1
      %v4753 = vrot.slane %v4689, 1
      %v4754 = vrot.slane %v4690, 1
      %v4755 = vrot.slane %v4691, 1
      %v4756 = vrot.slane %v4692, 1
      %v4757 = vrot.slane %v4693, 1
      %v4758 = vrot.slane %v4694, 1
      %v4759 = vrot.slane %v4695, 1
      %v4760 = vrot.slane %v4696, 1
      %v4761 = vrot.slane %v4697, 1
      %v4762 = vrot.slane %v4698, 1
      %v4763 = vrot.slane %v4699, 1
      %v4764 = vrot.slane %v4700, 1
      %v4765 = vrot.slane %v4701, 1
      %v4766 = vrot.slane %v4702, 1
      %v4767 = vrot.slane %v4703, 1
      %v4768 = vrot.slane %v4704, 1
      %v4769 = vrot.slane %v4705, 1
      %v4770 = vrot.slane %v4706, 1
      %v4771 = vrot.slane %v4707, 1
      %v4772 = vrot.slane %v4708, 1
      %v4773 = vrot.slane %v4709, 1
      %v4774 = vrot.slane %v4710, 1
      %v4775 = vrot.slane %v4711, 1
      %v4776 = vrot.slane %v4712, 1
      %v4777 = vrot.slane %v4713, 1
      %v4778 = vrot.slane %v4714, 1
      %v4779 = vrot.slane %v4715, 1
      %v4780 = vrot.slane %v4716, 1
      %v4781 = vrot.slane %v4717, 1
      %v4782 = vrot.slane %v4718, 1
      %v4783 = vrot.slane %v4719, 1
      %v4784 = vrot.slane %v4720, 1
      %v4785 = vrot.slane %v4721, 1
      %v4786 = vrot.slane %v4722, 1
      %v4787 = vrot.slane %v4723, 1
      %v4788 = vrot.slane %v4724, 1
      %v4789 = vrot.slane %v4725, 1
      %v4790 = vrot.slane %v4726, 1
      %v4791 = vrot.slane %v4727, 1
      %v4792 = vrot.slane %v4728, 1
      %v4793 = vrot.slane %v4729, 1
      %v4794 = vrot.slane %v4730, 1
      %v4795 = vrot.slane %v4731, 1
      %v4796 = vrot.slane %v4732, 1
      %v4797 = vrot.slane %v4733, 1
      %v4798 = vrot.slane %v4734, 1
      %v4799 = vrot.slane %v4735, 1
      %v4800 = vrot.slane %v4736, 1
      %v4801 = vrot.slane %v4737, 1
      %v4802 = vrot.slane %v4738, 1
      %v4803 = vrot.slane %v4739, 1
      %v4804 = vrot.slane %v4740, 1
      %v4805 = vrot.slane %v4741, 1
      %vm4806 = vcmp.lt.s32.totalorder %v2360, 7
      %v4807 = vsel %vm4806, %v4804, %v4805
      %v4808 = vsel %vm4806, %v4803, %v4804
      %v4809 = vsel %vm4806, %v4802, %v4803
      %v4810 = vsel %vm4806, %v4801, %v4802
      %v4811 = vsel %vm4806, %v4800, %v4801
      %v4812 = vsel %vm4806, %v4799, %v4800
      %v4813 = vsel %vm4806, %v4798, %v4799
      %v4814 = vsel %vm4806, %v4797, %v4798
      %v4815 = vsel %vm4806, %v4796, %v4797
      %v4816 = vsel %vm4806, %v4795, %v4796
      %v4817 = vsel %vm4806, %v4794, %v4795
      %v4818 = vsel %vm4806, %v4793, %v4794
      %v4819 = vsel %vm4806, %v4792, %v4793
      %v4820 = vsel %vm4806, %v4791, %v4792
      %v4821 = vsel %vm4806, %v4790, %v4791
      %v4822 = vsel %vm4806, %v4789, %v4790
      %v4823 = vsel %vm4806, %v4788, %v4789
      %v4824 = vsel %vm4806, %v4787, %v4788
      %v4825 = vsel %vm4806, %v4786, %v4787
      %v4826 = vsel %vm4806, %v4785, %v4786
      %v4827 = vsel %vm4806, %v4784, %v4785
      %v4828 = vsel %vm4806, %v4783, %v4784
      %v4829 = vsel %vm4806, %v4782, %v4783
      %v4830 = vsel %vm4806, %v4781, %v4782
      %v4831 = vsel %vm4806, %v4780, %v4781
      %v4832 = vsel %vm4806, %v4779, %v4780
      %v4833 = vsel %vm4806, %v4778, %v4779
      %v4834 = vsel %vm4806, %v4777, %v4778
      %v4835 = vsel %vm4806, %v4776, %v4777
      %v4836 = vsel %vm4806, %v4775, %v4776
      %v4837 = vsel %vm4806, %v4774, %v4775
      %v4838 = vsel %vm4806, %v4773, %v4774
      %v4839 = vsel %vm4806, %v4772, %v4773
      %v4840 = vsel %vm4806, %v4771, %v4772
      %v4841 = vsel %vm4806, %v4770, %v4771
      %v4842 = vsel %vm4806, %v4769, %v4770
      %v4843 = vsel %vm4806, %v4768, %v4769
      %v4844 = vsel %vm4806, %v4767, %v4768
      %v4845 = vsel %vm4806, %v4766, %v4767
      %v4846 = vsel %vm4806, %v4765, %v4766
      %v4847 = vsel %vm4806, %v4764, %v4765
      %v4848 = vsel %vm4806, %v4763, %v4764
      %v4849 = vsel %vm4806, %v4762, %v4763
      %v4850 = vsel %vm4806, %v4761, %v4762
      %v4851 = vsel %vm4806, %v4760, %v4761
      %v4852 = vsel %vm4806, %v4759, %v4760
      %v4853 = vsel %vm4806, %v4758, %v4759
      %v4854 = vsel %vm4806, %v4757, %v4758
      %v4855 = vsel %vm4806, %v4756, %v4757
      %v4856 = vsel %vm4806, %v4755, %v4756
      %v4857 = vsel %vm4806, %v4754, %v4755
      %v4858 = vsel %vm4806, %v4753, %v4754
      %v4859 = vsel %vm4806, %v4752, %v4753
      %v4860 = vsel %vm4806, %v4751, %v4752
      %v4861 = vsel %vm4806, %v4750, %v4751
      %v4862 = vsel %vm4806, %v4749, %v4750
      %v4863 = vsel %vm4806, %v4748, %v4749
      %v4864 = vsel %vm4806, %v4747, %v4748
      %v4865 = vsel %vm4806, %v4746, %v4747
      %v4866 = vsel %vm4806, %v4745, %v4746
      %v4867 = vsel %vm4806, %v4744, %v4745
      %v4868 = vsel %vm4806, %v4743, %v4744
      %v4869 = vsel %vm4806, %v4742, %v4743
      %v4870 = vsel %vm4806, %v4805, %v4742
      %v4871 = vadd.f32 %v3552, %v4869
      %v4872 = vadd.f32 %v3553, %v4868
      %v4873 = vadd.f32 %v3554, %v4867
      %v4874 = vadd.f32 %v3555, %v4866
      %v4875 = vadd.f32 %v3556, %v4865
      %v4876 = vadd.f32 %v3557, %v4864
      %v4877 = vadd.f32 %v3558, %v4863
      %v4878 = vadd.f32 %v3559, %v4862
      %v4879 = vadd.f32 %v3560, %v4861
      %v4880 = vadd.f32 %v3561, %v4860
      %v4881 = vadd.f32 %v3562, %v4859
      %v4882 = vadd.f32 %v3563, %v4858
      %v4883 = vadd.f32 %v3564, %v4857
      %v4884 = vadd.f32 %v3565, %v4856
      %v4885 = vadd.f32 %v3566, %v4855
      %v4886 = vadd.f32 %v3567, %v4854
      %v4887 = vadd.f32 %v3568, %v4853
      %v4888 = vadd.f32 %v3569, %v4852
      %v4889 = vadd.f32 %v3570, %v4851
      %v4890 = vadd.f32 %v3571, %v4850
      %v4891 = vadd.f32 %v3572, %v4849
      %v4892 = vadd.f32 %v3573, %v4848
      %v4893 = vadd.f32 %v3574, %v4847
      %v4894 = vadd.f32 %v3575, %v4846
      %v4895 = vadd.f32 %v3576, %v4845
      %v4896 = vadd.f32 %v3577, %v4844
      %v4897 = vadd.f32 %v3578, %v4843
      %v4898 = vadd.f32 %v3579, %v4842
      %v4899 = vadd.f32 %v3580, %v4841
      %v4900 = vadd.f32 %v3581, %v4840
      %v4901 = vadd.f32 %v3582, %v4839
      %v4902 = vadd.f32 %v3583, %v4838
      %v4903 = vadd.f32 %v3584, %v4837
      %v4904 = vadd.f32 %v3585, %v4836
      %v4905 = vadd.f32 %v3586, %v4835
      %v4906 = vadd.f32 %v3587, %v4834
      %v4907 = vadd.f32 %v3588, %v4833
      %v4908 = vadd.f32 %v3589, %v4832
      %v4909 = vadd.f32 %v3590, %v4831
      %v4910 = vadd.f32 %v3591, %v4830
      %v4911 = vadd.f32 %v3592, %v4829
      %v4912 = vadd.f32 %v3593, %v4828
      %v4913 = vadd.f32 %v3594, %v4827
      %v4914 = vadd.f32 %v3595, %v4826
      %v4915 = vadd.f32 %v3596, %v4825
      %v4916 = vadd.f32 %v3597, %v4824
      %v4917 = vadd.f32 %v3598, %v4823
      %v4918 = vadd.f32 %v3599, %v4822
      %v4919 = vadd.f32 %v3600, %v4821
      %v4920 = vadd.f32 %v3601, %v4820
      %v4921 = vadd.f32 %v3602, %v4819
      %v4922 = vadd.f32 %v3603, %v4818
      %v4923 = vadd.f32 %v3604, %v4817
      %v4924 = vadd.f32 %v3605, %v4816
      %v4925 = vadd.f32 %v3606, %v4815
      %v4926 = vadd.f32 %v3607, %v4814
      %v4927 = vadd.f32 %v3608, %v4813
      %v4928 = vadd.f32 %v3609, %v4812
      %v4929 = vadd.f32 %v3610, %v4811
      %v4930 = vadd.f32 %v3611, %v4810
      %v4931 = vadd.f32 %v3612, %v4809
      %v4932 = vadd.f32 %v3613, %v4808
      %v4933 = vadd.f32 %v3614, %v4807
      %v4934 = vadd.f32 %v3615, %v4870
      %v4935 = vadd.s32 %v2360, 8
      %v4936 = vadd.s32 %v2360, 16
      %v4937 = vadd.s32 %v2360, 24
      %vm4938 = vcmp.ge.s32.totalorder %v2360, 1
      %vm4939 = vcmp.ge.s32.totalorder %v4935, 1
      %vm4940 = vcmp.ge.s32.totalorder %v4936, 1
      %vm4941 = vcmp.ge.s32.totalorder %v4937, 1
      %vm4942 = vcmp.lt.s32.totalorder %v2360, 17
      %vm4943 = vcmp.lt.s32.totalorder %v4935, 17
      %vm4944 = vcmp.lt.s32.totalorder %v4936, 17
      %vm4945 = vcmp.lt.s32.totalorder %v4937, 17
      %vm4946 = vmand %vm4938, %vm4942
      %vm4947 = vmand %vm4939, %vm4943
      %vm4948 = vmand %vm4940, %vm4944
      %vm4949 = vmand %vm4941, %vm4945
      %v4950 = vsel %vm4946, %v4871, 0.0
      %v4951 = vsel %vm4947, %v4872, 0.0
      %v4952 = vsel %vm4948, %v4873, 0.0
      %v4953 = vsel %vm4949, %v4874, 0.0
      %v4954 = vsel %vm4946, %v4875, 0.0
      %v4955 = vsel %vm4947, %v4876, 0.0
      %v4956 = vsel %vm4948, %v4877, 0.0
      %v4957 = vsel %vm4949, %v4878, 0.0
      %v4958 = vsel %vm4946, %v4879, 0.0
      %v4959 = vsel %vm4947, %v4880, 0.0
      %v4960 = vsel %vm4948, %v4881, 0.0
      %v4961 = vsel %vm4949, %v4882, 0.0
      %v4962 = vsel %vm4946, %v4883, 0.0
      %v4963 = vsel %vm4947, %v4884, 0.0
      %v4964 = vsel %vm4948, %v4885, 0.0
      %v4965 = vsel %vm4949, %v4886, 0.0
      %v4966 = vsel %vm4946, %v4887, 0.0
      %v4967 = vsel %vm4947, %v4888, 0.0
      %v4968 = vsel %vm4948, %v4889, 0.0
      %v4969 = vsel %vm4949, %v4890, 0.0
      %v4970 = vsel %vm4946, %v4891, 0.0
      %v4971 = vsel %vm4947, %v4892, 0.0
      %v4972 = vsel %vm4948, %v4893, 0.0
      %v4973 = vsel %vm4949, %v4894, 0.0
      %v4974 = vsel %vm4946, %v4895, 0.0
      %v4975 = vsel %vm4947, %v4896, 0.0
      %v4976 = vsel %vm4948, %v4897, 0.0
      %v4977 = vsel %vm4949, %v4898, 0.0
      %v4978 = vsel %vm4946, %v4899, 0.0
      %v4979 = vsel %vm4947, %v4900, 0.0
      %v4980 = vsel %vm4948, %v4901, 0.0
      %v4981 = vsel %vm4949, %v4902, 0.0
      %v4982 = vsel %vm4946, %v4903, 0.0
      %v4983 = vsel %vm4947, %v4904, 0.0
      %v4984 = vsel %vm4948, %v4905, 0.0
      %v4985 = vsel %vm4949, %v4906, 0.0
      %v4986 = vsel %vm4946, %v4907, 0.0
      %v4987 = vsel %vm4947, %v4908, 0.0
      %v4988 = vsel %vm4948, %v4909, 0.0
      %v4989 = vsel %vm4949, %v4910, 0.0
      %v4990 = vsel %vm4946, %v4911, 0.0
      %v4991 = vsel %vm4947, %v4912, 0.0
      %v4992 = vsel %vm4948, %v4913, 0.0
      %v4993 = vsel %vm4949, %v4914, 0.0
      %v4994 = vsel %vm4946, %v4915, 0.0
      %v4995 = vsel %vm4947, %v4916, 0.0
      %v4996 = vsel %vm4948, %v4917, 0.0
      %v4997 = vsel %vm4949, %v4918, 0.0
      %v4998 = vsel %vm4946, %v4919, 0.0
      %v4999 = vsel %vm4947, %v4920, 0.0
      %v5000 = vsel %vm4948, %v4921, 0.0
      %v5001 = vsel %vm4949, %v4922, 0.0
      %v5002 = vsel %vm4946, %v4923, 0.0
      %v5003 = vsel %vm4947, %v4924, 0.0
      %v5004 = vsel %vm4948, %v4925, 0.0
      %v5005 = vsel %vm4949, %v4926, 0.0
      %v5006 = vsel %vm4946, %v4927, 0.0
      %v5007 = vsel %vm4947, %v4928, 0.0
      %v5008 = vsel %vm4948, %v4929, 0.0
      %v5009 = vsel %vm4949, %v4930, 0.0
      %v5010 = vsel %vm4946, %v4931, 0.0
      %v5011 = vsel %vm4947, %v4932, 0.0
      %v5012 = vsel %vm4948, %v4933, 0.0
      %v5013 = vsel %vm4949, %v4934, 0.0
      %v5014 = vadd.f32 %v4950, %v4951
      %v5015 = vadd.f32 %v5014, %v4952
      %v5016 = vadd.f32 %v5015, %v4953
      %v5017 = vadd.f32 %v5016, %v4954
      %v5018 = vadd.f32 %v5017, %v4955
      %v5019 = vadd.f32 %v5018, %v4956
      %v5020 = vadd.f32 %v5019, %v4957
      %v5021 = vadd.f32 %v5020, %v4958
      %v5022 = vadd.f32 %v5021, %v4959
      %v5023 = vadd.f32 %v5022, %v4960
      %v5024 = vadd.f32 %v5023, %v4961
      %v5025 = vadd.f32 %v5024, %v4962
      %v5026 = vadd.f32 %v5025, %v4963
      %v5027 = vadd.f32 %v5026, %v4964
      %v5028 = vadd.f32 %v5027, %v4965
      %v5029 = vadd.f32 %v5028, %v4966
      %v5030 = vadd.f32 %v5029, %v4967
      %v5031 = vadd.f32 %v5030, %v4968
      %v5032 = vadd.f32 %v5031, %v4969
      %v5033 = vadd.f32 %v5032, %v4970
      %v5034 = vadd.f32 %v5033, %v4971
      %v5035 = vadd.f32 %v5034, %v4972
      %v5036 = vadd.f32 %v5035, %v4973
      %v5037 = vadd.f32 %v5036, %v4974
      %v5038 = vadd.f32 %v5037, %v4975
      %v5039 = vadd.f32 %v5038, %v4976
      %v5040 = vadd.f32 %v5039, %v4977
      %v5041 = vadd.f32 %v5040, %v4978
      %v5042 = vadd.f32 %v5041, %v4979
      %v5043 = vadd.f32 %v5042, %v4980
      %v5044 = vadd.f32 %v5043, %v4981
      %v5045 = vadd.f32 %v5044, %v4982
      %v5046 = vadd.f32 %v5045, %v4983
      %v5047 = vadd.f32 %v5046, %v4984
      %v5048 = vadd.f32 %v5047, %v4985
      %v5049 = vadd.f32 %v5048, %v4986
      %v5050 = vadd.f32 %v5049, %v4987
      %v5051 = vadd.f32 %v5050, %v4988
      %v5052 = vadd.f32 %v5051, %v4989
      %v5053 = vadd.f32 %v5052, %v4990
      %v5054 = vadd.f32 %v5053, %v4991
      %v5055 = vadd.f32 %v5054, %v4992
      %v5056 = vadd.f32 %v5055, %v4993
      %v5057 = vadd.f32 %v5056, %v4994
      %v5058 = vadd.f32 %v5057, %v4995
      %v5059 = vadd.f32 %v5058, %v4996
      %v5060 = vadd.f32 %v5059, %v4997
      %v5061 = vadd.f32 %v5060, %v4998
      %v5062 = vadd.f32 %v5061, %v4999
      %v5063 = vadd.f32 %v5062, %v5000
      %v5064 = vadd.f32 %v5063, %v5001
      %v5065 = vadd.f32 %v5064, %v5002
      %v5066 = vadd.f32 %v5065, %v5003
      %v5067 = vadd.f32 %v5066, %v5004
      %v5068 = vadd.f32 %v5067, %v5005
      %v5069 = vadd.f32 %v5068, %v5006
      %v5070 = vadd.f32 %v5069, %v5007
      %v5071 = vadd.f32 %v5070, %v5008
      %v5072 = vadd.f32 %v5071, %v5009
      %v5073 = vadd.f32 %v5072, %v5010
      %v5074 = vadd.f32 %v5073, %v5011
      %v5075 = vadd.f32 %v5074, %v5012
      %v5076 = vadd.f32 %v5075, %v5013
      %v5077 = vrot.slane %v5076, 4
      %v5078 = vadd.f32 %v5076, %v5077
      %v5079 = vrot.slane %v5078, 2
      %v5080 = vadd.f32 %v5078, %v5079
      %v5081 = vrot.slane %v5080, 1
      %v5082 = vadd.f32 %v5080, %v5081
      %5083 = vst [vmem:[%s181] sm:$0x1] %v5082
      %v5084 = vmul.f32 %v4950, %v4950
      %v5085 = vmul.f32 %v4951, %v4951
      %v5086 = vmul.f32 %v4952, %v4952
      %v5087 = vmul.f32 %v4953, %v4953
      %v5088 = vmul.f32 %v4954, %v4954
      %v5089 = vmul.f32 %v4955, %v4955
      %v5090 = vmul.f32 %v4956, %v4956
      %v5091 = vmul.f32 %v4957, %v4957
      %v5092 = vmul.f32 %v4958, %v4958
      %v5093 = vmul.f32 %v4959, %v4959
      %v5094 = vmul.f32 %v4960, %v4960
      %v5095 = vmul.f32 %v4961, %v4961
      %v5096 = vmul.f32 %v4962, %v4962
      %v5097 = vmul.f32 %v4963, %v4963
      %v5098 = vmul.f32 %v4964, %v4964
      %v5099 = vmul.f32 %v4965, %v4965
      %v5100 = vmul.f32 %v4966, %v4966
      %v5101 = vmul.f32 %v4967, %v4967
      %v5102 = vmul.f32 %v4968, %v4968
      %v5103 = vmul.f32 %v4969, %v4969
      %v5104 = vmul.f32 %v4970, %v4970
      %v5105 = vmul.f32 %v4971, %v4971
      %v5106 = vmul.f32 %v4972, %v4972
      %v5107 = vmul.f32 %v4973, %v4973
      %v5108 = vmul.f32 %v4974, %v4974
      %v5109 = vmul.f32 %v4975, %v4975
      %v5110 = vmul.f32 %v4976, %v4976
      %v5111 = vmul.f32 %v4977, %v4977
      %v5112 = vmul.f32 %v4978, %v4978
      %v5113 = vmul.f32 %v4979, %v4979
      %v5114 = vmul.f32 %v4980, %v4980
      %v5115 = vmul.f32 %v4981, %v4981
      %v5116 = vmul.f32 %v4982, %v4982
      %v5117 = vmul.f32 %v4983, %v4983
      %v5118 = vmul.f32 %v4984, %v4984
      %v5119 = vmul.f32 %v4985, %v4985
      %v5120 = vmul.f32 %v4986, %v4986
      %v5121 = vmul.f32 %v4987, %v4987
      %v5122 = vmul.f32 %v4988, %v4988
      %v5123 = vmul.f32 %v4989, %v4989
      %v5124 = vmul.f32 %v4990, %v4990
      %v5125 = vmul.f32 %v4991, %v4991
      %v5126 = vmul.f32 %v4992, %v4992
      %v5127 = vmul.f32 %v4993, %v4993
      %v5128 = vmul.f32 %v4994, %v4994
      %v5129 = vmul.f32 %v4995, %v4995
      %v5130 = vmul.f32 %v4996, %v4996
      %v5131 = vmul.f32 %v4997, %v4997
      %v5132 = vmul.f32 %v4998, %v4998
      %v5133 = vmul.f32 %v4999, %v4999
      %v5134 = vmul.f32 %v5000, %v5000
      %v5135 = vmul.f32 %v5001, %v5001
      %v5136 = vmul.f32 %v5002, %v5002
      %v5137 = vmul.f32 %v5003, %v5003
      %v5138 = vmul.f32 %v5004, %v5004
      %v5139 = vmul.f32 %v5005, %v5005
      %v5140 = vmul.f32 %v5006, %v5006
      %v5141 = vmul.f32 %v5007, %v5007
      %v5142 = vmul.f32 %v5008, %v5008
      %v5143 = vmul.f32 %v5009, %v5009
      %v5144 = vmul.f32 %v5010, %v5010
      %v5145 = vmul.f32 %v5011, %v5011
      %v5146 = vmul.f32 %v5012, %v5012
      %v5147 = vmul.f32 %v5013, %v5013
      %v5148 = vadd.f32 %v5084, %v5085
      %v5149 = vadd.f32 %v5148, %v5086
      %v5150 = vadd.f32 %v5149, %v5087
      %v5151 = vadd.f32 %v5150, %v5088
      %v5152 = vadd.f32 %v5151, %v5089
      %v5153 = vadd.f32 %v5152, %v5090
      %v5154 = vadd.f32 %v5153, %v5091
      %v5155 = vadd.f32 %v5154, %v5092
      %v5156 = vadd.f32 %v5155, %v5093
      %v5157 = vadd.f32 %v5156, %v5094
      %v5158 = vadd.f32 %v5157, %v5095
      %v5159 = vadd.f32 %v5158, %v5096
      %v5160 = vadd.f32 %v5159, %v5097
      %v5161 = vadd.f32 %v5160, %v5098
      %v5162 = vadd.f32 %v5161, %v5099
      %v5163 = vadd.f32 %v5162, %v5100
      %v5164 = vadd.f32 %v5163, %v5101
      %v5165 = vadd.f32 %v5164, %v5102
      %v5166 = vadd.f32 %v5165, %v5103
      %v5167 = vadd.f32 %v5166, %v5104
      %v5168 = vadd.f32 %v5167, %v5105
      %v5169 = vadd.f32 %v5168, %v5106
      %v5170 = vadd.f32 %v5169, %v5107
      %v5171 = vadd.f32 %v5170, %v5108
      %v5172 = vadd.f32 %v5171, %v5109
      %v5173 = vadd.f32 %v5172, %v5110
      %v5174 = vadd.f32 %v5173, %v5111
      %v5175 = vadd.f32 %v5174, %v5112
      %v5176 = vadd.f32 %v5175, %v5113
      %v5177 = vadd.f32 %v5176, %v5114
      %v5178 = vadd.f32 %v5177, %v5115
      %v5179 = vadd.f32 %v5178, %v5116
      %v5180 = vadd.f32 %v5179, %v5117
      %v5181 = vadd.f32 %v5180, %v5118
      %v5182 = vadd.f32 %v5181, %v5119
      %v5183 = vadd.f32 %v5182, %v5120
      %v5184 = vadd.f32 %v5183, %v5121
      %v5185 = vadd.f32 %v5184, %v5122
      %v5186 = vadd.f32 %v5185, %v5123
      %v5187 = vadd.f32 %v5186, %v5124
      %v5188 = vadd.f32 %v5187, %v5125
      %v5189 = vadd.f32 %v5188, %v5126
      %v5190 = vadd.f32 %v5189, %v5127
      %v5191 = vadd.f32 %v5190, %v5128
      %v5192 = vadd.f32 %v5191, %v5129
      %v5193 = vadd.f32 %v5192, %v5130
      %v5194 = vadd.f32 %v5193, %v5131
      %v5195 = vadd.f32 %v5194, %v5132
      %v5196 = vadd.f32 %v5195, %v5133
      %v5197 = vadd.f32 %v5196, %v5134
      %v5198 = vadd.f32 %v5197, %v5135
      %v5199 = vadd.f32 %v5198, %v5136
      %v5200 = vadd.f32 %v5199, %v5137
      %v5201 = vadd.f32 %v5200, %v5138
      %v5202 = vadd.f32 %v5201, %v5139
      %v5203 = vadd.f32 %v5202, %v5140
      %v5204 = vadd.f32 %v5203, %v5141
      %v5205 = vadd.f32 %v5204, %v5142
      %v5206 = vadd.f32 %v5205, %v5143
      %v5207 = vadd.f32 %v5206, %v5144
      %v5208 = vadd.f32 %v5207, %v5145
      %v5209 = vadd.f32 %v5208, %v5146
      %v5210 = vadd.f32 %v5209, %v5147
      %v5211 = vrot.slane %v5210, 4
      %v5212 = vadd.f32 %v5210, %v5211
      %v5213 = vrot.slane %v5212, 2
      %v5214 = vadd.f32 %v5212, %v5213
      %v5215 = vrot.slane %v5214, 1
      %v5216 = vadd.f32 %v5214, %v5215
      %5217 = vst [vmem:[%s181 + $0x1] sm:$0x1] %v5216
      %5218 = vst [vmem:[%s177] sm:$0xff] 0.0
      %5219 = vst [vmem:[%s177 + $0x8] sm:$0xff] 0.0
      %5220 = vst [vmem:[%s177 + $0x10] sm:$0xff] 0.0
      %5221 = vst [vmem:[%s177 + $0x18] sm:$0xff] 0.0
      %s5222 = scalar_lea.vmem %s177, 32
      %5223 = vst [vmem:[%s5222] sm:$0xff] %v4950
      %5224 = vst [vmem:[%s5222 + $0x8] sm:$0xff] %v4951
      %5225 = vst [vmem:[%s5222 + $0x10] sm:$0xff] %v4952
      %5226 = vst [vmem:[%s5222 + $0x18] sm:$0xff] %v4953
      %5227 = vst [vmem:[%s5222 + $0x20] sm:$0xff] %v4954
      %5228 = vst [vmem:[%s5222 + $0x28] sm:$0xff] %v4955
      %5229 = vst [vmem:[%s5222 + $0x30] sm:$0xff] %v4956
      %5230 = vst [vmem:[%s5222 + $0x38] sm:$0xff] %v4957
      %5231 = vst [vmem:[%s5222 + $0x40] sm:$0xff] %v4958
      %5232 = vst [vmem:[%s5222 + $0x48] sm:$0xff] %v4959
      %5233 = vst [vmem:[%s5222 + $0x50] sm:$0xff] %v4960
      %5234 = vst [vmem:[%s5222 + $0x58] sm:$0xff] %v4961
      %5235 = vst [vmem:[%s5222 + $0x60] sm:$0xff] %v4962
      %5236 = vst [vmem:[%s5222 + $0x68] sm:$0xff] %v4963
      %5237 = vst [vmem:[%s5222 + $0x70] sm:$0xff] %v4964
      %5238 = vst [vmem:[%s5222 + $0x78] sm:$0xff] %v4965
      %5239 = vst [vmem:[%s5222 + $0x80] sm:$0xff] %v4966
      %5240 = vst [vmem:[%s5222 + $0x88] sm:$0xff] %v4967
      %5241 = vst [vmem:[%s5222 + $0x90] sm:$0xff] %v4968
      %5242 = vst [vmem:[%s5222 + $0x98] sm:$0xff] %v4969
      %5243 = vst [vmem:[%s5222 + $0xa0] sm:$0xff] %v4970
      %5244 = vst [vmem:[%s5222 + $0xa8] sm:$0xff] %v4971
      %5245 = vst [vmem:[%s5222 + $0xb0] sm:$0xff] %v4972
      %5246 = vst [vmem:[%s5222 + $0xb8] sm:$0xff] %v4973
      %5247 = vst [vmem:[%s5222 + $0xc0] sm:$0xff] %v4974
      %5248 = vst [vmem:[%s5222 + $0xc8] sm:$0xff] %v4975
      %5249 = vst [vmem:[%s5222 + $0xd0] sm:$0xff] %v4976
      %5250 = vst [vmem:[%s5222 + $0xd8] sm:$0xff] %v4977
      %5251 = vst [vmem:[%s5222 + $0xe0] sm:$0xff] %v4978
      %5252 = vst [vmem:[%s5222 + $0xe8] sm:$0xff] %v4979
      %5253 = vst [vmem:[%s5222 + $0xf0] sm:$0xff] %v4980
      %5254 = vst [vmem:[%s5222 + $0xf8] sm:$0xff] %v4981
      %5255 = vst [vmem:[%s5222 + $0x100] sm:$0xff] %v4982
      %5256 = vst [vmem:[%s5222 + $0x108] sm:$0xff] %v4983
      %5257 = vst [vmem:[%s5222 + $0x110] sm:$0xff] %v4984
      %5258 = vst [vmem:[%s5222 + $0x118] sm:$0xff] %v4985
      %5259 = vst [vmem:[%s5222 + $0x120] sm:$0xff] %v4986
      %5260 = vst [vmem:[%s5222 + $0x128] sm:$0xff] %v4987
      %5261 = vst [vmem:[%s5222 + $0x130] sm:$0xff] %v4988
      %5262 = vst [vmem:[%s5222 + $0x138] sm:$0xff] %v4989
      %5263 = vst [vmem:[%s5222 + $0x140] sm:$0xff] %v4990
      %5264 = vst [vmem:[%s5222 + $0x148] sm:$0xff] %v4991
      %5265 = vst [vmem:[%s5222 + $0x150] sm:$0xff] %v4992
      %5266 = vst [vmem:[%s5222 + $0x158] sm:$0xff] %v4993
      %5267 = vst [vmem:[%s5222 + $0x160] sm:$0xff] %v4994
      %5268 = vst [vmem:[%s5222 + $0x168] sm:$0xff] %v4995
      %5269 = vst [vmem:[%s5222 + $0x170] sm:$0xff] %v4996
      %5270 = vst [vmem:[%s5222 + $0x178] sm:$0xff] %v4997
      %5271 = vst [vmem:[%s5222 + $0x180] sm:$0xff] %v4998
      %5272 = vst [vmem:[%s5222 + $0x188] sm:$0xff] %v4999
      %5273 = vst [vmem:[%s5222 + $0x190] sm:$0xff] %v5000
      %5274 = vst [vmem:[%s5222 + $0x198] sm:$0xff] %v5001
      %5275 = vst [vmem:[%s5222 + $0x1a0] sm:$0xff] %v5002
      %5276 = vst [vmem:[%s5222 + $0x1a8] sm:$0xff] %v5003
      %5277 = vst [vmem:[%s5222 + $0x1b0] sm:$0xff] %v5004
      %5278 = vst [vmem:[%s5222 + $0x1b8] sm:$0xff] %v5005
      %5279 = vst [vmem:[%s5222 + $0x1c0] sm:$0xff] %v5006
      %5280 = vst [vmem:[%s5222 + $0x1c8] sm:$0xff] %v5007
      %5281 = vst [vmem:[%s5222 + $0x1d0] sm:$0xff] %v5008
      %5282 = vst [vmem:[%s5222 + $0x1d8] sm:$0xff] %v5009
      %5283 = vst [vmem:[%s5222 + $0x1e0] sm:$0xff] %v5010
      %5284 = vst [vmem:[%s5222 + $0x1e8] sm:$0xff] %v5011
      %5285 = vst [vmem:[%s5222 + $0x1f0] sm:$0xff] %v5012
      %5286 = vst [vmem:[%s5222 + $0x1f8] sm:$0xff] %v5013
      %s5287 = scalar_lea.vmem %s177, 544
      %5288 = vst [vmem:[%s5287] sm:$0xff] 0.0
      %5289 = vst [vmem:[%s5287 + $0x8] sm:$0xff] 0.0
      %5290 = vst [vmem:[%s5287 + $0x10] sm:$0xff] 0.0
      %5291 = vst [vmem:[%s5287 + $0x18] sm:$0xff] 0.0
      %p5292 = scmp.lt.s32.totalorder %s15, 1
      %s5293 = scalar_select %p5292, %s15, 1
      %s5294 = smul.addr %s5293, 72
      %s5295 = smul.addr %s5294, 8
      %s5296 = scalar_lea.vmem %s2, %s5295
      %p5297 = scmp.lt.s32.totalorder %s15, 1
      %s5298 = scalar_select %p5297, %s15, 1
      %s5299 = smul.addr %s5298, 2
      %s5300 = scalar_lea.vmem %s3, %s5299
      // Predicated region
      $region29: #{vgg_block_forward.4} parent=27 // pred_check
        %p5301 = pneg %p80
      $region30: #{vgg_block_forward.4} parent=27 // pred_check_branch
        %5303 = sbr.rel (%p5301) target = $region32
      $region31: #{vgg_block_forward.4} parent=27 // pred_region
        _
      $region32: #{vgg_block_forward.4} parent=27 // pred_fallthru
        _
      // Predicated region
      $region33: #{vgg_block_forward.4} parent=27 // pred_check
        %p5304 = pneg %p106
      $region34: #{vgg_block_forward.4} parent=27 // pred_check_branch
        %5306 = sbr.rel (%p5304) target = $region36
      $region35: #{vgg_block_forward.4} parent=27 // pred_region
        _
      $region36: #{vgg_block_forward.4} parent=27 // pred_fallthru
        _
    $region28: #{vgg_block_forward.4} parent=5 // pred_fallthru
      _
    %p5307 = scmp.le.s32.totalorder 2, %s10
    // Predicated region
    $region37: #{vgg_block_forward.4} parent=5 // pred_check
      %p5308 = pneg %p5307
    $region38: #{vgg_block_forward.4} parent=5 // pred_check_branch
      %5310 = sbr.rel (%p5308) target = $region40
    $region39: #{vgg_block_forward.4} parent=5 // pred_region
      %s5311 = ssub.s32 %s10, 2
      // Predicated region
      $region41: #{vgg_block_forward.4} parent=39 // pred_check
        %p5312 = pneg %p86
      $region42: #{vgg_block_forward.4} parent=39 // pred_check_branch
        %5314 = sbr.rel (%p5312) target = $region44
      $region43: #{vgg_block_forward.4} parent=39 // pred_region
        %p5315 = scmp.lt.s32.totalorder %s16, 1
        %s5316 = scalar_select %p5315, %s16, 1
        %s5317 = smul.addr %s5316, 72
        %s5318 = smul.addr %s5317, 8
        %s5319 = scalar_lea.vmem %s2, %s5318
      $region44: #{vgg_block_forward.4} parent=39 // pred_fallthru
        _
      // Predicated region
      $region45: #{vgg_block_forward.4} parent=39 // pred_check
        %p5320 = pneg %p112
      $region46: #{vgg_block_forward.4} parent=39 // pred_check_branch
        %5322 = sbr.rel (%p5320) target = $region48
      $region47: #{vgg_block_forward.4} parent=39 // pred_region
        %p5323 = scmp.lt.s32.totalorder %s16, 1
        %s5324 = scalar_select %p5323, %s16, 1
        %s5325 = smul.addr %s5324, 2
        %s5326 = scalar_lea.vmem %s3, %s5325
      $region48: #{vgg_block_forward.4} parent=39 // pred_fallthru
        _
    $region40: #{vgg_block_forward.4} parent=5 // pred_fallthru
      _
  $region6: #{vgg_block_forward.4} parent=0 // loop_footer
    %s14 = sadd.s32 1, %s10
  $region7: #{vgg_block_forward.4} parent=0 // loop_footer_branch
    %9 = sbr.rel target = $region3
  $region8: #{vgg_block_forward.4} parent=0 // loop_exit
    _

</llo_original>
